<compile_context>
chip_gen: v6e
topology: v6e:2x2x1
jax: 0.10.0
libtpu: 0.0.40
codegen_flags: <defaults>
</compile_context>

<pallas_src>
import functools

import jax
import jax.numpy as jnp
from jax.experimental import pallas as pl
from jax.experimental.pallas import tpu as pltpu


def _round8(c):
    return max(8, ((c + 7) // 8) * 8)


def _revealnet_kernel(*refs, H, W, W_pad, L_buf, chans_p, n_layers):
    """Fully fused RevealNet forward for one batch element.

    Ref layout (all spatial axes flattened as lane index r*W_pad + c, where
    buffer row r / col c correspond to image pixel (r-1, c-1); halo = zeros):
      refs[0]              x_ref   (1, c0, L_buf)       bf16 input, halo pre-zeroed
      refs[1 : 1+L]        w_refs  (9, cout_l, cin_l)   bf16 per-tap transposed weights
      refs[1+L]            s_ref   (L, cmax, 1)         f32 folded BN scale
      refs[2+L]            b_ref   (L, cmax, 1)         f32 folded bias
      refs[3+L]            mask    (1, H*W_pad)         f32 1.0 on valid (w < W) lanes
      refs[4+L]            o_ref   (1, c_last, H*W_pad) f32 sigmoid output
      refs[5+L], refs[6+L] buf_a/b (cmax, L_buf)        bf16 ping-pong activations
    """
    HW_pad = H * W_pad
    x_ref = refs[0]
    w_refs = refs[1:1 + n_layers]
    s_ref = refs[1 + n_layers]
    b_ref = refs[2 + n_layers]
    mask_ref = refs[3 + n_layers]
    o_ref = refs[4 + n_layers]
    buf_a = refs[5 + n_layers]
    buf_b = refs[6 + n_layers]

    cmax = buf_a.shape[0]
    # Zero only the halo strips of the ping-pong buffers (top halo row + first
    # interior row's left-halo lane; bottom halo row + slack tail).  The lanes
    # [W_pad+1, (H+1)*W_pad+1) are fully rewritten by every layer's store.
    # Deliberately NOT guarded by program_id (scratch is per-core on megacore).
    top_w = W_pad + 8
    bot_start = (H + 1) * W_pad
    bot_w = L_buf - bot_start
    for buf in (buf_a, buf_b):
        buf[:, pl.ds(0, top_w)] = jnp.zeros((cmax, top_w), buf.dtype)
        buf[:, pl.ds(bot_start, bot_w)] = jnp.zeros((cmax, bot_w), buf.dtype)

    mask = mask_ref[...]                       # (1, HW_pad) f32, hoisted out of the loop
    bufs = (buf_a, buf_b)
    src = x_ref[0]                             # (c0, L_buf) bf16

    for layer in range(n_layers):
        cin, cout = chans_p[layer], chans_p[layer + 1]
        w_ref = w_refs[layer]

        # 9 accumulating per-tap matmuls; every tap is a pure lane shift.
        acc = jnp.zeros((cout, HW_pad), jnp.float32)
        for t in range(9):
            dy, dx = divmod(t, 3)
            shift = dy * W_pad + dx
            tap = src[:, shift:shift + HW_pad]                      # (cin, HW_pad)
            acc = acc + jnp.dot(w_ref[t], tap,
                                preferred_element_type=jnp.float32)

        # f32 epilogue: folded BN scale/bias (+conv bias), then activation.
        y = acc * s_ref[layer][:cout] + b_ref[layer][:cout]
        if layer == n_layers - 1:
            o_ref[0] = jax.nn.sigmoid(y)       # (cout, HW_pad), lane-dense store
        else:
            # ReLU, then zero the pad / halo lanes so the stored block also
            # re-establishes the halo-zero invariant of the destination buffer.
            y = jnp.maximum(y, 0.0) * mask
            dst = bufs[layer % 2]
            dst[pl.ds(0, cout), pl.ds(W_pad + 1, HW_pad)] = y.astype(dst.dtype)
            src = dst[pl.ds(0, cout), :]       # (cout, L_buf) source for next layer


def _pack_params(params, chans_p):
    """Per-layer packing at true (8-rounded) widths.

    Returns:
      w_list : list of (9, cout_p, cin_p) bf16  -- per-tap transposed weights
      s_all  : (L, cmax, 1) f32                 -- folded BN scale (0 in pad rows)
      b_all  : (L, cmax, 1) f32                 -- folded bias      (0 in pad rows)
    """
    cs = max(chans_p)
    L = len(params)
    w_list, s_rows, b_rows = [], [], []
    for i, p in enumerate(params):
        w = p["w"]                                        # (3, 3, cin, cout) HWIO
        cin, cout = w.shape[2], w.shape[3]
        cin_p, cout_p = chans_p[i], chans_p[i + 1]
        wt = jnp.transpose(w, (0, 1, 3, 2)).reshape(9, cout, cin)   # (tap, cout, cin)
        wp = jnp.zeros((9, cout_p, cin_p), jnp.float32).at[:, :cout, :cin].set(wt)
        w_list.append(wp.astype(jnp.bfloat16))
        s_rows.append(jnp.zeros((cs,), jnp.float32).at[:cout].set(p["scale"]))
        b_rows.append(jnp.zeros((cs,), jnp.float32).at[:cout].set(p["bias"]))
    s_all = jnp.stack(s_rows).reshape(L, cs, 1)
    b_all = jnp.stack(b_rows).reshape(L, cs, 1)
    return w_list, s_all, b_all


def reveal_net_forward(x_nchw, params):
    """RevealNet forward. Input/output NCHW (PyTorch convention)."""
    N, nc, H, W = x_nchw.shape
    L = len(params)

    chans = [nc] + [p["w"].shape[3] for p in params]
    chans_p = [_round8(c) for c in chans]
    cs = max(chans_p)

    W_pad = ((W + 2 + 7) // 8) * 8            # lanes per padded image row (>= W+2)
    HW_pad = H * W_pad                        # matmul N dim (lane-dense: 384 here)
    L_buf = (H + 3) * W_pad                   # (H+2) rows + slack so every tap slice is in-bounds

    w_list, s_all, b_all = _pack_params(params, chans_p)

    # Build the channel-major, flattened-spatial, halo-padded input slab.
    c0 = chans_p[0]
    xp = jnp.zeros((N, c0, H + 2, W_pad), jnp.float32)
    xp = xp.at[:, :nc, 1:H + 1, 1:W + 1].set(x_nchw.astype(jnp.float32))
    xp = xp.reshape(N, c0, (H + 2) * W_pad)
    xp = jnp.pad(xp, ((0, 0), (0, 0), (0, L_buf - (H + 2) * W_pad))).astype(jnp.bfloat16)

    # 1.0 on valid lanes (w < W inside each W_pad-wide row), 0.0 on pad lanes.
    mask = jnp.zeros((1, H, W_pad), jnp.float32).at[:, :, :W].set(1.0).reshape(1, HW_pad)

    kernel = functools.partial(_revealnet_kernel, H=H, W=W, W_pad=W_pad,
                               L_buf=L_buf, chans_p=tuple(chans_p), n_layers=L)

    in_specs = [pl.BlockSpec((1, c0, L_buf), lambda n: (n, 0, 0))]
    for wl in w_list:                                              # resident, DMA'd once
        in_specs.append(pl.BlockSpec(wl.shape, lambda n: (0, 0, 0)))
    in_specs += [
        pl.BlockSpec((L, cs, 1), lambda n: (0, 0, 0)),             # resident
        pl.BlockSpec((L, cs, 1), lambda n: (0, 0, 0)),             # resident
        pl.BlockSpec((1, HW_pad), lambda n: (0, 0)),               # resident
    ]

    c_last = chans_p[-1]
    out = pl.pallas_call(
        kernel,
        out_shape=jax.ShapeDtypeStruct((N, c_last, HW_pad), jnp.float32),
        grid=(N,),
        in_specs=in_specs,
        out_specs=pl.BlockSpec((1, c_last, HW_pad), lambda n: (n, 0, 0)),
        scratch_shapes=[
            pltpu.VMEM((cs, L_buf), jnp.bfloat16),
            pltpu.VMEM((cs, L_buf), jnp.bfloat16),
        ],
        compiler_params=pltpu.CompilerParams(dimension_semantics=("parallel",)),
    )(xp, *w_list, s_all, b_all, mask)

    # (N, c_last, H*W_pad) is already channel-major: reshape + slice to NCHW.
    out = out.reshape(N, c_last, H, W_pad)[:, :nc, :, :W]
    return out


def init_params(key, nc, nhf):
    """Deterministic synthetic params.  BatchNorm is applied in eval mode with
    running stats; BN affine + running stats + conv bias are folded into one
    per-channel (scale, bias) pair applied after the conv."""
    chans = [nc, nhf, nhf * 2, nhf * 4, nhf * 2, nhf, nc]
    eps = 1e-5
    params = []
    for i in range(6):
        cin, cout = chans[i], chans[i + 1]
        key, kw, kb, kg, kbe, km, kv = jax.random.split(key, 7)
        w = jax.random.normal(kw, (3, 3, cin, cout), jnp.float32) / jnp.sqrt(9.0 * cin)
        b = 0.01 * jax.random.normal(kb, (cout,), jnp.float32)
        if i < 5:  # layers followed by BatchNorm2d
            gamma = 1.0 + 0.1 * jax.random.normal(kg, (cout,), jnp.float32)
            beta = 0.1 * jax.random.normal(kbe, (cout,), jnp.float32)
            rmean = 0.1 * jax.random.normal(km, (cout,), jnp.float32)
            rvar = 1.0 + 0.1 * jax.random.uniform(kv, (cout,), jnp.float32)
            s = gamma / jnp.sqrt(rvar + eps)
            scale = s
            bias = b * s + (beta - rmean * s)
        else:      # final conv: no BN, just conv bias (sigmoid applied in-kernel)
            scale = jnp.ones((cout,), jnp.float32)
            bias = b
        params.append({"w": w, "scale": scale, "bias": bias})
    return params


def _reference_forward(x_nchw, params):
    """Pure-JAX reference with the same bf16-operand / f32-accumulation
    numerics as the kernel (lax conv on NHWC)."""
    x = jnp.transpose(x_nchw, (0, 2, 3, 1)).astype(jnp.bfloat16)
    n_layers = len(params)
    for i, p in enumerate(params):
        y = jax.lax.conv_general_dilated(
            x, p["w"].astype(jnp.bfloat16), window_strides=(1, 1), padding="SAME",
            dimension_numbers=("NHWC", "HWIO", "NHWC"),
            preferred_element_type=jnp.float32,
        )
        y = y * p["scale"] + p["bias"]
        if i == n_layers - 1:
            x = jax.nn.sigmoid(y)
        else:
            x = jnp.maximum(y, 0.0).astype(jnp.bfloat16)
    return jnp.transpose(x, (0, 3, 1, 2))


if __name__ == "__main__":
    # Small shapes consistent with RevealNet(nc=3, nhf=...): batch=2, 3 ch, 16x16.
    # TODO(synk): BatchNorm training-mode batch statistics are not implemented
    # (eval-mode running stats are folded into scale/bias, matching inference).
    nc, nhf = 3, 16
    N, H, W = 2, 16, 16

    root = jax.random.PRNGKey(0)
    k_params, k_x = jax.random.split(root)
    params = init_params(k_params, nc, nhf)
    x = jax.random.uniform(k_x, (N, nc, H, W), jnp.float32)  # NCHW, like PyTorch

    out = jax.block_until_ready(reveal_net_forward(x, params))
    assert out.shape == (N, nc, H, W), out.shape

    ref = jax.block_until_ready(_reference_forward(x, params))
    assert jnp.allclose(out, ref, atol=1e-2, rtol=1e-2), "mismatch vs reference"

    print("KERNEL_OK")
</pallas_src>

<mosaic_0001>
module attributes {stable_mosaic.version = 11 : i64} {
  func.func @_revealnet_kernel(%arg0: i32, %arg1: memref<1x8x456xbf16, #tpu.memory_space<vmem>>, %arg2: memref<9x16x8xbf16, #tpu.memory_space<vmem>>, %arg3: memref<9x32x16xbf16, #tpu.memory_space<vmem>>, %arg4: memref<9x64x32xbf16, #tpu.memory_space<vmem>>, %arg5: memref<9x32x64xbf16, #tpu.memory_space<vmem>>, %arg6: memref<9x16x32xbf16, #tpu.memory_space<vmem>>, %arg7: memref<9x8x16xbf16, #tpu.memory_space<vmem>>, %arg8: memref<6x64x1xf32, #tpu.memory_space<vmem>>, %arg9: memref<6x64x1xf32, #tpu.memory_space<vmem>>, %arg10: memref<1x384xf32, #tpu.memory_space<vmem>>, %arg11: memref<1x8x384xf32, #tpu.memory_space<vmem>>, %arg12: memref<64x456xbf16, #tpu.memory_space<vmem>>, %arg13: memref<64x456xbf16, #tpu.memory_space<vmem>>) attributes {dimension_semantics = [#tpu.dimension_semantics<parallel>], iteration_bounds = array<i64: 2>, scalar_prefetch = 0 : i64, scratch_operands = 2 : i64, tpu.core_type = #tpu.core_type<tc>, window_params = [{transform_indices = @transform_0, window_bounds = array<i64: 1, 8, 456>}, {pipeline_mode = #tpu.pipeline_mode<synchronous>, transform_indices = @transform_1, window_bounds = array<i64: 9, 16, 8>}, {pipeline_mode = #tpu.pipeline_mode<synchronous>, transform_indices = @transform_2, window_bounds = array<i64: 9, 32, 16>}, {pipeline_mode = #tpu.pipeline_mode<synchronous>, transform_indices = @transform_3, window_bounds = array<i64: 9, 64, 32>}, {pipeline_mode = #tpu.pipeline_mode<synchronous>, transform_indices = @transform_4, window_bounds = array<i64: 9, 32, 64>}, {pipeline_mode = #tpu.pipeline_mode<synchronous>, transform_indices = @transform_5, window_bounds = array<i64: 9, 16, 32>}, {pipeline_mode = #tpu.pipeline_mode<synchronous>, transform_indices = @transform_6, window_bounds = array<i64: 9, 8, 16>}, {pipeline_mode = #tpu.pipeline_mode<synchronous>, transform_indices = @transform_7, window_bounds = array<i64: 6, 64, 1>}, {pipeline_mode = #tpu.pipeline_mode<synchronous>, transform_indices = @transform_8, window_bounds = array<i64: 6, 64, 1>}, {pipeline_mode = #tpu.pipeline_mode<synchronous>, transform_indices = @transform_9, window_bounds = array<i64: 1, 384>}, {transform_indices = @transform_10, window_bounds = array<i64: 1, 8, 384>}]} {
    %cst = arith.constant 0.000000e+00 : bf16
    %0 = vector.broadcast %cst : bf16 to vector<64x32xbf16>
    %c0 = arith.constant 0 : index
    %c0_0 = arith.constant 0 : index
    %1 = vector.load %arg12[%c0, %c0_0] : memref<64x456xbf16, #tpu.memory_space<vmem>>, vector<64x32xbf16>
    tpu.vector_store %arg12[%c0, %c0_0], %0 {strides = array<i32>} : memref<64x456xbf16, #tpu.memory_space<vmem>>, vector<64x32xbf16>,
    %cst_1 = arith.constant 0.000000e+00 : bf16
    %2 = vector.broadcast %cst_1 : bf16 to vector<64x48xbf16>
    %c0_2 = arith.constant 0 : index
    %c408 = arith.constant 408 : index
    %3 = vector.load %arg12[%c0_2, %c408] : memref<64x456xbf16, #tpu.memory_space<vmem>>, vector<64x48xbf16>
    tpu.vector_store %arg12[%c0_2, %c408], %2 {strides = array<i32>} : memref<64x456xbf16, #tpu.memory_space<vmem>>, vector<64x48xbf16>,
    %cst_3 = arith.constant 0.000000e+00 : bf16
    %4 = vector.broadcast %cst_3 : bf16 to vector<64x32xbf16>
    %c0_4 = arith.constant 0 : index
    %c0_5 = arith.constant 0 : index
    %5 = vector.load %arg13[%c0_4, %c0_5] : memref<64x456xbf16, #tpu.memory_space<vmem>>, vector<64x32xbf16>
    tpu.vector_store %arg13[%c0_4, %c0_5], %4 {strides = array<i32>} : memref<64x456xbf16, #tpu.memory_space<vmem>>, vector<64x32xbf16>,
    %cst_6 = arith.constant 0.000000e+00 : bf16
    %6 = vector.broadcast %cst_6 : bf16 to vector<64x48xbf16>
    %c0_7 = arith.constant 0 : index
    %c408_8 = arith.constant 408 : index
    %7 = vector.load %arg13[%c0_7, %c408_8] : memref<64x456xbf16, #tpu.memory_space<vmem>>, vector<64x48xbf16>
    tpu.vector_store %arg13[%c0_7, %c408_8], %6 {strides = array<i32>} : memref<64x456xbf16, #tpu.memory_space<vmem>>, vector<64x48xbf16>,
    %c0_9 = arith.constant 0 : index
    %c0_10 = arith.constant 0 : index
    %8 = vector.load %arg10[%c0_9, %c0_10] : memref<1x384xf32, #tpu.memory_space<vmem>>, vector<1x384xf32>
    %c0_11 = arith.constant 0 : index
    %c0_12 = arith.constant 0 : index
    %c0_13 = arith.constant 0 : index
    %9 = vector.load %arg1[%c0_11, %c0_12, %c0_13] : memref<1x8x456xbf16, #tpu.memory_space<vmem>>, vector<1x8x456xbf16>
    %10 = vector.shape_cast %9 : vector<1x8x456xbf16> to vector<8x456xbf16>
    %cst_14 = arith.constant 0.000000e+00 : f32
    %11 = vector.broadcast %cst_14 : f32 to vector<16x384xf32>
    %12 = vector.extract_strided_slice %10 {offsets = [0, 0], sizes = [8, 384], strides = [1, 1]} : vector<8x456xbf16> to vector<8x384xbf16>
    %c0_15 = arith.constant 0 : index
    %c0_16 = arith.constant 0 : index
    %c0_17 = arith.constant 0 : index
    %13 = vector.load %arg2[%c0_15, %c0_16, %c0_17] : memref<9x16x8xbf16, #tpu.memory_space<vmem>>, vector<1x16x8xbf16>
    %14 = vector.shape_cast %13 : vector<1x16x8xbf16> to vector<16x8xbf16>
    %cst_18 = arith.constant dense<0.000000e+00> : vector<16x384xf32>
    %15 = tpu.matmul %14, %12, %cst_18 {dimension_numbers = #tpu.dot_dimension_numbers<[1], [0], [0], [1], [0, 0, 1, 1], [], []>} : vector<16x8xbf16>, vector<8x384xbf16>, vector<16x384xf32> -> vector<16x384xf32>
    %16 = arith.addf %11, %15 : vector<16x384xf32>
    %17 = vector.extract_strided_slice %10 {offsets = [0, 1], sizes = [8, 384], strides = [1, 1]} : vector<8x456xbf16> to vector<8x384xbf16>
    %c1 = arith.constant 1 : index
    %c0_19 = arith.constant 0 : index
    %c0_20 = arith.constant 0 : index
    %18 = vector.load %arg2[%c1, %c0_19, %c0_20] : memref<9x16x8xbf16, #tpu.memory_space<vmem>>, vector<1x16x8xbf16>
    %19 = vector.shape_cast %18 : vector<1x16x8xbf16> to vector<16x8xbf16>
    %cst_21 = arith.constant dense<0.000000e+00> : vector<16x384xf32>
    %20 = tpu.matmul %19, %17, %cst_21 {dimension_numbers = #tpu.dot_dimension_numbers<[1], [0], [0], [1], [0, 0, 1, 1], [], []>} : vector<16x8xbf16>, vector<8x384xbf16>, vector<16x384xf32> -> vector<16x384xf32>
    %21 = arith.addf %16, %20 : vector<16x384xf32>
    %22 = vector.extract_strided_slice %10 {offsets = [0, 2], sizes = [8, 384], strides = [1, 1]} : vector<8x456xbf16> to vector<8x384xbf16>
    %c2 = arith.constant 2 : index
    %c0_22 = arith.constant 0 : index
    %c0_23 = arith.constant 0 : index
    %23 = vector.load %arg2[%c2, %c0_22, %c0_23] : memref<9x16x8xbf16, #tpu.memory_space<vmem>>, vector<1x16x8xbf16>
    %24 = vector.shape_cast %23 : vector<1x16x8xbf16> to vector<16x8xbf16>
    %cst_24 = arith.constant dense<0.000000e+00> : vector<16x384xf32>
    %25 = tpu.matmul %24, %22, %cst_24 {dimension_numbers = #tpu.dot_dimension_numbers<[1], [0], [0], [1], [0, 0, 1, 1], [], []>} : vector<16x8xbf16>, vector<8x384xbf16>, vector<16x384xf32> -> vector<16x384xf32>
    %26 = arith.addf %21, %25 : vector<16x384xf32>
    %27 = vector.extract_strided_slice %10 {offsets = [0, 24], sizes = [8, 384], strides = [1, 1]} : vector<8x456xbf16> to vector<8x384xbf16>
    %c3 = arith.constant 3 : index
    %c0_25 = arith.constant 0 : index
    %c0_26 = arith.constant 0 : index
    %28 = vector.load %arg2[%c3, %c0_25, %c0_26] : memref<9x16x8xbf16, #tpu.memory_space<vmem>>, vector<1x16x8xbf16>
    %29 = vector.shape_cast %28 : vector<1x16x8xbf16> to vector<16x8xbf16>
    %cst_27 = arith.constant dense<0.000000e+00> : vector<16x384xf32>
    %30 = tpu.matmul %29, %27, %cst_27 {dimension_numbers = #tpu.dot_dimension_numbers<[1], [0], [0], [1], [0, 0, 1, 1], [], []>} : vector<16x8xbf16>, vector<8x384xbf16>, vector<16x384xf32> -> vector<16x384xf32>
    %31 = arith.addf %26, %30 : vector<16x384xf32>
    %32 = vector.extract_strided_slice %10 {offsets = [0, 25], sizes = [8, 384], strides = [1, 1]} : vector<8x456xbf16> to vector<8x384xbf16>
    %c4 = arith.constant 4 : index
    %c0_28 = arith.constant 0 : index
    %c0_29 = arith.constant 0 : index
    %33 = vector.load %arg2[%c4, %c0_28, %c0_29] : memref<9x16x8xbf16, #tpu.memory_space<vmem>>, vector<1x16x8xbf16>
    %34 = vector.shape_cast %33 : vector<1x16x8xbf16> to vector<16x8xbf16>
    %cst_30 = arith.constant dense<0.000000e+00> : vector<16x384xf32>
    %35 = tpu.matmul %34, %32, %cst_30 {dimension_numbers = #tpu.dot_dimension_numbers<[1], [0], [0], [1], [0, 0, 1, 1], [], []>} : vector<16x8xbf16>, vector<8x384xbf16>, vector<16x384xf32> -> vector<16x384xf32>
    %36 = arith.addf %31, %35 : vector<16x384xf32>
    %37 = vector.extract_strided_slice %10 {offsets = [0, 26], sizes = [8, 384], strides = [1, 1]} : vector<8x456xbf16> to vector<8x384xbf16>
    %c5 = arith.constant 5 : index
    %c0_31 = arith.constant 0 : index
    %c0_32 = arith.constant 0 : index
    %38 = vector.load %arg2[%c5, %c0_31, %c0_32] : memref<9x16x8xbf16, #tpu.memory_space<vmem>>, vector<1x16x8xbf16>
    %39 = vector.shape_cast %38 : vector<1x16x8xbf16> to vector<16x8xbf16>
    %cst_33 = arith.constant dense<0.000000e+00> : vector<16x384xf32>
    %40 = tpu.matmul %39, %37, %cst_33 {dimension_numbers = #tpu.dot_dimension_numbers<[1], [0], [0], [1], [0, 0, 1, 1], [], []>} : vector<16x8xbf16>, vector<8x384xbf16>, vector<16x384xf32> -> vector<16x384xf32>
    %41 = arith.addf %36, %40 : vector<16x384xf32>
    %42 = vector.extract_strided_slice %10 {offsets = [0, 48], sizes = [8, 384], strides = [1, 1]} : vector<8x456xbf16> to vector<8x384xbf16>
    %c6 = arith.constant 6 : index
    %c0_34 = arith.constant 0 : index
    %c0_35 = arith.constant 0 : index
    %43 = vector.load %arg2[%c6, %c0_34, %c0_35] : memref<9x16x8xbf16, #tpu.memory_space<vmem>>, vector<1x16x8xbf16>
    %44 = vector.shape_cast %43 : vector<1x16x8xbf16> to vector<16x8xbf16>
    %cst_36 = arith.constant dense<0.000000e+00> : vector<16x384xf32>
    %45 = tpu.matmul %44, %42, %cst_36 {dimension_numbers = #tpu.dot_dimension_numbers<[1], [0], [0], [1], [0, 0, 1, 1], [], []>} : vector<16x8xbf16>, vector<8x384xbf16>, vector<16x384xf32> -> vector<16x384xf32>
    %46 = arith.addf %41, %45 : vector<16x384xf32>
    %47 = vector.extract_strided_slice %10 {offsets = [0, 49], sizes = [8, 384], strides = [1, 1]} : vector<8x456xbf16> to vector<8x384xbf16>
    %c7 = arith.constant 7 : index
    %c0_37 = arith.constant 0 : index
    %c0_38 = arith.constant 0 : index
    %48 = vector.load %arg2[%c7, %c0_37, %c0_38] : memref<9x16x8xbf16, #tpu.memory_space<vmem>>, vector<1x16x8xbf16>
    %49 = vector.shape_cast %48 : vector<1x16x8xbf16> to vector<16x8xbf16>
    %cst_39 = arith.constant dense<0.000000e+00> : vector<16x384xf32>
    %50 = tpu.matmul %49, %47, %cst_39 {dimension_numbers = #tpu.dot_dimension_numbers<[1], [0], [0], [1], [0, 0, 1, 1], [], []>} : vector<16x8xbf16>, vector<8x384xbf16>, vector<16x384xf32> -> vector<16x384xf32>
    %51 = arith.addf %46, %50 : vector<16x384xf32>
    %52 = vector.extract_strided_slice %10 {offsets = [0, 50], sizes = [8, 384], strides = [1, 1]} : vector<8x456xbf16> to vector<8x384xbf16>
    %c8 = arith.constant 8 : index
    %c0_40 = arith.constant 0 : index
    %c0_41 = arith.constant 0 : index
    %53 = vector.load %arg2[%c8, %c0_40, %c0_41] : memref<9x16x8xbf16, #tpu.memory_space<vmem>>, vector<1x16x8xbf16>
    %54 = vector.shape_cast %53 : vector<1x16x8xbf16> to vector<16x8xbf16>
    %cst_42 = arith.constant dense<0.000000e+00> : vector<16x384xf32>
    %55 = tpu.matmul %54, %52, %cst_42 {dimension_numbers = #tpu.dot_dimension_numbers<[1], [0], [0], [1], [0, 0, 1, 1], [], []>} : vector<16x8xbf16>, vector<8x384xbf16>, vector<16x384xf32> -> vector<16x384xf32>
    %56 = arith.addf %51, %55 : vector<16x384xf32>
    %c0_43 = arith.constant 0 : index
    %c0_44 = arith.constant 0 : index
    %c0_45 = arith.constant 0 : index
    %57 = vector.load %arg8[%c0_43, %c0_44, %c0_45] : memref<6x64x1xf32, #tpu.memory_space<vmem>>, vector<1x64x1xf32>
    %58 = vector.shape_cast %57 : vector<1x64x1xf32> to vector<64x1xf32>
    %59 = vector.extract_strided_slice %58 {offsets = [0, 0], sizes = [16, 1], strides = [1, 1]} : vector<64x1xf32> to vector<16x1xf32>
    %60 = vector.broadcast %59 : vector<16x1xf32> to vector<16x384xf32>
    %61 = arith.mulf %56, %60 : vector<16x384xf32>
    %c0_46 = arith.constant 0 : index
    %c0_47 = arith.constant 0 : index
    %c0_48 = arith.constant 0 : index
    %62 = vector.load %arg9[%c0_46, %c0_47, %c0_48] : memref<6x64x1xf32, #tpu.memory_space<vmem>>, vector<1x64x1xf32>
    %63 = vector.shape_cast %62 : vector<1x64x1xf32> to vector<64x1xf32>
    %64 = vector.extract_strided_slice %63 {offsets = [0, 0], sizes = [16, 1], strides = [1, 1]} : vector<64x1xf32> to vector<16x1xf32>
    %65 = vector.broadcast %64 : vector<16x1xf32> to vector<16x384xf32>
    %66 = arith.addf %61, %65 : vector<16x384xf32>
    %cst_49 = arith.constant 0.000000e+00 : f32
    %67 = vector.broadcast %cst_49 : f32 to vector<16x384xf32>
    %68 = arith.maximumf %66, %67 : vector<16x384xf32>
    %69 = vector.broadcast %8 : vector<1x384xf32> to vector<16x384xf32>
    %70 = arith.mulf %68, %69 : vector<16x384xf32>
    %71 = arith.truncf %70 : vector<16x384xf32> to vector<16x384xbf16>
    %c0_50 = arith.constant 0 : index
    %c25 = arith.constant 25 : index
    %72 = vector.load %arg12[%c0_50, %c25] : memref<64x456xbf16, #tpu.memory_space<vmem>>, vector<16x384xbf16>
    tpu.vector_store %arg12[%c0_50, %c25], %71 {strides = array<i32>} : memref<64x456xbf16, #tpu.memory_space<vmem>>, vector<16x384xbf16>,
    %c0_51 = arith.constant 0 : index
    %c0_52 = arith.constant 0 : index
    %73 = vector.load %arg12[%c0_51, %c0_52] : memref<64x456xbf16, #tpu.memory_space<vmem>>, vector<16x456xbf16>
    %cst_53 = arith.constant 0.000000e+00 : f32
    %74 = vector.broadcast %cst_53 : f32 to vector<32x384xf32>
    %75 = vector.extract_strided_slice %73 {offsets = [0, 0], sizes = [16, 384], strides = [1, 1]} : vector<16x456xbf16> to vector<16x384xbf16>
    %c0_54 = arith.constant 0 : index
    %c0_55 = arith.constant 0 : index
    %c0_56 = arith.constant 0 : index
    %76 = vector.load %arg3[%c0_54, %c0_55, %c0_56] : memref<9x32x16xbf16, #tpu.memory_space<vmem>>, vector<1x32x16xbf16>
    %77 = vector.shape_cast %76 : vector<1x32x16xbf16> to vector<32x16xbf16>
    %cst_57 = arith.constant dense<0.000000e+00> : vector<32x384xf32>
    %78 = tpu.matmul %77, %75, %cst_57 {dimension_numbers = #tpu.dot_dimension_numbers<[1], [0], [0], [1], [0, 0, 1, 1], [], []>} : vector<32x16xbf16>, vector<16x384xbf16>, vector<32x384xf32> -> vector<32x384xf32>
    %79 = arith.addf %74, %78 : vector<32x384xf32>
    %80 = vector.extract_strided_slice %73 {offsets = [0, 1], sizes = [16, 384], strides = [1, 1]} : vector<16x456xbf16> to vector<16x384xbf16>
    %c1_58 = arith.constant 1 : index
    %c0_59 = arith.constant 0 : index
    %c0_60 = arith.constant 0 : index
    %81 = vector.load %arg3[%c1_58, %c0_59, %c0_60] : memref<9x32x16xbf16, #tpu.memory_space<vmem>>, vector<1x32x16xbf16>
    %82 = vector.shape_cast %81 : vector<1x32x16xbf16> to vector<32x16xbf16>
    %cst_61 = arith.constant dense<0.000000e+00> : vector<32x384xf32>
    %83 = tpu.matmul %82, %80, %cst_61 {dimension_numbers = #tpu.dot_dimension_numbers<[1], [0], [0], [1], [0, 0, 1, 1], [], []>} : vector<32x16xbf16>, vector<16x384xbf16>, vector<32x384xf32> -> vector<32x384xf32>
    %84 = arith.addf %79, %83 : vector<32x384xf32>
    %85 = vector.extract_strided_slice %73 {offsets = [0, 2], sizes = [16, 384], strides = [1, 1]} : vector<16x456xbf16> to vector<16x384xbf16>
    %c2_62 = arith.constant 2 : index
    %c0_63 = arith.constant 0 : index
    %c0_64 = arith.constant 0 : index
    %86 = vector.load %arg3[%c2_62, %c0_63, %c0_64] : memref<9x32x16xbf16, #tpu.memory_space<vmem>>, vector<1x32x16xbf16>
    %87 = vector.shape_cast %86 : vector<1x32x16xbf16> to vector<32x16xbf16>
    %cst_65 = arith.constant dense<0.000000e+00> : vector<32x384xf32>
    %88 = tpu.matmul %87, %85, %cst_65 {dimension_numbers = #tpu.dot_dimension_numbers<[1], [0], [0], [1], [0, 0, 1, 1], [], []>} : vector<32x16xbf16>, vector<16x384xbf16>, vector<32x384xf32> -> vector<32x384xf32>
    %89 = arith.addf %84, %88 : vector<32x384xf32>
    %90 = vector.extract_strided_slice %73 {offsets = [0, 24], sizes = [16, 384], strides = [1, 1]} : vector<16x456xbf16> to vector<16x384xbf16>
    %c3_66 = arith.constant 3 : index
    %c0_67 = arith.constant 0 : index
    %c0_68 = arith.constant 0 : index
    %91 = vector.load %arg3[%c3_66, %c0_67, %c0_68] : memref<9x32x16xbf16, #tpu.memory_space<vmem>>, vector<1x32x16xbf16>
    %92 = vector.shape_cast %91 : vector<1x32x16xbf16> to vector<32x16xbf16>
    %cst_69 = arith.constant dense<0.000000e+00> : vector<32x384xf32>
    %93 = tpu.matmul %92, %90, %cst_69 {dimension_numbers = #tpu.dot_dimension_numbers<[1], [0], [0], [1], [0, 0, 1, 1], [], []>} : vector<32x16xbf16>, vector<16x384xbf16>, vector<32x384xf32> -> vector<32x384xf32>
    %94 = arith.addf %89, %93 : vector<32x384xf32>
    %95 = vector.extract_strided_slice %73 {offsets = [0, 25], sizes = [16, 384], strides = [1, 1]} : vector<16x456xbf16> to vector<16x384xbf16>
    %c4_70 = arith.constant 4 : index
    %c0_71 = arith.constant 0 : index
    %c0_72 = arith.constant 0 : index
    %96 = vector.load %arg3[%c4_70, %c0_71, %c0_72] : memref<9x32x16xbf16, #tpu.memory_space<vmem>>, vector<1x32x16xbf16>
    %97 = vector.shape_cast %96 : vector<1x32x16xbf16> to vector<32x16xbf16>
    %cst_73 = arith.constant dense<0.000000e+00> : vector<32x384xf32>
    %98 = tpu.matmul %97, %95, %cst_73 {dimension_numbers = #tpu.dot_dimension_numbers<[1], [0], [0], [1], [0, 0, 1, 1], [], []>} : vector<32x16xbf16>, vector<16x384xbf16>, vector<32x384xf32> -> vector<32x384xf32>
    %99 = arith.addf %94, %98 : vector<32x384xf32>
    %100 = vector.extract_strided_slice %73 {offsets = [0, 26], sizes = [16, 384], strides = [1, 1]} : vector<16x456xbf16> to vector<16x384xbf16>
    %c5_74 = arith.constant 5 : index
    %c0_75 = arith.constant 0 : index
    %c0_76 = arith.constant 0 : index
    %101 = vector.load %arg3[%c5_74, %c0_75, %c0_76] : memref<9x32x16xbf16, #tpu.memory_space<vmem>>, vector<1x32x16xbf16>
    %102 = vector.shape_cast %101 : vector<1x32x16xbf16> to vector<32x16xbf16>
    %cst_77 = arith.constant dense<0.000000e+00> : vector<32x384xf32>
    %103 = tpu.matmul %102, %100, %cst_77 {dimension_numbers = #tpu.dot_dimension_numbers<[1], [0], [0], [1], [0, 0, 1, 1], [], []>} : vector<32x16xbf16>, vector<16x384xbf16>, vector<32x384xf32> -> vector<32x384xf32>
    %104 = arith.addf %99, %103 : vector<32x384xf32>
    %105 = vector.extract_strided_slice %73 {offsets = [0, 48], sizes = [16, 384], strides = [1, 1]} : vector<16x456xbf16> to vector<16x384xbf16>
    %c6_78 = arith.constant 6 : index
    %c0_79 = arith.constant 0 : index
    %c0_80 = arith.constant 0 : index
    %106 = vector.load %arg3[%c6_78, %c0_79, %c0_80] : memref<9x32x16xbf16, #tpu.memory_space<vmem>>, vector<1x32x16xbf16>
    %107 = vector.shape_cast %106 : vector<1x32x16xbf16> to vector<32x16xbf16>
    %cst_81 = arith.constant dense<0.000000e+00> : vector<32x384xf32>
    %108 = tpu.matmul %107, %105, %cst_81 {dimension_numbers = #tpu.dot_dimension_numbers<[1], [0], [0], [1], [0, 0, 1, 1], [], []>} : vector<32x16xbf16>, vector<16x384xbf16>, vector<32x384xf32> -> vector<32x384xf32>
    %109 = arith.addf %104, %108 : vector<32x384xf32>
    %110 = vector.extract_strided_slice %73 {offsets = [0, 49], sizes = [16, 384], strides = [1, 1]} : vector<16x456xbf16> to vector<16x384xbf16>
    %c7_82 = arith.constant 7 : index
    %c0_83 = arith.constant 0 : index
    %c0_84 = arith.constant 0 : index
    %111 = vector.load %arg3[%c7_82, %c0_83, %c0_84] : memref<9x32x16xbf16, #tpu.memory_space<vmem>>, vector<1x32x16xbf16>
    %112 = vector.shape_cast %111 : vector<1x32x16xbf16> to vector<32x16xbf16>
    %cst_85 = arith.constant dense<0.000000e+00> : vector<32x384xf32>
    %113 = tpu.matmul %112, %110, %cst_85 {dimension_numbers = #tpu.dot_dimension_numbers<[1], [0], [0], [1], [0, 0, 1, 1], [], []>} : vector<32x16xbf16>, vector<16x384xbf16>, vector<32x384xf32> -> vector<32x384xf32>
    %114 = arith.addf %109, %113 : vector<32x384xf32>
    %115 = vector.extract_strided_slice %73 {offsets = [0, 50], sizes = [16, 384], strides = [1, 1]} : vector<16x456xbf16> to vector<16x384xbf16>
    %c8_86 = arith.constant 8 : index
    %c0_87 = arith.constant 0 : index
    %c0_88 = arith.constant 0 : index
    %116 = vector.load %arg3[%c8_86, %c0_87, %c0_88] : memref<9x32x16xbf16, #tpu.memory_space<vmem>>, vector<1x32x16xbf16>
    %117 = vector.shape_cast %116 : vector<1x32x16xbf16> to vector<32x16xbf16>
    %cst_89 = arith.constant dense<0.000000e+00> : vector<32x384xf32>
    %118 = tpu.matmul %117, %115, %cst_89 {dimension_numbers = #tpu.dot_dimension_numbers<[1], [0], [0], [1], [0, 0, 1, 1], [], []>} : vector<32x16xbf16>, vector<16x384xbf16>, vector<32x384xf32> -> vector<32x384xf32>
    %119 = arith.addf %114, %118 : vector<32x384xf32>
    %c1_90 = arith.constant 1 : index
    %c0_91 = arith.constant 0 : index
    %c0_92 = arith.constant 0 : index
    %120 = vector.load %arg8[%c1_90, %c0_91, %c0_92] : memref<6x64x1xf32, #tpu.memory_space<vmem>>, vector<1x64x1xf32>
    %121 = vector.shape_cast %120 : vector<1x64x1xf32> to vector<64x1xf32>
    %122 = vector.extract_strided_slice %121 {offsets = [0, 0], sizes = [32, 1], strides = [1, 1]} : vector<64x1xf32> to vector<32x1xf32>
    %123 = vector.broadcast %122 : vector<32x1xf32> to vector<32x384xf32>
    %124 = arith.mulf %119, %123 : vector<32x384xf32>
    %c1_93 = arith.constant 1 : index
    %c0_94 = arith.constant 0 : index
    %c0_95 = arith.constant 0 : index
    %125 = vector.load %arg9[%c1_93, %c0_94, %c0_95] : memref<6x64x1xf32, #tpu.memory_space<vmem>>, vector<1x64x1xf32>
    %126 = vector.shape_cast %125 : vector<1x64x1xf32> to vector<64x1xf32>
    %127 = vector.extract_strided_slice %126 {offsets = [0, 0], sizes = [32, 1], strides = [1, 1]} : vector<64x1xf32> to vector<32x1xf32>
    %128 = vector.broadcast %127 : vector<32x1xf32> to vector<32x384xf32>
    %129 = arith.addf %124, %128 : vector<32x384xf32>
    %cst_96 = arith.constant 0.000000e+00 : f32
    %130 = vector.broadcast %cst_96 : f32 to vector<32x384xf32>
    %131 = arith.maximumf %129, %130 : vector<32x384xf32>
    %132 = vector.broadcast %8 : vector<1x384xf32> to vector<32x384xf32>
    %133 = arith.mulf %131, %132 : vector<32x384xf32>
    %134 = arith.truncf %133 : vector<32x384xf32> to vector<32x384xbf16>
    %c0_97 = arith.constant 0 : index
    %c25_98 = arith.constant 25 : index
    %135 = vector.load %arg13[%c0_97, %c25_98] : memref<64x456xbf16, #tpu.memory_space<vmem>>, vector<32x384xbf16>
    tpu.vector_store %arg13[%c0_97, %c25_98], %134 {strides = array<i32>} : memref<64x456xbf16, #tpu.memory_space<vmem>>, vector<32x384xbf16>,
    %c0_99 = arith.constant 0 : index
    %c0_100 = arith.constant 0 : index
    %136 = vector.load %arg13[%c0_99, %c0_100] : memref<64x456xbf16, #tpu.memory_space<vmem>>, vector<32x456xbf16>
    %cst_101 = arith.constant 0.000000e+00 : f32
    %137 = vector.broadcast %cst_101 : f32 to vector<64x384xf32>
    %138 = vector.extract_strided_slice %136 {offsets = [0, 0], sizes = [32, 384], strides = [1, 1]} : vector<32x456xbf16> to vector<32x384xbf16>
    %c0_102 = arith.constant 0 : index
    %c0_103 = arith.constant 0 : index
    %c0_104 = arith.constant 0 : index
    %139 = vector.load %arg4[%c0_102, %c0_103, %c0_104] : memref<9x64x32xbf16, #tpu.memory_space<vmem>>, vector<1x64x32xbf16>
    %140 = vector.shape_cast %139 : vector<1x64x32xbf16> to vector<64x32xbf16>
    %cst_105 = arith.constant dense<0.000000e+00> : vector<64x384xf32>
    %141 = tpu.matmul %140, %138, %cst_105 {dimension_numbers = #tpu.dot_dimension_numbers<[1], [0], [0], [1], [0, 0, 1, 1], [], []>} : vector<64x32xbf16>, vector<32x384xbf16>, vector<64x384xf32> -> vector<64x384xf32>
    %142 = arith.addf %137, %141 : vector<64x384xf32>
    %143 = vector.extract_strided_slice %136 {offsets = [0, 1], sizes = [32, 384], strides = [1, 1]} : vector<32x456xbf16> to vector<32x384xbf16>
    %c1_106 = arith.constant 1 : index
    %c0_107 = arith.constant 0 : index
    %c0_108 = arith.constant 0 : index
    %144 = vector.load %arg4[%c1_106, %c0_107, %c0_108] : memref<9x64x32xbf16, #tpu.memory_space<vmem>>, vector<1x64x32xbf16>
    %145 = vector.shape_cast %144 : vector<1x64x32xbf16> to vector<64x32xbf16>
    %cst_109 = arith.constant dense<0.000000e+00> : vector<64x384xf32>
    %146 = tpu.matmul %145, %143, %cst_109 {dimension_numbers = #tpu.dot_dimension_numbers<[1], [0], [0], [1], [0, 0, 1, 1], [], []>} : vector<64x32xbf16>, vector<32x384xbf16>, vector<64x384xf32> -> vector<64x384xf32>
    %147 = arith.addf %142, %146 : vector<64x384xf32>
    %148 = vector.extract_strided_slice %136 {offsets = [0, 2], sizes = [32, 384], strides = [1, 1]} : vector<32x456xbf16> to vector<32x384xbf16>
    %c2_110 = arith.constant 2 : index
    %c0_111 = arith.constant 0 : index
    %c0_112 = arith.constant 0 : index
    %149 = vector.load %arg4[%c2_110, %c0_111, %c0_112] : memref<9x64x32xbf16, #tpu.memory_space<vmem>>, vector<1x64x32xbf16>
    %150 = vector.shape_cast %149 : vector<1x64x32xbf16> to vector<64x32xbf16>
    %cst_113 = arith.constant dense<0.000000e+00> : vector<64x384xf32>
    %151 = tpu.matmul %150, %148, %cst_113 {dimension_numbers = #tpu.dot_dimension_numbers<[1], [0], [0], [1], [0, 0, 1, 1], [], []>} : vector<64x32xbf16>, vector<32x384xbf16>, vector<64x384xf32> -> vector<64x384xf32>
    %152 = arith.addf %147, %151 : vector<64x384xf32>
    %153 = vector.extract_strided_slice %136 {offsets = [0, 24], sizes = [32, 384], strides = [1, 1]} : vector<32x456xbf16> to vector<32x384xbf16>
    %c3_114 = arith.constant 3 : index
    %c0_115 = arith.constant 0 : index
    %c0_116 = arith.constant 0 : index
    %154 = vector.load %arg4[%c3_114, %c0_115, %c0_116] : memref<9x64x32xbf16, #tpu.memory_space<vmem>>, vector<1x64x32xbf16>
    %155 = vector.shape_cast %154 : vector<1x64x32xbf16> to vector<64x32xbf16>
    %cst_117 = arith.constant dense<0.000000e+00> : vector<64x384xf32>
    %156 = tpu.matmul %155, %153, %cst_117 {dimension_numbers = #tpu.dot_dimension_numbers<[1], [0], [0], [1], [0, 0, 1, 1], [], []>} : vector<64x32xbf16>, vector<32x384xbf16>, vector<64x384xf32> -> vector<64x384xf32>
    %157 = arith.addf %152, %156 : vector<64x384xf32>
    %158 = vector.extract_strided_slice %136 {offsets = [0, 25], sizes = [32, 384], strides = [1, 1]} : vector<32x456xbf16> to vector<32x384xbf16>
    %c4_118 = arith.constant 4 : index
    %c0_119 = arith.constant 0 : index
    %c0_120 = arith.constant 0 : index
    %159 = vector.load %arg4[%c4_118, %c0_119, %c0_120] : memref<9x64x32xbf16, #tpu.memory_space<vmem>>, vector<1x64x32xbf16>
    %160 = vector.shape_cast %159 : vector<1x64x32xbf16> to vector<64x32xbf16>
    %cst_121 = arith.constant dense<0.000000e+00> : vector<64x384xf32>
    %161 = tpu.matmul %160, %158, %cst_121 {dimension_numbers = #tpu.dot_dimension_numbers<[1], [0], [0], [1], [0, 0, 1, 1], [], []>} : vector<64x32xbf16>, vector<32x384xbf16>, vector<64x384xf32> -> vector<64x384xf32>
    %162 = arith.addf %157, %161 : vector<64x384xf32>
    %163 = vector.extract_strided_slice %136 {offsets = [0, 26], sizes = [32, 384], strides = [1, 1]} : vector<32x456xbf16> to vector<32x384xbf16>
    %c5_122 = arith.constant 5 : index
    %c0_123 = arith.constant 0 : index
    %c0_124 = arith.constant 0 : index
    %164 = vector.load %arg4[%c5_122, %c0_123, %c0_124] : memref<9x64x32xbf16, #tpu.memory_space<vmem>>, vector<1x64x32xbf16>
    %165 = vector.shape_cast %164 : vector<1x64x32xbf16> to vector<64x32xbf16>
    %cst_125 = arith.constant dense<0.000000e+00> : vector<64x384xf32>
    %166 = tpu.matmul %165, %163, %cst_125 {dimension_numbers = #tpu.dot_dimension_numbers<[1], [0], [0], [1], [0, 0, 1, 1], [], []>} : vector<64x32xbf16>, vector<32x384xbf16>, vector<64x384xf32> -> vector<64x384xf32>
    %167 = arith.addf %162, %166 : vector<64x384xf32>
    %168 = vector.extract_strided_slice %136 {offsets = [0, 48], sizes = [32, 384], strides = [1, 1]} : vector<32x456xbf16> to vector<32x384xbf16>
    %c6_126 = arith.constant 6 : index
    %c0_127 = arith.constant 0 : index
    %c0_128 = arith.constant 0 : index
    %169 = vector.load %arg4[%c6_126, %c0_127, %c0_128] : memref<9x64x32xbf16, #tpu.memory_space<vmem>>, vector<1x64x32xbf16>
    %170 = vector.shape_cast %169 : vector<1x64x32xbf16> to vector<64x32xbf16>
    %cst_129 = arith.constant dense<0.000000e+00> : vector<64x384xf32>
    %171 = tpu.matmul %170, %168, %cst_129 {dimension_numbers = #tpu.dot_dimension_numbers<[1], [0], [0], [1], [0, 0, 1, 1], [], []>} : vector<64x32xbf16>, vector<32x384xbf16>, vector<64x384xf32> -> vector<64x384xf32>
    %172 = arith.addf %167, %171 : vector<64x384xf32>
    %173 = vector.extract_strided_slice %136 {offsets = [0, 49], sizes = [32, 384], strides = [1, 1]} : vector<32x456xbf16> to vector<32x384xbf16>
    %c7_130 = arith.constant 7 : index
    %c0_131 = arith.constant 0 : index
    %c0_132 = arith.constant 0 : index
    %174 = vector.load %arg4[%c7_130, %c0_131, %c0_132] : memref<9x64x32xbf16, #tpu.memory_space<vmem>>, vector<1x64x32xbf16>
    %175 = vector.shape_cast %174 : vector<1x64x32xbf16> to vector<64x32xbf16>
    %cst_133 = arith.constant dense<0.000000e+00> : vector<64x384xf32>
    %176 = tpu.matmul %175, %173, %cst_133 {dimension_numbers = #tpu.dot_dimension_numbers<[1], [0], [0], [1], [0, 0, 1, 1], [], []>} : vector<64x32xbf16>, vector<32x384xbf16>, vector<64x384xf32> -> vector<64x384xf32>
    %177 = arith.addf %172, %176 : vector<64x384xf32>
    %178 = vector.extract_strided_slice %136 {offsets = [0, 50], sizes = [32, 384], strides = [1, 1]} : vector<32x456xbf16> to vector<32x384xbf16>
    %c8_134 = arith.constant 8 : index
    %c0_135 = arith.constant 0 : index
    %c0_136 = arith.constant 0 : index
    %179 = vector.load %arg4[%c8_134, %c0_135, %c0_136] : memref<9x64x32xbf16, #tpu.memory_space<vmem>>, vector<1x64x32xbf16>
    %180 = vector.shape_cast %179 : vector<1x64x32xbf16> to vector<64x32xbf16>
    %cst_137 = arith.constant dense<0.000000e+00> : vector<64x384xf32>
    %181 = tpu.matmul %180, %178, %cst_137 {dimension_numbers = #tpu.dot_dimension_numbers<[1], [0], [0], [1], [0, 0, 1, 1], [], []>} : vector<64x32xbf16>, vector<32x384xbf16>, vector<64x384xf32> -> vector<64x384xf32>
    %182 = arith.addf %177, %181 : vector<64x384xf32>
    %c2_138 = arith.constant 2 : index
    %c0_139 = arith.constant 0 : index
    %c0_140 = arith.constant 0 : index
    %183 = vector.load %arg8[%c2_138, %c0_139, %c0_140] : memref<6x64x1xf32, #tpu.memory_space<vmem>>, vector<1x64x1xf32>
    %184 = vector.shape_cast %183 : vector<1x64x1xf32> to vector<64x1xf32>
    %185 = vector.broadcast %184 : vector<64x1xf32> to vector<64x384xf32>
    %186 = arith.mulf %182, %185 : vector<64x384xf32>
    %c2_141 = arith.constant 2 : index
    %c0_142 = arith.constant 0 : index
    %c0_143 = arith.constant 0 : index
    %187 = vector.load %arg9[%c2_141, %c0_142, %c0_143] : memref<6x64x1xf32, #tpu.memory_space<vmem>>, vector<1x64x1xf32>
    %188 = vector.shape_cast %187 : vector<1x64x1xf32> to vector<64x1xf32>
    %189 = vector.broadcast %188 : vector<64x1xf32> to vector<64x384xf32>
    %190 = arith.addf %186, %189 : vector<64x384xf32>
    %cst_144 = arith.constant 0.000000e+00 : f32
    %191 = vector.broadcast %cst_144 : f32 to vector<64x384xf32>
    %192 = arith.maximumf %190, %191 : vector<64x384xf32>
    %193 = vector.broadcast %8 : vector<1x384xf32> to vector<64x384xf32>
    %194 = arith.mulf %192, %193 : vector<64x384xf32>
    %195 = arith.truncf %194 : vector<64x384xf32> to vector<64x384xbf16>
    %c0_145 = arith.constant 0 : index
    %c25_146 = arith.constant 25 : index
    %196 = vector.load %arg12[%c0_145, %c25_146] : memref<64x456xbf16, #tpu.memory_space<vmem>>, vector<64x384xbf16>
    tpu.vector_store %arg12[%c0_145, %c25_146], %195 {strides = array<i32>} : memref<64x456xbf16, #tpu.memory_space<vmem>>, vector<64x384xbf16>,
    %c0_147 = arith.constant 0 : index
    %c0_148 = arith.constant 0 : index
    %197 = vector.load %arg12[%c0_147, %c0_148] : memref<64x456xbf16, #tpu.memory_space<vmem>>, vector<64x456xbf16>
    %cst_149 = arith.constant 0.000000e+00 : f32
    %198 = vector.broadcast %cst_149 : f32 to vector<32x384xf32>
    %199 = vector.extract_strided_slice %197 {offsets = [0, 0], sizes = [64, 384], strides = [1, 1]} : vector<64x456xbf16> to vector<64x384xbf16>
    %c0_150 = arith.constant 0 : index
    %c0_151 = arith.constant 0 : index
    %c0_152 = arith.constant 0 : index
    %200 = vector.load %arg5[%c0_150, %c0_151, %c0_152] : memref<9x32x64xbf16, #tpu.memory_space<vmem>>, vector<1x32x64xbf16>
    %201 = vector.shape_cast %200 : vector<1x32x64xbf16> to vector<32x64xbf16>
    %cst_153 = arith.constant dense<0.000000e+00> : vector<32x384xf32>
    %202 = tpu.matmul %201, %199, %cst_153 {dimension_numbers = #tpu.dot_dimension_numbers<[1], [0], [0], [1], [0, 0, 1, 1], [], []>} : vector<32x64xbf16>, vector<64x384xbf16>, vector<32x384xf32> -> vector<32x384xf32>
    %203 = arith.addf %198, %202 : vector<32x384xf32>
    %204 = vector.extract_strided_slice %197 {offsets = [0, 1], sizes = [64, 384], strides = [1, 1]} : vector<64x456xbf16> to vector<64x384xbf16>
    %c1_154 = arith.constant 1 : index
    %c0_155 = arith.constant 0 : index
    %c0_156 = arith.constant 0 : index
    %205 = vector.load %arg5[%c1_154, %c0_155, %c0_156] : memref<9x32x64xbf16, #tpu.memory_space<vmem>>, vector<1x32x64xbf16>
    %206 = vector.shape_cast %205 : vector<1x32x64xbf16> to vector<32x64xbf16>
    %cst_157 = arith.constant dense<0.000000e+00> : vector<32x384xf32>
    %207 = tpu.matmul %206, %204, %cst_157 {dimension_numbers = #tpu.dot_dimension_numbers<[1], [0], [0], [1], [0, 0, 1, 1], [], []>} : vector<32x64xbf16>, vector<64x384xbf16>, vector<32x384xf32> -> vector<32x384xf32>
    %208 = arith.addf %203, %207 : vector<32x384xf32>
    %209 = vector.extract_strided_slice %197 {offsets = [0, 2], sizes = [64, 384], strides = [1, 1]} : vector<64x456xbf16> to vector<64x384xbf16>
    %c2_158 = arith.constant 2 : index
    %c0_159 = arith.constant 0 : index
    %c0_160 = arith.constant 0 : index
    %210 = vector.load %arg5[%c2_158, %c0_159, %c0_160] : memref<9x32x64xbf16, #tpu.memory_space<vmem>>, vector<1x32x64xbf16>
    %211 = vector.shape_cast %210 : vector<1x32x64xbf16> to vector<32x64xbf16>
    %cst_161 = arith.constant dense<0.000000e+00> : vector<32x384xf32>
    %212 = tpu.matmul %211, %209, %cst_161 {dimension_numbers = #tpu.dot_dimension_numbers<[1], [0], [0], [1], [0, 0, 1, 1], [], []>} : vector<32x64xbf16>, vector<64x384xbf16>, vector<32x384xf32> -> vector<32x384xf32>
    %213 = arith.addf %208, %212 : vector<32x384xf32>
    %214 = vector.extract_strided_slice %197 {offsets = [0, 24], sizes = [64, 384], strides = [1, 1]} : vector<64x456xbf16> to vector<64x384xbf16>
    %c3_162 = arith.constant 3 : index
    %c0_163 = arith.constant 0 : index
    %c0_164 = arith.constant 0 : index
    %215 = vector.load %arg5[%c3_162, %c0_163, %c0_164] : memref<9x32x64xbf16, #tpu.memory_space<vmem>>, vector<1x32x64xbf16>
    %216 = vector.shape_cast %215 : vector<1x32x64xbf16> to vector<32x64xbf16>
    %cst_165 = arith.constant dense<0.000000e+00> : vector<32x384xf32>
    %217 = tpu.matmul %216, %214, %cst_165 {dimension_numbers = #tpu.dot_dimension_numbers<[1], [0], [0], [1], [0, 0, 1, 1], [], []>} : vector<32x64xbf16>, vector<64x384xbf16>, vector<32x384xf32> -> vector<32x384xf32>
    %218 = arith.addf %213, %217 : vector<32x384xf32>
    %219 = vector.extract_strided_slice %197 {offsets = [0, 25], sizes = [64, 384], strides = [1, 1]} : vector<64x456xbf16> to vector<64x384xbf16>
    %c4_166 = arith.constant 4 : index
    %c0_167 = arith.constant 0 : index
    %c0_168 = arith.constant 0 : index
    %220 = vector.load %arg5[%c4_166, %c0_167, %c0_168] : memref<9x32x64xbf16, #tpu.memory_space<vmem>>, vector<1x32x64xbf16>
    %221 = vector.shape_cast %220 : vector<1x32x64xbf16> to vector<32x64xbf16>
    %cst_169 = arith.constant dense<0.000000e+00> : vector<32x384xf32>
    %222 = tpu.matmul %221, %219, %cst_169 {dimension_numbers = #tpu.dot_dimension_numbers<[1], [0], [0], [1], [0, 0, 1, 1], [], []>} : vector<32x64xbf16>, vector<64x384xbf16>, vector<32x384xf32> -> vector<32x384xf32>
    %223 = arith.addf %218, %222 : vector<32x384xf32>
    %224 = vector.extract_strided_slice %197 {offsets = [0, 26], sizes = [64, 384], strides = [1, 1]} : vector<64x456xbf16> to vector<64x384xbf16>
    %c5_170 = arith.constant 5 : index
    %c0_171 = arith.constant 0 : index
    %c0_172 = arith.constant 0 : index
    %225 = vector.load %arg5[%c5_170, %c0_171, %c0_172] : memref<9x32x64xbf16, #tpu.memory_space<vmem>>, vector<1x32x64xbf16>
    %226 = vector.shape_cast %225 : vector<1x32x64xbf16> to vector<32x64xbf16>
    %cst_173 = arith.constant dense<0.000000e+00> : vector<32x384xf32>
    %227 = tpu.matmul %226, %224, %cst_173 {dimension_numbers = #tpu.dot_dimension_numbers<[1], [0], [0], [1], [0, 0, 1, 1], [], []>} : vector<32x64xbf16>, vector<64x384xbf16>, vector<32x384xf32> -> vector<32x384xf32>
    %228 = arith.addf %223, %227 : vector<32x384xf32>
    %229 = vector.extract_strided_slice %197 {offsets = [0, 48], sizes = [64, 384], strides = [1, 1]} : vector<64x456xbf16> to vector<64x384xbf16>
    %c6_174 = arith.constant 6 : index
    %c0_175 = arith.constant 0 : index
    %c0_176 = arith.constant 0 : index
    %230 = vector.load %arg5[%c6_174, %c0_175, %c0_176] : memref<9x32x64xbf16, #tpu.memory_space<vmem>>, vector<1x32x64xbf16>
    %231 = vector.shape_cast %230 : vector<1x32x64xbf16> to vector<32x64xbf16>
    %cst_177 = arith.constant dense<0.000000e+00> : vector<32x384xf32>
    %232 = tpu.matmul %231, %229, %cst_177 {dimension_numbers = #tpu.dot_dimension_numbers<[1], [0], [0], [1], [0, 0, 1, 1], [], []>} : vector<32x64xbf16>, vector<64x384xbf16>, vector<32x384xf32> -> vector<32x384xf32>
    %233 = arith.addf %228, %232 : vector<32x384xf32>
    %234 = vector.extract_strided_slice %197 {offsets = [0, 49], sizes = [64, 384], strides = [1, 1]} : vector<64x456xbf16> to vector<64x384xbf16>
    %c7_178 = arith.constant 7 : index
    %c0_179 = arith.constant 0 : index
    %c0_180 = arith.constant 0 : index
    %235 = vector.load %arg5[%c7_178, %c0_179, %c0_180] : memref<9x32x64xbf16, #tpu.memory_space<vmem>>, vector<1x32x64xbf16>
    %236 = vector.shape_cast %235 : vector<1x32x64xbf16> to vector<32x64xbf16>
    %cst_181 = arith.constant dense<0.000000e+00> : vector<32x384xf32>
    %237 = tpu.matmul %236, %234, %cst_181 {dimension_numbers = #tpu.dot_dimension_numbers<[1], [0], [0], [1], [0, 0, 1, 1], [], []>} : vector<32x64xbf16>, vector<64x384xbf16>, vector<32x384xf32> -> vector<32x384xf32>
    %238 = arith.addf %233, %237 : vector<32x384xf32>
    %239 = vector.extract_strided_slice %197 {offsets = [0, 50], sizes = [64, 384], strides = [1, 1]} : vector<64x456xbf16> to vector<64x384xbf16>
    %c8_182 = arith.constant 8 : index
    %c0_183 = arith.constant 0 : index
    %c0_184 = arith.constant 0 : index
    %240 = vector.load %arg5[%c8_182, %c0_183, %c0_184] : memref<9x32x64xbf16, #tpu.memory_space<vmem>>, vector<1x32x64xbf16>
    %241 = vector.shape_cast %240 : vector<1x32x64xbf16> to vector<32x64xbf16>
    %cst_185 = arith.constant dense<0.000000e+00> : vector<32x384xf32>
    %242 = tpu.matmul %241, %239, %cst_185 {dimension_numbers = #tpu.dot_dimension_numbers<[1], [0], [0], [1], [0, 0, 1, 1], [], []>} : vector<32x64xbf16>, vector<64x384xbf16>, vector<32x384xf32> -> vector<32x384xf32>
    %243 = arith.addf %238, %242 : vector<32x384xf32>
    %c3_186 = arith.constant 3 : index
    %c0_187 = arith.constant 0 : index
    %c0_188 = arith.constant 0 : index
    %244 = vector.load %arg8[%c3_186, %c0_187, %c0_188] : memref<6x64x1xf32, #tpu.memory_space<vmem>>, vector<1x64x1xf32>
    %245 = vector.shape_cast %244 : vector<1x64x1xf32> to vector<64x1xf32>
    %246 = vector.extract_strided_slice %245 {offsets = [0, 0], sizes = [32, 1], strides = [1, 1]} : vector<64x1xf32> to vector<32x1xf32>
    %247 = vector.broadcast %246 : vector<32x1xf32> to vector<32x384xf32>
    %248 = arith.mulf %243, %247 : vector<32x384xf32>
    %c3_189 = arith.constant 3 : index
    %c0_190 = arith.constant 0 : index
    %c0_191 = arith.constant 0 : index
    %249 = vector.load %arg9[%c3_189, %c0_190, %c0_191] : memref<6x64x1xf32, #tpu.memory_space<vmem>>, vector<1x64x1xf32>
    %250 = vector.shape_cast %249 : vector<1x64x1xf32> to vector<64x1xf32>
    %251 = vector.extract_strided_slice %250 {offsets = [0, 0], sizes = [32, 1], strides = [1, 1]} : vector<64x1xf32> to vector<32x1xf32>
    %252 = vector.broadcast %251 : vector<32x1xf32> to vector<32x384xf32>
    %253 = arith.addf %248, %252 : vector<32x384xf32>
    %cst_192 = arith.constant 0.000000e+00 : f32
    %254 = vector.broadcast %cst_192 : f32 to vector<32x384xf32>
    %255 = arith.maximumf %253, %254 : vector<32x384xf32>
    %256 = vector.broadcast %8 : vector<1x384xf32> to vector<32x384xf32>
    %257 = arith.mulf %255, %256 : vector<32x384xf32>
    %258 = arith.truncf %257 : vector<32x384xf32> to vector<32x384xbf16>
    %c0_193 = arith.constant 0 : index
    %c25_194 = arith.constant 25 : index
    %259 = vector.load %arg13[%c0_193, %c25_194] : memref<64x456xbf16, #tpu.memory_space<vmem>>, vector<32x384xbf16>
    tpu.vector_store %arg13[%c0_193, %c25_194], %258 {strides = array<i32>} : memref<64x456xbf16, #tpu.memory_space<vmem>>, vector<32x384xbf16>,
    %c0_195 = arith.constant 0 : index
    %c0_196 = arith.constant 0 : index
    %260 = vector.load %arg13[%c0_195, %c0_196] : memref<64x456xbf16, #tpu.memory_space<vmem>>, vector<32x456xbf16>
    %cst_197 = arith.constant 0.000000e+00 : f32
    %261 = vector.broadcast %cst_197 : f32 to vector<16x384xf32>
    %262 = vector.extract_strided_slice %260 {offsets = [0, 0], sizes = [32, 384], strides = [1, 1]} : vector<32x456xbf16> to vector<32x384xbf16>
    %c0_198 = arith.constant 0 : index
    %c0_199 = arith.constant 0 : index
    %c0_200 = arith.constant 0 : index
    %263 = vector.load %arg6[%c0_198, %c0_199, %c0_200] : memref<9x16x32xbf16, #tpu.memory_space<vmem>>, vector<1x16x32xbf16>
    %264 = vector.shape_cast %263 : vector<1x16x32xbf16> to vector<16x32xbf16>
    %cst_201 = arith.constant dense<0.000000e+00> : vector<16x384xf32>
    %265 = tpu.matmul %264, %262, %cst_201 {dimension_numbers = #tpu.dot_dimension_numbers<[1], [0], [0], [1], [0, 0, 1, 1], [], []>} : vector<16x32xbf16>, vector<32x384xbf16>, vector<16x384xf32> -> vector<16x384xf32>
    %266 = arith.addf %261, %265 : vector<16x384xf32>
    %267 = vector.extract_strided_slice %260 {offsets = [0, 1], sizes = [32, 384], strides = [1, 1]} : vector<32x456xbf16> to vector<32x384xbf16>
    %c1_202 = arith.constant 1 : index
    %c0_203 = arith.constant 0 : index
    %c0_204 = arith.constant 0 : index
    %268 = vector.load %arg6[%c1_202, %c0_203, %c0_204] : memref<9x16x32xbf16, #tpu.memory_space<vmem>>, vector<1x16x32xbf16>
    %269 = vector.shape_cast %268 : vector<1x16x32xbf16> to vector<16x32xbf16>
    %cst_205 = arith.constant dense<0.000000e+00> : vector<16x384xf32>
    %270 = tpu.matmul %269, %267, %cst_205 {dimension_numbers = #tpu.dot_dimension_numbers<[1], [0], [0], [1], [0, 0, 1, 1], [], []>} : vector<16x32xbf16>, vector<32x384xbf16>, vector<16x384xf32> -> vector<16x384xf32>
    %271 = arith.addf %266, %270 : vector<16x384xf32>
    %272 = vector.extract_strided_slice %260 {offsets = [0, 2], sizes = [32, 384], strides = [1, 1]} : vector<32x456xbf16> to vector<32x384xbf16>
    %c2_206 = arith.constant 2 : index
    %c0_207 = arith.constant 0 : index
    %c0_208 = arith.constant 0 : index
    %273 = vector.load %arg6[%c2_206, %c0_207, %c0_208] : memref<9x16x32xbf16, #tpu.memory_space<vmem>>, vector<1x16x32xbf16>
    %274 = vector.shape_cast %273 : vector<1x16x32xbf16> to vector<16x32xbf16>
    %cst_209 = arith.constant dense<0.000000e+00> : vector<16x384xf32>
    %275 = tpu.matmul %274, %272, %cst_209 {dimension_numbers = #tpu.dot_dimension_numbers<[1], [0], [0], [1], [0, 0, 1, 1], [], []>} : vector<16x32xbf16>, vector<32x384xbf16>, vector<16x384xf32> -> vector<16x384xf32>
    %276 = arith.addf %271, %275 : vector<16x384xf32>
    %277 = vector.extract_strided_slice %260 {offsets = [0, 24], sizes = [32, 384], strides = [1, 1]} : vector<32x456xbf16> to vector<32x384xbf16>
    %c3_210 = arith.constant 3 : index
    %c0_211 = arith.constant 0 : index
    %c0_212 = arith.constant 0 : index
    %278 = vector.load %arg6[%c3_210, %c0_211, %c0_212] : memref<9x16x32xbf16, #tpu.memory_space<vmem>>, vector<1x16x32xbf16>
    %279 = vector.shape_cast %278 : vector<1x16x32xbf16> to vector<16x32xbf16>
    %cst_213 = arith.constant dense<0.000000e+00> : vector<16x384xf32>
    %280 = tpu.matmul %279, %277, %cst_213 {dimension_numbers = #tpu.dot_dimension_numbers<[1], [0], [0], [1], [0, 0, 1, 1], [], []>} : vector<16x32xbf16>, vector<32x384xbf16>, vector<16x384xf32> -> vector<16x384xf32>
    %281 = arith.addf %276, %280 : vector<16x384xf32>
    %282 = vector.extract_strided_slice %260 {offsets = [0, 25], sizes = [32, 384], strides = [1, 1]} : vector<32x456xbf16> to vector<32x384xbf16>
    %c4_214 = arith.constant 4 : index
    %c0_215 = arith.constant 0 : index
    %c0_216 = arith.constant 0 : index
    %283 = vector.load %arg6[%c4_214, %c0_215, %c0_216] : memref<9x16x32xbf16, #tpu.memory_space<vmem>>, vector<1x16x32xbf16>
    %284 = vector.shape_cast %283 : vector<1x16x32xbf16> to vector<16x32xbf16>
    %cst_217 = arith.constant dense<0.000000e+00> : vector<16x384xf32>
    %285 = tpu.matmul %284, %282, %cst_217 {dimension_numbers = #tpu.dot_dimension_numbers<[1], [0], [0], [1], [0, 0, 1, 1], [], []>} : vector<16x32xbf16>, vector<32x384xbf16>, vector<16x384xf32> -> vector<16x384xf32>
    %286 = arith.addf %281, %285 : vector<16x384xf32>
    %287 = vector.extract_strided_slice %260 {offsets = [0, 26], sizes = [32, 384], strides = [1, 1]} : vector<32x456xbf16> to vector<32x384xbf16>
    %c5_218 = arith.constant 5 : index
    %c0_219 = arith.constant 0 : index
    %c0_220 = arith.constant 0 : index
    %288 = vector.load %arg6[%c5_218, %c0_219, %c0_220] : memref<9x16x32xbf16, #tpu.memory_space<vmem>>, vector<1x16x32xbf16>
    %289 = vector.shape_cast %288 : vector<1x16x32xbf16> to vector<16x32xbf16>
    %cst_221 = arith.constant dense<0.000000e+00> : vector<16x384xf32>
    %290 = tpu.matmul %289, %287, %cst_221 {dimension_numbers = #tpu.dot_dimension_numbers<[1], [0], [0], [1], [0, 0, 1, 1], [], []>} : vector<16x32xbf16>, vector<32x384xbf16>, vector<16x384xf32> -> vector<16x384xf32>
    %291 = arith.addf %286, %290 : vector<16x384xf32>
    %292 = vector.extract_strided_slice %260 {offsets = [0, 48], sizes = [32, 384], strides = [1, 1]} : vector<32x456xbf16> to vector<32x384xbf16>
    %c6_222 = arith.constant 6 : index
    %c0_223 = arith.constant 0 : index
    %c0_224 = arith.constant 0 : index
    %293 = vector.load %arg6[%c6_222, %c0_223, %c0_224] : memref<9x16x32xbf16, #tpu.memory_space<vmem>>, vector<1x16x32xbf16>
    %294 = vector.shape_cast %293 : vector<1x16x32xbf16> to vector<16x32xbf16>
    %cst_225 = arith.constant dense<0.000000e+00> : vector<16x384xf32>
    %295 = tpu.matmul %294, %292, %cst_225 {dimension_numbers = #tpu.dot_dimension_numbers<[1], [0], [0], [1], [0, 0, 1, 1], [], []>} : vector<16x32xbf16>, vector<32x384xbf16>, vector<16x384xf32> -> vector<16x384xf32>
    %296 = arith.addf %291, %295 : vector<16x384xf32>
    %297 = vector.extract_strided_slice %260 {offsets = [0, 49], sizes = [32, 384], strides = [1, 1]} : vector<32x456xbf16> to vector<32x384xbf16>
    %c7_226 = arith.constant 7 : index
    %c0_227 = arith.constant 0 : index
    %c0_228 = arith.constant 0 : index
    %298 = vector.load %arg6[%c7_226, %c0_227, %c0_228] : memref<9x16x32xbf16, #tpu.memory_space<vmem>>, vector<1x16x32xbf16>
    %299 = vector.shape_cast %298 : vector<1x16x32xbf16> to vector<16x32xbf16>
    %cst_229 = arith.constant dense<0.000000e+00> : vector<16x384xf32>
    %300 = tpu.matmul %299, %297, %cst_229 {dimension_numbers = #tpu.dot_dimension_numbers<[1], [0], [0], [1], [0, 0, 1, 1], [], []>} : vector<16x32xbf16>, vector<32x384xbf16>, vector<16x384xf32> -> vector<16x384xf32>
    %301 = arith.addf %296, %300 : vector<16x384xf32>
    %302 = vector.extract_strided_slice %260 {offsets = [0, 50], sizes = [32, 384], strides = [1, 1]} : vector<32x456xbf16> to vector<32x384xbf16>
    %c8_230 = arith.constant 8 : index
    %c0_231 = arith.constant 0 : index
    %c0_232 = arith.constant 0 : index
    %303 = vector.load %arg6[%c8_230, %c0_231, %c0_232] : memref<9x16x32xbf16, #tpu.memory_space<vmem>>, vector<1x16x32xbf16>
    %304 = vector.shape_cast %303 : vector<1x16x32xbf16> to vector<16x32xbf16>
    %cst_233 = arith.constant dense<0.000000e+00> : vector<16x384xf32>
    %305 = tpu.matmul %304, %302, %cst_233 {dimension_numbers = #tpu.dot_dimension_numbers<[1], [0], [0], [1], [0, 0, 1, 1], [], []>} : vector<16x32xbf16>, vector<32x384xbf16>, vector<16x384xf32> -> vector<16x384xf32>
    %306 = arith.addf %301, %305 : vector<16x384xf32>
    %c4_234 = arith.constant 4 : index
    %c0_235 = arith.constant 0 : index
    %c0_236 = arith.constant 0 : index
    %307 = vector.load %arg8[%c4_234, %c0_235, %c0_236] : memref<6x64x1xf32, #tpu.memory_space<vmem>>, vector<1x64x1xf32>
    %308 = vector.shape_cast %307 : vector<1x64x1xf32> to vector<64x1xf32>
    %309 = vector.extract_strided_slice %308 {offsets = [0, 0], sizes = [16, 1], strides = [1, 1]} : vector<64x1xf32> to vector<16x1xf32>
    %310 = vector.broadcast %309 : vector<16x1xf32> to vector<16x384xf32>
    %311 = arith.mulf %306, %310 : vector<16x384xf32>
    %c4_237 = arith.constant 4 : index
    %c0_238 = arith.constant 0 : index
    %c0_239 = arith.constant 0 : index
    %312 = vector.load %arg9[%c4_237, %c0_238, %c0_239] : memref<6x64x1xf32, #tpu.memory_space<vmem>>, vector<1x64x1xf32>
    %313 = vector.shape_cast %312 : vector<1x64x1xf32> to vector<64x1xf32>
    %314 = vector.extract_strided_slice %313 {offsets = [0, 0], sizes = [16, 1], strides = [1, 1]} : vector<64x1xf32> to vector<16x1xf32>
    %315 = vector.broadcast %314 : vector<16x1xf32> to vector<16x384xf32>
    %316 = arith.addf %311, %315 : vector<16x384xf32>
    %cst_240 = arith.constant 0.000000e+00 : f32
    %317 = vector.broadcast %cst_240 : f32 to vector<16x384xf32>
    %318 = arith.maximumf %316, %317 : vector<16x384xf32>
    %319 = vector.broadcast %8 : vector<1x384xf32> to vector<16x384xf32>
    %320 = arith.mulf %318, %319 : vector<16x384xf32>
    %321 = arith.truncf %320 : vector<16x384xf32> to vector<16x384xbf16>
    %c0_241 = arith.constant 0 : index
    %c25_242 = arith.constant 25 : index
    %322 = vector.load %arg12[%c0_241, %c25_242] : memref<64x456xbf16, #tpu.memory_space<vmem>>, vector<16x384xbf16>
    tpu.vector_store %arg12[%c0_241, %c25_242], %321 {strides = array<i32>} : memref<64x456xbf16, #tpu.memory_space<vmem>>, vector<16x384xbf16>,
    %c0_243 = arith.constant 0 : index
    %c0_244 = arith.constant 0 : index
    %323 = vector.load %arg12[%c0_243, %c0_244] : memref<64x456xbf16, #tpu.memory_space<vmem>>, vector<16x456xbf16>
    %cst_245 = arith.constant 0.000000e+00 : f32
    %324 = vector.broadcast %cst_245 : f32 to vector<8x384xf32>
    %325 = vector.extract_strided_slice %323 {offsets = [0, 0], sizes = [16, 384], strides = [1, 1]} : vector<16x456xbf16> to vector<16x384xbf16>
    %c0_246 = arith.constant 0 : index
    %c0_247 = arith.constant 0 : index
    %c0_248 = arith.constant 0 : index
    %326 = vector.load %arg7[%c0_246, %c0_247, %c0_248] : memref<9x8x16xbf16, #tpu.memory_space<vmem>>, vector<1x8x16xbf16>
    %327 = vector.shape_cast %326 : vector<1x8x16xbf16> to vector<8x16xbf16>
    %cst_249 = arith.constant dense<0.000000e+00> : vector<8x384xf32>
    %328 = tpu.matmul %327, %325, %cst_249 {dimension_numbers = #tpu.dot_dimension_numbers<[1], [0], [0], [1], [0, 0, 1, 1], [], []>} : vector<8x16xbf16>, vector<16x384xbf16>, vector<8x384xf32> -> vector<8x384xf32>
    %329 = arith.addf %324, %328 : vector<8x384xf32>
    %330 = vector.extract_strided_slice %323 {offsets = [0, 1], sizes = [16, 384], strides = [1, 1]} : vector<16x456xbf16> to vector<16x384xbf16>
    %c1_250 = arith.constant 1 : index
    %c0_251 = arith.constant 0 : index
    %c0_252 = arith.constant 0 : index
    %331 = vector.load %arg7[%c1_250, %c0_251, %c0_252] : memref<9x8x16xbf16, #tpu.memory_space<vmem>>, vector<1x8x16xbf16>
    %332 = vector.shape_cast %331 : vector<1x8x16xbf16> to vector<8x16xbf16>
    %cst_253 = arith.constant dense<0.000000e+00> : vector<8x384xf32>
    %333 = tpu.matmul %332, %330, %cst_253 {dimension_numbers = #tpu.dot_dimension_numbers<[1], [0], [0], [1], [0, 0, 1, 1], [], []>} : vector<8x16xbf16>, vector<16x384xbf16>, vector<8x384xf32> -> vector<8x384xf32>
    %334 = arith.addf %329, %333 : vector<8x384xf32>
    %335 = vector.extract_strided_slice %323 {offsets = [0, 2], sizes = [16, 384], strides = [1, 1]} : vector<16x456xbf16> to vector<16x384xbf16>
    %c2_254 = arith.constant 2 : index
    %c0_255 = arith.constant 0 : index
    %c0_256 = arith.constant 0 : index
    %336 = vector.load %arg7[%c2_254, %c0_255, %c0_256] : memref<9x8x16xbf16, #tpu.memory_space<vmem>>, vector<1x8x16xbf16>
    %337 = vector.shape_cast %336 : vector<1x8x16xbf16> to vector<8x16xbf16>
    %cst_257 = arith.constant dense<0.000000e+00> : vector<8x384xf32>
    %338 = tpu.matmul %337, %335, %cst_257 {dimension_numbers = #tpu.dot_dimension_numbers<[1], [0], [0], [1], [0, 0, 1, 1], [], []>} : vector<8x16xbf16>, vector<16x384xbf16>, vector<8x384xf32> -> vector<8x384xf32>
    %339 = arith.addf %334, %338 : vector<8x384xf32>
    %340 = vector.extract_strided_slice %323 {offsets = [0, 24], sizes = [16, 384], strides = [1, 1]} : vector<16x456xbf16> to vector<16x384xbf16>
    %c3_258 = arith.constant 3 : index
    %c0_259 = arith.constant 0 : index
    %c0_260 = arith.constant 0 : index
    %341 = vector.load %arg7[%c3_258, %c0_259, %c0_260] : memref<9x8x16xbf16, #tpu.memory_space<vmem>>, vector<1x8x16xbf16>
    %342 = vector.shape_cast %341 : vector<1x8x16xbf16> to vector<8x16xbf16>
    %cst_261 = arith.constant dense<0.000000e+00> : vector<8x384xf32>
    %343 = tpu.matmul %342, %340, %cst_261 {dimension_numbers = #tpu.dot_dimension_numbers<[1], [0], [0], [1], [0, 0, 1, 1], [], []>} : vector<8x16xbf16>, vector<16x384xbf16>, vector<8x384xf32> -> vector<8x384xf32>
    %344 = arith.addf %339, %343 : vector<8x384xf32>
    %345 = vector.extract_strided_slice %323 {offsets = [0, 25], sizes = [16, 384], strides = [1, 1]} : vector<16x456xbf16> to vector<16x384xbf16>
    %c4_262 = arith.constant 4 : index
    %c0_263 = arith.constant 0 : index
    %c0_264 = arith.constant 0 : index
    %346 = vector.load %arg7[%c4_262, %c0_263, %c0_264] : memref<9x8x16xbf16, #tpu.memory_space<vmem>>, vector<1x8x16xbf16>
    %347 = vector.shape_cast %346 : vector<1x8x16xbf16> to vector<8x16xbf16>
    %cst_265 = arith.constant dense<0.000000e+00> : vector<8x384xf32>
    %348 = tpu.matmul %347, %345, %cst_265 {dimension_numbers = #tpu.dot_dimension_numbers<[1], [0], [0], [1], [0, 0, 1, 1], [], []>} : vector<8x16xbf16>, vector<16x384xbf16>, vector<8x384xf32> -> vector<8x384xf32>
    %349 = arith.addf %344, %348 : vector<8x384xf32>
    %350 = vector.extract_strided_slice %323 {offsets = [0, 26], sizes = [16, 384], strides = [1, 1]} : vector<16x456xbf16> to vector<16x384xbf16>
    %c5_266 = arith.constant 5 : index
    %c0_267 = arith.constant 0 : index
    %c0_268 = arith.constant 0 : index
    %351 = vector.load %arg7[%c5_266, %c0_267, %c0_268] : memref<9x8x16xbf16, #tpu.memory_space<vmem>>, vector<1x8x16xbf16>
    %352 = vector.shape_cast %351 : vector<1x8x16xbf16> to vector<8x16xbf16>
    %cst_269 = arith.constant dense<0.000000e+00> : vector<8x384xf32>
    %353 = tpu.matmul %352, %350, %cst_269 {dimension_numbers = #tpu.dot_dimension_numbers<[1], [0], [0], [1], [0, 0, 1, 1], [], []>} : vector<8x16xbf16>, vector<16x384xbf16>, vector<8x384xf32> -> vector<8x384xf32>
    %354 = arith.addf %349, %353 : vector<8x384xf32>
    %355 = vector.extract_strided_slice %323 {offsets = [0, 48], sizes = [16, 384], strides = [1, 1]} : vector<16x456xbf16> to vector<16x384xbf16>
    %c6_270 = arith.constant 6 : index
    %c0_271 = arith.constant 0 : index
    %c0_272 = arith.constant 0 : index
    %356 = vector.load %arg7[%c6_270, %c0_271, %c0_272] : memref<9x8x16xbf16, #tpu.memory_space<vmem>>, vector<1x8x16xbf16>
    %357 = vector.shape_cast %356 : vector<1x8x16xbf16> to vector<8x16xbf16>
    %cst_273 = arith.constant dense<0.000000e+00> : vector<8x384xf32>
    %358 = tpu.matmul %357, %355, %cst_273 {dimension_numbers = #tpu.dot_dimension_numbers<[1], [0], [0], [1], [0, 0, 1, 1], [], []>} : vector<8x16xbf16>, vector<16x384xbf16>, vector<8x384xf32> -> vector<8x384xf32>
    %359 = arith.addf %354, %358 : vector<8x384xf32>
    %360 = vector.extract_strided_slice %323 {offsets = [0, 49], sizes = [16, 384], strides = [1, 1]} : vector<16x456xbf16> to vector<16x384xbf16>
    %c7_274 = arith.constant 7 : index
    %c0_275 = arith.constant 0 : index
    %c0_276 = arith.constant 0 : index
    %361 = vector.load %arg7[%c7_274, %c0_275, %c0_276] : memref<9x8x16xbf16, #tpu.memory_space<vmem>>, vector<1x8x16xbf16>
    %362 = vector.shape_cast %361 : vector<1x8x16xbf16> to vector<8x16xbf16>
    %cst_277 = arith.constant dense<0.000000e+00> : vector<8x384xf32>
    %363 = tpu.matmul %362, %360, %cst_277 {dimension_numbers = #tpu.dot_dimension_numbers<[1], [0], [0], [1], [0, 0, 1, 1], [], []>} : vector<8x16xbf16>, vector<16x384xbf16>, vector<8x384xf32> -> vector<8x384xf32>
    %364 = arith.addf %359, %363 : vector<8x384xf32>
    %365 = vector.extract_strided_slice %323 {offsets = [0, 50], sizes = [16, 384], strides = [1, 1]} : vector<16x456xbf16> to vector<16x384xbf16>
    %c8_278 = arith.constant 8 : index
    %c0_279 = arith.constant 0 : index
    %c0_280 = arith.constant 0 : index
    %366 = vector.load %arg7[%c8_278, %c0_279, %c0_280] : memref<9x8x16xbf16, #tpu.memory_space<vmem>>, vector<1x8x16xbf16>
    %367 = vector.shape_cast %366 : vector<1x8x16xbf16> to vector<8x16xbf16>
    %cst_281 = arith.constant dense<0.000000e+00> : vector<8x384xf32>
    %368 = tpu.matmul %367, %365, %cst_281 {dimension_numbers = #tpu.dot_dimension_numbers<[1], [0], [0], [1], [0, 0, 1, 1], [], []>} : vector<8x16xbf16>, vector<16x384xbf16>, vector<8x384xf32> -> vector<8x384xf32>
    %369 = arith.addf %364, %368 : vector<8x384xf32>
    %c5_282 = arith.constant 5 : index
    %c0_283 = arith.constant 0 : index
    %c0_284 = arith.constant 0 : index
    %370 = vector.load %arg8[%c5_282, %c0_283, %c0_284] : memref<6x64x1xf32, #tpu.memory_space<vmem>>, vector<1x64x1xf32>
    %371 = vector.shape_cast %370 : vector<1x64x1xf32> to vector<64x1xf32>
    %372 = vector.extract_strided_slice %371 {offsets = [0, 0], sizes = [8, 1], strides = [1, 1]} : vector<64x1xf32> to vector<8x1xf32>
    %373 = vector.broadcast %372 : vector<8x1xf32> to vector<8x384xf32>
    %374 = arith.mulf %369, %373 : vector<8x384xf32>
    %c5_285 = arith.constant 5 : index
    %c0_286 = arith.constant 0 : index
    %c0_287 = arith.constant 0 : index
    %375 = vector.load %arg9[%c5_285, %c0_286, %c0_287] : memref<6x64x1xf32, #tpu.memory_space<vmem>>, vector<1x64x1xf32>
    %376 = vector.shape_cast %375 : vector<1x64x1xf32> to vector<64x1xf32>
    %377 = vector.extract_strided_slice %376 {offsets = [0, 0], sizes = [8, 1], strides = [1, 1]} : vector<64x1xf32> to vector<8x1xf32>
    %378 = vector.broadcast %377 : vector<8x1xf32> to vector<8x384xf32>
    %379 = arith.addf %374, %378 : vector<8x384xf32>
    %380 = arith.negf %379 : vector<8x384xf32>
    %381 = math.exp %380 : vector<8x384xf32>
    %cst_288 = arith.constant 1.000000e+00 : f32
    %382 = vector.broadcast %cst_288 : f32 to vector<8x384xf32>
    %383 = arith.addf %382, %381 : vector<8x384xf32>
    %384 = arith.divf %382, %383 : vector<8x384xf32>
    %c0_289 = arith.constant 0 : index
    %c0_290 = arith.constant 0 : index
    %c0_291 = arith.constant 0 : index
    %385 = vector.load %arg11[%c0_289, %c0_290, %c0_291] : memref<1x8x384xf32, #tpu.memory_space<vmem>>, vector<1x8x384xf32>
    %386 = vector.shape_cast %385 : vector<1x8x384xf32> to vector<8x384xf32>
    %387 = vector.shape_cast %384 : vector<8x384xf32> to vector<1x8x384xf32>
    tpu.vector_store %arg11[%c0_289, %c0_290, %c0_291], %387 {strides = array<i32>} : memref<1x8x384xf32, #tpu.memory_space<vmem>>, vector<1x8x384xf32>,
    return
  }
  func.func @transform_0(%arg0: i32) -> (i32, i32, i32) {
    %c0_i32 = arith.constant 0 : i32
    %c0_i32_0 = arith.constant 0 : i32
    %c0_i32_1 = arith.constant 0 : i32
    return %arg0, %c0_i32, %c0_i32_0 : i32, i32, i32
  }
  func.func @transform_1(%arg0: i32) -> (i32, i32, i32) {
    %c0_i32 = arith.constant 0 : i32
    %c0_i32_0 = arith.constant 0 : i32
    %c0_i32_1 = arith.constant 0 : i32
    %c0_i32_2 = arith.constant 0 : i32
    return %c0_i32, %c0_i32_0, %c0_i32_1 : i32, i32, i32
  }
  func.func @transform_2(%arg0: i32) -> (i32, i32, i32) {
    %c0_i32 = arith.constant 0 : i32
    %c0_i32_0 = arith.constant 0 : i32
    %c0_i32_1 = arith.constant 0 : i32
    %c0_i32_2 = arith.constant 0 : i32
    return %c0_i32, %c0_i32_0, %c0_i32_1 : i32, i32, i32
  }
  func.func @transform_3(%arg0: i32) -> (i32, i32, i32) {
    %c0_i32 = arith.constant 0 : i32
    %c0_i32_0 = arith.constant 0 : i32
    %c0_i32_1 = arith.constant 0 : i32
    %c0_i32_2 = arith.constant 0 : i32
    return %c0_i32, %c0_i32_0, %c0_i32_1 : i32, i32, i32
  }
  func.func @transform_4(%arg0: i32) -> (i32, i32, i32) {
    %c0_i32 = arith.constant 0 : i32
    %c0_i32_0 = arith.constant 0 : i32
    %c0_i32_1 = arith.constant 0 : i32
    %c0_i32_2 = arith.constant 0 : i32
    return %c0_i32, %c0_i32_0, %c0_i32_1 : i32, i32, i32
  }
  func.func @transform_5(%arg0: i32) -> (i32, i32, i32) {
    %c0_i32 = arith.constant 0 : i32
    %c0_i32_0 = arith.constant 0 : i32
    %c0_i32_1 = arith.constant 0 : i32
    %c0_i32_2 = arith.constant 0 : i32
    return %c0_i32, %c0_i32_0, %c0_i32_1 : i32, i32, i32
  }
  func.func @transform_6(%arg0: i32) -> (i32, i32, i32) {
    %c0_i32 = arith.constant 0 : i32
    %c0_i32_0 = arith.constant 0 : i32
    %c0_i32_1 = arith.constant 0 : i32
    %c0_i32_2 = arith.constant 0 : i32
    return %c0_i32, %c0_i32_0, %c0_i32_1 : i32, i32, i32
  }
  func.func @transform_7(%arg0: i32) -> (i32, i32, i32) {
    %c0_i32 = arith.constant 0 : i32
    %c0_i32_0 = arith.constant 0 : i32
    %c0_i32_1 = arith.constant 0 : i32
    %c0_i32_2 = arith.constant 0 : i32
    return %c0_i32, %c0_i32_0, %c0_i32_1 : i32, i32, i32
  }
  func.func @transform_8(%arg0: i32) -> (i32, i32, i32) {
    %c0_i32 = arith.constant 0 : i32
    %c0_i32_0 = arith.constant 0 : i32
    %c0_i32_1 = arith.constant 0 : i32
    %c0_i32_2 = arith.constant 0 : i32
    return %c0_i32, %c0_i32_0, %c0_i32_1 : i32, i32, i32
  }
  func.func @transform_9(%arg0: i32) -> (i32, i32) {
    %c0_i32 = arith.constant 0 : i32
    %c0_i32_0 = arith.constant 0 : i32
    %c0_i32_1 = arith.constant 0 : i32
    return %c0_i32, %c0_i32_0 : i32, i32
  }
  func.func @transform_10(%arg0: i32) -> (i32, i32, i32) {
    %c0_i32 = arith.constant 0 : i32
    %c0_i32_0 = arith.constant 0 : i32
    %c0_i32_1 = arith.constant 0 : i32
    return %arg0, %c0_i32, %c0_i32_0 : i32, i32, i32
  }
}

</mosaic_0001>

<llo_original>
// kernel: tpu_custom_call.1
$region0: #{tpu_custom_call.1}
  #allocation0 [shape = 'u32[]', space=smem, size = 0x4, offset = 0x4, fixed_abs, tag = 'smem constant byte address 0x4 - core index']
  #allocation1 [shape = 'u32[144,128]{1,0:T(1,128)}', space=vmem, size = 0x12000, scoped, tag = 'internal scratch']
  #allocation2 [shape = 'bf16[64,456]{1,0:T(8,128)(2,1)}', space=vmem, size = 0x10000, scoped, tag = 'scratch operand']
  #allocation3 [shape = 'bf16[64,456]{1,0:T(8,128)(2,1)}', space=vmem, size = 0x10000, scoped, tag = 'scratch operand']
  %s0 = inlined_call_operand.vmem [shape: bf16[2,8,456], index: 0, kind: input, shape index: {}]
  %s1 = inlined_call_operand.vmem [shape: bf16[9,16,8], index: 1, kind: input, shape index: {}]
  %s2 = inlined_call_operand.vmem [shape: bf16[9,32,16], index: 2, kind: input, shape index: {}]
  %s3 = inlined_call_operand.vmem [shape: bf16[9,64,32], index: 3, kind: input, shape index: {}]
  %s4 = inlined_call_operand.vmem [shape: bf16[9,32,64], index: 4, kind: input, shape index: {}]
  %s5 = inlined_call_operand.vmem [shape: bf16[9,16,32], index: 5, kind: input, shape index: {}]
  %s6 = inlined_call_operand.vmem [shape: bf16[9,8,16], index: 6, kind: input, shape index: {}]
  %s7 = inlined_call_operand.vmem [shape: f32[6,64,1], index: 7, kind: input, shape index: {}]
  %s8 = inlined_call_operand.vmem [shape: f32[6,64,1], index: 8, kind: input, shape index: {}]
  %s9 = inlined_call_operand.vmem [shape: f32[1,384], index: 9, kind: input, shape index: {}]
  %s10 = inlined_call_operand.hbm [shape: f32[2,8,384], index: 10, kind: output, shape index: {}]
  %s11 = sld [smem:[#allocation0]]
  $region73: #{tpu_custom_call.1} parent=0
    _
  %s13 = ssub.s32 1, %s11
  %s14 = scalar_select 0, %s13, %s11
  $region1: #{tpu_custom_call.1} parent=0
    #allocation4 [shape = 'u8[24576]{0}', space=vmem, size = 0x6000, scoped, tag = 'output window, operand 0']
    #allocation5 [shape = 's32[2]{0}', space=sflag, size = 0x8, scoped, tag = 'scoped memory for tpu_custom_call.1']
    %15 = vsyncpa [#allocation5], 0
    %s16 = scalar_lea.sflag [#allocation5], 1
    %17 = vsyncpa %s16, 0
    loop: start=0, step=1, limit=4
    $region2: #{tpu_custom_call.1} parent=1 // loop_pre_header
      _
    $region3: #{tpu_custom_call.1} parent=1 // loop_header
      %s19 = sphi 0, %s23
      %p20 = scmp.ge.s32.totalorder %s19, 4
      %s29 = sphi 0, %s31
      %s32 = sphi 0, %s29
      %s33 = sphi 0, %s32
      %s49 = sphi 0, %s33
      %s53 = sphi 0, %s53
      %s55 = sphi 0, %s53
      %s56 = sphi 0, %s55
      %s70 = sphi 0, %s56
      %s74 = sphi 0, %s74
      %s76 = sphi 0, %s74
      %s77 = sphi 0, %s76
      %s91 = sphi 0, %s77
      %s95 = sphi 0, %s95
      %s97 = sphi 0, %s95
      %s98 = sphi 0, %s97
      %s112 = sphi 0, %s98
      %s116 = sphi 0, %s116
      %s118 = sphi 0, %s116
      %s119 = sphi 0, %s118
      %s133 = sphi 0, %s119
      %s137 = sphi 0, %s137
      %s139 = sphi 0, %s137
      %s140 = sphi 0, %s139
      %s154 = sphi 0, %s140
      %s158 = sphi 0, %s158
      %s160 = sphi 0, %s158
      %s161 = sphi 0, %s160
      %s175 = sphi 0, %s161
      %s179 = sphi 0, %s179
      %s181 = sphi 0, %s179
      %s182 = sphi 0, %s181
      %s196 = sphi 0, %s182
      %s200 = sphi 0, %s200
      %s202 = sphi 0, %s200
      %s203 = sphi 0, %s202
      %s217 = sphi 0, %s203
      %s221 = sphi 0, %s221
      %s223 = sphi 0, %s221
      %s224 = sphi 0, %s223
      %s238 = sphi 0, %s224
      %s244 = sphi 0, %s246
      %s247 = sphi 0, %s244
      %s248 = sphi 0, %s247
      %s264 = sphi 0, %s248
    $region4: #{tpu_custom_call.1} parent=1 // loop_header_branch
      %22 = sbr.rel (%p20) target = $region8
    $region5: #{tpu_custom_call.1} parent=1 // loop_body
      %s24 = ssub.s32 %s19, 1
      %s25 = ssub.s32 %s19, 2
      %s26 = sadd.s32 %s19, 1
      %s27 = ssub.s32 %s19, %s26
      %p28 = scmp.eq.s32.totalorder %s27, 0
      %s30 = sadd.s32 %s29, 1
      %s31 = scalar_select %p28, %s29, %s30
      %p34 = pneg %p28
      %p35 = scmp.eq.s32.totalorder %s19, 1
      %p36 = por %p34, %p35
      %p37 = scmp.ne.s32.totalorder %s29, %s32
      %p38 = scmp.eq.s32.totalorder %s19, 0
      %p39 = por %p37, %p38
      %p40 = scmp.ne.s32.totalorder %s29, %s32
      %p41 = scmp.eq.s32.totalorder %s24, 1
      %p42 = por %p40, %p41
      %p43 = scmp.ne.s32.totalorder %s32, %s33
      %p44 = scmp.eq.s32.totalorder %s24, 0
      %p45 = por %p43, %p44
      %p46 = scmp.ne.s32.totalorder %s32, %s33
      %p47 = scmp.eq.s32.totalorder %s25, 1
      %p48 = por %p46, %p47
      %p50 = scmp.ne.s32.totalorder %s33, %s49
      %p51 = scmp.eq.s32.totalorder %s25, 0
      %p52 = por %p50, %p51
      %s54 = sadd.s32 %s53, 1
      %p57 = scmp.eq.s32.totalorder %s19, 1
      %p58 = scmp.ne.s32.totalorder %s53, %s55
      %p59 = scmp.eq.s32.totalorder %s19, 0
      %p60 = por %p58, %p59
      %p61 = scmp.ne.s32.totalorder %s53, %s55
      %p62 = scmp.eq.s32.totalorder %s24, 1
      %p63 = por %p61, %p62
      %p64 = scmp.ne.s32.totalorder %s55, %s56
      %p65 = scmp.eq.s32.totalorder %s24, 0
      %p66 = por %p64, %p65
      %p67 = scmp.ne.s32.totalorder %s55, %s56
      %p68 = scmp.eq.s32.totalorder %s25, 1
      %p69 = por %p67, %p68
      %p71 = scmp.ne.s32.totalorder %s56, %s70
      %p72 = scmp.eq.s32.totalorder %s25, 0
      %p73 = por %p71, %p72
      %s75 = sadd.s32 %s74, 1
      %p78 = scmp.eq.s32.totalorder %s19, 1
      %p79 = scmp.ne.s32.totalorder %s74, %s76
      %p80 = scmp.eq.s32.totalorder %s19, 0
      %p81 = por %p79, %p80
      %p82 = scmp.ne.s32.totalorder %s74, %s76
      %p83 = scmp.eq.s32.totalorder %s24, 1
      %p84 = por %p82, %p83
      %p85 = scmp.ne.s32.totalorder %s76, %s77
      %p86 = scmp.eq.s32.totalorder %s24, 0
      %p87 = por %p85, %p86
      %p88 = scmp.ne.s32.totalorder %s76, %s77
      %p89 = scmp.eq.s32.totalorder %s25, 1
      %p90 = por %p88, %p89
      %p92 = scmp.ne.s32.totalorder %s77, %s91
      %p93 = scmp.eq.s32.totalorder %s25, 0
      %p94 = por %p92, %p93
      %s96 = sadd.s32 %s95, 1
      %p99 = scmp.eq.s32.totalorder %s19, 1
      %p100 = scmp.ne.s32.totalorder %s95, %s97
      %p101 = scmp.eq.s32.totalorder %s19, 0
      %p102 = por %p100, %p101
      %p103 = scmp.ne.s32.totalorder %s95, %s97
      %p104 = scmp.eq.s32.totalorder %s24, 1
      %p105 = por %p103, %p104
      %p106 = scmp.ne.s32.totalorder %s97, %s98
      %p107 = scmp.eq.s32.totalorder %s24, 0
      %p108 = por %p106, %p107
      %p109 = scmp.ne.s32.totalorder %s97, %s98
      %p110 = scmp.eq.s32.totalorder %s25, 1
      %p111 = por %p109, %p110
      %p113 = scmp.ne.s32.totalorder %s98, %s112
      %p114 = scmp.eq.s32.totalorder %s25, 0
      %p115 = por %p113, %p114
      %s117 = sadd.s32 %s116, 1
      %p120 = scmp.eq.s32.totalorder %s19, 1
      %p121 = scmp.ne.s32.totalorder %s116, %s118
      %p122 = scmp.eq.s32.totalorder %s19, 0
      %p123 = por %p121, %p122
      %p124 = scmp.ne.s32.totalorder %s116, %s118
      %p125 = scmp.eq.s32.totalorder %s24, 1
      %p126 = por %p124, %p125
      %p127 = scmp.ne.s32.totalorder %s118, %s119
      %p128 = scmp.eq.s32.totalorder %s24, 0
      %p129 = por %p127, %p128
      %p130 = scmp.ne.s32.totalorder %s118, %s119
      %p131 = scmp.eq.s32.totalorder %s25, 1
      %p132 = por %p130, %p131
      %p134 = scmp.ne.s32.totalorder %s119, %s133
      %p135 = scmp.eq.s32.totalorder %s25, 0
      %p136 = por %p134, %p135
      %s138 = sadd.s32 %s137, 1
      %p141 = scmp.eq.s32.totalorder %s19, 1
      %p142 = scmp.ne.s32.totalorder %s137, %s139
      %p143 = scmp.eq.s32.totalorder %s19, 0
      %p144 = por %p142, %p143
      %p145 = scmp.ne.s32.totalorder %s137, %s139
      %p146 = scmp.eq.s32.totalorder %s24, 1
      %p147 = por %p145, %p146
      %p148 = scmp.ne.s32.totalorder %s139, %s140
      %p149 = scmp.eq.s32.totalorder %s24, 0
      %p150 = por %p148, %p149
      %p151 = scmp.ne.s32.totalorder %s139, %s140
      %p152 = scmp.eq.s32.totalorder %s25, 1
      %p153 = por %p151, %p152
      %p155 = scmp.ne.s32.totalorder %s140, %s154
      %p156 = scmp.eq.s32.totalorder %s25, 0
      %p157 = por %p155, %p156
      %s159 = sadd.s32 %s158, 1
      %p162 = scmp.eq.s32.totalorder %s19, 1
      %p163 = scmp.ne.s32.totalorder %s158, %s160
      %p164 = scmp.eq.s32.totalorder %s19, 0
      %p165 = por %p163, %p164
      %p166 = scmp.ne.s32.totalorder %s158, %s160
      %p167 = scmp.eq.s32.totalorder %s24, 1
      %p168 = por %p166, %p167
      %p169 = scmp.ne.s32.totalorder %s160, %s161
      %p170 = scmp.eq.s32.totalorder %s24, 0
      %p171 = por %p169, %p170
      %p172 = scmp.ne.s32.totalorder %s160, %s161
      %p173 = scmp.eq.s32.totalorder %s25, 1
      %p174 = por %p172, %p173
      %p176 = scmp.ne.s32.totalorder %s161, %s175
      %p177 = scmp.eq.s32.totalorder %s25, 0
      %p178 = por %p176, %p177
      %s180 = sadd.s32 %s179, 1
      %p183 = scmp.eq.s32.totalorder %s19, 1
      %p184 = scmp.ne.s32.totalorder %s179, %s181
      %p185 = scmp.eq.s32.totalorder %s19, 0
      %p186 = por %p184, %p185
      %p187 = scmp.ne.s32.totalorder %s179, %s181
      %p188 = scmp.eq.s32.totalorder %s24, 1
      %p189 = por %p187, %p188
      %p190 = scmp.ne.s32.totalorder %s181, %s182
      %p191 = scmp.eq.s32.totalorder %s24, 0
      %p192 = por %p190, %p191
      %p193 = scmp.ne.s32.totalorder %s181, %s182
      %p194 = scmp.eq.s32.totalorder %s25, 1
      %p195 = por %p193, %p194
      %p197 = scmp.ne.s32.totalorder %s182, %s196
      %p198 = scmp.eq.s32.totalorder %s25, 0
      %p199 = por %p197, %p198
      %s201 = sadd.s32 %s200, 1
      %p204 = scmp.eq.s32.totalorder %s19, 1
      %p205 = scmp.ne.s32.totalorder %s200, %s202
      %p206 = scmp.eq.s32.totalorder %s19, 0
      %p207 = por %p205, %p206
      %p208 = scmp.ne.s32.totalorder %s200, %s202
      %p209 = scmp.eq.s32.totalorder %s24, 1
      %p210 = por %p208, %p209
      %p211 = scmp.ne.s32.totalorder %s202, %s203
      %p212 = scmp.eq.s32.totalorder %s24, 0
      %p213 = por %p211, %p212
      %p214 = scmp.ne.s32.totalorder %s202, %s203
      %p215 = scmp.eq.s32.totalorder %s25, 1
      %p216 = por %p214, %p215
      %p218 = scmp.ne.s32.totalorder %s203, %s217
      %p219 = scmp.eq.s32.totalorder %s25, 0
      %p220 = por %p218, %p219
      %s222 = sadd.s32 %s221, 1
      %p225 = scmp.eq.s32.totalorder %s19, 1
      %p226 = scmp.ne.s32.totalorder %s221, %s223
      %p227 = scmp.eq.s32.totalorder %s19, 0
      %p228 = por %p226, %p227
      %p229 = scmp.ne.s32.totalorder %s221, %s223
      %p230 = scmp.eq.s32.totalorder %s24, 1
      %p231 = por %p229, %p230
      %p232 = scmp.ne.s32.totalorder %s223, %s224
      %p233 = scmp.eq.s32.totalorder %s24, 0
      %p234 = por %p232, %p233
      %p235 = scmp.ne.s32.totalorder %s223, %s224
      %p236 = scmp.eq.s32.totalorder %s25, 1
      %p237 = por %p235, %p236
      %p239 = scmp.ne.s32.totalorder %s224, %s238
      %p240 = scmp.eq.s32.totalorder %s25, 0
      %p241 = por %p239, %p240
      %s242 = ssub.s32 %s19, %s26
      %p243 = scmp.eq.s32.totalorder %s242, 0
      %s245 = sadd.s32 %s244, 1
      %s246 = scalar_select %p243, %s244, %s245
      %p249 = pneg %p243
      %p250 = scmp.eq.s32.totalorder %s19, 1
      %p251 = por %p249, %p250
      %p252 = scmp.ne.s32.totalorder %s244, %s247
      %p253 = scmp.eq.s32.totalorder %s19, 0
      %p254 = por %p252, %p253
      %p255 = scmp.ne.s32.totalorder %s244, %s247
      %p256 = scmp.eq.s32.totalorder %s24, 1
      %p257 = por %p255, %p256
      %p258 = scmp.ne.s32.totalorder %s247, %s248
      %p259 = scmp.eq.s32.totalorder %s24, 0
      %p260 = por %p258, %p259
      %p261 = scmp.ne.s32.totalorder %s247, %s248
      %p262 = scmp.eq.s32.totalorder %s25, 1
      %p263 = por %p261, %p262
      %p265 = scmp.ne.s32.totalorder %s248, %s264
      %p266 = scmp.eq.s32.totalorder %s25, 0
      %p267 = por %p265, %p266
      %p268 = scmp.le.s32.totalorder 1, %s19
      %p269 = scmp.lt.s32.totalorder %s19, 3
      %p270 = pnand %p268, %p269
      %p271 = pneg %p270
      // Predicated region
      $region9: #{tpu_custom_call.1} parent=5 // pred_check
        _
      $region10: #{tpu_custom_call.1} parent=5 // pred_check_branch
        %273 = sbr.rel (%p270) target = $region12
      $region11: #{tpu_custom_call.1} parent=5 // pred_region
        %s274 = ssub.s32 %s19, 1
        // Predicated region
        $region13: #{tpu_custom_call.1} parent=11 // pred_check
          %p275 = pneg %p66
        $region14: #{tpu_custom_call.1} parent=11 // pred_check_branch
          %277 = sbr.rel (%p275) target = $region16
        $region15: #{tpu_custom_call.1} parent=11 // pred_region
          _
        $region16: #{tpu_custom_call.1} parent=11 // pred_fallthru
          _
        // Predicated region
        $region17: #{tpu_custom_call.1} parent=11 // pred_check
          %p278 = pneg %p87
        $region18: #{tpu_custom_call.1} parent=11 // pred_check_branch
          %280 = sbr.rel (%p278) target = $region20
        $region19: #{tpu_custom_call.1} parent=11 // pred_region
          _
        $region20: #{tpu_custom_call.1} parent=11 // pred_fallthru
          _
        // Predicated region
        $region21: #{tpu_custom_call.1} parent=11 // pred_check
          %p281 = pneg %p108
        $region22: #{tpu_custom_call.1} parent=11 // pred_check_branch
          %283 = sbr.rel (%p281) target = $region24
        $region23: #{tpu_custom_call.1} parent=11 // pred_region
          _
        $region24: #{tpu_custom_call.1} parent=11 // pred_fallthru
          _
        // Predicated region
        $region25: #{tpu_custom_call.1} parent=11 // pred_check
          %p284 = pneg %p129
        $region26: #{tpu_custom_call.1} parent=11 // pred_check_branch
          %286 = sbr.rel (%p284) target = $region28
        $region27: #{tpu_custom_call.1} parent=11 // pred_region
          _
        $region28: #{tpu_custom_call.1} parent=11 // pred_fallthru
          _
        // Predicated region
        $region29: #{tpu_custom_call.1} parent=11 // pred_check
          %p287 = pneg %p150
        $region30: #{tpu_custom_call.1} parent=11 // pred_check_branch
          %289 = sbr.rel (%p287) target = $region32
        $region31: #{tpu_custom_call.1} parent=11 // pred_region
          _
        $region32: #{tpu_custom_call.1} parent=11 // pred_fallthru
          _
        // Predicated region
        $region33: #{tpu_custom_call.1} parent=11 // pred_check
          %p290 = pneg %p171
        $region34: #{tpu_custom_call.1} parent=11 // pred_check_branch
          %292 = sbr.rel (%p290) target = $region36
        $region35: #{tpu_custom_call.1} parent=11 // pred_region
          _
        $region36: #{tpu_custom_call.1} parent=11 // pred_fallthru
          _
        // Predicated region
        $region37: #{tpu_custom_call.1} parent=11 // pred_check
          %p293 = pneg %p192
        $region38: #{tpu_custom_call.1} parent=11 // pred_check_branch
          %295 = sbr.rel (%p293) target = $region40
        $region39: #{tpu_custom_call.1} parent=11 // pred_region
          _
        $region40: #{tpu_custom_call.1} parent=11 // pred_fallthru
          _
        // Predicated region
        $region41: #{tpu_custom_call.1} parent=11 // pred_check
          %p296 = pneg %p213
        $region42: #{tpu_custom_call.1} parent=11 // pred_check_branch
          %298 = sbr.rel (%p296) target = $region44
        $region43: #{tpu_custom_call.1} parent=11 // pred_region
          _
        $region44: #{tpu_custom_call.1} parent=11 // pred_fallthru
          _
        // Predicated region
        $region45: #{tpu_custom_call.1} parent=11 // pred_check
          %p299 = pneg %p234
        $region46: #{tpu_custom_call.1} parent=11 // pred_check_branch
          %301 = sbr.rel (%p299) target = $region48
        $region47: #{tpu_custom_call.1} parent=11 // pred_region
          _
        $region48: #{tpu_custom_call.1} parent=11 // pred_fallthru
          _
      $region12: #{tpu_custom_call.1} parent=5 // pred_fallthru
        _
      %p302 = scmp.lt.s32.totalorder %s19, 2
      // Predicated region
      $region49: #{tpu_custom_call.1} parent=5 // pred_check
        %p303 = pneg %p302
      $region50: #{tpu_custom_call.1} parent=5 // pred_check_branch
        %305 = sbr.rel (%p303) target = $region52
      $region51: #{tpu_custom_call.1} parent=5 // pred_region
        // Predicated region
        $region53: #{tpu_custom_call.1} parent=51 // pred_check
          %p306 = pneg %p39
        $region54: #{tpu_custom_call.1} parent=51 // pred_check_branch
          %308 = sbr.rel (%p306) target = $region56
        $region55: #{tpu_custom_call.1} parent=51 // pred_region
          %p309 = scmp.lt.s32.totalorder %s19, 1
          %s310 = scalar_select %p309, %s19, 1
          %s311 = smul.addr %s310, 4
          %s312 = smul.addr %s311, 4
          %s313 = scalar_lea.vmem %s0, %s312
        $region56: #{tpu_custom_call.1} parent=51 // pred_fallthru
          _
      $region52: #{tpu_custom_call.1} parent=5 // pred_fallthru
        _
      %p314 = scmp.le.s32.totalorder 1, %s19
      %p315 = scmp.lt.s32.totalorder %s19, 3
      %p316 = pnand %p314, %p315
      %p317 = pneg %p316
      // Predicated region
      $region57: #{tpu_custom_call.1} parent=5 // pred_check
        _
      $region58: #{tpu_custom_call.1} parent=5 // pred_check_branch
        %319 = sbr.rel (%p316) target = $region60
      $region59: #{tpu_custom_call.1} parent=5 // pred_region
        %s320 = ssub.s32 %s19, 1
        %p321 = scmp.lt.s32.totalorder %s24, 1
        %s322 = scalar_select %p321, %s24, 1
        %s323 = smul.addr %s322, 4
        %s324 = smul.addr %s323, 4
        %s325 = scalar_lea.vmem %s0, %s324
        %p326 = pneg %p45
        %p327 = pneg %p42
        %p328 = pneg %p66
        %p329 = pneg %p63
        %p330 = pneg %p87
        %p331 = pneg %p84
        %p332 = pneg %p108
        %p333 = pneg %p105
        %p334 = pneg %p129
        %p335 = pneg %p126
        %p336 = pneg %p150
        %p337 = pneg %p147
        %p338 = pneg %p171
        %p339 = pneg %p168
        %p340 = pneg %p192
        %p341 = pneg %p189
        %p342 = pneg %p213
        %p343 = pneg %p210
        %p344 = pneg %p234
        %p345 = pneg %p231
        %p346 = pneg %p260
        %p347 = pneg %p257
        %s348 = sand.u32 %s247, 1
        %s349 = scalar_lea.sflag [#allocation5], %s348
        %s350 = sand.u32 %s247, 1
        %s351 = smul.addr %s350, 24
        %s352 = scalar_lea.vmem [#allocation4], %s351
        %p353 = scmp.lt.s32.totalorder %s24, 1
        %s354 = scalar_select %p353, %s24, 1
        %s355 = smul.addr %s354, 4
        %s356 = smul.addr %s355, 4
        %s357 = scalar_lea.vmem %s0, %s356
        %vm359 = vcmask 257024
        %360 = vst.msk [vmem:[#allocation2] sm:$0xf] %vm359, 0
        %361 = vst.msk [vmem:[#allocation2 + $0x10] sm:$0xf] %vm359, 0
        %362 = vst.msk [vmem:[#allocation2 + $0x20] sm:$0xf] %vm359, 0
        %363 = vst.msk [vmem:[#allocation2 + $0x30] sm:$0xf] %vm359, 0
        %364 = vst.msk [vmem:[#allocation2 + $0x40] sm:$0xf] %vm359, 0
        %365 = vst.msk [vmem:[#allocation2 + $0x50] sm:$0xf] %vm359, 0
        %366 = vst.msk [vmem:[#allocation2 + $0x60] sm:$0xf] %vm359, 0
        %367 = vst.msk [vmem:[#allocation2 + $0x70] sm:$0xf] %vm359, 0
        %vm368 = vcmask 584896
        %369 = vst.msk [vmem:[#allocation2 + $0xc] sm:$0xf] %vm368, 0
        %370 = vst.msk [vmem:[#allocation2 + $0x1c] sm:$0xf] %vm368, 0
        %371 = vst.msk [vmem:[#allocation2 + $0x2c] sm:$0xf] %vm368, 0
        %372 = vst.msk [vmem:[#allocation2 + $0x3c] sm:$0xf] %vm368, 0
        %373 = vst.msk [vmem:[#allocation2 + $0x4c] sm:$0xf] %vm368, 0
        %374 = vst.msk [vmem:[#allocation2 + $0x5c] sm:$0xf] %vm368, 0
        %375 = vst.msk [vmem:[#allocation2 + $0x6c] sm:$0xf] %vm368, 0
        %376 = vst.msk [vmem:[#allocation2 + $0x7c] sm:$0xf] %vm368, 0
        %377 = vst.msk [vmem:[#allocation3] sm:$0xf] %vm359, 0
        %378 = vst.msk [vmem:[#allocation3 + $0x10] sm:$0xf] %vm359, 0
        %379 = vst.msk [vmem:[#allocation3 + $0x20] sm:$0xf] %vm359, 0
        %380 = vst.msk [vmem:[#allocation3 + $0x30] sm:$0xf] %vm359, 0
        %381 = vst.msk [vmem:[#allocation3 + $0x40] sm:$0xf] %vm359, 0
        %382 = vst.msk [vmem:[#allocation3 + $0x50] sm:$0xf] %vm359, 0
        %383 = vst.msk [vmem:[#allocation3 + $0x60] sm:$0xf] %vm359, 0
        %384 = vst.msk [vmem:[#allocation3 + $0x70] sm:$0xf] %vm359, 0
        %385 = vst.msk [vmem:[#allocation3 + $0xc] sm:$0xf] %vm368, 0
        %386 = vst.msk [vmem:[#allocation3 + $0x1c] sm:$0xf] %vm368, 0
        %387 = vst.msk [vmem:[#allocation3 + $0x2c] sm:$0xf] %vm368, 0
        %388 = vst.msk [vmem:[#allocation3 + $0x3c] sm:$0xf] %vm368, 0
        %389 = vst.msk [vmem:[#allocation3 + $0x4c] sm:$0xf] %vm368, 0
        %390 = vst.msk [vmem:[#allocation3 + $0x5c] sm:$0xf] %vm368, 0
        %391 = vst.msk [vmem:[#allocation3 + $0x6c] sm:$0xf] %vm368, 0
        %392 = vst.msk [vmem:[#allocation3 + $0x7c] sm:$0xf] %vm368, 0
        %v393 = vld [vmem:[%s9] sm:$0x7]
        %v394 = vld [vmem:[%s357] sm:$0xff]
        %v395 = vld [vmem:[%s357 + $0x8] sm:$0xff]
        %v396 = vld [vmem:[%s1] sm:$0xf]
        %v397 = vld [vmem:[%s1 + $0x4] sm:$0xf]
        %s398 = scalar_lea.vmem %s1, 8
        %v399 = vld [vmem:[%s398] sm:$0xf]
        %v400 = vld [vmem:[%s398 + $0x4] sm:$0xf]
        %v403 = vunpack.c.l.b16 %v399
        %v404 = vunpack.c.l.b16 %v400
        %v405 = vpack.c.b16 %v404, %v403
        %v408 = vunpack.c.l.b16 %v394
        %v409 = vunpack.c.h.b16 %v394
        %v410 = vunpack.c.l.b16 %v395
        %v411 = vunpack.c.h.b16 %v395
        %v412 = vpack.c.b16 %v408, %v408
        %v413 = vpack.c.b16 %v409, %v409
        %v414 = vpack.c.b16 %v410, %v410
        %v415 = vpack.c.b16 %v411, %v411
        %416 = vrot.lane.b32.xlu0 %v412, 127
        %v417 = vpop.permute.xlu0 %416
        %418 = vrot.lane.b32.xlu0 %v413, 127
        %v419 = vpop.permute.xlu0 %418
        %420 = vrot.lane.b32.xlu0 %v414, 127
        %v421 = vpop.permute.xlu0 %420
        %422 = vrot.lane.b32.xlu0 %v415, 127
        %v423 = vpop.permute.xlu0 %422
        %vm424 = vcmask 1039360
        %v425 = vsel %vm424, %v417, %v419
        %v426 = vsel %vm424, %v419, %v421
        %v427 = vsel %vm424, %v421, %v423
        %vm428 = vcmask 64512
        %v430 = vsel %vm428, %v405, 0
        %vm432 = vcmask 1043456
        %v434 = vsel %vm432, %v425, 0
        %v437 = vsel %vm432, %v426, 0
        %v440 = vsel %vm432, %v427, 0
        %442 = vmatprep.subr.bf16.mxu0 0
        %443 = vmatpush1.bf16.msra.mxu0 0
        %444 = vmatprep.subr.bf16.mxu0 0
        %445 = vmatpush1.bf16.msra.mxu0 0
        %446 = vmatprep.subr.bf16.mxu0 0
        %447 = vmatpush1.bf16.msra.mxu0 0
        %448 = vmatprep.subr.bf16.mxu0 0
        %449 = vmatpush1.bf16.msra.mxu0 0
        %450 = vmatprep.subr.bf16.mxu0 0
        %451 = vmatpush1.bf16.msra.mxu0 0
        %452 = vmatprep.subr.bf16.mxu0 0
        %453 = vmatpush1.bf16.msra.mxu0 0
        %454 = vmatprep.subr.bf16.mxu0 0
        %455 = vmatpush1.bf16.msra.mxu0 0
        %456 = vmatprep.subr.bf16.mxu0 %v437
        %457 = vmatpush1.bf16.msra.mxu0 %v434
        %458 = vmatprep.subr.bf16.mxu0 0
        %459 = vmatpush2.bf16.msra.mxu0 0
        %460 = vmatprep.subr.bf16.mxu0 0
        %461 = vmatpush2.bf16.msra.mxu0 0
        %462 = vmatprep.subr.bf16.mxu0 0
        %463 = vmatpush2.bf16.msra.mxu0 0
        %464 = vmatprep.subr.bf16.mxu0 0
        %465 = vmatpush2.bf16.msra.mxu0 0
        %466 = vmatprep.subr.bf16.mxu0 0
        %467 = vmatpush2.bf16.msra.mxu0 0
        %468 = vmatprep.subr.bf16.mxu0 0
        %469 = vmatpush2.bf16.msra.mxu0 0
        %470 = vmatprep.subr.bf16.mxu0 0
        %471 = vmatpush2.bf16.msra.mxu0 0
        %472 = vmatprep.subr.bf16.mxu0 0
        %473 = vmatpush2.bf16.msra.mxu0 0
        %474 = vmatprep.mubr.bf16.mxu0 0
        %475 = vmatmul.mubr.bf16.gmra.mxu0 %v430
        %v476 = vpop.f32.mrf.mxu0
        %v477 = vadd.f32 0.0, %v476
        %v478 = vpop.f32.mrf.mxu0
        %v479 = vadd.f32 0.0, %v478
        %v480 = vpop.f32.mrf.mxu0
        %v481 = vadd.f32 0.0, %v480
        %v482 = vpop.f32.mrf.mxu0
        %v483 = vadd.f32 0.0, %v482
        %484 = vdwg.mxu0
        %485 = vmatprep.subr.bf16.mxu0 0
        %486 = vmatpush1.bf16.msra.mxu0 0
        %487 = vmatprep.subr.bf16.mxu0 0
        %488 = vmatpush1.bf16.msra.mxu0 0
        %489 = vmatprep.subr.bf16.mxu0 0
        %490 = vmatpush1.bf16.msra.mxu0 0
        %491 = vmatprep.subr.bf16.mxu0 0
        %492 = vmatpush1.bf16.msra.mxu0 0
        %493 = vmatprep.subr.bf16.mxu0 0
        %494 = vmatpush1.bf16.msra.mxu0 0
        %495 = vmatprep.subr.bf16.mxu0 0
        %496 = vmatpush1.bf16.msra.mxu0 0
        %497 = vmatprep.subr.bf16.mxu0 0
        %498 = vmatpush1.bf16.msra.mxu0 0
        %499 = vmatprep.subr.bf16.mxu0 0
        %500 = vmatpush1.bf16.msra.mxu0 %v440
        %501 = vmatprep.subr.bf16.mxu0 0
        %502 = vmatpush2.bf16.msra.mxu0 0
        %503 = vmatprep.subr.bf16.mxu0 0
        %504 = vmatpush2.bf16.msra.mxu0 0
        %505 = vmatprep.subr.bf16.mxu0 0
        %506 = vmatpush2.bf16.msra.mxu0 0
        %507 = vmatprep.subr.bf16.mxu0 0
        %508 = vmatpush2.bf16.msra.mxu0 0
        %509 = vmatprep.subr.bf16.mxu0 0
        %510 = vmatpush2.bf16.msra.mxu0 0
        %511 = vmatprep.subr.bf16.mxu0 0
        %512 = vmatpush2.bf16.msra.mxu0 0
        %513 = vmatprep.subr.bf16.mxu0 0
        %514 = vmatpush2.bf16.msra.mxu0 0
        %515 = vmatprep.subr.bf16.mxu0 0
        %516 = vmatpush2.bf16.msra.mxu0 0
        %517 = vmatprep.mubr.bf16.mxu0 0
        %518 = vmatmul.mubr.bf16.gmra.mxu0 %v430
        %v519 = vpop.f32.mrf.mxu0
        %v520 = vadd.f32 0.0, %v519
        %v521 = vpop.f32.mrf.mxu0
        %v522 = vpop.f32.mrf.mxu0
        %v523 = vadd.f32 0.0, %v522
        %v524 = vpop.f32.mrf.mxu0
        %525 = vdwg.mxu0
        %v528 = vunpack.c.l.b16 %v396
        %v529 = vunpack.c.l.b16 %v397
        %v530 = vpack.c.b16 %v529, %v528
        %v532 = vsel %vm428, %v530, 0
        %v535 = vsel %vm432, %v412, 0
        %v538 = vsel %vm432, %v413, 0
        %v541 = vsel %vm432, %v414, 0
        %543 = vmatprep.subr.bf16.mxu0 0
        %544 = vmatpush1.bf16.msra.mxu0 0
        %545 = vmatprep.subr.bf16.mxu0 0
        %546 = vmatpush1.bf16.msra.mxu0 0
        %547 = vmatprep.subr.bf16.mxu0 0
        %548 = vmatpush1.bf16.msra.mxu0 0
        %549 = vmatprep.subr.bf16.mxu0 0
        %550 = vmatpush1.bf16.msra.mxu0 0
        %551 = vmatprep.subr.bf16.mxu0 0
        %552 = vmatpush1.bf16.msra.mxu0 0
        %553 = vmatprep.subr.bf16.mxu0 0
        %554 = vmatpush1.bf16.msra.mxu0 0
        %555 = vmatprep.subr.bf16.mxu0 0
        %556 = vmatpush1.bf16.msra.mxu0 0
        %557 = vmatprep.subr.bf16.mxu0 %v538
        %558 = vmatpush1.bf16.msra.mxu0 %v535
        %559 = vmatprep.subr.bf16.mxu0 0
        %560 = vmatpush2.bf16.msra.mxu0 0
        %561 = vmatprep.subr.bf16.mxu0 0
        %562 = vmatpush2.bf16.msra.mxu0 0
        %563 = vmatprep.subr.bf16.mxu0 0
        %564 = vmatpush2.bf16.msra.mxu0 0
        %565 = vmatprep.subr.bf16.mxu0 0
        %566 = vmatpush2.bf16.msra.mxu0 0
        %567 = vmatprep.subr.bf16.mxu0 0
        %568 = vmatpush2.bf16.msra.mxu0 0
        %569 = vmatprep.subr.bf16.mxu0 0
        %570 = vmatpush2.bf16.msra.mxu0 0
        %571 = vmatprep.subr.bf16.mxu0 0
        %572 = vmatpush2.bf16.msra.mxu0 0
        %573 = vmatprep.subr.bf16.mxu0 0
        %574 = vmatpush2.bf16.msra.mxu0 0
        %575 = vmatprep.mubr.bf16.mxu0 0
        %576 = vmatmul.mubr.bf16.gmra.mxu0 %v532
        %v577 = vpop.f32.mrf.mxu0
        %v578 = vadd.f32 %v477, %v577
        %v579 = vpop.f32.mrf.mxu0
        %v580 = vadd.f32 %v479, %v579
        %v581 = vpop.f32.mrf.mxu0
        %v582 = vadd.f32 %v481, %v581
        %v583 = vpop.f32.mrf.mxu0
        %v584 = vadd.f32 %v483, %v583
        %585 = vdwg.mxu0
        %586 = vmatprep.subr.bf16.mxu0 0
        %587 = vmatpush1.bf16.msra.mxu0 0
        %588 = vmatprep.subr.bf16.mxu0 0
        %589 = vmatpush1.bf16.msra.mxu0 0
        %590 = vmatprep.subr.bf16.mxu0 0
        %591 = vmatpush1.bf16.msra.mxu0 0
        %592 = vmatprep.subr.bf16.mxu0 0
        %593 = vmatpush1.bf16.msra.mxu0 0
        %594 = vmatprep.subr.bf16.mxu0 0
        %595 = vmatpush1.bf16.msra.mxu0 0
        %596 = vmatprep.subr.bf16.mxu0 0
        %597 = vmatpush1.bf16.msra.mxu0 0
        %598 = vmatprep.subr.bf16.mxu0 0
        %599 = vmatpush1.bf16.msra.mxu0 0
        %600 = vmatprep.subr.bf16.mxu0 0
        %601 = vmatpush1.bf16.msra.mxu0 %v541
        %602 = vmatprep.subr.bf16.mxu0 0
        %603 = vmatpush2.bf16.msra.mxu0 0
        %604 = vmatprep.subr.bf16.mxu0 0
        %605 = vmatpush2.bf16.msra.mxu0 0
        %606 = vmatprep.subr.bf16.mxu0 0
        %607 = vmatpush2.bf16.msra.mxu0 0
        %608 = vmatprep.subr.bf16.mxu0 0
        %609 = vmatpush2.bf16.msra.mxu0 0
        %610 = vmatprep.subr.bf16.mxu0 0
        %611 = vmatpush2.bf16.msra.mxu0 0
        %612 = vmatprep.subr.bf16.mxu0 0
        %613 = vmatpush2.bf16.msra.mxu0 0
        %614 = vmatprep.subr.bf16.mxu0 0
        %615 = vmatpush2.bf16.msra.mxu0 0
        %616 = vmatprep.subr.bf16.mxu0 0
        %617 = vmatpush2.bf16.msra.mxu0 0
        %618 = vmatprep.mubr.bf16.mxu0 0
        %619 = vmatmul.mubr.bf16.gmra.mxu0 %v532
        %v620 = vpop.f32.mrf.mxu0
        %v621 = vadd.f32 %v520, %v620
        %v622 = vpop.f32.mrf.mxu0
        %v623 = vpop.f32.mrf.mxu0
        %v624 = vadd.f32 %v523, %v623
        %v625 = vpop.f32.mrf.mxu0
        %626 = vdwg.mxu0
        %s627 = scalar_lea.vmem %s1, 16
        %v628 = vld [vmem:[%s627] sm:$0xf]
        %v629 = vld [vmem:[%s627 + $0x4] sm:$0xf]
        %v632 = vunpack.c.l.b16 %v628
        %v633 = vunpack.c.l.b16 %v629
        %v634 = vpack.c.b16 %v633, %v632
        %635 = vrot.lane.b32.xlu0 %v412, 126
        %v636 = vpop.permute.xlu0 %635
        %637 = vrot.lane.b32.xlu0 %v413, 126
        %v638 = vpop.permute.xlu0 %637
        %639 = vrot.lane.b32.xlu0 %v414, 126
        %v640 = vpop.permute.xlu0 %639
        %641 = vrot.lane.b32.xlu0 %v415, 126
        %v642 = vpop.permute.xlu0 %641
        %vm643 = vcmask 1031168
        %v644 = vsel %vm643, %v636, %v638
        %v645 = vsel %vm643, %v638, %v640
        %v646 = vsel %vm643, %v640, %v642
        %v648 = vsel %vm428, %v634, 0
        %v651 = vsel %vm432, %v644, 0
        %v654 = vsel %vm432, %v645, 0
        %v657 = vsel %vm432, %v646, 0
        %659 = vmatprep.subr.bf16.mxu0 0
        %660 = vmatpush1.bf16.msra.mxu0 0
        %661 = vmatprep.subr.bf16.mxu0 0
        %662 = vmatpush1.bf16.msra.mxu0 0
        %663 = vmatprep.subr.bf16.mxu0 0
        %664 = vmatpush1.bf16.msra.mxu0 0
        %665 = vmatprep.subr.bf16.mxu0 0
        %666 = vmatpush1.bf16.msra.mxu0 0
        %667 = vmatprep.subr.bf16.mxu0 0
        %668 = vmatpush1.bf16.msra.mxu0 0
        %669 = vmatprep.subr.bf16.mxu0 0
        %670 = vmatpush1.bf16.msra.mxu0 0
        %671 = vmatprep.subr.bf16.mxu0 0
        %672 = vmatpush1.bf16.msra.mxu0 0
        %673 = vmatprep.subr.bf16.mxu0 %v654
        %674 = vmatpush1.bf16.msra.mxu0 %v651
        %675 = vmatprep.subr.bf16.mxu0 0
        %676 = vmatpush2.bf16.msra.mxu0 0
        %677 = vmatprep.subr.bf16.mxu0 0
        %678 = vmatpush2.bf16.msra.mxu0 0
        %679 = vmatprep.subr.bf16.mxu0 0
        %680 = vmatpush2.bf16.msra.mxu0 0
        %681 = vmatprep.subr.bf16.mxu0 0
        %682 = vmatpush2.bf16.msra.mxu0 0
        %683 = vmatprep.subr.bf16.mxu0 0
        %684 = vmatpush2.bf16.msra.mxu0 0
        %685 = vmatprep.subr.bf16.mxu0 0
        %686 = vmatpush2.bf16.msra.mxu0 0
        %687 = vmatprep.subr.bf16.mxu0 0
        %688 = vmatpush2.bf16.msra.mxu0 0
        %689 = vmatprep.subr.bf16.mxu0 0
        %690 = vmatpush2.bf16.msra.mxu0 0
        %691 = vmatprep.mubr.bf16.mxu0 0
        %692 = vmatmul.mubr.bf16.gmra.mxu0 %v648
        %v693 = vpop.f32.mrf.mxu0
        %v694 = vadd.f32 0.0, %v693
        %v695 = vpop.f32.mrf.mxu0
        %v696 = vadd.f32 0.0, %v695
        %v697 = vpop.f32.mrf.mxu0
        %v698 = vadd.f32 0.0, %v697
        %v699 = vpop.f32.mrf.mxu0
        %v700 = vadd.f32 0.0, %v699
        %701 = vdwg.mxu0
        %702 = vmatprep.subr.bf16.mxu0 0
        %703 = vmatpush1.bf16.msra.mxu0 0
        %704 = vmatprep.subr.bf16.mxu0 0
        %705 = vmatpush1.bf16.msra.mxu0 0
        %706 = vmatprep.subr.bf16.mxu0 0
        %707 = vmatpush1.bf16.msra.mxu0 0
        %708 = vmatprep.subr.bf16.mxu0 0
        %709 = vmatpush1.bf16.msra.mxu0 0
        %710 = vmatprep.subr.bf16.mxu0 0
        %711 = vmatpush1.bf16.msra.mxu0 0
        %712 = vmatprep.subr.bf16.mxu0 0
        %713 = vmatpush1.bf16.msra.mxu0 0
        %714 = vmatprep.subr.bf16.mxu0 0
        %715 = vmatpush1.bf16.msra.mxu0 0
        %716 = vmatprep.subr.bf16.mxu0 0
        %717 = vmatpush1.bf16.msra.mxu0 %v657
        %718 = vmatprep.subr.bf16.mxu0 0
        %719 = vmatpush2.bf16.msra.mxu0 0
        %720 = vmatprep.subr.bf16.mxu0 0
        %721 = vmatpush2.bf16.msra.mxu0 0
        %722 = vmatprep.subr.bf16.mxu0 0
        %723 = vmatpush2.bf16.msra.mxu0 0
        %724 = vmatprep.subr.bf16.mxu0 0
        %725 = vmatpush2.bf16.msra.mxu0 0
        %726 = vmatprep.subr.bf16.mxu0 0
        %727 = vmatpush2.bf16.msra.mxu0 0
        %728 = vmatprep.subr.bf16.mxu0 0
        %729 = vmatpush2.bf16.msra.mxu0 0
        %730 = vmatprep.subr.bf16.mxu0 0
        %731 = vmatpush2.bf16.msra.mxu0 0
        %732 = vmatprep.subr.bf16.mxu0 0
        %733 = vmatpush2.bf16.msra.mxu0 0
        %734 = vmatprep.mubr.bf16.mxu0 0
        %735 = vmatmul.mubr.bf16.gmra.mxu0 %v648
        %v736 = vpop.f32.mrf.mxu0
        %v737 = vadd.f32 0.0, %v736
        %v738 = vpop.f32.mrf.mxu0
        %v739 = vpop.f32.mrf.mxu0
        %v740 = vadd.f32 0.0, %v739
        %v741 = vpop.f32.mrf.mxu0
        %742 = vdwg.mxu0
        %v743 = vadd.f32 %v578, %v694
        %v744 = vadd.f32 %v580, %v696
        %v745 = vadd.f32 %v621, %v737
        %v746 = vadd.f32 %v582, %v698
        %v747 = vadd.f32 %v584, %v700
        %v748 = vadd.f32 %v624, %v740
        %s749 = scalar_lea.vmem %s1, 24
        %v750 = vld [vmem:[%s749] sm:$0xf]
        %v751 = vld [vmem:[%s749 + $0x4] sm:$0xf]
        %v754 = vunpack.c.l.b16 %v750
        %v755 = vunpack.c.l.b16 %v751
        %v756 = vpack.c.b16 %v755, %v754
        %757 = vrot.lane.b32.xlu0 %v412, 104
        %v758 = vpop.permute.xlu0 %757
        %759 = vrot.lane.b32.xlu0 %v413, 104
        %v760 = vpop.permute.xlu0 %759
        %761 = vrot.lane.b32.xlu0 %v414, 104
        %v762 = vpop.permute.xlu0 %761
        %763 = vrot.lane.b32.xlu0 %v415, 104
        %v764 = vpop.permute.xlu0 %763
        %vm765 = vcmask 850944
        %v766 = vsel %vm765, %v758, %v760
        %v767 = vsel %vm765, %v760, %v762
        %v768 = vsel %vm765, %v762, %v764
        %v770 = vsel %vm428, %v756, 0
        %v773 = vsel %vm432, %v766, 0
        %v776 = vsel %vm432, %v767, 0
        %v779 = vsel %vm432, %v768, 0
        %781 = vmatprep.subr.bf16.mxu0 0
        %782 = vmatpush1.bf16.msra.mxu0 0
        %783 = vmatprep.subr.bf16.mxu0 0
        %784 = vmatpush1.bf16.msra.mxu0 0
        %785 = vmatprep.subr.bf16.mxu0 0
        %786 = vmatpush1.bf16.msra.mxu0 0
        %787 = vmatprep.subr.bf16.mxu0 0
        %788 = vmatpush1.bf16.msra.mxu0 0
        %789 = vmatprep.subr.bf16.mxu0 0
        %790 = vmatpush1.bf16.msra.mxu0 0
        %791 = vmatprep.subr.bf16.mxu0 0
        %792 = vmatpush1.bf16.msra.mxu0 0
        %793 = vmatprep.subr.bf16.mxu0 0
        %794 = vmatpush1.bf16.msra.mxu0 0
        %795 = vmatprep.subr.bf16.mxu0 %v776
        %796 = vmatpush1.bf16.msra.mxu0 %v773
        %797 = vmatprep.subr.bf16.mxu0 0
        %798 = vmatpush2.bf16.msra.mxu0 0
        %799 = vmatprep.subr.bf16.mxu0 0
        %800 = vmatpush2.bf16.msra.mxu0 0
        %801 = vmatprep.subr.bf16.mxu0 0
        %802 = vmatpush2.bf16.msra.mxu0 0
        %803 = vmatprep.subr.bf16.mxu0 0
        %804 = vmatpush2.bf16.msra.mxu0 0
        %805 = vmatprep.subr.bf16.mxu0 0
        %806 = vmatpush2.bf16.msra.mxu0 0
        %807 = vmatprep.subr.bf16.mxu0 0
        %808 = vmatpush2.bf16.msra.mxu0 0
        %809 = vmatprep.subr.bf16.mxu0 0
        %810 = vmatpush2.bf16.msra.mxu0 0
        %811 = vmatprep.subr.bf16.mxu0 0
        %812 = vmatpush2.bf16.msra.mxu0 0
        %813 = vmatprep.mubr.bf16.mxu0 0
        %814 = vmatmul.mubr.bf16.gmra.mxu0 %v770
        %v815 = vpop.f32.mrf.mxu0
        %v816 = vadd.f32 0.0, %v815
        %v817 = vpop.f32.mrf.mxu0
        %v818 = vadd.f32 0.0, %v817
        %v819 = vpop.f32.mrf.mxu0
        %v820 = vadd.f32 0.0, %v819
        %v821 = vpop.f32.mrf.mxu0
        %v822 = vadd.f32 0.0, %v821
        %823 = vdwg.mxu0
        %824 = vmatprep.subr.bf16.mxu0 0
        %825 = vmatpush1.bf16.msra.mxu0 0
        %826 = vmatprep.subr.bf16.mxu0 0
        %827 = vmatpush1.bf16.msra.mxu0 0
        %828 = vmatprep.subr.bf16.mxu0 0
        %829 = vmatpush1.bf16.msra.mxu0 0
        %830 = vmatprep.subr.bf16.mxu0 0
        %831 = vmatpush1.bf16.msra.mxu0 0
        %832 = vmatprep.subr.bf16.mxu0 0
        %833 = vmatpush1.bf16.msra.mxu0 0
        %834 = vmatprep.subr.bf16.mxu0 0
        %835 = vmatpush1.bf16.msra.mxu0 0
        %836 = vmatprep.subr.bf16.mxu0 0
        %837 = vmatpush1.bf16.msra.mxu0 0
        %838 = vmatprep.subr.bf16.mxu0 0
        %839 = vmatpush1.bf16.msra.mxu0 %v779
        %840 = vmatprep.subr.bf16.mxu0 0
        %841 = vmatpush2.bf16.msra.mxu0 0
        %842 = vmatprep.subr.bf16.mxu0 0
        %843 = vmatpush2.bf16.msra.mxu0 0
        %844 = vmatprep.subr.bf16.mxu0 0
        %845 = vmatpush2.bf16.msra.mxu0 0
        %846 = vmatprep.subr.bf16.mxu0 0
        %847 = vmatpush2.bf16.msra.mxu0 0
        %848 = vmatprep.subr.bf16.mxu0 0
        %849 = vmatpush2.bf16.msra.mxu0 0
        %850 = vmatprep.subr.bf16.mxu0 0
        %851 = vmatpush2.bf16.msra.mxu0 0
        %852 = vmatprep.subr.bf16.mxu0 0
        %853 = vmatpush2.bf16.msra.mxu0 0
        %854 = vmatprep.subr.bf16.mxu0 0
        %855 = vmatpush2.bf16.msra.mxu0 0
        %856 = vmatprep.mubr.bf16.mxu0 0
        %857 = vmatmul.mubr.bf16.gmra.mxu0 %v770
        %v858 = vpop.f32.mrf.mxu0
        %v859 = vadd.f32 0.0, %v858
        %v860 = vpop.f32.mrf.mxu0
        %v861 = vpop.f32.mrf.mxu0
        %v862 = vadd.f32 0.0, %v861
        %v863 = vpop.f32.mrf.mxu0
        %864 = vdwg.mxu0
        %v865 = vadd.f32 %v743, %v816
        %v866 = vadd.f32 %v744, %v818
        %v867 = vadd.f32 %v745, %v859
        %v868 = vadd.f32 %v746, %v820
        %v869 = vadd.f32 %v747, %v822
        %v870 = vadd.f32 %v748, %v862
        %s871 = scalar_lea.vmem %s1, 32
        %v872 = vld [vmem:[%s871] sm:$0xf]
        %v873 = vld [vmem:[%s871 + $0x4] sm:$0xf]
        %v876 = vunpack.c.l.b16 %v872
        %v877 = vunpack.c.l.b16 %v873
        %v878 = vpack.c.b16 %v877, %v876
        %879 = vrot.lane.b32.xlu0 %v412, 103
        %v880 = vpop.permute.xlu0 %879
        %881 = vrot.lane.b32.xlu0 %v413, 103
        %v882 = vpop.permute.xlu0 %881
        %883 = vrot.lane.b32.xlu0 %v414, 103
        %v884 = vpop.permute.xlu0 %883
        %885 = vrot.lane.b32.xlu0 %v415, 103
        %v886 = vpop.permute.xlu0 %885
        %vm887 = vcmask 842752
        %v888 = vsel %vm887, %v880, %v882
        %v889 = vsel %vm887, %v882, %v884
        %v890 = vsel %vm887, %v884, %v886
        %v892 = vsel %vm428, %v878, 0
        %v895 = vsel %vm432, %v888, 0
        %v898 = vsel %vm432, %v889, 0
        %v901 = vsel %vm432, %v890, 0
        %903 = vmatprep.subr.bf16.mxu0 0
        %904 = vmatpush1.bf16.msra.mxu0 0
        %905 = vmatprep.subr.bf16.mxu0 0
        %906 = vmatpush1.bf16.msra.mxu0 0
        %907 = vmatprep.subr.bf16.mxu0 0
        %908 = vmatpush1.bf16.msra.mxu0 0
        %909 = vmatprep.subr.bf16.mxu0 0
        %910 = vmatpush1.bf16.msra.mxu0 0
        %911 = vmatprep.subr.bf16.mxu0 0
        %912 = vmatpush1.bf16.msra.mxu0 0
        %913 = vmatprep.subr.bf16.mxu0 0
        %914 = vmatpush1.bf16.msra.mxu0 0
        %915 = vmatprep.subr.bf16.mxu0 0
        %916 = vmatpush1.bf16.msra.mxu0 0
        %917 = vmatprep.subr.bf16.mxu0 %v898
        %918 = vmatpush1.bf16.msra.mxu0 %v895
        %919 = vmatprep.subr.bf16.mxu0 0
        %920 = vmatpush2.bf16.msra.mxu0 0
        %921 = vmatprep.subr.bf16.mxu0 0
        %922 = vmatpush2.bf16.msra.mxu0 0
        %923 = vmatprep.subr.bf16.mxu0 0
        %924 = vmatpush2.bf16.msra.mxu0 0
        %925 = vmatprep.subr.bf16.mxu0 0
        %926 = vmatpush2.bf16.msra.mxu0 0
        %927 = vmatprep.subr.bf16.mxu0 0
        %928 = vmatpush2.bf16.msra.mxu0 0
        %929 = vmatprep.subr.bf16.mxu0 0
        %930 = vmatpush2.bf16.msra.mxu0 0
        %931 = vmatprep.subr.bf16.mxu0 0
        %932 = vmatpush2.bf16.msra.mxu0 0
        %933 = vmatprep.subr.bf16.mxu0 0
        %934 = vmatpush2.bf16.msra.mxu0 0
        %935 = vmatprep.mubr.bf16.mxu0 0
        %936 = vmatmul.mubr.bf16.gmra.mxu0 %v892
        %v937 = vpop.f32.mrf.mxu0
        %v938 = vadd.f32 0.0, %v937
        %v939 = vpop.f32.mrf.mxu0
        %v940 = vadd.f32 0.0, %v939
        %v941 = vpop.f32.mrf.mxu0
        %v942 = vadd.f32 0.0, %v941
        %v943 = vpop.f32.mrf.mxu0
        %v944 = vadd.f32 0.0, %v943
        %945 = vdwg.mxu0
        %946 = vmatprep.subr.bf16.mxu0 0
        %947 = vmatpush1.bf16.msra.mxu0 0
        %948 = vmatprep.subr.bf16.mxu0 0
        %949 = vmatpush1.bf16.msra.mxu0 0
        %950 = vmatprep.subr.bf16.mxu0 0
        %951 = vmatpush1.bf16.msra.mxu0 0
        %952 = vmatprep.subr.bf16.mxu0 0
        %953 = vmatpush1.bf16.msra.mxu0 0
        %954 = vmatprep.subr.bf16.mxu0 0
        %955 = vmatpush1.bf16.msra.mxu0 0
        %956 = vmatprep.subr.bf16.mxu0 0
        %957 = vmatpush1.bf16.msra.mxu0 0
        %958 = vmatprep.subr.bf16.mxu0 0
        %959 = vmatpush1.bf16.msra.mxu0 0
        %960 = vmatprep.subr.bf16.mxu0 0
        %961 = vmatpush1.bf16.msra.mxu0 %v901
        %962 = vmatprep.subr.bf16.mxu0 0
        %963 = vmatpush2.bf16.msra.mxu0 0
        %964 = vmatprep.subr.bf16.mxu0 0
        %965 = vmatpush2.bf16.msra.mxu0 0
        %966 = vmatprep.subr.bf16.mxu0 0
        %967 = vmatpush2.bf16.msra.mxu0 0
        %968 = vmatprep.subr.bf16.mxu0 0
        %969 = vmatpush2.bf16.msra.mxu0 0
        %970 = vmatprep.subr.bf16.mxu0 0
        %971 = vmatpush2.bf16.msra.mxu0 0
        %972 = vmatprep.subr.bf16.mxu0 0
        %973 = vmatpush2.bf16.msra.mxu0 0
        %974 = vmatprep.subr.bf16.mxu0 0
        %975 = vmatpush2.bf16.msra.mxu0 0
        %976 = vmatprep.subr.bf16.mxu0 0
        %977 = vmatpush2.bf16.msra.mxu0 0
        %978 = vmatprep.mubr.bf16.mxu0 0
        %979 = vmatmul.mubr.bf16.gmra.mxu0 %v892
        %v980 = vpop.f32.mrf.mxu0
        %v981 = vadd.f32 0.0, %v980
        %v982 = vpop.f32.mrf.mxu0
        %v983 = vpop.f32.mrf.mxu0
        %v984 = vadd.f32 0.0, %v983
        %v985 = vpop.f32.mrf.mxu0
        %986 = vdwg.mxu0
        %v987 = vadd.f32 %v865, %v938
        %v988 = vadd.f32 %v866, %v940
        %v989 = vadd.f32 %v867, %v981
        %v990 = vadd.f32 %v868, %v942
        %v991 = vadd.f32 %v869, %v944
        %v992 = vadd.f32 %v870, %v984
        %s993 = scalar_lea.vmem %s1, 40
        %v994 = vld [vmem:[%s993] sm:$0xf]
        %v995 = vld [vmem:[%s993 + $0x4] sm:$0xf]
        %v998 = vunpack.c.l.b16 %v994
        %v999 = vunpack.c.l.b16 %v995
        %v1000 = vpack.c.b16 %v999, %v998
        %1001 = vrot.lane.b32.xlu0 %v412, 102
        %v1002 = vpop.permute.xlu0 %1001
        %1003 = vrot.lane.b32.xlu0 %v413, 102
        %v1004 = vpop.permute.xlu0 %1003
        %1005 = vrot.lane.b32.xlu0 %v414, 102
        %v1006 = vpop.permute.xlu0 %1005
        %1007 = vrot.lane.b32.xlu0 %v415, 102
        %v1008 = vpop.permute.xlu0 %1007
        %vm1009 = vcmask 834560
        %v1010 = vsel %vm1009, %v1002, %v1004
        %v1011 = vsel %vm1009, %v1004, %v1006
        %v1012 = vsel %vm1009, %v1006, %v1008
        %v1014 = vsel %vm428, %v1000, 0
        %v1017 = vsel %vm432, %v1010, 0
        %v1020 = vsel %vm432, %v1011, 0
        %v1023 = vsel %vm432, %v1012, 0
        %1025 = vmatprep.subr.bf16.mxu0 0
        %1026 = vmatpush1.bf16.msra.mxu0 0
        %1027 = vmatprep.subr.bf16.mxu0 0
        %1028 = vmatpush1.bf16.msra.mxu0 0
        %1029 = vmatprep.subr.bf16.mxu0 0
        %1030 = vmatpush1.bf16.msra.mxu0 0
        %1031 = vmatprep.subr.bf16.mxu0 0
        %1032 = vmatpush1.bf16.msra.mxu0 0
        %1033 = vmatprep.subr.bf16.mxu0 0
        %1034 = vmatpush1.bf16.msra.mxu0 0
        %1035 = vmatprep.subr.bf16.mxu0 0
        %1036 = vmatpush1.bf16.msra.mxu0 0
        %1037 = vmatprep.subr.bf16.mxu0 0
        %1038 = vmatpush1.bf16.msra.mxu0 0
        %1039 = vmatprep.subr.bf16.mxu0 %v1020
        %1040 = vmatpush1.bf16.msra.mxu0 %v1017
        %1041 = vmatprep.subr.bf16.mxu0 0
        %1042 = vmatpush2.bf16.msra.mxu0 0
        %1043 = vmatprep.subr.bf16.mxu0 0
        %1044 = vmatpush2.bf16.msra.mxu0 0
        %1045 = vmatprep.subr.bf16.mxu0 0
        %1046 = vmatpush2.bf16.msra.mxu0 0
        %1047 = vmatprep.subr.bf16.mxu0 0
        %1048 = vmatpush2.bf16.msra.mxu0 0
        %1049 = vmatprep.subr.bf16.mxu0 0
        %1050 = vmatpush2.bf16.msra.mxu0 0
        %1051 = vmatprep.subr.bf16.mxu0 0
        %1052 = vmatpush2.bf16.msra.mxu0 0
        %1053 = vmatprep.subr.bf16.mxu0 0
        %1054 = vmatpush2.bf16.msra.mxu0 0
        %1055 = vmatprep.subr.bf16.mxu0 0
        %1056 = vmatpush2.bf16.msra.mxu0 0
        %1057 = vmatprep.mubr.bf16.mxu0 0
        %1058 = vmatmul.mubr.bf16.gmra.mxu0 %v1014
        %v1059 = vpop.f32.mrf.mxu0
        %v1060 = vadd.f32 0.0, %v1059
        %v1061 = vpop.f32.mrf.mxu0
        %v1062 = vadd.f32 0.0, %v1061
        %v1063 = vpop.f32.mrf.mxu0
        %v1064 = vadd.f32 0.0, %v1063
        %v1065 = vpop.f32.mrf.mxu0
        %v1066 = vadd.f32 0.0, %v1065
        %1067 = vdwg.mxu0
        %1068 = vmatprep.subr.bf16.mxu0 0
        %1069 = vmatpush1.bf16.msra.mxu0 0
        %1070 = vmatprep.subr.bf16.mxu0 0
        %1071 = vmatpush1.bf16.msra.mxu0 0
        %1072 = vmatprep.subr.bf16.mxu0 0
        %1073 = vmatpush1.bf16.msra.mxu0 0
        %1074 = vmatprep.subr.bf16.mxu0 0
        %1075 = vmatpush1.bf16.msra.mxu0 0
        %1076 = vmatprep.subr.bf16.mxu0 0
        %1077 = vmatpush1.bf16.msra.mxu0 0
        %1078 = vmatprep.subr.bf16.mxu0 0
        %1079 = vmatpush1.bf16.msra.mxu0 0
        %1080 = vmatprep.subr.bf16.mxu0 0
        %1081 = vmatpush1.bf16.msra.mxu0 0
        %1082 = vmatprep.subr.bf16.mxu0 0
        %1083 = vmatpush1.bf16.msra.mxu0 %v1023
        %1084 = vmatprep.subr.bf16.mxu0 0
        %1085 = vmatpush2.bf16.msra.mxu0 0
        %1086 = vmatprep.subr.bf16.mxu0 0
        %1087 = vmatpush2.bf16.msra.mxu0 0
        %1088 = vmatprep.subr.bf16.mxu0 0
        %1089 = vmatpush2.bf16.msra.mxu0 0
        %1090 = vmatprep.subr.bf16.mxu0 0
        %1091 = vmatpush2.bf16.msra.mxu0 0
        %1092 = vmatprep.subr.bf16.mxu0 0
        %1093 = vmatpush2.bf16.msra.mxu0 0
        %1094 = vmatprep.subr.bf16.mxu0 0
        %1095 = vmatpush2.bf16.msra.mxu0 0
        %1096 = vmatprep.subr.bf16.mxu0 0
        %1097 = vmatpush2.bf16.msra.mxu0 0
        %1098 = vmatprep.subr.bf16.mxu0 0
        %1099 = vmatpush2.bf16.msra.mxu0 0
        %1100 = vmatprep.mubr.bf16.mxu0 0
        %1101 = vmatmul.mubr.bf16.gmra.mxu0 %v1014
        %v1102 = vpop.f32.mrf.mxu0
        %v1103 = vadd.f32 0.0, %v1102
        %v1104 = vpop.f32.mrf.mxu0
        %v1105 = vpop.f32.mrf.mxu0
        %v1106 = vadd.f32 0.0, %v1105
        %v1107 = vpop.f32.mrf.mxu0
        %1108 = vdwg.mxu0
        %v1109 = vadd.f32 %v987, %v1060
        %v1110 = vadd.f32 %v988, %v1062
        %v1111 = vadd.f32 %v989, %v1103
        %v1112 = vadd.f32 %v990, %v1064
        %v1113 = vadd.f32 %v991, %v1066
        %v1114 = vadd.f32 %v992, %v1106
        %s1115 = scalar_lea.vmem %s1, 48
        %v1116 = vld [vmem:[%s1115] sm:$0xf]
        %v1117 = vld [vmem:[%s1115 + $0x4] sm:$0xf]
        %v1120 = vunpack.c.l.b16 %v1116
        %v1121 = vunpack.c.l.b16 %v1117
        %v1122 = vpack.c.b16 %v1121, %v1120
        %1123 = vrot.lane.b32.xlu0 %v412, 80
        %v1124 = vpop.permute.xlu0 %1123
        %1125 = vrot.lane.b32.xlu0 %v413, 80
        %v1126 = vpop.permute.xlu0 %1125
        %1127 = vrot.lane.b32.xlu0 %v414, 80
        %v1128 = vpop.permute.xlu0 %1127
        %1129 = vrot.lane.b32.xlu0 %v415, 80
        %v1130 = vpop.permute.xlu0 %1129
        %vm1131 = vcmask 654336
        %v1132 = vsel %vm1131, %v1124, %v1126
        %v1133 = vsel %vm1131, %v1126, %v1128
        %v1134 = vsel %vm1131, %v1128, %v1130
        %v1136 = vsel %vm428, %v1122, 0
        %v1139 = vsel %vm432, %v1132, 0
        %v1142 = vsel %vm432, %v1133, 0
        %v1145 = vsel %vm432, %v1134, 0
        %1147 = vmatprep.subr.bf16.mxu0 0
        %1148 = vmatpush1.bf16.msra.mxu0 0
        %1149 = vmatprep.subr.bf16.mxu0 0
        %1150 = vmatpush1.bf16.msra.mxu0 0
        %1151 = vmatprep.subr.bf16.mxu0 0
        %1152 = vmatpush1.bf16.msra.mxu0 0
        %1153 = vmatprep.subr.bf16.mxu0 0
        %1154 = vmatpush1.bf16.msra.mxu0 0
        %1155 = vmatprep.subr.bf16.mxu0 0
        %1156 = vmatpush1.bf16.msra.mxu0 0
        %1157 = vmatprep.subr.bf16.mxu0 0
        %1158 = vmatpush1.bf16.msra.mxu0 0
        %1159 = vmatprep.subr.bf16.mxu0 0
        %1160 = vmatpush1.bf16.msra.mxu0 0
        %1161 = vmatprep.subr.bf16.mxu0 %v1142
        %1162 = vmatpush1.bf16.msra.mxu0 %v1139
        %1163 = vmatprep.subr.bf16.mxu0 0
        %1164 = vmatpush2.bf16.msra.mxu0 0
        %1165 = vmatprep.subr.bf16.mxu0 0
        %1166 = vmatpush2.bf16.msra.mxu0 0
        %1167 = vmatprep.subr.bf16.mxu0 0
        %1168 = vmatpush2.bf16.msra.mxu0 0
        %1169 = vmatprep.subr.bf16.mxu0 0
        %1170 = vmatpush2.bf16.msra.mxu0 0
        %1171 = vmatprep.subr.bf16.mxu0 0
        %1172 = vmatpush2.bf16.msra.mxu0 0
        %1173 = vmatprep.subr.bf16.mxu0 0
        %1174 = vmatpush2.bf16.msra.mxu0 0
        %1175 = vmatprep.subr.bf16.mxu0 0
        %1176 = vmatpush2.bf16.msra.mxu0 0
        %1177 = vmatprep.subr.bf16.mxu0 0
        %1178 = vmatpush2.bf16.msra.mxu0 0
        %1179 = vmatprep.mubr.bf16.mxu0 0
        %1180 = vmatmul.mubr.bf16.gmra.mxu0 %v1136
        %v1181 = vpop.f32.mrf.mxu0
        %v1182 = vadd.f32 0.0, %v1181
        %v1183 = vpop.f32.mrf.mxu0
        %v1184 = vadd.f32 0.0, %v1183
        %v1185 = vpop.f32.mrf.mxu0
        %v1186 = vadd.f32 0.0, %v1185
        %v1187 = vpop.f32.mrf.mxu0
        %v1188 = vadd.f32 0.0, %v1187
        %1189 = vdwg.mxu0
        %1190 = vmatprep.subr.bf16.mxu0 0
        %1191 = vmatpush1.bf16.msra.mxu0 0
        %1192 = vmatprep.subr.bf16.mxu0 0
        %1193 = vmatpush1.bf16.msra.mxu0 0
        %1194 = vmatprep.subr.bf16.mxu0 0
        %1195 = vmatpush1.bf16.msra.mxu0 0
        %1196 = vmatprep.subr.bf16.mxu0 0
        %1197 = vmatpush1.bf16.msra.mxu0 0
        %1198 = vmatprep.subr.bf16.mxu0 0
        %1199 = vmatpush1.bf16.msra.mxu0 0
        %1200 = vmatprep.subr.bf16.mxu0 0
        %1201 = vmatpush1.bf16.msra.mxu0 0
        %1202 = vmatprep.subr.bf16.mxu0 0
        %1203 = vmatpush1.bf16.msra.mxu0 0
        %1204 = vmatprep.subr.bf16.mxu0 0
        %1205 = vmatpush1.bf16.msra.mxu0 %v1145
        %1206 = vmatprep.subr.bf16.mxu0 0
        %1207 = vmatpush2.bf16.msra.mxu0 0
        %1208 = vmatprep.subr.bf16.mxu0 0
        %1209 = vmatpush2.bf16.msra.mxu0 0
        %1210 = vmatprep.subr.bf16.mxu0 0
        %1211 = vmatpush2.bf16.msra.mxu0 0
        %1212 = vmatprep.subr.bf16.mxu0 0
        %1213 = vmatpush2.bf16.msra.mxu0 0
        %1214 = vmatprep.subr.bf16.mxu0 0
        %1215 = vmatpush2.bf16.msra.mxu0 0
        %1216 = vmatprep.subr.bf16.mxu0 0
        %1217 = vmatpush2.bf16.msra.mxu0 0
        %1218 = vmatprep.subr.bf16.mxu0 0
        %1219 = vmatpush2.bf16.msra.mxu0 0
        %1220 = vmatprep.subr.bf16.mxu0 0
        %1221 = vmatpush2.bf16.msra.mxu0 0
        %1222 = vmatprep.mubr.bf16.mxu0 0
        %1223 = vmatmul.mubr.bf16.gmra.mxu0 %v1136
        %v1224 = vpop.f32.mrf.mxu0
        %v1225 = vadd.f32 0.0, %v1224
        %v1226 = vpop.f32.mrf.mxu0
        %v1227 = vpop.f32.mrf.mxu0
        %v1228 = vadd.f32 0.0, %v1227
        %v1229 = vpop.f32.mrf.mxu0
        %1230 = vdwg.mxu0
        %v1231 = vadd.f32 %v1109, %v1182
        %v1232 = vadd.f32 %v1110, %v1184
        %v1233 = vadd.f32 %v1111, %v1225
        %v1234 = vadd.f32 %v1112, %v1186
        %v1235 = vadd.f32 %v1113, %v1188
        %v1236 = vadd.f32 %v1114, %v1228
        %s1237 = scalar_lea.vmem %s1, 56
        %v1238 = vld [vmem:[%s1237] sm:$0xf]
        %v1239 = vld [vmem:[%s1237 + $0x4] sm:$0xf]
        %v1242 = vunpack.c.l.b16 %v1238
        %v1243 = vunpack.c.l.b16 %v1239
        %v1244 = vpack.c.b16 %v1243, %v1242
        %1245 = vrot.lane.b32.xlu0 %v412, 79
        %v1246 = vpop.permute.xlu0 %1245
        %1247 = vrot.lane.b32.xlu0 %v413, 79
        %v1248 = vpop.permute.xlu0 %1247
        %1249 = vrot.lane.b32.xlu0 %v414, 79
        %v1250 = vpop.permute.xlu0 %1249
        %1251 = vrot.lane.b32.xlu0 %v415, 79
        %v1252 = vpop.permute.xlu0 %1251
        %vm1253 = vcmask 646144
        %v1254 = vsel %vm1253, %v1246, %v1248
        %v1255 = vsel %vm1253, %v1248, %v1250
        %v1256 = vsel %vm1253, %v1250, %v1252
        %v1258 = vsel %vm428, %v1244, 0
        %v1261 = vsel %vm432, %v1254, 0
        %v1264 = vsel %vm432, %v1255, 0
        %v1267 = vsel %vm432, %v1256, 0
        %1269 = vmatprep.subr.bf16.mxu0 0
        %1270 = vmatpush1.bf16.msra.mxu0 0
        %1271 = vmatprep.subr.bf16.mxu0 0
        %1272 = vmatpush1.bf16.msra.mxu0 0
        %1273 = vmatprep.subr.bf16.mxu0 0
        %1274 = vmatpush1.bf16.msra.mxu0 0
        %1275 = vmatprep.subr.bf16.mxu0 0
        %1276 = vmatpush1.bf16.msra.mxu0 0
        %1277 = vmatprep.subr.bf16.mxu0 0
        %1278 = vmatpush1.bf16.msra.mxu0 0
        %1279 = vmatprep.subr.bf16.mxu0 0
        %1280 = vmatpush1.bf16.msra.mxu0 0
        %1281 = vmatprep.subr.bf16.mxu0 0
        %1282 = vmatpush1.bf16.msra.mxu0 0
        %1283 = vmatprep.subr.bf16.mxu0 %v1264
        %1284 = vmatpush1.bf16.msra.mxu0 %v1261
        %1285 = vmatprep.subr.bf16.mxu0 0
        %1286 = vmatpush2.bf16.msra.mxu0 0
        %1287 = vmatprep.subr.bf16.mxu0 0
        %1288 = vmatpush2.bf16.msra.mxu0 0
        %1289 = vmatprep.subr.bf16.mxu0 0
        %1290 = vmatpush2.bf16.msra.mxu0 0
        %1291 = vmatprep.subr.bf16.mxu0 0
        %1292 = vmatpush2.bf16.msra.mxu0 0
        %1293 = vmatprep.subr.bf16.mxu0 0
        %1294 = vmatpush2.bf16.msra.mxu0 0
        %1295 = vmatprep.subr.bf16.mxu0 0
        %1296 = vmatpush2.bf16.msra.mxu0 0
        %1297 = vmatprep.subr.bf16.mxu0 0
        %1298 = vmatpush2.bf16.msra.mxu0 0
        %1299 = vmatprep.subr.bf16.mxu0 0
        %1300 = vmatpush2.bf16.msra.mxu0 0
        %1301 = vmatprep.mubr.bf16.mxu0 0
        %1302 = vmatmul.mubr.bf16.gmra.mxu0 %v1258
        %v1303 = vpop.f32.mrf.mxu0
        %v1304 = vadd.f32 0.0, %v1303
        %v1305 = vpop.f32.mrf.mxu0
        %v1306 = vadd.f32 0.0, %v1305
        %v1307 = vpop.f32.mrf.mxu0
        %v1308 = vadd.f32 0.0, %v1307
        %v1309 = vpop.f32.mrf.mxu0
        %v1310 = vadd.f32 0.0, %v1309
        %1311 = vdwg.mxu0
        %1312 = vmatprep.subr.bf16.mxu0 0
        %1313 = vmatpush1.bf16.msra.mxu0 0
        %1314 = vmatprep.subr.bf16.mxu0 0
        %1315 = vmatpush1.bf16.msra.mxu0 0
        %1316 = vmatprep.subr.bf16.mxu0 0
        %1317 = vmatpush1.bf16.msra.mxu0 0
        %1318 = vmatprep.subr.bf16.mxu0 0
        %1319 = vmatpush1.bf16.msra.mxu0 0
        %1320 = vmatprep.subr.bf16.mxu0 0
        %1321 = vmatpush1.bf16.msra.mxu0 0
        %1322 = vmatprep.subr.bf16.mxu0 0
        %1323 = vmatpush1.bf16.msra.mxu0 0
        %1324 = vmatprep.subr.bf16.mxu0 0
        %1325 = vmatpush1.bf16.msra.mxu0 0
        %1326 = vmatprep.subr.bf16.mxu0 0
        %1327 = vmatpush1.bf16.msra.mxu0 %v1267
        %1328 = vmatprep.subr.bf16.mxu0 0
        %1329 = vmatpush2.bf16.msra.mxu0 0
        %1330 = vmatprep.subr.bf16.mxu0 0
        %1331 = vmatpush2.bf16.msra.mxu0 0
        %1332 = vmatprep.subr.bf16.mxu0 0
        %1333 = vmatpush2.bf16.msra.mxu0 0
        %1334 = vmatprep.subr.bf16.mxu0 0
        %1335 = vmatpush2.bf16.msra.mxu0 0
        %1336 = vmatprep.subr.bf16.mxu0 0
        %1337 = vmatpush2.bf16.msra.mxu0 0
        %1338 = vmatprep.subr.bf16.mxu0 0
        %1339 = vmatpush2.bf16.msra.mxu0 0
        %1340 = vmatprep.subr.bf16.mxu0 0
        %1341 = vmatpush2.bf16.msra.mxu0 0
        %1342 = vmatprep.subr.bf16.mxu0 0
        %1343 = vmatpush2.bf16.msra.mxu0 0
        %1344 = vmatprep.mubr.bf16.mxu0 0
        %1345 = vmatmul.mubr.bf16.gmra.mxu0 %v1258
        %v1346 = vpop.f32.mrf.mxu0
        %v1347 = vadd.f32 0.0, %v1346
        %v1348 = vpop.f32.mrf.mxu0
        %v1349 = vpop.f32.mrf.mxu0
        %v1350 = vadd.f32 0.0, %v1349
        %v1351 = vpop.f32.mrf.mxu0
        %1352 = vdwg.mxu0
        %v1353 = vadd.f32 %v1231, %v1304
        %v1354 = vadd.f32 %v1232, %v1306
        %v1355 = vadd.f32 %v1233, %v1347
        %v1356 = vadd.f32 %v1234, %v1308
        %v1357 = vadd.f32 %v1235, %v1310
        %v1358 = vadd.f32 %v1236, %v1350
        %s1359 = scalar_lea.vmem %s1, 64
        %v1360 = vld [vmem:[%s1359] sm:$0xf]
        %v1361 = vld [vmem:[%s1359 + $0x4] sm:$0xf]
        %v1364 = vunpack.c.l.b16 %v1360
        %v1365 = vunpack.c.l.b16 %v1361
        %v1366 = vpack.c.b16 %v1365, %v1364
        %1367 = vrot.lane.b32.xlu0 %v412, 78
        %v1368 = vpop.permute.xlu0 %1367
        %1369 = vrot.lane.b32.xlu0 %v413, 78
        %v1370 = vpop.permute.xlu0 %1369
        %1371 = vrot.lane.b32.xlu0 %v414, 78
        %v1372 = vpop.permute.xlu0 %1371
        %1373 = vrot.lane.b32.xlu0 %v415, 78
        %v1374 = vpop.permute.xlu0 %1373
        %vm1375 = vcmask 637952
        %v1376 = vsel %vm1375, %v1368, %v1370
        %v1377 = vsel %vm1375, %v1370, %v1372
        %v1378 = vsel %vm1375, %v1372, %v1374
        %v1380 = vsel %vm428, %v1366, 0
        %v1383 = vsel %vm432, %v1376, 0
        %v1386 = vsel %vm432, %v1377, 0
        %v1389 = vsel %vm432, %v1378, 0
        %1391 = vmatprep.subr.bf16.mxu0 0
        %1392 = vmatpush1.bf16.msra.mxu0 0
        %1393 = vmatprep.subr.bf16.mxu0 0
        %1394 = vmatpush1.bf16.msra.mxu0 0
        %1395 = vmatprep.subr.bf16.mxu0 0
        %1396 = vmatpush1.bf16.msra.mxu0 0
        %1397 = vmatprep.subr.bf16.mxu0 0
        %1398 = vmatpush1.bf16.msra.mxu0 0
        %1399 = vmatprep.subr.bf16.mxu0 0
        %1400 = vmatpush1.bf16.msra.mxu0 0
        %1401 = vmatprep.subr.bf16.mxu0 0
        %1402 = vmatpush1.bf16.msra.mxu0 0
        %1403 = vmatprep.subr.bf16.mxu0 0
        %1404 = vmatpush1.bf16.msra.mxu0 0
        %1405 = vmatprep.subr.bf16.mxu0 %v1386
        %1406 = vmatpush1.bf16.msra.mxu0 %v1383
        %1407 = vmatprep.subr.bf16.mxu0 0
        %1408 = vmatpush2.bf16.msra.mxu0 0
        %1409 = vmatprep.subr.bf16.mxu0 0
        %1410 = vmatpush2.bf16.msra.mxu0 0
        %1411 = vmatprep.subr.bf16.mxu0 0
        %1412 = vmatpush2.bf16.msra.mxu0 0
        %1413 = vmatprep.subr.bf16.mxu0 0
        %1414 = vmatpush2.bf16.msra.mxu0 0
        %1415 = vmatprep.subr.bf16.mxu0 0
        %1416 = vmatpush2.bf16.msra.mxu0 0
        %1417 = vmatprep.subr.bf16.mxu0 0
        %1418 = vmatpush2.bf16.msra.mxu0 0
        %1419 = vmatprep.subr.bf16.mxu0 0
        %1420 = vmatpush2.bf16.msra.mxu0 0
        %1421 = vmatprep.subr.bf16.mxu0 0
        %1422 = vmatpush2.bf16.msra.mxu0 0
        %1423 = vmatprep.mubr.bf16.mxu0 0
        %1424 = vmatmul.mubr.bf16.gmra.mxu0 %v1380
        %v1425 = vpop.f32.mrf.mxu0
        %v1426 = vadd.f32 0.0, %v1425
        %v1427 = vpop.f32.mrf.mxu0
        %v1428 = vadd.f32 0.0, %v1427
        %v1429 = vpop.f32.mrf.mxu0
        %v1430 = vadd.f32 0.0, %v1429
        %v1431 = vpop.f32.mrf.mxu0
        %v1432 = vadd.f32 0.0, %v1431
        %1433 = vdwg.mxu0
        %1434 = vmatprep.subr.bf16.mxu0 0
        %1435 = vmatpush1.bf16.msra.mxu0 0
        %1436 = vmatprep.subr.bf16.mxu0 0
        %1437 = vmatpush1.bf16.msra.mxu0 0
        %1438 = vmatprep.subr.bf16.mxu0 0
        %1439 = vmatpush1.bf16.msra.mxu0 0
        %1440 = vmatprep.subr.bf16.mxu0 0
        %1441 = vmatpush1.bf16.msra.mxu0 0
        %1442 = vmatprep.subr.bf16.mxu0 0
        %1443 = vmatpush1.bf16.msra.mxu0 0
        %1444 = vmatprep.subr.bf16.mxu0 0
        %1445 = vmatpush1.bf16.msra.mxu0 0
        %1446 = vmatprep.subr.bf16.mxu0 0
        %1447 = vmatpush1.bf16.msra.mxu0 0
        %1448 = vmatprep.subr.bf16.mxu0 0
        %1449 = vmatpush1.bf16.msra.mxu0 %v1389
        %1450 = vmatprep.subr.bf16.mxu0 0
        %1451 = vmatpush2.bf16.msra.mxu0 0
        %1452 = vmatprep.subr.bf16.mxu0 0
        %1453 = vmatpush2.bf16.msra.mxu0 0
        %1454 = vmatprep.subr.bf16.mxu0 0
        %1455 = vmatpush2.bf16.msra.mxu0 0
        %1456 = vmatprep.subr.bf16.mxu0 0
        %1457 = vmatpush2.bf16.msra.mxu0 0
        %1458 = vmatprep.subr.bf16.mxu0 0
        %1459 = vmatpush2.bf16.msra.mxu0 0
        %1460 = vmatprep.subr.bf16.mxu0 0
        %1461 = vmatpush2.bf16.msra.mxu0 0
        %1462 = vmatprep.subr.bf16.mxu0 0
        %1463 = vmatpush2.bf16.msra.mxu0 0
        %1464 = vmatprep.subr.bf16.mxu0 0
        %1465 = vmatpush2.bf16.msra.mxu0 0
        %1466 = vmatprep.mubr.bf16.mxu0 0
        %1467 = vmatmul.mubr.bf16.gmra.mxu0 %v1380
        %v1468 = vpop.f32.mrf.mxu0
        %v1469 = vadd.f32 0.0, %v1468
        %v1470 = vpop.f32.mrf.mxu0
        %v1471 = vpop.f32.mrf.mxu0
        %v1472 = vadd.f32 0.0, %v1471
        %v1473 = vpop.f32.mrf.mxu0
        %1474 = vdwg.mxu0
        %v1475 = vadd.f32 %v1353, %v1426
        %v1476 = vadd.f32 %v1354, %v1428
        %v1477 = vadd.f32 %v1355, %v1469
        %v1478 = vadd.f32 %v1356, %v1430
        %v1479 = vadd.f32 %v1357, %v1432
        %v1480 = vadd.f32 %v1358, %v1472
        %v1481 = vld [vmem:[%s7] sm:$0xff]
        %v1482 = vld [vmem:[%s7 + $0x8] sm:$0xff]
        %1484 = vset.pattern.permute.xlu0 0
        %1485 = vperm.xlu0 %1484, %v1481
        %v1486 = vpop.permute.xlu0 %1485
        %1489 = vset.pattern.permute.xlu0 0
        %1490 = vperm.xlu0 %1489, %v1482
        %v1491 = vpop.permute.xlu0 %1490
        %v1493 = vmul.f32 %v1475, %v1486
        %v1494 = vmul.f32 %v1476, %v1486
        %v1495 = vmul.f32 %v1477, %v1486
        %v1496 = vmul.f32 %v1478, %v1491
        %v1497 = vmul.f32 %v1479, %v1491
        %v1498 = vmul.f32 %v1480, %v1491
        %v1499 = vld [vmem:[%s8] sm:$0xff]
        %v1500 = vld [vmem:[%s8 + $0x8] sm:$0xff]
        %1502 = vset.pattern.permute.xlu0 0
        %1503 = vperm.xlu0 %1502, %v1499
        %v1504 = vpop.permute.xlu0 %1503
        %1507 = vset.pattern.permute.xlu0 0
        %1508 = vperm.xlu0 %1507, %v1500
        %v1509 = vpop.permute.xlu0 %1508
        %v1511 = vadd.f32 %v1493, %v1504
        %v1512 = vadd.f32 %v1494, %v1504
        %v1513 = vadd.f32 %v1495, %v1504
        %v1514 = vadd.f32 %v1496, %v1509
        %v1515 = vadd.f32 %v1497, %v1509
        %v1516 = vadd.f32 %v1498, %v1509
        %v1517 = vmax.f32 %v1511, 0.0
        %v1518 = vmax.f32 %v1512, 0.0
        %v1519 = vmax.f32 %v1513, 0.0
        %v1520 = vmax.f32 %v1514, 0.0
        %v1521 = vmax.f32 %v1515, 0.0
        %v1522 = vmax.f32 %v1516, 0.0
        %v1524 = vlaneseq
        %v1525 = vshrl.u32 %v1524, 7
        %v1526 = vsub.s32 0, %v1525
        %v1527 = vrot.slane %v393, %v1526
        %v1528 = vlaneseq
        %v1529 = vshrl.u32 %v1528, 7
        %v1530 = vsub.s32 1, %v1529
        %v1531 = vrot.slane %v393, %v1530
        %v1532 = vlaneseq
        %v1533 = vshrl.u32 %v1532, 7
        %v1534 = vsub.s32 2, %v1533
        %v1535 = vrot.slane %v393, %v1534
        %v1539 = vmul.f32 %v1517, %v1527
        %v1540 = vmul.f32 %v1518, %v1531
        %v1541 = vmul.f32 %v1519, %v1535
        %v1542 = vmul.f32 %v1520, %v1527
        %v1543 = vmul.f32 %v1521, %v1531
        %v1544 = vmul.f32 %v1522, %v1535
        %v1545 = vpack.c.bf16 %v1542, %v1539
        %v1546 = vpack.c.bf16 %v1543, %v1540
        %v1547 = vpack.c.bf16 %v1544, %v1541
        %v1551 = vunpack.c.l.b16 %v1545
        %v1552 = vunpack.c.l.b16 %v1546
        %v1553 = vunpack.c.l.b16 %v1547
        %v1554 = vunpack.c.h.b16 %v1545
        %v1555 = vunpack.c.h.b16 %v1546
        %v1556 = vunpack.c.h.b16 %v1547
        %v1557 = vpack.c.b16 %v1552, %v1551
        %v1558 = vpack.c.b16 %v1553, %v1553
        %v1559 = vpack.c.b16 %v1555, %v1554
        %v1560 = vpack.c.b16 %v1556, %v1556
        %1561 = vrot.lane.b32.xlu0 %v1557, 25
        %v1562 = vpop.permute.xlu0 %1561
        %1563 = vrot.lane.b32.xlu0 %v1558, 25
        %v1564 = vpop.permute.xlu0 %1563
        %1565 = vrot.lane.b32.xlu0 %v1559, 25
        %v1566 = vpop.permute.xlu0 %1565
        %1567 = vrot.lane.b32.xlu0 %v1560, 25
        %v1568 = vpop.permute.xlu0 %1567
        %v1569 = vrot.slane %v1562, 4
        %v1570 = vrot.slane %v1564, 4
        %v1571 = vrot.slane %v1566, 4
        %v1572 = vrot.slane %v1568, 4
        %vm1573 = vcmask 203776
        %v1574 = vsel %vm1573, %v1569, %v1562
        %vm1575 = vcmask 1043456
        %v1576 = vsel %vm1575, %v1569, %v1570
        %v1577 = vsel %vm1573, %v1576, %v1564
        %v1578 = vsel %vm1573, %v1571, %v1566
        %v1579 = vsel %vm1575, %v1571, %v1572
        %v1580 = vsel %vm1573, %v1579, %v1568
        %vm1585 = vcmask 1043656
        %vm1586 = vcmask 1047556
        %vm1587 = vmor %vm1586, %vm1585
        %1588 = vst.msk [vmem:[#allocation2] sm:$0xff] %vm1587, %v1574
        %vm1589 = vcmask 203780
        %vm1590 = vmor %vm1589, %vm432
        %1591 = vst.msk [vmem:[#allocation2 + $0x8] sm:$0xff] %vm1590, %v1577
        %1592 = vst.msk [vmem:[#allocation2 + $0x10] sm:$0xff] %vm1587, %v1578
        %1593 = vst.msk [vmem:[#allocation2 + $0x18] sm:$0xff] %vm1590, %v1580
        %v1594 = vld [vmem:[#allocation2] sm:$0xff]
        %v1595 = vld [vmem:[#allocation2 + $0x8] sm:$0xff]
        %v1596 = vld [vmem:[#allocation2 + $0x10] sm:$0xff]
        %v1597 = vld [vmem:[#allocation2 + $0x18] sm:$0xff]
        %v1598 = vld [vmem:[%s2] sm:$0xf]
        %v1599 = vld [vmem:[%s2 + $0x4] sm:$0xf]
        %v1600 = vld [vmem:[%s2 + $0x8] sm:$0xf]
        %v1601 = vld [vmem:[%s2 + $0xc] sm:$0xf]
        %s1602 = scalar_lea.vmem %s2, 16
        %v1603 = vld [vmem:[%s1602] sm:$0xf]
        %v1604 = vld [vmem:[%s1602 + $0x4] sm:$0xf]
        %v1605 = vld [vmem:[%s1602 + $0x8] sm:$0xf]
        %v1606 = vld [vmem:[%s1602 + $0xc] sm:$0xf]
        %v1611 = vunpack.c.l.b16 %v1603
        %v1612 = vunpack.c.l.b16 %v1604
        %v1613 = vunpack.c.l.b16 %v1605
        %v1614 = vunpack.c.l.b16 %v1606
        %v1615 = vpack.c.b16 %v1612, %v1611
        %v1616 = vpack.c.b16 %v1614, %v1613
        %v1621 = vunpack.c.l.b16 %v1594
        %v1622 = vunpack.c.h.b16 %v1594
        %v1623 = vunpack.c.l.b16 %v1595
        %v1624 = vunpack.c.h.b16 %v1595
        %v1625 = vunpack.c.l.b16 %v1596
        %v1626 = vunpack.c.h.b16 %v1596
        %v1627 = vunpack.c.l.b16 %v1597
        %v1628 = vunpack.c.h.b16 %v1597
        %v1629 = vpack.c.b16 %v1625, %v1621
        %v1630 = vpack.c.b16 %v1626, %v1622
        %v1631 = vpack.c.b16 %v1627, %v1623
        %v1632 = vpack.c.b16 %v1628, %v1624
        %1633 = vrot.lane.b32.xlu0 %v1629, 127
        %v1634 = vpop.permute.xlu0 %1633
        %1635 = vrot.lane.b32.xlu0 %v1630, 127
        %v1636 = vpop.permute.xlu0 %1635
        %1637 = vrot.lane.b32.xlu0 %v1631, 127
        %v1638 = vpop.permute.xlu0 %1637
        %1639 = vrot.lane.b32.xlu0 %v1632, 127
        %v1640 = vpop.permute.xlu0 %1639
        %v1641 = vsel %vm424, %v1634, %v1636
        %v1642 = vsel %vm424, %v1636, %v1638
        %v1643 = vsel %vm424, %v1638, %v1640
        %vm1647 = vcmask 130048
        %v1649 = vsel %vm1647, %v1615, 0
        %v1652 = vsel %vm1647, %v1616, 0
        %1654 = vmatprep.subr.bf16.mxu0 0
        %1655 = vmatpush1.bf16.msra.mxu0 0
        %1656 = vmatprep.subr.bf16.mxu0 0
        %1657 = vmatpush1.bf16.msra.mxu0 0
        %1658 = vmatprep.subr.bf16.mxu0 0
        %1659 = vmatpush1.bf16.msra.mxu0 0
        %1660 = vmatprep.subr.bf16.mxu0 0
        %1661 = vmatpush1.bf16.msra.mxu0 0
        %1662 = vmatprep.subr.bf16.mxu0 0
        %1663 = vmatpush1.bf16.msra.mxu0 0
        %1664 = vmatprep.subr.bf16.mxu0 0
        %1665 = vmatpush1.bf16.msra.mxu0 0
        %1666 = vmatprep.subr.bf16.mxu0 0
        %1667 = vmatpush1.bf16.msra.mxu0 0
        %1668 = vmatprep.subr.bf16.mxu0 %v1642
        %1669 = vmatpush1.bf16.msra.mxu0 %v1641
        %1670 = vmatprep.subr.bf16.mxu0 0
        %1671 = vmatpush2.bf16.msra.mxu0 0
        %1672 = vmatprep.subr.bf16.mxu0 0
        %1673 = vmatpush2.bf16.msra.mxu0 0
        %1674 = vmatprep.subr.bf16.mxu0 0
        %1675 = vmatpush2.bf16.msra.mxu0 0
        %1676 = vmatprep.subr.bf16.mxu0 0
        %1677 = vmatpush2.bf16.msra.mxu0 0
        %1678 = vmatprep.subr.bf16.mxu0 0
        %1679 = vmatpush2.bf16.msra.mxu0 0
        %1680 = vmatprep.subr.bf16.mxu0 0
        %1681 = vmatpush2.bf16.msra.mxu0 0
        %1682 = vmatprep.subr.bf16.mxu0 0
        %1683 = vmatpush2.bf16.msra.mxu0 0
        %1684 = vmatprep.subr.bf16.mxu0 0
        %1685 = vmatpush2.bf16.msra.mxu0 0
        %1686 = vmatprep.mubr.bf16.mxu0 0
        %1687 = vmatmul.mubr.bf16.gmra.mxu0 %v1649
        %v1688 = vpop.f32.mrf.mxu0
        %v1689 = vadd.f32 0.0, %v1688
        %v1690 = vpop.f32.mrf.mxu0
        %v1691 = vadd.f32 0.0, %v1690
        %v1692 = vpop.f32.mrf.mxu0
        %v1693 = vadd.f32 0.0, %v1692
        %v1694 = vpop.f32.mrf.mxu0
        %v1695 = vadd.f32 0.0, %v1694
        %1696 = vmatprep.mubr.bf16.mxu0 0
        %1697 = vmatmul.mubr.bf16.gmra.mxu0 %v1652
        %v1698 = vpop.f32.mrf.mxu0
        %v1699 = vadd.f32 0.0, %v1698
        %v1700 = vpop.f32.mrf.mxu0
        %v1701 = vadd.f32 0.0, %v1700
        %v1702 = vpop.f32.mrf.mxu0
        %v1703 = vadd.f32 0.0, %v1702
        %v1704 = vpop.f32.mrf.mxu0
        %v1705 = vadd.f32 0.0, %v1704
        %1706 = vdwg.mxu0
        %1707 = vmatprep.subr.bf16.mxu0 0
        %1708 = vmatpush1.bf16.msra.mxu0 0
        %1709 = vmatprep.subr.bf16.mxu0 0
        %1710 = vmatpush1.bf16.msra.mxu0 0
        %1711 = vmatprep.subr.bf16.mxu0 0
        %1712 = vmatpush1.bf16.msra.mxu0 0
        %1713 = vmatprep.subr.bf16.mxu0 0
        %1714 = vmatpush1.bf16.msra.mxu0 0
        %1715 = vmatprep.subr.bf16.mxu0 0
        %1716 = vmatpush1.bf16.msra.mxu0 0
        %1717 = vmatprep.subr.bf16.mxu0 0
        %1718 = vmatpush1.bf16.msra.mxu0 0
        %1719 = vmatprep.subr.bf16.mxu0 0
        %1720 = vmatpush1.bf16.msra.mxu0 0
        %1721 = vmatprep.subr.bf16.mxu0 0
        %1722 = vmatpush1.bf16.msra.mxu0 %v1643
        %1723 = vmatprep.subr.bf16.mxu0 0
        %1724 = vmatpush2.bf16.msra.mxu0 0
        %1725 = vmatprep.subr.bf16.mxu0 0
        %1726 = vmatpush2.bf16.msra.mxu0 0
        %1727 = vmatprep.subr.bf16.mxu0 0
        %1728 = vmatpush2.bf16.msra.mxu0 0
        %1729 = vmatprep.subr.bf16.mxu0 0
        %1730 = vmatpush2.bf16.msra.mxu0 0
        %1731 = vmatprep.subr.bf16.mxu0 0
        %1732 = vmatpush2.bf16.msra.mxu0 0
        %1733 = vmatprep.subr.bf16.mxu0 0
        %1734 = vmatpush2.bf16.msra.mxu0 0
        %1735 = vmatprep.subr.bf16.mxu0 0
        %1736 = vmatpush2.bf16.msra.mxu0 0
        %1737 = vmatprep.subr.bf16.mxu0 0
        %1738 = vmatpush2.bf16.msra.mxu0 0
        %1739 = vmatprep.mubr.bf16.mxu0 0
        %1740 = vmatmul.mubr.bf16.gmra.mxu0 %v1649
        %v1741 = vpop.f32.mrf.mxu0
        %v1742 = vadd.f32 0.0, %v1741
        %v1743 = vpop.f32.mrf.mxu0
        %v1744 = vpop.f32.mrf.mxu0
        %v1745 = vadd.f32 0.0, %v1744
        %v1746 = vpop.f32.mrf.mxu0
        %1747 = vmatprep.mubr.bf16.mxu0 0
        %1748 = vmatmul.mubr.bf16.gmra.mxu0 %v1652
        %v1749 = vpop.f32.mrf.mxu0
        %v1750 = vadd.f32 0.0, %v1749
        %v1751 = vpop.f32.mrf.mxu0
        %v1752 = vpop.f32.mrf.mxu0
        %v1753 = vadd.f32 0.0, %v1752
        %v1754 = vpop.f32.mrf.mxu0
        %1755 = vdwg.mxu0
        %v1760 = vunpack.c.l.b16 %v1598
        %v1761 = vunpack.c.l.b16 %v1599
        %v1762 = vunpack.c.l.b16 %v1600
        %v1763 = vunpack.c.l.b16 %v1601
        %v1764 = vpack.c.b16 %v1761, %v1760
        %v1765 = vpack.c.b16 %v1763, %v1762
        %v1770 = vsel %vm1647, %v1764, 0
        %v1773 = vsel %vm1647, %v1765, 0
        %1775 = vmatprep.subr.bf16.mxu0 0
        %1776 = vmatpush1.bf16.msra.mxu0 0
        %1777 = vmatprep.subr.bf16.mxu0 0
        %1778 = vmatpush1.bf16.msra.mxu0 0
        %1779 = vmatprep.subr.bf16.mxu0 0
        %1780 = vmatpush1.bf16.msra.mxu0 0
        %1781 = vmatprep.subr.bf16.mxu0 0
        %1782 = vmatpush1.bf16.msra.mxu0 0
        %1783 = vmatprep.subr.bf16.mxu0 0
        %1784 = vmatpush1.bf16.msra.mxu0 0
        %1785 = vmatprep.subr.bf16.mxu0 0
        %1786 = vmatpush1.bf16.msra.mxu0 0
        %1787 = vmatprep.subr.bf16.mxu0 0
        %1788 = vmatpush1.bf16.msra.mxu0 0
        %1789 = vmatprep.subr.bf16.mxu0 %v1630
        %1790 = vmatpush1.bf16.msra.mxu0 %v1629
        %1791 = vmatprep.subr.bf16.mxu0 0
        %1792 = vmatpush2.bf16.msra.mxu0 0
        %1793 = vmatprep.subr.bf16.mxu0 0
        %1794 = vmatpush2.bf16.msra.mxu0 0
        %1795 = vmatprep.subr.bf16.mxu0 0
        %1796 = vmatpush2.bf16.msra.mxu0 0
        %1797 = vmatprep.subr.bf16.mxu0 0
        %1798 = vmatpush2.bf16.msra.mxu0 0
        %1799 = vmatprep.subr.bf16.mxu0 0
        %1800 = vmatpush2.bf16.msra.mxu0 0
        %1801 = vmatprep.subr.bf16.mxu0 0
        %1802 = vmatpush2.bf16.msra.mxu0 0
        %1803 = vmatprep.subr.bf16.mxu0 0
        %1804 = vmatpush2.bf16.msra.mxu0 0
        %1805 = vmatprep.subr.bf16.mxu0 0
        %1806 = vmatpush2.bf16.msra.mxu0 0
        %1807 = vmatprep.mubr.bf16.mxu0 0
        %1808 = vmatmul.mubr.bf16.gmra.mxu0 %v1770
        %v1809 = vpop.f32.mrf.mxu0
        %v1810 = vadd.f32 %v1689, %v1809
        %v1811 = vpop.f32.mrf.mxu0
        %v1812 = vadd.f32 %v1691, %v1811
        %v1813 = vpop.f32.mrf.mxu0
        %v1814 = vadd.f32 %v1693, %v1813
        %v1815 = vpop.f32.mrf.mxu0
        %v1816 = vadd.f32 %v1695, %v1815
        %1817 = vmatprep.mubr.bf16.mxu0 0
        %1818 = vmatmul.mubr.bf16.gmra.mxu0 %v1773
        %v1819 = vpop.f32.mrf.mxu0
        %v1820 = vadd.f32 %v1699, %v1819
        %v1821 = vpop.f32.mrf.mxu0
        %v1822 = vadd.f32 %v1701, %v1821
        %v1823 = vpop.f32.mrf.mxu0
        %v1824 = vadd.f32 %v1703, %v1823
        %v1825 = vpop.f32.mrf.mxu0
        %v1826 = vadd.f32 %v1705, %v1825
        %1827 = vdwg.mxu0
        %1828 = vmatprep.subr.bf16.mxu0 0
        %1829 = vmatpush1.bf16.msra.mxu0 0
        %1830 = vmatprep.subr.bf16.mxu0 0
        %1831 = vmatpush1.bf16.msra.mxu0 0
        %1832 = vmatprep.subr.bf16.mxu0 0
        %1833 = vmatpush1.bf16.msra.mxu0 0
        %1834 = vmatprep.subr.bf16.mxu0 0
        %1835 = vmatpush1.bf16.msra.mxu0 0
        %1836 = vmatprep.subr.bf16.mxu0 0
        %1837 = vmatpush1.bf16.msra.mxu0 0
        %1838 = vmatprep.subr.bf16.mxu0 0
        %1839 = vmatpush1.bf16.msra.mxu0 0
        %1840 = vmatprep.subr.bf16.mxu0 0
        %1841 = vmatpush1.bf16.msra.mxu0 0
        %1842 = vmatprep.subr.bf16.mxu0 0
        %1843 = vmatpush1.bf16.msra.mxu0 %v1631
        %1844 = vmatprep.subr.bf16.mxu0 0
        %1845 = vmatpush2.bf16.msra.mxu0 0
        %1846 = vmatprep.subr.bf16.mxu0 0
        %1847 = vmatpush2.bf16.msra.mxu0 0
        %1848 = vmatprep.subr.bf16.mxu0 0
        %1849 = vmatpush2.bf16.msra.mxu0 0
        %1850 = vmatprep.subr.bf16.mxu0 0
        %1851 = vmatpush2.bf16.msra.mxu0 0
        %1852 = vmatprep.subr.bf16.mxu0 0
        %1853 = vmatpush2.bf16.msra.mxu0 0
        %1854 = vmatprep.subr.bf16.mxu0 0
        %1855 = vmatpush2.bf16.msra.mxu0 0
        %1856 = vmatprep.subr.bf16.mxu0 0
        %1857 = vmatpush2.bf16.msra.mxu0 0
        %1858 = vmatprep.subr.bf16.mxu0 0
        %1859 = vmatpush2.bf16.msra.mxu0 0
        %1860 = vmatprep.mubr.bf16.mxu0 0
        %1861 = vmatmul.mubr.bf16.gmra.mxu0 %v1770
        %v1862 = vpop.f32.mrf.mxu0
        %v1863 = vadd.f32 %v1742, %v1862
        %v1864 = vpop.f32.mrf.mxu0
        %v1865 = vpop.f32.mrf.mxu0
        %v1866 = vadd.f32 %v1745, %v1865
        %v1867 = vpop.f32.mrf.mxu0
        %1868 = vmatprep.mubr.bf16.mxu0 0
        %1869 = vmatmul.mubr.bf16.gmra.mxu0 %v1773
        %v1870 = vpop.f32.mrf.mxu0
        %v1871 = vadd.f32 %v1750, %v1870
        %v1872 = vpop.f32.mrf.mxu0
        %v1873 = vpop.f32.mrf.mxu0
        %v1874 = vadd.f32 %v1753, %v1873
        %v1875 = vpop.f32.mrf.mxu0
        %1876 = vdwg.mxu0
        %s1877 = scalar_lea.vmem %s2, 32
        %v1878 = vld [vmem:[%s1877] sm:$0xf]
        %v1879 = vld [vmem:[%s1877 + $0x4] sm:$0xf]
        %v1880 = vld [vmem:[%s1877 + $0x8] sm:$0xf]
        %v1881 = vld [vmem:[%s1877 + $0xc] sm:$0xf]
        %v1886 = vunpack.c.l.b16 %v1878
        %v1887 = vunpack.c.l.b16 %v1879
        %v1888 = vunpack.c.l.b16 %v1880
        %v1889 = vunpack.c.l.b16 %v1881
        %v1890 = vpack.c.b16 %v1887, %v1886
        %v1891 = vpack.c.b16 %v1889, %v1888
        %1892 = vrot.lane.b32.xlu0 %v1629, 126
        %v1893 = vpop.permute.xlu0 %1892
        %1894 = vrot.lane.b32.xlu0 %v1630, 126
        %v1895 = vpop.permute.xlu0 %1894
        %1896 = vrot.lane.b32.xlu0 %v1631, 126
        %v1897 = vpop.permute.xlu0 %1896
        %1898 = vrot.lane.b32.xlu0 %v1632, 126
        %v1899 = vpop.permute.xlu0 %1898
        %v1900 = vsel %vm643, %v1893, %v1895
        %v1901 = vsel %vm643, %v1895, %v1897
        %v1902 = vsel %vm643, %v1897, %v1899
        %v1907 = vsel %vm1647, %v1890, 0
        %v1910 = vsel %vm1647, %v1891, 0
        %1912 = vmatprep.subr.bf16.mxu0 0
        %1913 = vmatpush1.bf16.msra.mxu0 0
        %1914 = vmatprep.subr.bf16.mxu0 0
        %1915 = vmatpush1.bf16.msra.mxu0 0
        %1916 = vmatprep.subr.bf16.mxu0 0
        %1917 = vmatpush1.bf16.msra.mxu0 0
        %1918 = vmatprep.subr.bf16.mxu0 0
        %1919 = vmatpush1.bf16.msra.mxu0 0
        %1920 = vmatprep.subr.bf16.mxu0 0
        %1921 = vmatpush1.bf16.msra.mxu0 0
        %1922 = vmatprep.subr.bf16.mxu0 0
        %1923 = vmatpush1.bf16.msra.mxu0 0
        %1924 = vmatprep.subr.bf16.mxu0 0
        %1925 = vmatpush1.bf16.msra.mxu0 0
        %1926 = vmatprep.subr.bf16.mxu0 %v1901
        %1927 = vmatpush1.bf16.msra.mxu0 %v1900
        %1928 = vmatprep.subr.bf16.mxu0 0
        %1929 = vmatpush2.bf16.msra.mxu0 0
        %1930 = vmatprep.subr.bf16.mxu0 0
        %1931 = vmatpush2.bf16.msra.mxu0 0
        %1932 = vmatprep.subr.bf16.mxu0 0
        %1933 = vmatpush2.bf16.msra.mxu0 0
        %1934 = vmatprep.subr.bf16.mxu0 0
        %1935 = vmatpush2.bf16.msra.mxu0 0
        %1936 = vmatprep.subr.bf16.mxu0 0
        %1937 = vmatpush2.bf16.msra.mxu0 0
        %1938 = vmatprep.subr.bf16.mxu0 0
        %1939 = vmatpush2.bf16.msra.mxu0 0
        %1940 = vmatprep.subr.bf16.mxu0 0
        %1941 = vmatpush2.bf16.msra.mxu0 0
        %1942 = vmatprep.subr.bf16.mxu0 0
        %1943 = vmatpush2.bf16.msra.mxu0 0
        %1944 = vmatprep.mubr.bf16.mxu0 0
        %1945 = vmatmul.mubr.bf16.gmra.mxu0 %v1907
        %v1946 = vpop.f32.mrf.mxu0
        %v1947 = vadd.f32 0.0, %v1946
        %v1948 = vpop.f32.mrf.mxu0
        %v1949 = vadd.f32 0.0, %v1948
        %v1950 = vpop.f32.mrf.mxu0
        %v1951 = vadd.f32 0.0, %v1950
        %v1952 = vpop.f32.mrf.mxu0
        %v1953 = vadd.f32 0.0, %v1952
        %1954 = vmatprep.mubr.bf16.mxu0 0
        %1955 = vmatmul.mubr.bf16.gmra.mxu0 %v1910
        %v1956 = vpop.f32.mrf.mxu0
        %v1957 = vadd.f32 0.0, %v1956
        %v1958 = vpop.f32.mrf.mxu0
        %v1959 = vadd.f32 0.0, %v1958
        %v1960 = vpop.f32.mrf.mxu0
        %v1961 = vadd.f32 0.0, %v1960
        %v1962 = vpop.f32.mrf.mxu0
        %v1963 = vadd.f32 0.0, %v1962
        %1964 = vdwg.mxu0
        %1965 = vmatprep.subr.bf16.mxu0 0
        %1966 = vmatpush1.bf16.msra.mxu0 0
        %1967 = vmatprep.subr.bf16.mxu0 0
        %1968 = vmatpush1.bf16.msra.mxu0 0
        %1969 = vmatprep.subr.bf16.mxu0 0
        %1970 = vmatpush1.bf16.msra.mxu0 0
        %1971 = vmatprep.subr.bf16.mxu0 0
        %1972 = vmatpush1.bf16.msra.mxu0 0
        %1973 = vmatprep.subr.bf16.mxu0 0
        %1974 = vmatpush1.bf16.msra.mxu0 0
        %1975 = vmatprep.subr.bf16.mxu0 0
        %1976 = vmatpush1.bf16.msra.mxu0 0
        %1977 = vmatprep.subr.bf16.mxu0 0
        %1978 = vmatpush1.bf16.msra.mxu0 0
        %1979 = vmatprep.subr.bf16.mxu0 0
        %1980 = vmatpush1.bf16.msra.mxu0 %v1902
        %1981 = vmatprep.subr.bf16.mxu0 0
        %1982 = vmatpush2.bf16.msra.mxu0 0
        %1983 = vmatprep.subr.bf16.mxu0 0
        %1984 = vmatpush2.bf16.msra.mxu0 0
        %1985 = vmatprep.subr.bf16.mxu0 0
        %1986 = vmatpush2.bf16.msra.mxu0 0
        %1987 = vmatprep.subr.bf16.mxu0 0
        %1988 = vmatpush2.bf16.msra.mxu0 0
        %1989 = vmatprep.subr.bf16.mxu0 0
        %1990 = vmatpush2.bf16.msra.mxu0 0
        %1991 = vmatprep.subr.bf16.mxu0 0
        %1992 = vmatpush2.bf16.msra.mxu0 0
        %1993 = vmatprep.subr.bf16.mxu0 0
        %1994 = vmatpush2.bf16.msra.mxu0 0
        %1995 = vmatprep.subr.bf16.mxu0 0
        %1996 = vmatpush2.bf16.msra.mxu0 0
        %1997 = vmatprep.mubr.bf16.mxu0 0
        %1998 = vmatmul.mubr.bf16.gmra.mxu0 %v1907
        %v1999 = vpop.f32.mrf.mxu0
        %v2000 = vadd.f32 0.0, %v1999
        %v2001 = vpop.f32.mrf.mxu0
        %v2002 = vpop.f32.mrf.mxu0
        %v2003 = vadd.f32 0.0, %v2002
        %v2004 = vpop.f32.mrf.mxu0
        %2005 = vmatprep.mubr.bf16.mxu0 0
        %2006 = vmatmul.mubr.bf16.gmra.mxu0 %v1910
        %v2007 = vpop.f32.mrf.mxu0
        %v2008 = vadd.f32 0.0, %v2007
        %v2009 = vpop.f32.mrf.mxu0
        %v2010 = vpop.f32.mrf.mxu0
        %v2011 = vadd.f32 0.0, %v2010
        %v2012 = vpop.f32.mrf.mxu0
        %2013 = vdwg.mxu0
        %v2014 = vadd.f32 %v1810, %v1947
        %v2015 = vadd.f32 %v1812, %v1949
        %v2016 = vadd.f32 %v1863, %v2000
        %v2017 = vadd.f32 %v1814, %v1951
        %v2018 = vadd.f32 %v1816, %v1953
        %v2019 = vadd.f32 %v1866, %v2003
        %v2020 = vadd.f32 %v1820, %v1957
        %v2021 = vadd.f32 %v1822, %v1959
        %v2022 = vadd.f32 %v1871, %v2008
        %v2023 = vadd.f32 %v1824, %v1961
        %v2024 = vadd.f32 %v1826, %v1963
        %v2025 = vadd.f32 %v1874, %v2011
        %s2026 = scalar_lea.vmem %s2, 48
        %v2027 = vld [vmem:[%s2026] sm:$0xf]
        %v2028 = vld [vmem:[%s2026 + $0x4] sm:$0xf]
        %v2029 = vld [vmem:[%s2026 + $0x8] sm:$0xf]
        %v2030 = vld [vmem:[%s2026 + $0xc] sm:$0xf]
        %v2035 = vunpack.c.l.b16 %v2027
        %v2036 = vunpack.c.l.b16 %v2028
        %v2037 = vunpack.c.l.b16 %v2029
        %v2038 = vunpack.c.l.b16 %v2030
        %v2039 = vpack.c.b16 %v2036, %v2035
        %v2040 = vpack.c.b16 %v2038, %v2037
        %2041 = vrot.lane.b32.xlu0 %v1629, 104
        %v2042 = vpop.permute.xlu0 %2041
        %2043 = vrot.lane.b32.xlu0 %v1630, 104
        %v2044 = vpop.permute.xlu0 %2043
        %2045 = vrot.lane.b32.xlu0 %v1631, 104
        %v2046 = vpop.permute.xlu0 %2045
        %2047 = vrot.lane.b32.xlu0 %v1632, 104
        %v2048 = vpop.permute.xlu0 %2047
        %v2049 = vsel %vm765, %v2042, %v2044
        %v2050 = vsel %vm765, %v2044, %v2046
        %v2051 = vsel %vm765, %v2046, %v2048
        %v2056 = vsel %vm1647, %v2039, 0
        %v2059 = vsel %vm1647, %v2040, 0
        %2061 = vmatprep.subr.bf16.mxu0 0
        %2062 = vmatpush1.bf16.msra.mxu0 0
        %2063 = vmatprep.subr.bf16.mxu0 0
        %2064 = vmatpush1.bf16.msra.mxu0 0
        %2065 = vmatprep.subr.bf16.mxu0 0
        %2066 = vmatpush1.bf16.msra.mxu0 0
        %2067 = vmatprep.subr.bf16.mxu0 0
        %2068 = vmatpush1.bf16.msra.mxu0 0
        %2069 = vmatprep.subr.bf16.mxu0 0
        %2070 = vmatpush1.bf16.msra.mxu0 0
        %2071 = vmatprep.subr.bf16.mxu0 0
        %2072 = vmatpush1.bf16.msra.mxu0 0
        %2073 = vmatprep.subr.bf16.mxu0 0
        %2074 = vmatpush1.bf16.msra.mxu0 0
        %2075 = vmatprep.subr.bf16.mxu0 %v2050
        %2076 = vmatpush1.bf16.msra.mxu0 %v2049
        %2077 = vmatprep.subr.bf16.mxu0 0
        %2078 = vmatpush2.bf16.msra.mxu0 0
        %2079 = vmatprep.subr.bf16.mxu0 0
        %2080 = vmatpush2.bf16.msra.mxu0 0
        %2081 = vmatprep.subr.bf16.mxu0 0
        %2082 = vmatpush2.bf16.msra.mxu0 0
        %2083 = vmatprep.subr.bf16.mxu0 0
        %2084 = vmatpush2.bf16.msra.mxu0 0
        %2085 = vmatprep.subr.bf16.mxu0 0
        %2086 = vmatpush2.bf16.msra.mxu0 0
        %2087 = vmatprep.subr.bf16.mxu0 0
        %2088 = vmatpush2.bf16.msra.mxu0 0
        %2089 = vmatprep.subr.bf16.mxu0 0
        %2090 = vmatpush2.bf16.msra.mxu0 0
        %2091 = vmatprep.subr.bf16.mxu0 0
        %2092 = vmatpush2.bf16.msra.mxu0 0
        %2093 = vmatprep.mubr.bf16.mxu0 0
        %2094 = vmatmul.mubr.bf16.gmra.mxu0 %v2056
        %v2095 = vpop.f32.mrf.mxu0
        %v2096 = vadd.f32 0.0, %v2095
        %v2097 = vpop.f32.mrf.mxu0
        %v2098 = vadd.f32 0.0, %v2097
        %v2099 = vpop.f32.mrf.mxu0
        %v2100 = vadd.f32 0.0, %v2099
        %v2101 = vpop.f32.mrf.mxu0
        %v2102 = vadd.f32 0.0, %v2101
        %2103 = vmatprep.mubr.bf16.mxu0 0
        %2104 = vmatmul.mubr.bf16.gmra.mxu0 %v2059
        %v2105 = vpop.f32.mrf.mxu0
        %v2106 = vadd.f32 0.0, %v2105
        %v2107 = vpop.f32.mrf.mxu0
        %v2108 = vadd.f32 0.0, %v2107
        %v2109 = vpop.f32.mrf.mxu0
        %v2110 = vadd.f32 0.0, %v2109
        %v2111 = vpop.f32.mrf.mxu0
        %v2112 = vadd.f32 0.0, %v2111
        %2113 = vdwg.mxu0
        %2114 = vmatprep.subr.bf16.mxu0 0
        %2115 = vmatpush1.bf16.msra.mxu0 0
        %2116 = vmatprep.subr.bf16.mxu0 0
        %2117 = vmatpush1.bf16.msra.mxu0 0
        %2118 = vmatprep.subr.bf16.mxu0 0
        %2119 = vmatpush1.bf16.msra.mxu0 0
        %2120 = vmatprep.subr.bf16.mxu0 0
        %2121 = vmatpush1.bf16.msra.mxu0 0
        %2122 = vmatprep.subr.bf16.mxu0 0
        %2123 = vmatpush1.bf16.msra.mxu0 0
        %2124 = vmatprep.subr.bf16.mxu0 0
        %2125 = vmatpush1.bf16.msra.mxu0 0
        %2126 = vmatprep.subr.bf16.mxu0 0
        %2127 = vmatpush1.bf16.msra.mxu0 0
        %2128 = vmatprep.subr.bf16.mxu0 0
        %2129 = vmatpush1.bf16.msra.mxu0 %v2051
        %2130 = vmatprep.subr.bf16.mxu0 0
        %2131 = vmatpush2.bf16.msra.mxu0 0
        %2132 = vmatprep.subr.bf16.mxu0 0
        %2133 = vmatpush2.bf16.msra.mxu0 0
        %2134 = vmatprep.subr.bf16.mxu0 0
        %2135 = vmatpush2.bf16.msra.mxu0 0
        %2136 = vmatprep.subr.bf16.mxu0 0
        %2137 = vmatpush2.bf16.msra.mxu0 0
        %2138 = vmatprep.subr.bf16.mxu0 0
        %2139 = vmatpush2.bf16.msra.mxu0 0
        %2140 = vmatprep.subr.bf16.mxu0 0
        %2141 = vmatpush2.bf16.msra.mxu0 0
        %2142 = vmatprep.subr.bf16.mxu0 0
        %2143 = vmatpush2.bf16.msra.mxu0 0
        %2144 = vmatprep.subr.bf16.mxu0 0
        %2145 = vmatpush2.bf16.msra.mxu0 0
        %2146 = vmatprep.mubr.bf16.mxu0 0
        %2147 = vmatmul.mubr.bf16.gmra.mxu0 %v2056
        %v2148 = vpop.f32.mrf.mxu0
        %v2149 = vadd.f32 0.0, %v2148
        %v2150 = vpop.f32.mrf.mxu0
        %v2151 = vpop.f32.mrf.mxu0
        %v2152 = vadd.f32 0.0, %v2151
        %v2153 = vpop.f32.mrf.mxu0
        %2154 = vmatprep.mubr.bf16.mxu0 0
        %2155 = vmatmul.mubr.bf16.gmra.mxu0 %v2059
        %v2156 = vpop.f32.mrf.mxu0
        %v2157 = vadd.f32 0.0, %v2156
        %v2158 = vpop.f32.mrf.mxu0
        %v2159 = vpop.f32.mrf.mxu0
        %v2160 = vadd.f32 0.0, %v2159
        %v2161 = vpop.f32.mrf.mxu0
        %2162 = vdwg.mxu0
        %v2163 = vadd.f32 %v2014, %v2096
        %v2164 = vadd.f32 %v2015, %v2098
        %v2165 = vadd.f32 %v2016, %v2149
        %v2166 = vadd.f32 %v2017, %v2100
        %v2167 = vadd.f32 %v2018, %v2102
        %v2168 = vadd.f32 %v2019, %v2152
        %v2169 = vadd.f32 %v2020, %v2106
        %v2170 = vadd.f32 %v2021, %v2108
        %v2171 = vadd.f32 %v2022, %v2157
        %v2172 = vadd.f32 %v2023, %v2110
        %v2173 = vadd.f32 %v2024, %v2112
        %v2174 = vadd.f32 %v2025, %v2160
        %s2175 = scalar_lea.vmem %s2, 64
        %v2176 = vld [vmem:[%s2175] sm:$0xf]
        %v2177 = vld [vmem:[%s2175 + $0x4] sm:$0xf]
        %v2178 = vld [vmem:[%s2175 + $0x8] sm:$0xf]
        %v2179 = vld [vmem:[%s2175 + $0xc] sm:$0xf]
        %v2184 = vunpack.c.l.b16 %v2176
        %v2185 = vunpack.c.l.b16 %v2177
        %v2186 = vunpack.c.l.b16 %v2178
        %v2187 = vunpack.c.l.b16 %v2179
        %v2188 = vpack.c.b16 %v2185, %v2184
        %v2189 = vpack.c.b16 %v2187, %v2186
        %2190 = vrot.lane.b32.xlu0 %v1629, 103
        %v2191 = vpop.permute.xlu0 %2190
        %2192 = vrot.lane.b32.xlu0 %v1630, 103
        %v2193 = vpop.permute.xlu0 %2192
        %2194 = vrot.lane.b32.xlu0 %v1631, 103
        %v2195 = vpop.permute.xlu0 %2194
        %2196 = vrot.lane.b32.xlu0 %v1632, 103
        %v2197 = vpop.permute.xlu0 %2196
        %v2198 = vsel %vm887, %v2191, %v2193
        %v2199 = vsel %vm887, %v2193, %v2195
        %v2200 = vsel %vm887, %v2195, %v2197
        %v2205 = vsel %vm1647, %v2188, 0
        %v2208 = vsel %vm1647, %v2189, 0
        %2210 = vmatprep.subr.bf16.mxu0 0
        %2211 = vmatpush1.bf16.msra.mxu0 0
        %2212 = vmatprep.subr.bf16.mxu0 0
        %2213 = vmatpush1.bf16.msra.mxu0 0
        %2214 = vmatprep.subr.bf16.mxu0 0
        %2215 = vmatpush1.bf16.msra.mxu0 0
        %2216 = vmatprep.subr.bf16.mxu0 0
        %2217 = vmatpush1.bf16.msra.mxu0 0
        %2218 = vmatprep.subr.bf16.mxu0 0
        %2219 = vmatpush1.bf16.msra.mxu0 0
        %2220 = vmatprep.subr.bf16.mxu0 0
        %2221 = vmatpush1.bf16.msra.mxu0 0
        %2222 = vmatprep.subr.bf16.mxu0 0
        %2223 = vmatpush1.bf16.msra.mxu0 0
        %2224 = vmatprep.subr.bf16.mxu0 %v2199
        %2225 = vmatpush1.bf16.msra.mxu0 %v2198
        %2226 = vmatprep.subr.bf16.mxu0 0
        %2227 = vmatpush2.bf16.msra.mxu0 0
        %2228 = vmatprep.subr.bf16.mxu0 0
        %2229 = vmatpush2.bf16.msra.mxu0 0
        %2230 = vmatprep.subr.bf16.mxu0 0
        %2231 = vmatpush2.bf16.msra.mxu0 0
        %2232 = vmatprep.subr.bf16.mxu0 0
        %2233 = vmatpush2.bf16.msra.mxu0 0
        %2234 = vmatprep.subr.bf16.mxu0 0
        %2235 = vmatpush2.bf16.msra.mxu0 0
        %2236 = vmatprep.subr.bf16.mxu0 0
        %2237 = vmatpush2.bf16.msra.mxu0 0
        %2238 = vmatprep.subr.bf16.mxu0 0
        %2239 = vmatpush2.bf16.msra.mxu0 0
        %2240 = vmatprep.subr.bf16.mxu0 0
        %2241 = vmatpush2.bf16.msra.mxu0 0
        %2242 = vmatprep.mubr.bf16.mxu0 0
        %2243 = vmatmul.mubr.bf16.gmra.mxu0 %v2205
        %v2244 = vpop.f32.mrf.mxu0
        %v2245 = vadd.f32 0.0, %v2244
        %v2246 = vpop.f32.mrf.mxu0
        %v2247 = vadd.f32 0.0, %v2246
        %v2248 = vpop.f32.mrf.mxu0
        %v2249 = vadd.f32 0.0, %v2248
        %v2250 = vpop.f32.mrf.mxu0
        %v2251 = vadd.f32 0.0, %v2250
        %2252 = vmatprep.mubr.bf16.mxu0 0
        %2253 = vmatmul.mubr.bf16.gmra.mxu0 %v2208
        %v2254 = vpop.f32.mrf.mxu0
        %v2255 = vadd.f32 0.0, %v2254
        %v2256 = vpop.f32.mrf.mxu0
        %v2257 = vadd.f32 0.0, %v2256
        %v2258 = vpop.f32.mrf.mxu0
        %v2259 = vadd.f32 0.0, %v2258
        %v2260 = vpop.f32.mrf.mxu0
        %v2261 = vadd.f32 0.0, %v2260
        %2262 = vdwg.mxu0
        %2263 = vmatprep.subr.bf16.mxu0 0
        %2264 = vmatpush1.bf16.msra.mxu0 0
        %2265 = vmatprep.subr.bf16.mxu0 0
        %2266 = vmatpush1.bf16.msra.mxu0 0
        %2267 = vmatprep.subr.bf16.mxu0 0
        %2268 = vmatpush1.bf16.msra.mxu0 0
        %2269 = vmatprep.subr.bf16.mxu0 0
        %2270 = vmatpush1.bf16.msra.mxu0 0
        %2271 = vmatprep.subr.bf16.mxu0 0
        %2272 = vmatpush1.bf16.msra.mxu0 0
        %2273 = vmatprep.subr.bf16.mxu0 0
        %2274 = vmatpush1.bf16.msra.mxu0 0
        %2275 = vmatprep.subr.bf16.mxu0 0
        %2276 = vmatpush1.bf16.msra.mxu0 0
        %2277 = vmatprep.subr.bf16.mxu0 0
        %2278 = vmatpush1.bf16.msra.mxu0 %v2200
        %2279 = vmatprep.subr.bf16.mxu0 0
        %2280 = vmatpush2.bf16.msra.mxu0 0
        %2281 = vmatprep.subr.bf16.mxu0 0
        %2282 = vmatpush2.bf16.msra.mxu0 0
        %2283 = vmatprep.subr.bf16.mxu0 0
        %2284 = vmatpush2.bf16.msra.mxu0 0
        %2285 = vmatprep.subr.bf16.mxu0 0
        %2286 = vmatpush2.bf16.msra.mxu0 0
        %2287 = vmatprep.subr.bf16.mxu0 0
        %2288 = vmatpush2.bf16.msra.mxu0 0
        %2289 = vmatprep.subr.bf16.mxu0 0
        %2290 = vmatpush2.bf16.msra.mxu0 0
        %2291 = vmatprep.subr.bf16.mxu0 0
        %2292 = vmatpush2.bf16.msra.mxu0 0
        %2293 = vmatprep.subr.bf16.mxu0 0
        %2294 = vmatpush2.bf16.msra.mxu0 0
        %2295 = vmatprep.mubr.bf16.mxu0 0
        %2296 = vmatmul.mubr.bf16.gmra.mxu0 %v2205
        %v2297 = vpop.f32.mrf.mxu0
        %v2298 = vadd.f32 0.0, %v2297
        %v2299 = vpop.f32.mrf.mxu0
        %v2300 = vpop.f32.mrf.mxu0
        %v2301 = vadd.f32 0.0, %v2300
        %v2302 = vpop.f32.mrf.mxu0
        %2303 = vmatprep.mubr.bf16.mxu0 0
        %2304 = vmatmul.mubr.bf16.gmra.mxu0 %v2208
        %v2305 = vpop.f32.mrf.mxu0
        %v2306 = vadd.f32 0.0, %v2305
        %v2307 = vpop.f32.mrf.mxu0
        %v2308 = vpop.f32.mrf.mxu0
        %v2309 = vadd.f32 0.0, %v2308
        %v2310 = vpop.f32.mrf.mxu0
        %2311 = vdwg.mxu0
        %v2312 = vadd.f32 %v2163, %v2245
        %v2313 = vadd.f32 %v2164, %v2247
        %v2314 = vadd.f32 %v2165, %v2298
        %v2315 = vadd.f32 %v2166, %v2249
        %v2316 = vadd.f32 %v2167, %v2251
        %v2317 = vadd.f32 %v2168, %v2301
        %v2318 = vadd.f32 %v2169, %v2255
        %v2319 = vadd.f32 %v2170, %v2257
        %v2320 = vadd.f32 %v2171, %v2306
        %v2321 = vadd.f32 %v2172, %v2259
        %v2322 = vadd.f32 %v2173, %v2261
        %v2323 = vadd.f32 %v2174, %v2309
        %s2324 = scalar_lea.vmem %s2, 80
        %v2325 = vld [vmem:[%s2324] sm:$0xf]
        %v2326 = vld [vmem:[%s2324 + $0x4] sm:$0xf]
        %v2327 = vld [vmem:[%s2324 + $0x8] sm:$0xf]
        %v2328 = vld [vmem:[%s2324 + $0xc] sm:$0xf]
        %v2333 = vunpack.c.l.b16 %v2325
        %v2334 = vunpack.c.l.b16 %v2326
        %v2335 = vunpack.c.l.b16 %v2327
        %v2336 = vunpack.c.l.b16 %v2328
        %v2337 = vpack.c.b16 %v2334, %v2333
        %v2338 = vpack.c.b16 %v2336, %v2335
        %2339 = vrot.lane.b32.xlu0 %v1629, 102
        %v2340 = vpop.permute.xlu0 %2339
        %2341 = vrot.lane.b32.xlu0 %v1630, 102
        %v2342 = vpop.permute.xlu0 %2341
        %2343 = vrot.lane.b32.xlu0 %v1631, 102
        %v2344 = vpop.permute.xlu0 %2343
        %2345 = vrot.lane.b32.xlu0 %v1632, 102
        %v2346 = vpop.permute.xlu0 %2345
        %v2347 = vsel %vm1009, %v2340, %v2342
        %v2348 = vsel %vm1009, %v2342, %v2344
        %v2349 = vsel %vm1009, %v2344, %v2346
        %v2354 = vsel %vm1647, %v2337, 0
        %v2357 = vsel %vm1647, %v2338, 0
        %2359 = vmatprep.subr.bf16.mxu0 0
        %2360 = vmatpush1.bf16.msra.mxu0 0
        %2361 = vmatprep.subr.bf16.mxu0 0
        %2362 = vmatpush1.bf16.msra.mxu0 0
        %2363 = vmatprep.subr.bf16.mxu0 0
        %2364 = vmatpush1.bf16.msra.mxu0 0
        %2365 = vmatprep.subr.bf16.mxu0 0
        %2366 = vmatpush1.bf16.msra.mxu0 0
        %2367 = vmatprep.subr.bf16.mxu0 0
        %2368 = vmatpush1.bf16.msra.mxu0 0
        %2369 = vmatprep.subr.bf16.mxu0 0
        %2370 = vmatpush1.bf16.msra.mxu0 0
        %2371 = vmatprep.subr.bf16.mxu0 0
        %2372 = vmatpush1.bf16.msra.mxu0 0
        %2373 = vmatprep.subr.bf16.mxu0 %v2348
        %2374 = vmatpush1.bf16.msra.mxu0 %v2347
        %2375 = vmatprep.subr.bf16.mxu0 0
        %2376 = vmatpush2.bf16.msra.mxu0 0
        %2377 = vmatprep.subr.bf16.mxu0 0
        %2378 = vmatpush2.bf16.msra.mxu0 0
        %2379 = vmatprep.subr.bf16.mxu0 0
        %2380 = vmatpush2.bf16.msra.mxu0 0
        %2381 = vmatprep.subr.bf16.mxu0 0
        %2382 = vmatpush2.bf16.msra.mxu0 0
        %2383 = vmatprep.subr.bf16.mxu0 0
        %2384 = vmatpush2.bf16.msra.mxu0 0
        %2385 = vmatprep.subr.bf16.mxu0 0
        %2386 = vmatpush2.bf16.msra.mxu0 0
        %2387 = vmatprep.subr.bf16.mxu0 0
        %2388 = vmatpush2.bf16.msra.mxu0 0
        %2389 = vmatprep.subr.bf16.mxu0 0
        %2390 = vmatpush2.bf16.msra.mxu0 0
        %2391 = vmatprep.mubr.bf16.mxu0 0
        %2392 = vmatmul.mubr.bf16.gmra.mxu0 %v2354
        %v2393 = vpop.f32.mrf.mxu0
        %v2394 = vadd.f32 0.0, %v2393
        %v2395 = vpop.f32.mrf.mxu0
        %v2396 = vadd.f32 0.0, %v2395
        %v2397 = vpop.f32.mrf.mxu0
        %v2398 = vadd.f32 0.0, %v2397
        %v2399 = vpop.f32.mrf.mxu0
        %v2400 = vadd.f32 0.0, %v2399
        %2401 = vmatprep.mubr.bf16.mxu0 0
        %2402 = vmatmul.mubr.bf16.gmra.mxu0 %v2357
        %v2403 = vpop.f32.mrf.mxu0
        %v2404 = vadd.f32 0.0, %v2403
        %v2405 = vpop.f32.mrf.mxu0
        %v2406 = vadd.f32 0.0, %v2405
        %v2407 = vpop.f32.mrf.mxu0
        %v2408 = vadd.f32 0.0, %v2407
        %v2409 = vpop.f32.mrf.mxu0
        %v2410 = vadd.f32 0.0, %v2409
        %2411 = vdwg.mxu0
        %2412 = vmatprep.subr.bf16.mxu0 0
        %2413 = vmatpush1.bf16.msra.mxu0 0
        %2414 = vmatprep.subr.bf16.mxu0 0
        %2415 = vmatpush1.bf16.msra.mxu0 0
        %2416 = vmatprep.subr.bf16.mxu0 0
        %2417 = vmatpush1.bf16.msra.mxu0 0
        %2418 = vmatprep.subr.bf16.mxu0 0
        %2419 = vmatpush1.bf16.msra.mxu0 0
        %2420 = vmatprep.subr.bf16.mxu0 0
        %2421 = vmatpush1.bf16.msra.mxu0 0
        %2422 = vmatprep.subr.bf16.mxu0 0
        %2423 = vmatpush1.bf16.msra.mxu0 0
        %2424 = vmatprep.subr.bf16.mxu0 0
        %2425 = vmatpush1.bf16.msra.mxu0 0
        %2426 = vmatprep.subr.bf16.mxu0 0
        %2427 = vmatpush1.bf16.msra.mxu0 %v2349
        %2428 = vmatprep.subr.bf16.mxu0 0
        %2429 = vmatpush2.bf16.msra.mxu0 0
        %2430 = vmatprep.subr.bf16.mxu0 0
        %2431 = vmatpush2.bf16.msra.mxu0 0
        %2432 = vmatprep.subr.bf16.mxu0 0
        %2433 = vmatpush2.bf16.msra.mxu0 0
        %2434 = vmatprep.subr.bf16.mxu0 0
        %2435 = vmatpush2.bf16.msra.mxu0 0
        %2436 = vmatprep.subr.bf16.mxu0 0
        %2437 = vmatpush2.bf16.msra.mxu0 0
        %2438 = vmatprep.subr.bf16.mxu0 0
        %2439 = vmatpush2.bf16.msra.mxu0 0
        %2440 = vmatprep.subr.bf16.mxu0 0
        %2441 = vmatpush2.bf16.msra.mxu0 0
        %2442 = vmatprep.subr.bf16.mxu0 0
        %2443 = vmatpush2.bf16.msra.mxu0 0
        %2444 = vmatprep.mubr.bf16.mxu0 0
        %2445 = vmatmul.mubr.bf16.gmra.mxu0 %v2354
        %v2446 = vpop.f32.mrf.mxu0
        %v2447 = vadd.f32 0.0, %v2446
        %v2448 = vpop.f32.mrf.mxu0
        %v2449 = vpop.f32.mrf.mxu0
        %v2450 = vadd.f32 0.0, %v2449
        %v2451 = vpop.f32.mrf.mxu0
        %2452 = vmatprep.mubr.bf16.mxu0 0
        %2453 = vmatmul.mubr.bf16.gmra.mxu0 %v2357
        %v2454 = vpop.f32.mrf.mxu0
        %v2455 = vadd.f32 0.0, %v2454
        %v2456 = vpop.f32.mrf.mxu0
        %v2457 = vpop.f32.mrf.mxu0
        %v2458 = vadd.f32 0.0, %v2457
        %v2459 = vpop.f32.mrf.mxu0
        %2460 = vdwg.mxu0
        %v2461 = vadd.f32 %v2312, %v2394
        %v2462 = vadd.f32 %v2313, %v2396
        %v2463 = vadd.f32 %v2314, %v2447
        %v2464 = vadd.f32 %v2315, %v2398
        %v2465 = vadd.f32 %v2316, %v2400
        %v2466 = vadd.f32 %v2317, %v2450
        %v2467 = vadd.f32 %v2318, %v2404
        %v2468 = vadd.f32 %v2319, %v2406
        %v2469 = vadd.f32 %v2320, %v2455
        %v2470 = vadd.f32 %v2321, %v2408
        %v2471 = vadd.f32 %v2322, %v2410
        %v2472 = vadd.f32 %v2323, %v2458
        %s2473 = scalar_lea.vmem %s2, 96
        %v2474 = vld [vmem:[%s2473] sm:$0xf]
        %v2475 = vld [vmem:[%s2473 + $0x4] sm:$0xf]
        %v2476 = vld [vmem:[%s2473 + $0x8] sm:$0xf]
        %v2477 = vld [vmem:[%s2473 + $0xc] sm:$0xf]
        %v2482 = vunpack.c.l.b16 %v2474
        %v2483 = vunpack.c.l.b16 %v2475
        %v2484 = vunpack.c.l.b16 %v2476
        %v2485 = vunpack.c.l.b16 %v2477
        %v2486 = vpack.c.b16 %v2483, %v2482
        %v2487 = vpack.c.b16 %v2485, %v2484
        %2488 = vrot.lane.b32.xlu0 %v1629, 80
        %v2489 = vpop.permute.xlu0 %2488
        %2490 = vrot.lane.b32.xlu0 %v1630, 80
        %v2491 = vpop.permute.xlu0 %2490
        %2492 = vrot.lane.b32.xlu0 %v1631, 80
        %v2493 = vpop.permute.xlu0 %2492
        %2494 = vrot.lane.b32.xlu0 %v1632, 80
        %v2495 = vpop.permute.xlu0 %2494
        %v2496 = vsel %vm1131, %v2489, %v2491
        %v2497 = vsel %vm1131, %v2491, %v2493
        %v2498 = vsel %vm1131, %v2493, %v2495
        %v2503 = vsel %vm1647, %v2486, 0
        %v2506 = vsel %vm1647, %v2487, 0
        %2508 = vmatprep.subr.bf16.mxu0 0
        %2509 = vmatpush1.bf16.msra.mxu0 0
        %2510 = vmatprep.subr.bf16.mxu0 0
        %2511 = vmatpush1.bf16.msra.mxu0 0
        %2512 = vmatprep.subr.bf16.mxu0 0
        %2513 = vmatpush1.bf16.msra.mxu0 0
        %2514 = vmatprep.subr.bf16.mxu0 0
        %2515 = vmatpush1.bf16.msra.mxu0 0
        %2516 = vmatprep.subr.bf16.mxu0 0
        %2517 = vmatpush1.bf16.msra.mxu0 0
        %2518 = vmatprep.subr.bf16.mxu0 0
        %2519 = vmatpush1.bf16.msra.mxu0 0
        %2520 = vmatprep.subr.bf16.mxu0 0
        %2521 = vmatpush1.bf16.msra.mxu0 0
        %2522 = vmatprep.subr.bf16.mxu0 %v2497
        %2523 = vmatpush1.bf16.msra.mxu0 %v2496
        %2524 = vmatprep.subr.bf16.mxu0 0
        %2525 = vmatpush2.bf16.msra.mxu0 0
        %2526 = vmatprep.subr.bf16.mxu0 0
        %2527 = vmatpush2.bf16.msra.mxu0 0
        %2528 = vmatprep.subr.bf16.mxu0 0
        %2529 = vmatpush2.bf16.msra.mxu0 0
        %2530 = vmatprep.subr.bf16.mxu0 0
        %2531 = vmatpush2.bf16.msra.mxu0 0
        %2532 = vmatprep.subr.bf16.mxu0 0
        %2533 = vmatpush2.bf16.msra.mxu0 0
        %2534 = vmatprep.subr.bf16.mxu0 0
        %2535 = vmatpush2.bf16.msra.mxu0 0
        %2536 = vmatprep.subr.bf16.mxu0 0
        %2537 = vmatpush2.bf16.msra.mxu0 0
        %2538 = vmatprep.subr.bf16.mxu0 0
        %2539 = vmatpush2.bf16.msra.mxu0 0
        %2540 = vmatprep.mubr.bf16.mxu0 0
        %2541 = vmatmul.mubr.bf16.gmra.mxu0 %v2503
        %v2542 = vpop.f32.mrf.mxu0
        %v2543 = vadd.f32 0.0, %v2542
        %v2544 = vpop.f32.mrf.mxu0
        %v2545 = vadd.f32 0.0, %v2544
        %v2546 = vpop.f32.mrf.mxu0
        %v2547 = vadd.f32 0.0, %v2546
        %v2548 = vpop.f32.mrf.mxu0
        %v2549 = vadd.f32 0.0, %v2548
        %2550 = vmatprep.mubr.bf16.mxu0 0
        %2551 = vmatmul.mubr.bf16.gmra.mxu0 %v2506
        %v2552 = vpop.f32.mrf.mxu0
        %v2553 = vadd.f32 0.0, %v2552
        %v2554 = vpop.f32.mrf.mxu0
        %v2555 = vadd.f32 0.0, %v2554
        %v2556 = vpop.f32.mrf.mxu0
        %v2557 = vadd.f32 0.0, %v2556
        %v2558 = vpop.f32.mrf.mxu0
        %v2559 = vadd.f32 0.0, %v2558
        %2560 = vdwg.mxu0
        %2561 = vmatprep.subr.bf16.mxu0 0
        %2562 = vmatpush1.bf16.msra.mxu0 0
        %2563 = vmatprep.subr.bf16.mxu0 0
        %2564 = vmatpush1.bf16.msra.mxu0 0
        %2565 = vmatprep.subr.bf16.mxu0 0
        %2566 = vmatpush1.bf16.msra.mxu0 0
        %2567 = vmatprep.subr.bf16.mxu0 0
        %2568 = vmatpush1.bf16.msra.mxu0 0
        %2569 = vmatprep.subr.bf16.mxu0 0
        %2570 = vmatpush1.bf16.msra.mxu0 0
        %2571 = vmatprep.subr.bf16.mxu0 0
        %2572 = vmatpush1.bf16.msra.mxu0 0
        %2573 = vmatprep.subr.bf16.mxu0 0
        %2574 = vmatpush1.bf16.msra.mxu0 0
        %2575 = vmatprep.subr.bf16.mxu0 0
        %2576 = vmatpush1.bf16.msra.mxu0 %v2498
        %2577 = vmatprep.subr.bf16.mxu0 0
        %2578 = vmatpush2.bf16.msra.mxu0 0
        %2579 = vmatprep.subr.bf16.mxu0 0
        %2580 = vmatpush2.bf16.msra.mxu0 0
        %2581 = vmatprep.subr.bf16.mxu0 0
        %2582 = vmatpush2.bf16.msra.mxu0 0
        %2583 = vmatprep.subr.bf16.mxu0 0
        %2584 = vmatpush2.bf16.msra.mxu0 0
        %2585 = vmatprep.subr.bf16.mxu0 0
        %2586 = vmatpush2.bf16.msra.mxu0 0
        %2587 = vmatprep.subr.bf16.mxu0 0
        %2588 = vmatpush2.bf16.msra.mxu0 0
        %2589 = vmatprep.subr.bf16.mxu0 0
        %2590 = vmatpush2.bf16.msra.mxu0 0
        %2591 = vmatprep.subr.bf16.mxu0 0
        %2592 = vmatpush2.bf16.msra.mxu0 0
        %2593 = vmatprep.mubr.bf16.mxu0 0
        %2594 = vmatmul.mubr.bf16.gmra.mxu0 %v2503
        %v2595 = vpop.f32.mrf.mxu0
        %v2596 = vadd.f32 0.0, %v2595
        %v2597 = vpop.f32.mrf.mxu0
        %v2598 = vpop.f32.mrf.mxu0
        %v2599 = vadd.f32 0.0, %v2598
        %v2600 = vpop.f32.mrf.mxu0
        %2601 = vmatprep.mubr.bf16.mxu0 0
        %2602 = vmatmul.mubr.bf16.gmra.mxu0 %v2506
        %v2603 = vpop.f32.mrf.mxu0
        %v2604 = vadd.f32 0.0, %v2603
        %v2605 = vpop.f32.mrf.mxu0
        %v2606 = vpop.f32.mrf.mxu0
        %v2607 = vadd.f32 0.0, %v2606
        %v2608 = vpop.f32.mrf.mxu0
        %2609 = vdwg.mxu0
        %v2610 = vadd.f32 %v2461, %v2543
        %v2611 = vadd.f32 %v2462, %v2545
        %v2612 = vadd.f32 %v2463, %v2596
        %v2613 = vadd.f32 %v2464, %v2547
        %v2614 = vadd.f32 %v2465, %v2549
        %v2615 = vadd.f32 %v2466, %v2599
        %v2616 = vadd.f32 %v2467, %v2553
        %v2617 = vadd.f32 %v2468, %v2555
        %v2618 = vadd.f32 %v2469, %v2604
        %v2619 = vadd.f32 %v2470, %v2557
        %v2620 = vadd.f32 %v2471, %v2559
        %v2621 = vadd.f32 %v2472, %v2607
        %s2622 = scalar_lea.vmem %s2, 112
        %v2623 = vld [vmem:[%s2622] sm:$0xf]
        %v2624 = vld [vmem:[%s2622 + $0x4] sm:$0xf]
        %v2625 = vld [vmem:[%s2622 + $0x8] sm:$0xf]
        %v2626 = vld [vmem:[%s2622 + $0xc] sm:$0xf]
        %v2631 = vunpack.c.l.b16 %v2623
        %v2632 = vunpack.c.l.b16 %v2624
        %v2633 = vunpack.c.l.b16 %v2625
        %v2634 = vunpack.c.l.b16 %v2626
        %v2635 = vpack.c.b16 %v2632, %v2631
        %v2636 = vpack.c.b16 %v2634, %v2633
        %2637 = vrot.lane.b32.xlu0 %v1629, 79
        %v2638 = vpop.permute.xlu0 %2637
        %2639 = vrot.lane.b32.xlu0 %v1630, 79
        %v2640 = vpop.permute.xlu0 %2639
        %2641 = vrot.lane.b32.xlu0 %v1631, 79
        %v2642 = vpop.permute.xlu0 %2641
        %2643 = vrot.lane.b32.xlu0 %v1632, 79
        %v2644 = vpop.permute.xlu0 %2643
        %v2645 = vsel %vm1253, %v2638, %v2640
        %v2646 = vsel %vm1253, %v2640, %v2642
        %v2647 = vsel %vm1253, %v2642, %v2644
        %v2652 = vsel %vm1647, %v2635, 0
        %v2655 = vsel %vm1647, %v2636, 0
        %2657 = vmatprep.subr.bf16.mxu0 0
        %2658 = vmatpush1.bf16.msra.mxu0 0
        %2659 = vmatprep.subr.bf16.mxu0 0
        %2660 = vmatpush1.bf16.msra.mxu0 0
        %2661 = vmatprep.subr.bf16.mxu0 0
        %2662 = vmatpush1.bf16.msra.mxu0 0
        %2663 = vmatprep.subr.bf16.mxu0 0
        %2664 = vmatpush1.bf16.msra.mxu0 0
        %2665 = vmatprep.subr.bf16.mxu0 0
        %2666 = vmatpush1.bf16.msra.mxu0 0
        %2667 = vmatprep.subr.bf16.mxu0 0
        %2668 = vmatpush1.bf16.msra.mxu0 0
        %2669 = vmatprep.subr.bf16.mxu0 0
        %2670 = vmatpush1.bf16.msra.mxu0 0
        %2671 = vmatprep.subr.bf16.mxu0 %v2646
        %2672 = vmatpush1.bf16.msra.mxu0 %v2645
        %2673 = vmatprep.subr.bf16.mxu0 0
        %2674 = vmatpush2.bf16.msra.mxu0 0
        %2675 = vmatprep.subr.bf16.mxu0 0
        %2676 = vmatpush2.bf16.msra.mxu0 0
        %2677 = vmatprep.subr.bf16.mxu0 0
        %2678 = vmatpush2.bf16.msra.mxu0 0
        %2679 = vmatprep.subr.bf16.mxu0 0
        %2680 = vmatpush2.bf16.msra.mxu0 0
        %2681 = vmatprep.subr.bf16.mxu0 0
        %2682 = vmatpush2.bf16.msra.mxu0 0
        %2683 = vmatprep.subr.bf16.mxu0 0
        %2684 = vmatpush2.bf16.msra.mxu0 0
        %2685 = vmatprep.subr.bf16.mxu0 0
        %2686 = vmatpush2.bf16.msra.mxu0 0
        %2687 = vmatprep.subr.bf16.mxu0 0
        %2688 = vmatpush2.bf16.msra.mxu0 0
        %2689 = vmatprep.mubr.bf16.mxu0 0
        %2690 = vmatmul.mubr.bf16.gmra.mxu0 %v2652
        %v2691 = vpop.f32.mrf.mxu0
        %v2692 = vadd.f32 0.0, %v2691
        %v2693 = vpop.f32.mrf.mxu0
        %v2694 = vadd.f32 0.0, %v2693
        %v2695 = vpop.f32.mrf.mxu0
        %v2696 = vadd.f32 0.0, %v2695
        %v2697 = vpop.f32.mrf.mxu0
        %v2698 = vadd.f32 0.0, %v2697
        %2699 = vmatprep.mubr.bf16.mxu0 0
        %2700 = vmatmul.mubr.bf16.gmra.mxu0 %v2655
        %v2701 = vpop.f32.mrf.mxu0
        %v2702 = vadd.f32 0.0, %v2701
        %v2703 = vpop.f32.mrf.mxu0
        %v2704 = vadd.f32 0.0, %v2703
        %v2705 = vpop.f32.mrf.mxu0
        %v2706 = vadd.f32 0.0, %v2705
        %v2707 = vpop.f32.mrf.mxu0
        %v2708 = vadd.f32 0.0, %v2707
        %2709 = vdwg.mxu0
        %2710 = vmatprep.subr.bf16.mxu0 0
        %2711 = vmatpush1.bf16.msra.mxu0 0
        %2712 = vmatprep.subr.bf16.mxu0 0
        %2713 = vmatpush1.bf16.msra.mxu0 0
        %2714 = vmatprep.subr.bf16.mxu0 0
        %2715 = vmatpush1.bf16.msra.mxu0 0
        %2716 = vmatprep.subr.bf16.mxu0 0
        %2717 = vmatpush1.bf16.msra.mxu0 0
        %2718 = vmatprep.subr.bf16.mxu0 0
        %2719 = vmatpush1.bf16.msra.mxu0 0
        %2720 = vmatprep.subr.bf16.mxu0 0
        %2721 = vmatpush1.bf16.msra.mxu0 0
        %2722 = vmatprep.subr.bf16.mxu0 0
        %2723 = vmatpush1.bf16.msra.mxu0 0
        %2724 = vmatprep.subr.bf16.mxu0 0
        %2725 = vmatpush1.bf16.msra.mxu0 %v2647
        %2726 = vmatprep.subr.bf16.mxu0 0
        %2727 = vmatpush2.bf16.msra.mxu0 0
        %2728 = vmatprep.subr.bf16.mxu0 0
        %2729 = vmatpush2.bf16.msra.mxu0 0
        %2730 = vmatprep.subr.bf16.mxu0 0
        %2731 = vmatpush2.bf16.msra.mxu0 0
        %2732 = vmatprep.subr.bf16.mxu0 0
        %2733 = vmatpush2.bf16.msra.mxu0 0
        %2734 = vmatprep.subr.bf16.mxu0 0
        %2735 = vmatpush2.bf16.msra.mxu0 0
        %2736 = vmatprep.subr.bf16.mxu0 0
        %2737 = vmatpush2.bf16.msra.mxu0 0
        %2738 = vmatprep.subr.bf16.mxu0 0
        %2739 = vmatpush2.bf16.msra.mxu0 0
        %2740 = vmatprep.subr.bf16.mxu0 0
        %2741 = vmatpush2.bf16.msra.mxu0 0
        %2742 = vmatprep.mubr.bf16.mxu0 0
        %2743 = vmatmul.mubr.bf16.gmra.mxu0 %v2652
        %v2744 = vpop.f32.mrf.mxu0
        %v2745 = vadd.f32 0.0, %v2744
        %v2746 = vpop.f32.mrf.mxu0
        %v2747 = vpop.f32.mrf.mxu0
        %v2748 = vadd.f32 0.0, %v2747
        %v2749 = vpop.f32.mrf.mxu0
        %2750 = vmatprep.mubr.bf16.mxu0 0
        %2751 = vmatmul.mubr.bf16.gmra.mxu0 %v2655
        %v2752 = vpop.f32.mrf.mxu0
        %v2753 = vadd.f32 0.0, %v2752
        %v2754 = vpop.f32.mrf.mxu0
        %v2755 = vpop.f32.mrf.mxu0
        %v2756 = vadd.f32 0.0, %v2755
        %v2757 = vpop.f32.mrf.mxu0
        %2758 = vdwg.mxu0
        %v2759 = vadd.f32 %v2610, %v2692
        %v2760 = vadd.f32 %v2611, %v2694
        %v2761 = vadd.f32 %v2612, %v2745
        %v2762 = vadd.f32 %v2613, %v2696
        %v2763 = vadd.f32 %v2614, %v2698
        %v2764 = vadd.f32 %v2615, %v2748
        %v2765 = vadd.f32 %v2616, %v2702
        %v2766 = vadd.f32 %v2617, %v2704
        %v2767 = vadd.f32 %v2618, %v2753
        %v2768 = vadd.f32 %v2619, %v2706
        %v2769 = vadd.f32 %v2620, %v2708
        %v2770 = vadd.f32 %v2621, %v2756
        %s2771 = scalar_lea.vmem %s2, 128
        %v2772 = vld [vmem:[%s2771] sm:$0xf]
        %v2773 = vld [vmem:[%s2771 + $0x4] sm:$0xf]
        %v2774 = vld [vmem:[%s2771 + $0x8] sm:$0xf]
        %v2775 = vld [vmem:[%s2771 + $0xc] sm:$0xf]
        %v2780 = vunpack.c.l.b16 %v2772
        %v2781 = vunpack.c.l.b16 %v2773
        %v2782 = vunpack.c.l.b16 %v2774
        %v2783 = vunpack.c.l.b16 %v2775
        %v2784 = vpack.c.b16 %v2781, %v2780
        %v2785 = vpack.c.b16 %v2783, %v2782
        %2786 = vrot.lane.b32.xlu0 %v1629, 78
        %v2787 = vpop.permute.xlu0 %2786
        %2788 = vrot.lane.b32.xlu0 %v1630, 78
        %v2789 = vpop.permute.xlu0 %2788
        %2790 = vrot.lane.b32.xlu0 %v1631, 78
        %v2791 = vpop.permute.xlu0 %2790
        %2792 = vrot.lane.b32.xlu0 %v1632, 78
        %v2793 = vpop.permute.xlu0 %2792
        %v2794 = vsel %vm1375, %v2787, %v2789
        %v2795 = vsel %vm1375, %v2789, %v2791
        %v2796 = vsel %vm1375, %v2791, %v2793
        %v2801 = vsel %vm1647, %v2784, 0
        %v2804 = vsel %vm1647, %v2785, 0
        %2806 = vmatprep.subr.bf16.mxu0 0
        %2807 = vmatpush1.bf16.msra.mxu0 0
        %2808 = vmatprep.subr.bf16.mxu0 0
        %2809 = vmatpush1.bf16.msra.mxu0 0
        %2810 = vmatprep.subr.bf16.mxu0 0
        %2811 = vmatpush1.bf16.msra.mxu0 0
        %2812 = vmatprep.subr.bf16.mxu0 0
        %2813 = vmatpush1.bf16.msra.mxu0 0
        %2814 = vmatprep.subr.bf16.mxu0 0
        %2815 = vmatpush1.bf16.msra.mxu0 0
        %2816 = vmatprep.subr.bf16.mxu0 0
        %2817 = vmatpush1.bf16.msra.mxu0 0
        %2818 = vmatprep.subr.bf16.mxu0 0
        %2819 = vmatpush1.bf16.msra.mxu0 0
        %2820 = vmatprep.subr.bf16.mxu0 %v2795
        %2821 = vmatpush1.bf16.msra.mxu0 %v2794
        %2822 = vmatprep.subr.bf16.mxu0 0
        %2823 = vmatpush2.bf16.msra.mxu0 0
        %2824 = vmatprep.subr.bf16.mxu0 0
        %2825 = vmatpush2.bf16.msra.mxu0 0
        %2826 = vmatprep.subr.bf16.mxu0 0
        %2827 = vmatpush2.bf16.msra.mxu0 0
        %2828 = vmatprep.subr.bf16.mxu0 0
        %2829 = vmatpush2.bf16.msra.mxu0 0
        %2830 = vmatprep.subr.bf16.mxu0 0
        %2831 = vmatpush2.bf16.msra.mxu0 0
        %2832 = vmatprep.subr.bf16.mxu0 0
        %2833 = vmatpush2.bf16.msra.mxu0 0
        %2834 = vmatprep.subr.bf16.mxu0 0
        %2835 = vmatpush2.bf16.msra.mxu0 0
        %2836 = vmatprep.subr.bf16.mxu0 0
        %2837 = vmatpush2.bf16.msra.mxu0 0
        %2838 = vmatprep.mubr.bf16.mxu0 0
        %2839 = vmatmul.mubr.bf16.gmra.mxu0 %v2801
        %v2840 = vpop.f32.mrf.mxu0
        %v2841 = vadd.f32 0.0, %v2840
        %v2842 = vpop.f32.mrf.mxu0
        %v2843 = vadd.f32 0.0, %v2842
        %v2844 = vpop.f32.mrf.mxu0
        %v2845 = vadd.f32 0.0, %v2844
        %v2846 = vpop.f32.mrf.mxu0
        %v2847 = vadd.f32 0.0, %v2846
        %2848 = vmatprep.mubr.bf16.mxu0 0
        %2849 = vmatmul.mubr.bf16.gmra.mxu0 %v2804
        %v2850 = vpop.f32.mrf.mxu0
        %v2851 = vadd.f32 0.0, %v2850
        %v2852 = vpop.f32.mrf.mxu0
        %v2853 = vadd.f32 0.0, %v2852
        %v2854 = vpop.f32.mrf.mxu0
        %v2855 = vadd.f32 0.0, %v2854
        %v2856 = vpop.f32.mrf.mxu0
        %v2857 = vadd.f32 0.0, %v2856
        %2858 = vdwg.mxu0
        %2859 = vmatprep.subr.bf16.mxu0 0
        %2860 = vmatpush1.bf16.msra.mxu0 0
        %2861 = vmatprep.subr.bf16.mxu0 0
        %2862 = vmatpush1.bf16.msra.mxu0 0
        %2863 = vmatprep.subr.bf16.mxu0 0
        %2864 = vmatpush1.bf16.msra.mxu0 0
        %2865 = vmatprep.subr.bf16.mxu0 0
        %2866 = vmatpush1.bf16.msra.mxu0 0
        %2867 = vmatprep.subr.bf16.mxu0 0
        %2868 = vmatpush1.bf16.msra.mxu0 0
        %2869 = vmatprep.subr.bf16.mxu0 0
        %2870 = vmatpush1.bf16.msra.mxu0 0
        %2871 = vmatprep.subr.bf16.mxu0 0
        %2872 = vmatpush1.bf16.msra.mxu0 0
        %2873 = vmatprep.subr.bf16.mxu0 0
        %2874 = vmatpush1.bf16.msra.mxu0 %v2796
        %2875 = vmatprep.subr.bf16.mxu0 0
        %2876 = vmatpush2.bf16.msra.mxu0 0
        %2877 = vmatprep.subr.bf16.mxu0 0
        %2878 = vmatpush2.bf16.msra.mxu0 0
        %2879 = vmatprep.subr.bf16.mxu0 0
        %2880 = vmatpush2.bf16.msra.mxu0 0
        %2881 = vmatprep.subr.bf16.mxu0 0
        %2882 = vmatpush2.bf16.msra.mxu0 0
        %2883 = vmatprep.subr.bf16.mxu0 0
        %2884 = vmatpush2.bf16.msra.mxu0 0
        %2885 = vmatprep.subr.bf16.mxu0 0
        %2886 = vmatpush2.bf16.msra.mxu0 0
        %2887 = vmatprep.subr.bf16.mxu0 0
        %2888 = vmatpush2.bf16.msra.mxu0 0
        %2889 = vmatprep.subr.bf16.mxu0 0
        %2890 = vmatpush2.bf16.msra.mxu0 0
        %2891 = vmatprep.mubr.bf16.mxu0 0
        %2892 = vmatmul.mubr.bf16.gmra.mxu0 %v2801
        %v2893 = vpop.f32.mrf.mxu0
        %v2894 = vadd.f32 0.0, %v2893
        %v2895 = vpop.f32.mrf.mxu0
        %v2896 = vpop.f32.mrf.mxu0
        %v2897 = vadd.f32 0.0, %v2896
        %v2898 = vpop.f32.mrf.mxu0
        %2899 = vmatprep.mubr.bf16.mxu0 0
        %2900 = vmatmul.mubr.bf16.gmra.mxu0 %v2804
        %v2901 = vpop.f32.mrf.mxu0
        %v2902 = vadd.f32 0.0, %v2901
        %v2903 = vpop.f32.mrf.mxu0
        %v2904 = vpop.f32.mrf.mxu0
        %v2905 = vadd.f32 0.0, %v2904
        %v2906 = vpop.f32.mrf.mxu0
        %2907 = vdwg.mxu0
        %v2908 = vadd.f32 %v2759, %v2841
        %v2909 = vadd.f32 %v2760, %v2843
        %v2910 = vadd.f32 %v2761, %v2894
        %v2911 = vadd.f32 %v2762, %v2845
        %v2912 = vadd.f32 %v2763, %v2847
        %v2913 = vadd.f32 %v2764, %v2897
        %v2914 = vadd.f32 %v2765, %v2851
        %v2915 = vadd.f32 %v2766, %v2853
        %v2916 = vadd.f32 %v2767, %v2902
        %v2917 = vadd.f32 %v2768, %v2855
        %v2918 = vadd.f32 %v2769, %v2857
        %v2919 = vadd.f32 %v2770, %v2905
        %s2920 = scalar_lea.vmem %s7, 64
        %v2921 = vld [vmem:[%s2920] sm:$0xff]
        %v2922 = vld [vmem:[%s2920 + $0x8] sm:$0xff]
        %v2923 = vld [vmem:[%s2920 + $0x10] sm:$0xff]
        %v2924 = vld [vmem:[%s2920 + $0x18] sm:$0xff]
        %2926 = vset.pattern.permute.xlu0 0
        %2927 = vperm.xlu0 %2926, %v2921
        %v2928 = vpop.permute.xlu0 %2927
        %2931 = vset.pattern.permute.xlu0 0
        %2932 = vperm.xlu0 %2931, %v2922
        %v2933 = vpop.permute.xlu0 %2932
        %2936 = vset.pattern.permute.xlu0 0
        %2937 = vperm.xlu0 %2936, %v2923
        %v2938 = vpop.permute.xlu0 %2937
        %2941 = vset.pattern.permute.xlu0 0
        %2942 = vperm.xlu0 %2941, %v2924
        %v2943 = vpop.permute.xlu0 %2942
        %v2945 = vmul.f32 %v2908, %v2928
        %v2946 = vmul.f32 %v2909, %v2928
        %v2947 = vmul.f32 %v2910, %v2928
        %v2948 = vmul.f32 %v2911, %v2933
        %v2949 = vmul.f32 %v2912, %v2933
        %v2950 = vmul.f32 %v2913, %v2933
        %v2951 = vmul.f32 %v2914, %v2938
        %v2952 = vmul.f32 %v2915, %v2938
        %v2953 = vmul.f32 %v2916, %v2938
        %v2954 = vmul.f32 %v2917, %v2943
        %v2955 = vmul.f32 %v2918, %v2943
        %v2956 = vmul.f32 %v2919, %v2943
        %s2957 = scalar_lea.vmem %s8, 64
        %v2958 = vld [vmem:[%s2957] sm:$0xff]
        %v2959 = vld [vmem:[%s2957 + $0x8] sm:$0xff]
        %v2960 = vld [vmem:[%s2957 + $0x10] sm:$0xff]
        %v2961 = vld [vmem:[%s2957 + $0x18] sm:$0xff]
        %2963 = vset.pattern.permute.xlu0 0
        %2964 = vperm.xlu0 %2963, %v2958
        %v2965 = vpop.permute.xlu0 %2964
        %2968 = vset.pattern.permute.xlu0 0
        %2969 = vperm.xlu0 %2968, %v2959
        %v2970 = vpop.permute.xlu0 %2969
        %2973 = vset.pattern.permute.xlu0 0
        %2974 = vperm.xlu0 %2973, %v2960
        %v2975 = vpop.permute.xlu0 %2974
        %2978 = vset.pattern.permute.xlu0 0
        %2979 = vperm.xlu0 %2978, %v2961
        %v2980 = vpop.permute.xlu0 %2979
        %v2982 = vadd.f32 %v2945, %v2965
        %v2983 = vadd.f32 %v2946, %v2965
        %v2984 = vadd.f32 %v2947, %v2965
        %v2985 = vadd.f32 %v2948, %v2970
        %v2986 = vadd.f32 %v2949, %v2970
        %v2987 = vadd.f32 %v2950, %v2970
        %v2988 = vadd.f32 %v2951, %v2975
        %v2989 = vadd.f32 %v2952, %v2975
        %v2990 = vadd.f32 %v2953, %v2975
        %v2991 = vadd.f32 %v2954, %v2980
        %v2992 = vadd.f32 %v2955, %v2980
        %v2993 = vadd.f32 %v2956, %v2980
        %v2994 = vmax.f32 %v2982, 0.0
        %v2995 = vmax.f32 %v2983, 0.0
        %v2996 = vmax.f32 %v2984, 0.0
        %v2997 = vmax.f32 %v2985, 0.0
        %v2998 = vmax.f32 %v2986, 0.0
        %v2999 = vmax.f32 %v2987, 0.0
        %v3000 = vmax.f32 %v2988, 0.0
        %v3001 = vmax.f32 %v2989, 0.0
        %v3002 = vmax.f32 %v2990, 0.0
        %v3003 = vmax.f32 %v2991, 0.0
        %v3004 = vmax.f32 %v2992, 0.0
        %v3005 = vmax.f32 %v2993, 0.0
        %v3006 = vmul.f32 %v2994, %v1527
        %v3007 = vmul.f32 %v2995, %v1531
        %v3008 = vmul.f32 %v2996, %v1535
        %v3009 = vmul.f32 %v2997, %v1527
        %v3010 = vmul.f32 %v2998, %v1531
        %v3011 = vmul.f32 %v2999, %v1535
        %v3012 = vmul.f32 %v3000, %v1527
        %v3013 = vmul.f32 %v3001, %v1531
        %v3014 = vmul.f32 %v3002, %v1535
        %v3015 = vmul.f32 %v3003, %v1527
        %v3016 = vmul.f32 %v3004, %v1531
        %v3017 = vmul.f32 %v3005, %v1535
        %v3018 = vpack.c.bf16 %v3009, %v3006
        %v3019 = vpack.c.bf16 %v3010, %v3007
        %v3020 = vpack.c.bf16 %v3011, %v3008
        %v3021 = vpack.c.bf16 %v3015, %v3012
        %v3022 = vpack.c.bf16 %v3016, %v3013
        %v3023 = vpack.c.bf16 %v3017, %v3014
        %v3030 = vunpack.c.l.b16 %v3018
        %v3031 = vunpack.c.l.b16 %v3019
        %v3032 = vunpack.c.l.b16 %v3020
        %v3033 = vunpack.c.h.b16 %v3018
        %v3034 = vunpack.c.h.b16 %v3019
        %v3035 = vunpack.c.h.b16 %v3020
        %v3036 = vunpack.c.l.b16 %v3021
        %v3037 = vunpack.c.l.b16 %v3022
        %v3038 = vunpack.c.l.b16 %v3023
        %v3039 = vunpack.c.h.b16 %v3021
        %v3040 = vunpack.c.h.b16 %v3022
        %v3041 = vunpack.c.h.b16 %v3023
        %v3042 = vpack.c.b16 %v3031, %v3030
        %v3043 = vpack.c.b16 %v3032, %v3032
        %v3044 = vpack.c.b16 %v3034, %v3033
        %v3045 = vpack.c.b16 %v3035, %v3035
        %v3046 = vpack.c.b16 %v3037, %v3036
        %v3047 = vpack.c.b16 %v3038, %v3038
        %v3048 = vpack.c.b16 %v3040, %v3039
        %v3049 = vpack.c.b16 %v3041, %v3041
        %3050 = vrot.lane.b32.xlu0 %v3042, 25
        %v3051 = vpop.permute.xlu0 %3050
        %3052 = vrot.lane.b32.xlu0 %v3043, 25
        %v3053 = vpop.permute.xlu0 %3052
        %3054 = vrot.lane.b32.xlu0 %v3044, 25
        %v3055 = vpop.permute.xlu0 %3054
        %3056 = vrot.lane.b32.xlu0 %v3045, 25
        %v3057 = vpop.permute.xlu0 %3056
        %3058 = vrot.lane.b32.xlu0 %v3046, 25
        %v3059 = vpop.permute.xlu0 %3058
        %3060 = vrot.lane.b32.xlu0 %v3047, 25
        %v3061 = vpop.permute.xlu0 %3060
        %3062 = vrot.lane.b32.xlu0 %v3048, 25
        %v3063 = vpop.permute.xlu0 %3062
        %3064 = vrot.lane.b32.xlu0 %v3049, 25
        %v3065 = vpop.permute.xlu0 %3064
        %v3066 = vrot.slane %v3051, 4
        %v3067 = vrot.slane %v3053, 4
        %v3068 = vrot.slane %v3055, 4
        %v3069 = vrot.slane %v3057, 4
        %v3070 = vrot.slane %v3059, 4
        %v3071 = vrot.slane %v3061, 4
        %v3072 = vrot.slane %v3063, 4
        %v3073 = vrot.slane %v3065, 4
        %v3074 = vsel %vm1573, %v3066, %v3051
        %v3075 = vsel %vm1575, %v3066, %v3067
        %v3076 = vsel %vm1573, %v3075, %v3053
        %v3077 = vsel %vm1573, %v3068, %v3055
        %v3078 = vsel %vm1575, %v3068, %v3069
        %v3079 = vsel %vm1573, %v3078, %v3057
        %v3080 = vsel %vm1573, %v3070, %v3059
        %v3081 = vsel %vm1575, %v3070, %v3071
        %v3082 = vsel %vm1573, %v3081, %v3061
        %v3083 = vsel %vm1573, %v3072, %v3063
        %v3084 = vsel %vm1575, %v3072, %v3073
        %v3085 = vsel %vm1573, %v3084, %v3065
        %3094 = vst.msk [vmem:[#allocation3] sm:$0xff] %vm1587, %v3074
        %3095 = vst.msk [vmem:[#allocation3 + $0x8] sm:$0xff] %vm1590, %v3076
        %3096 = vst.msk [vmem:[#allocation3 + $0x10] sm:$0xff] %vm1587, %v3077
        %3097 = vst.msk [vmem:[#allocation3 + $0x18] sm:$0xff] %vm1590, %v3079
        %3098 = vst.msk [vmem:[#allocation3 + $0x20] sm:$0xff] %vm1587, %v3080
        %3099 = vst.msk [vmem:[#allocation3 + $0x28] sm:$0xff] %vm1590, %v3082
        %3100 = vst.msk [vmem:[#allocation3 + $0x30] sm:$0xff] %vm1587, %v3083
        %3101 = vst.msk [vmem:[#allocation3 + $0x38] sm:$0xff] %vm1590, %v3085
        %v3102 = vld [vmem:[#allocation3] sm:$0xff]
        %v3103 = vld [vmem:[#allocation3 + $0x8] sm:$0xff]
        %v3104 = vld [vmem:[#allocation3 + $0x10] sm:$0xff]
        %v3105 = vld [vmem:[#allocation3 + $0x18] sm:$0xff]
        %v3106 = vld [vmem:[#allocation3 + $0x20] sm:$0xff]
        %v3107 = vld [vmem:[#allocation3 + $0x28] sm:$0xff]
        %v3108 = vld [vmem:[#allocation3 + $0x30] sm:$0xff]
        %v3109 = vld [vmem:[#allocation3 + $0x38] sm:$0xff]
        %v3110 = vld [vmem:[%s3] sm:$0xf]
        %v3111 = vld [vmem:[%s3 + $0x4] sm:$0xf]
        %v3112 = vld [vmem:[%s3 + $0x8] sm:$0xf]
        %v3113 = vld [vmem:[%s3 + $0xc] sm:$0xf]
        %v3114 = vld [vmem:[%s3 + $0x10] sm:$0xf]
        %v3115 = vld [vmem:[%s3 + $0x14] sm:$0xf]
        %v3116 = vld [vmem:[%s3 + $0x18] sm:$0xf]
        %v3117 = vld [vmem:[%s3 + $0x1c] sm:$0xf]
        %s3118 = scalar_lea.vmem %s3, 32
        %v3119 = vld [vmem:[%s3118] sm:$0xf]
        %v3120 = vld [vmem:[%s3118 + $0x4] sm:$0xf]
        %v3121 = vld [vmem:[%s3118 + $0x8] sm:$0xf]
        %v3122 = vld [vmem:[%s3118 + $0xc] sm:$0xf]
        %v3123 = vld [vmem:[%s3118 + $0x10] sm:$0xf]
        %v3124 = vld [vmem:[%s3118 + $0x14] sm:$0xf]
        %v3125 = vld [vmem:[%s3118 + $0x18] sm:$0xf]
        %v3126 = vld [vmem:[%s3118 + $0x1c] sm:$0xf]
        %v3135 = vunpack.c.l.b16 %v3119
        %v3136 = vunpack.c.l.b16 %v3120
        %v3137 = vunpack.c.l.b16 %v3121
        %v3138 = vunpack.c.l.b16 %v3122
        %v3139 = vunpack.c.l.b16 %v3123
        %v3140 = vunpack.c.l.b16 %v3124
        %v3141 = vunpack.c.l.b16 %v3125
        %v3142 = vunpack.c.l.b16 %v3126
        %v3143 = vpack.c.b16 %v3136, %v3135
        %v3144 = vpack.c.b16 %v3138, %v3137
        %v3145 = vpack.c.b16 %v3140, %v3139
        %v3146 = vpack.c.b16 %v3142, %v3141
        %v3155 = vunpack.c.l.b16 %v3102
        %v3156 = vunpack.c.h.b16 %v3102
        %v3157 = vunpack.c.l.b16 %v3103
        %v3158 = vunpack.c.h.b16 %v3103
        %v3159 = vunpack.c.l.b16 %v3104
        %v3160 = vunpack.c.h.b16 %v3104
        %v3161 = vunpack.c.l.b16 %v3105
        %v3162 = vunpack.c.h.b16 %v3105
        %v3163 = vunpack.c.l.b16 %v3106
        %v3164 = vunpack.c.h.b16 %v3106
        %v3165 = vunpack.c.l.b16 %v3107
        %v3166 = vunpack.c.h.b16 %v3107
        %v3167 = vunpack.c.l.b16 %v3108
        %v3168 = vunpack.c.h.b16 %v3108
        %v3169 = vunpack.c.l.b16 %v3109
        %v3170 = vunpack.c.h.b16 %v3109
        %v3171 = vpack.c.b16 %v3159, %v3155
        %v3172 = vpack.c.b16 %v3160, %v3156
        %v3173 = vpack.c.b16 %v3161, %v3157
        %v3174 = vpack.c.b16 %v3162, %v3158
        %v3175 = vpack.c.b16 %v3167, %v3163
        %v3176 = vpack.c.b16 %v3168, %v3164
        %v3177 = vpack.c.b16 %v3169, %v3165
        %v3178 = vpack.c.b16 %v3170, %v3166
        %3179 = vrot.lane.b32.xlu0 %v3171, 127
        %v3180 = vpop.permute.xlu0 %3179
        %3181 = vrot.lane.b32.xlu0 %v3172, 127
        %v3182 = vpop.permute.xlu0 %3181
        %3183 = vrot.lane.b32.xlu0 %v3173, 127
        %v3184 = vpop.permute.xlu0 %3183
        %3185 = vrot.lane.b32.xlu0 %v3174, 127
        %v3186 = vpop.permute.xlu0 %3185
        %3187 = vrot.lane.b32.xlu0 %v3175, 127
        %v3188 = vpop.permute.xlu0 %3187
        %3189 = vrot.lane.b32.xlu0 %v3176, 127
        %v3190 = vpop.permute.xlu0 %3189
        %3191 = vrot.lane.b32.xlu0 %v3177, 127
        %v3192 = vpop.permute.xlu0 %3191
        %3193 = vrot.lane.b32.xlu0 %v3178, 127
        %v3194 = vpop.permute.xlu0 %3193
        %v3195 = vsel %vm424, %v3180, %v3182
        %v3196 = vsel %vm424, %v3182, %v3184
        %v3197 = vsel %vm424, %v3184, %v3186
        %v3198 = vsel %vm424, %v3188, %v3190
        %v3199 = vsel %vm424, %v3190, %v3192
        %v3200 = vsel %vm424, %v3192, %v3194
        %vm3207 = vcmask 261120
        %v3209 = vsel %vm3207, %v3143, 0
        %v3212 = vsel %vm3207, %v3144, 0
        %v3215 = vsel %vm3207, %v3145, 0
        %v3218 = vsel %vm3207, %v3146, 0
        %3220 = vmatprep.subr.bf16.mxu0 0
        %3221 = vmatpush1.bf16.msra.mxu0 0
        %3222 = vmatprep.subr.bf16.mxu0 0
        %3223 = vmatpush1.bf16.msra.mxu0 0
        %3224 = vmatprep.subr.bf16.mxu0 0
        %3225 = vmatpush1.bf16.msra.mxu0 0
        %3226 = vmatprep.subr.bf16.mxu0 0
        %3227 = vmatpush1.bf16.msra.mxu0 0
        %3228 = vmatprep.subr.bf16.mxu0 0
        %3229 = vmatpush1.bf16.msra.mxu0 0
        %3230 = vmatprep.subr.bf16.mxu0 0
        %3231 = vmatpush1.bf16.msra.mxu0 0
        %3232 = vmatprep.subr.bf16.mxu0 %v3199
        %3233 = vmatpush1.bf16.msra.mxu0 %v3198
        %3234 = vmatprep.subr.bf16.mxu0 %v3196
        %3235 = vmatpush1.bf16.msra.mxu0 %v3195
        %3236 = vmatprep.subr.bf16.mxu0 0
        %3237 = vmatpush2.bf16.msra.mxu0 0
        %3238 = vmatprep.subr.bf16.mxu0 0
        %3239 = vmatpush2.bf16.msra.mxu0 0
        %3240 = vmatprep.subr.bf16.mxu0 0
        %3241 = vmatpush2.bf16.msra.mxu0 0
        %3242 = vmatprep.subr.bf16.mxu0 0
        %3243 = vmatpush2.bf16.msra.mxu0 0
        %3244 = vmatprep.subr.bf16.mxu0 0
        %3245 = vmatpush2.bf16.msra.mxu0 0
        %3246 = vmatprep.subr.bf16.mxu0 0
        %3247 = vmatpush2.bf16.msra.mxu0 0
        %3248 = vmatprep.subr.bf16.mxu0 0
        %3249 = vmatpush2.bf16.msra.mxu0 0
        %3250 = vmatprep.subr.bf16.mxu0 0
        %3251 = vmatpush2.bf16.msra.mxu0 0
        %3252 = vmatprep.mubr.bf16.mxu0 0
        %3253 = vmatmul.mubr.bf16.gmra.mxu0 %v3209
        %v3254 = vpop.f32.mrf.mxu0
        %v3255 = vadd.f32 0.0, %v3254
        %v3256 = vpop.f32.mrf.mxu0
        %v3257 = vadd.f32 0.0, %v3256
        %v3258 = vpop.f32.mrf.mxu0
        %v3259 = vadd.f32 0.0, %v3258
        %v3260 = vpop.f32.mrf.mxu0
        %v3261 = vadd.f32 0.0, %v3260
        %3262 = vmatprep.mubr.bf16.mxu0 0
        %3263 = vmatmul.mubr.bf16.gmra.mxu0 %v3212
        %v3264 = vpop.f32.mrf.mxu0
        %v3265 = vadd.f32 0.0, %v3264
        %v3266 = vpop.f32.mrf.mxu0
        %v3267 = vadd.f32 0.0, %v3266
        %v3268 = vpop.f32.mrf.mxu0
        %v3269 = vadd.f32 0.0, %v3268
        %v3270 = vpop.f32.mrf.mxu0
        %v3271 = vadd.f32 0.0, %v3270
        %3272 = vmatprep.mubr.bf16.mxu0 0
        %3273 = vmatmul.mubr.bf16.gmra.mxu0 %v3215
        %v3274 = vpop.f32.mrf.mxu0
        %v3275 = vadd.f32 0.0, %v3274
        %v3276 = vpop.f32.mrf.mxu0
        %v3277 = vadd.f32 0.0, %v3276
        %v3278 = vpop.f32.mrf.mxu0
        %v3279 = vadd.f32 0.0, %v3278
        %v3280 = vpop.f32.mrf.mxu0
        %v3281 = vadd.f32 0.0, %v3280
        %3282 = vmatprep.mubr.bf16.mxu0 0
        %3283 = vmatmul.mubr.bf16.gmra.mxu0 %v3218
        %v3284 = vpop.f32.mrf.mxu0
        %v3285 = vadd.f32 0.0, %v3284
        %v3286 = vpop.f32.mrf.mxu0
        %v3287 = vadd.f32 0.0, %v3286
        %v3288 = vpop.f32.mrf.mxu0
        %v3289 = vadd.f32 0.0, %v3288
        %v3290 = vpop.f32.mrf.mxu0
        %v3291 = vadd.f32 0.0, %v3290
        %3292 = vdwg.mxu0
        %3293 = vmatprep.subr.bf16.mxu0 0
        %3294 = vmatpush1.bf16.msra.mxu0 0
        %3295 = vmatprep.subr.bf16.mxu0 0
        %3296 = vmatpush1.bf16.msra.mxu0 0
        %3297 = vmatprep.subr.bf16.mxu0 0
        %3298 = vmatpush1.bf16.msra.mxu0 0
        %3299 = vmatprep.subr.bf16.mxu0 0
        %3300 = vmatpush1.bf16.msra.mxu0 0
        %3301 = vmatprep.subr.bf16.mxu0 0
        %3302 = vmatpush1.bf16.msra.mxu0 0
        %3303 = vmatprep.subr.bf16.mxu0 0
        %3304 = vmatpush1.bf16.msra.mxu0 0
        %3305 = vmatprep.subr.bf16.mxu0 0
        %3306 = vmatpush1.bf16.msra.mxu0 %v3200
        %3307 = vmatprep.subr.bf16.mxu0 0
        %3308 = vmatpush1.bf16.msra.mxu0 %v3197
        %3309 = vmatprep.subr.bf16.mxu0 0
        %3310 = vmatpush2.bf16.msra.mxu0 0
        %3311 = vmatprep.subr.bf16.mxu0 0
        %3312 = vmatpush2.bf16.msra.mxu0 0
        %3313 = vmatprep.subr.bf16.mxu0 0
        %3314 = vmatpush2.bf16.msra.mxu0 0
        %3315 = vmatprep.subr.bf16.mxu0 0
        %3316 = vmatpush2.bf16.msra.mxu0 0
        %3317 = vmatprep.subr.bf16.mxu0 0
        %3318 = vmatpush2.bf16.msra.mxu0 0
        %3319 = vmatprep.subr.bf16.mxu0 0
        %3320 = vmatpush2.bf16.msra.mxu0 0
        %3321 = vmatprep.subr.bf16.mxu0 0
        %3322 = vmatpush2.bf16.msra.mxu0 0
        %3323 = vmatprep.subr.bf16.mxu0 0
        %3324 = vmatpush2.bf16.msra.mxu0 0
        %3325 = vmatprep.mubr.bf16.mxu0 0
        %3326 = vmatmul.mubr.bf16.gmra.mxu0 %v3209
        %v3327 = vpop.f32.mrf.mxu0
        %v3328 = vadd.f32 0.0, %v3327
        %v3329 = vpop.f32.mrf.mxu0
        %v3330 = vpop.f32.mrf.mxu0
        %v3331 = vadd.f32 0.0, %v3330
        %v3332 = vpop.f32.mrf.mxu0
        %3333 = vmatprep.mubr.bf16.mxu0 0
        %3334 = vmatmul.mubr.bf16.gmra.mxu0 %v3212
        %v3335 = vpop.f32.mrf.mxu0
        %v3336 = vadd.f32 0.0, %v3335
        %v3337 = vpop.f32.mrf.mxu0
        %v3338 = vpop.f32.mrf.mxu0
        %v3339 = vadd.f32 0.0, %v3338
        %v3340 = vpop.f32.mrf.mxu0
        %3341 = vmatprep.mubr.bf16.mxu0 0
        %3342 = vmatmul.mubr.bf16.gmra.mxu0 %v3215
        %v3343 = vpop.f32.mrf.mxu0
        %v3344 = vadd.f32 0.0, %v3343
        %v3345 = vpop.f32.mrf.mxu0
        %v3346 = vpop.f32.mrf.mxu0
        %v3347 = vadd.f32 0.0, %v3346
        %v3348 = vpop.f32.mrf.mxu0
        %3349 = vmatprep.mubr.bf16.mxu0 0
        %3350 = vmatmul.mubr.bf16.gmra.mxu0 %v3218
        %v3351 = vpop.f32.mrf.mxu0
        %v3352 = vadd.f32 0.0, %v3351
        %v3353 = vpop.f32.mrf.mxu0
        %v3354 = vpop.f32.mrf.mxu0
        %v3355 = vadd.f32 0.0, %v3354
        %v3356 = vpop.f32.mrf.mxu0
        %3357 = vdwg.mxu0
        %v3366 = vunpack.c.l.b16 %v3110
        %v3367 = vunpack.c.l.b16 %v3111
        %v3368 = vunpack.c.l.b16 %v3112
        %v3369 = vunpack.c.l.b16 %v3113
        %v3370 = vunpack.c.l.b16 %v3114
        %v3371 = vunpack.c.l.b16 %v3115
        %v3372 = vunpack.c.l.b16 %v3116
        %v3373 = vunpack.c.l.b16 %v3117
        %v3374 = vpack.c.b16 %v3367, %v3366
        %v3375 = vpack.c.b16 %v3369, %v3368
        %v3376 = vpack.c.b16 %v3371, %v3370
        %v3377 = vpack.c.b16 %v3373, %v3372
        %v3385 = vsel %vm3207, %v3374, 0
        %v3388 = vsel %vm3207, %v3375, 0
        %v3391 = vsel %vm3207, %v3376, 0
        %v3394 = vsel %vm3207, %v3377, 0
        %3396 = vmatprep.subr.bf16.mxu0 0
        %3397 = vmatpush1.bf16.msra.mxu0 0
        %3398 = vmatprep.subr.bf16.mxu0 0
        %3399 = vmatpush1.bf16.msra.mxu0 0
        %3400 = vmatprep.subr.bf16.mxu0 0
        %3401 = vmatpush1.bf16.msra.mxu0 0
        %3402 = vmatprep.subr.bf16.mxu0 0
        %3403 = vmatpush1.bf16.msra.mxu0 0
        %3404 = vmatprep.subr.bf16.mxu0 0
        %3405 = vmatpush1.bf16.msra.mxu0 0
        %3406 = vmatprep.subr.bf16.mxu0 0
        %3407 = vmatpush1.bf16.msra.mxu0 0
        %3408 = vmatprep.subr.bf16.mxu0 %v3176
        %3409 = vmatpush1.bf16.msra.mxu0 %v3175
        %3410 = vmatprep.subr.bf16.mxu0 %v3172
        %3411 = vmatpush1.bf16.msra.mxu0 %v3171
        %3412 = vmatprep.subr.bf16.mxu0 0
        %3413 = vmatpush2.bf16.msra.mxu0 0
        %3414 = vmatprep.subr.bf16.mxu0 0
        %3415 = vmatpush2.bf16.msra.mxu0 0
        %3416 = vmatprep.subr.bf16.mxu0 0
        %3417 = vmatpush2.bf16.msra.mxu0 0
        %3418 = vmatprep.subr.bf16.mxu0 0
        %3419 = vmatpush2.bf16.msra.mxu0 0
        %3420 = vmatprep.subr.bf16.mxu0 0
        %3421 = vmatpush2.bf16.msra.mxu0 0
        %3422 = vmatprep.subr.bf16.mxu0 0
        %3423 = vmatpush2.bf16.msra.mxu0 0
        %3424 = vmatprep.subr.bf16.mxu0 0
        %3425 = vmatpush2.bf16.msra.mxu0 0
        %3426 = vmatprep.subr.bf16.mxu0 0
        %3427 = vmatpush2.bf16.msra.mxu0 0
        %3428 = vmatprep.mubr.bf16.mxu0 0
        %3429 = vmatmul.mubr.bf16.gmra.mxu0 %v3385
        %v3430 = vpop.f32.mrf.mxu0
        %v3431 = vadd.f32 %v3255, %v3430
        %v3432 = vpop.f32.mrf.mxu0
        %v3433 = vadd.f32 %v3257, %v3432
        %v3434 = vpop.f32.mrf.mxu0
        %v3435 = vadd.f32 %v3259, %v3434
        %v3436 = vpop.f32.mrf.mxu0
        %v3437 = vadd.f32 %v3261, %v3436
        %3438 = vmatprep.mubr.bf16.mxu0 0
        %3439 = vmatmul.mubr.bf16.gmra.mxu0 %v3388
        %v3440 = vpop.f32.mrf.mxu0
        %v3441 = vadd.f32 %v3265, %v3440
        %v3442 = vpop.f32.mrf.mxu0
        %v3443 = vadd.f32 %v3267, %v3442
        %v3444 = vpop.f32.mrf.mxu0
        %v3445 = vadd.f32 %v3269, %v3444
        %v3446 = vpop.f32.mrf.mxu0
        %v3447 = vadd.f32 %v3271, %v3446
        %3448 = vmatprep.mubr.bf16.mxu0 0
        %3449 = vmatmul.mubr.bf16.gmra.mxu0 %v3391
        %v3450 = vpop.f32.mrf.mxu0
        %v3451 = vadd.f32 %v3275, %v3450
        %v3452 = vpop.f32.mrf.mxu0
        %v3453 = vadd.f32 %v3277, %v3452
        %v3454 = vpop.f32.mrf.mxu0
        %v3455 = vadd.f32 %v3279, %v3454
        %v3456 = vpop.f32.mrf.mxu0
        %v3457 = vadd.f32 %v3281, %v3456
        %3458 = vmatprep.mubr.bf16.mxu0 0
        %3459 = vmatmul.mubr.bf16.gmra.mxu0 %v3394
        %v3460 = vpop.f32.mrf.mxu0
        %v3461 = vadd.f32 %v3285, %v3460
        %v3462 = vpop.f32.mrf.mxu0
        %v3463 = vadd.f32 %v3287, %v3462
        %v3464 = vpop.f32.mrf.mxu0
        %v3465 = vadd.f32 %v3289, %v3464
        %v3466 = vpop.f32.mrf.mxu0
        %v3467 = vadd.f32 %v3291, %v3466
        %3468 = vdwg.mxu0
        %3469 = vmatprep.subr.bf16.mxu0 0
        %3470 = vmatpush1.bf16.msra.mxu0 0
        %3471 = vmatprep.subr.bf16.mxu0 0
        %3472 = vmatpush1.bf16.msra.mxu0 0
        %3473 = vmatprep.subr.bf16.mxu0 0
        %3474 = vmatpush1.bf16.msra.mxu0 0
        %3475 = vmatprep.subr.bf16.mxu0 0
        %3476 = vmatpush1.bf16.msra.mxu0 0
        %3477 = vmatprep.subr.bf16.mxu0 0
        %3478 = vmatpush1.bf16.msra.mxu0 0
        %3479 = vmatprep.subr.bf16.mxu0 0
        %3480 = vmatpush1.bf16.msra.mxu0 0
        %3481 = vmatprep.subr.bf16.mxu0 0
        %3482 = vmatpush1.bf16.msra.mxu0 %v3177
        %3483 = vmatprep.subr.bf16.mxu0 0
        %3484 = vmatpush1.bf16.msra.mxu0 %v3173
        %3485 = vmatprep.subr.bf16.mxu0 0
        %3486 = vmatpush2.bf16.msra.mxu0 0
        %3487 = vmatprep.subr.bf16.mxu0 0
        %3488 = vmatpush2.bf16.msra.mxu0 0
        %3489 = vmatprep.subr.bf16.mxu0 0
        %3490 = vmatpush2.bf16.msra.mxu0 0
        %3491 = vmatprep.subr.bf16.mxu0 0
        %3492 = vmatpush2.bf16.msra.mxu0 0
        %3493 = vmatprep.subr.bf16.mxu0 0
        %3494 = vmatpush2.bf16.msra.mxu0 0
        %3495 = vmatprep.subr.bf16.mxu0 0
        %3496 = vmatpush2.bf16.msra.mxu0 0
        %3497 = vmatprep.subr.bf16.mxu0 0
        %3498 = vmatpush2.bf16.msra.mxu0 0
        %3499 = vmatprep.subr.bf16.mxu0 0
        %3500 = vmatpush2.bf16.msra.mxu0 0
        %3501 = vmatprep.mubr.bf16.mxu0 0
        %3502 = vmatmul.mubr.bf16.gmra.mxu0 %v3385
        %v3503 = vpop.f32.mrf.mxu0
        %v3504 = vadd.f32 %v3328, %v3503
        %v3505 = vpop.f32.mrf.mxu0
        %v3506 = vpop.f32.mrf.mxu0
        %v3507 = vadd.f32 %v3331, %v3506
        %v3508 = vpop.f32.mrf.mxu0
        %3509 = vmatprep.mubr.bf16.mxu0 0
        %3510 = vmatmul.mubr.bf16.gmra.mxu0 %v3388
        %v3511 = vpop.f32.mrf.mxu0
        %v3512 = vadd.f32 %v3336, %v3511
        %v3513 = vpop.f32.mrf.mxu0
        %v3514 = vpop.f32.mrf.mxu0
        %v3515 = vadd.f32 %v3339, %v3514
        %v3516 = vpop.f32.mrf.mxu0
        %3517 = vmatprep.mubr.bf16.mxu0 0
        %3518 = vmatmul.mubr.bf16.gmra.mxu0 %v3391
        %v3519 = vpop.f32.mrf.mxu0
        %v3520 = vadd.f32 %v3344, %v3519
        %v3521 = vpop.f32.mrf.mxu0
        %v3522 = vpop.f32.mrf.mxu0
        %v3523 = vadd.f32 %v3347, %v3522
        %v3524 = vpop.f32.mrf.mxu0
        %3525 = vmatprep.mubr.bf16.mxu0 0
        %3526 = vmatmul.mubr.bf16.gmra.mxu0 %v3394
        %v3527 = vpop.f32.mrf.mxu0
        %v3528 = vadd.f32 %v3352, %v3527
        %v3529 = vpop.f32.mrf.mxu0
        %v3530 = vpop.f32.mrf.mxu0
        %v3531 = vadd.f32 %v3355, %v3530
        %v3532 = vpop.f32.mrf.mxu0
        %3533 = vdwg.mxu0
        %s3534 = scalar_lea.vmem %s3, 64
        %v3535 = vld [vmem:[%s3534] sm:$0xf]
        %v3536 = vld [vmem:[%s3534 + $0x4] sm:$0xf]
        %v3537 = vld [vmem:[%s3534 + $0x8] sm:$0xf]
        %v3538 = vld [vmem:[%s3534 + $0xc] sm:$0xf]
        %v3539 = vld [vmem:[%s3534 + $0x10] sm:$0xf]
        %v3540 = vld [vmem:[%s3534 + $0x14] sm:$0xf]
        %v3541 = vld [vmem:[%s3534 + $0x18] sm:$0xf]
        %v3542 = vld [vmem:[%s3534 + $0x1c] sm:$0xf]
        %v3551 = vunpack.c.l.b16 %v3535
        %v3552 = vunpack.c.l.b16 %v3536
        %v3553 = vunpack.c.l.b16 %v3537
        %v3554 = vunpack.c.l.b16 %v3538
        %v3555 = vunpack.c.l.b16 %v3539
        %v3556 = vunpack.c.l.b16 %v3540
        %v3557 = vunpack.c.l.b16 %v3541
        %v3558 = vunpack.c.l.b16 %v3542
        %v3559 = vpack.c.b16 %v3552, %v3551
        %v3560 = vpack.c.b16 %v3554, %v3553
        %v3561 = vpack.c.b16 %v3556, %v3555
        %v3562 = vpack.c.b16 %v3558, %v3557
        %3563 = vrot.lane.b32.xlu0 %v3171, 126
        %v3564 = vpop.permute.xlu0 %3563
        %3565 = vrot.lane.b32.xlu0 %v3172, 126
        %v3566 = vpop.permute.xlu0 %3565
        %3567 = vrot.lane.b32.xlu0 %v3173, 126
        %v3568 = vpop.permute.xlu0 %3567
        %3569 = vrot.lane.b32.xlu0 %v3174, 126
        %v3570 = vpop.permute.xlu0 %3569
        %3571 = vrot.lane.b32.xlu0 %v3175, 126
        %v3572 = vpop.permute.xlu0 %3571
        %3573 = vrot.lane.b32.xlu0 %v3176, 126
        %v3574 = vpop.permute.xlu0 %3573
        %3575 = vrot.lane.b32.xlu0 %v3177, 126
        %v3576 = vpop.permute.xlu0 %3575
        %3577 = vrot.lane.b32.xlu0 %v3178, 126
        %v3578 = vpop.permute.xlu0 %3577
        %v3579 = vsel %vm643, %v3564, %v3566
        %v3580 = vsel %vm643, %v3566, %v3568
        %v3581 = vsel %vm643, %v3568, %v3570
        %v3582 = vsel %vm643, %v3572, %v3574
        %v3583 = vsel %vm643, %v3574, %v3576
        %v3584 = vsel %vm643, %v3576, %v3578
        %v3592 = vsel %vm3207, %v3559, 0
        %v3595 = vsel %vm3207, %v3560, 0
        %v3598 = vsel %vm3207, %v3561, 0
        %v3601 = vsel %vm3207, %v3562, 0
        %3603 = vmatprep.subr.bf16.mxu0 0
        %3604 = vmatpush1.bf16.msra.mxu0 0
        %3605 = vmatprep.subr.bf16.mxu0 0
        %3606 = vmatpush1.bf16.msra.mxu0 0
        %3607 = vmatprep.subr.bf16.mxu0 0
        %3608 = vmatpush1.bf16.msra.mxu0 0
        %3609 = vmatprep.subr.bf16.mxu0 0
        %3610 = vmatpush1.bf16.msra.mxu0 0
        %3611 = vmatprep.subr.bf16.mxu0 0
        %3612 = vmatpush1.bf16.msra.mxu0 0
        %3613 = vmatprep.subr.bf16.mxu0 0
        %3614 = vmatpush1.bf16.msra.mxu0 0
        %3615 = vmatprep.subr.bf16.mxu0 %v3583
        %3616 = vmatpush1.bf16.msra.mxu0 %v3582
        %3617 = vmatprep.subr.bf16.mxu0 %v3580
        %3618 = vmatpush1.bf16.msra.mxu0 %v3579
        %3619 = vmatprep.subr.bf16.mxu0 0
        %3620 = vmatpush2.bf16.msra.mxu0 0
        %3621 = vmatprep.subr.bf16.mxu0 0
        %3622 = vmatpush2.bf16.msra.mxu0 0
        %3623 = vmatprep.subr.bf16.mxu0 0
        %3624 = vmatpush2.bf16.msra.mxu0 0
        %3625 = vmatprep.subr.bf16.mxu0 0
        %3626 = vmatpush2.bf16.msra.mxu0 0
        %3627 = vmatprep.subr.bf16.mxu0 0
        %3628 = vmatpush2.bf16.msra.mxu0 0
        %3629 = vmatprep.subr.bf16.mxu0 0
        %3630 = vmatpush2.bf16.msra.mxu0 0
        %3631 = vmatprep.subr.bf16.mxu0 0
        %3632 = vmatpush2.bf16.msra.mxu0 0
        %3633 = vmatprep.subr.bf16.mxu0 0
        %3634 = vmatpush2.bf16.msra.mxu0 0
        %3635 = vmatprep.mubr.bf16.mxu0 0
        %3636 = vmatmul.mubr.bf16.gmra.mxu0 %v3592
        %v3637 = vpop.f32.mrf.mxu0
        %v3638 = vadd.f32 0.0, %v3637
        %v3639 = vpop.f32.mrf.mxu0
        %v3640 = vadd.f32 0.0, %v3639
        %v3641 = vpop.f32.mrf.mxu0
        %v3642 = vadd.f32 0.0, %v3641
        %v3643 = vpop.f32.mrf.mxu0
        %v3644 = vadd.f32 0.0, %v3643
        %3645 = vmatprep.mubr.bf16.mxu0 0
        %3646 = vmatmul.mubr.bf16.gmra.mxu0 %v3595
        %v3647 = vpop.f32.mrf.mxu0
        %v3648 = vadd.f32 0.0, %v3647
        %v3649 = vpop.f32.mrf.mxu0
        %v3650 = vadd.f32 0.0, %v3649
        %v3651 = vpop.f32.mrf.mxu0
        %v3652 = vadd.f32 0.0, %v3651
        %v3653 = vpop.f32.mrf.mxu0
        %v3654 = vadd.f32 0.0, %v3653
        %3655 = vmatprep.mubr.bf16.mxu0 0
        %3656 = vmatmul.mubr.bf16.gmra.mxu0 %v3598
        %v3657 = vpop.f32.mrf.mxu0
        %v3658 = vadd.f32 0.0, %v3657
        %v3659 = vpop.f32.mrf.mxu0
        %v3660 = vadd.f32 0.0, %v3659
        %v3661 = vpop.f32.mrf.mxu0
        %v3662 = vadd.f32 0.0, %v3661
        %v3663 = vpop.f32.mrf.mxu0
        %v3664 = vadd.f32 0.0, %v3663
        %3665 = vmatprep.mubr.bf16.mxu0 0
        %3666 = vmatmul.mubr.bf16.gmra.mxu0 %v3601
        %v3667 = vpop.f32.mrf.mxu0
        %v3668 = vadd.f32 0.0, %v3667
        %v3669 = vpop.f32.mrf.mxu0
        %v3670 = vadd.f32 0.0, %v3669
        %v3671 = vpop.f32.mrf.mxu0
        %v3672 = vadd.f32 0.0, %v3671
        %v3673 = vpop.f32.mrf.mxu0
        %v3674 = vadd.f32 0.0, %v3673
        %3675 = vdwg.mxu0
        %3676 = vmatprep.subr.bf16.mxu0 0
        %3677 = vmatpush1.bf16.msra.mxu0 0
        %3678 = vmatprep.subr.bf16.mxu0 0
        %3679 = vmatpush1.bf16.msra.mxu0 0
        %3680 = vmatprep.subr.bf16.mxu0 0
        %3681 = vmatpush1.bf16.msra.mxu0 0
        %3682 = vmatprep.subr.bf16.mxu0 0
        %3683 = vmatpush1.bf16.msra.mxu0 0
        %3684 = vmatprep.subr.bf16.mxu0 0
        %3685 = vmatpush1.bf16.msra.mxu0 0
        %3686 = vmatprep.subr.bf16.mxu0 0
        %3687 = vmatpush1.bf16.msra.mxu0 0
        %3688 = vmatprep.subr.bf16.mxu0 0
        %3689 = vmatpush1.bf16.msra.mxu0 %v3584
        %3690 = vmatprep.subr.bf16.mxu0 0
        %3691 = vmatpush1.bf16.msra.mxu0 %v3581
        %3692 = vmatprep.subr.bf16.mxu0 0
        %3693 = vmatpush2.bf16.msra.mxu0 0
        %3694 = vmatprep.subr.bf16.mxu0 0
        %3695 = vmatpush2.bf16.msra.mxu0 0
        %3696 = vmatprep.subr.bf16.mxu0 0
        %3697 = vmatpush2.bf16.msra.mxu0 0
        %3698 = vmatprep.subr.bf16.mxu0 0
        %3699 = vmatpush2.bf16.msra.mxu0 0
        %3700 = vmatprep.subr.bf16.mxu0 0
        %3701 = vmatpush2.bf16.msra.mxu0 0
        %3702 = vmatprep.subr.bf16.mxu0 0
        %3703 = vmatpush2.bf16.msra.mxu0 0
        %3704 = vmatprep.subr.bf16.mxu0 0
        %3705 = vmatpush2.bf16.msra.mxu0 0
        %3706 = vmatprep.subr.bf16.mxu0 0
        %3707 = vmatpush2.bf16.msra.mxu0 0
        %3708 = vmatprep.mubr.bf16.mxu0 0
        %3709 = vmatmul.mubr.bf16.gmra.mxu0 %v3592
        %v3710 = vpop.f32.mrf.mxu0
        %v3711 = vadd.f32 0.0, %v3710
        %v3712 = vpop.f32.mrf.mxu0
        %v3713 = vpop.f32.mrf.mxu0
        %v3714 = vadd.f32 0.0, %v3713
        %v3715 = vpop.f32.mrf.mxu0
        %3716 = vmatprep.mubr.bf16.mxu0 0
        %3717 = vmatmul.mubr.bf16.gmra.mxu0 %v3595
        %v3718 = vpop.f32.mrf.mxu0
        %v3719 = vadd.f32 0.0, %v3718
        %v3720 = vpop.f32.mrf.mxu0
        %v3721 = vpop.f32.mrf.mxu0
        %v3722 = vadd.f32 0.0, %v3721
        %v3723 = vpop.f32.mrf.mxu0
        %3724 = vmatprep.mubr.bf16.mxu0 0
        %3725 = vmatmul.mubr.bf16.gmra.mxu0 %v3598
        %v3726 = vpop.f32.mrf.mxu0
        %v3727 = vadd.f32 0.0, %v3726
        %v3728 = vpop.f32.mrf.mxu0
        %v3729 = vpop.f32.mrf.mxu0
        %v3730 = vadd.f32 0.0, %v3729
        %v3731 = vpop.f32.mrf.mxu0
        %3732 = vmatprep.mubr.bf16.mxu0 0
        %3733 = vmatmul.mubr.bf16.gmra.mxu0 %v3601
        %v3734 = vpop.f32.mrf.mxu0
        %v3735 = vadd.f32 0.0, %v3734
        %v3736 = vpop.f32.mrf.mxu0
        %v3737 = vpop.f32.mrf.mxu0
        %v3738 = vadd.f32 0.0, %v3737
        %v3739 = vpop.f32.mrf.mxu0
        %3740 = vdwg.mxu0
        %v3741 = vadd.f32 %v3431, %v3638
        %v3742 = vadd.f32 %v3433, %v3640
        %v3743 = vadd.f32 %v3504, %v3711
        %v3744 = vadd.f32 %v3435, %v3642
        %v3745 = vadd.f32 %v3437, %v3644
        %v3746 = vadd.f32 %v3507, %v3714
        %v3747 = vadd.f32 %v3441, %v3648
        %v3748 = vadd.f32 %v3443, %v3650
        %v3749 = vadd.f32 %v3512, %v3719
        %v3750 = vadd.f32 %v3445, %v3652
        %v3751 = vadd.f32 %v3447, %v3654
        %v3752 = vadd.f32 %v3515, %v3722
        %v3753 = vadd.f32 %v3451, %v3658
        %v3754 = vadd.f32 %v3453, %v3660
        %v3755 = vadd.f32 %v3520, %v3727
        %v3756 = vadd.f32 %v3455, %v3662
        %v3757 = vadd.f32 %v3457, %v3664
        %v3758 = vadd.f32 %v3523, %v3730
        %v3759 = vadd.f32 %v3461, %v3668
        %v3760 = vadd.f32 %v3463, %v3670
        %v3761 = vadd.f32 %v3528, %v3735
        %v3762 = vadd.f32 %v3465, %v3672
        %v3763 = vadd.f32 %v3467, %v3674
        %v3764 = vadd.f32 %v3531, %v3738
        %s3765 = scalar_lea.vmem %s3, 96
        %v3766 = vld [vmem:[%s3765] sm:$0xf]
        %v3767 = vld [vmem:[%s3765 + $0x4] sm:$0xf]
        %v3768 = vld [vmem:[%s3765 + $0x8] sm:$0xf]
        %v3769 = vld [vmem:[%s3765 + $0xc] sm:$0xf]
        %v3770 = vld [vmem:[%s3765 + $0x10] sm:$0xf]
        %v3771 = vld [vmem:[%s3765 + $0x14] sm:$0xf]
        %v3772 = vld [vmem:[%s3765 + $0x18] sm:$0xf]
        %v3773 = vld [vmem:[%s3765 + $0x1c] sm:$0xf]
        %v3782 = vunpack.c.l.b16 %v3766
        %v3783 = vunpack.c.l.b16 %v3767
        %v3784 = vunpack.c.l.b16 %v3768
        %v3785 = vunpack.c.l.b16 %v3769
        %v3786 = vunpack.c.l.b16 %v3770
        %v3787 = vunpack.c.l.b16 %v3771
        %v3788 = vunpack.c.l.b16 %v3772
        %v3789 = vunpack.c.l.b16 %v3773
        %v3790 = vpack.c.b16 %v3783, %v3782
        %v3791 = vpack.c.b16 %v3785, %v3784
        %v3792 = vpack.c.b16 %v3787, %v3786
        %v3793 = vpack.c.b16 %v3789, %v3788
        %3794 = vrot.lane.b32.xlu0 %v3171, 104
        %v3795 = vpop.permute.xlu0 %3794
        %3796 = vrot.lane.b32.xlu0 %v3172, 104
        %v3797 = vpop.permute.xlu0 %3796
        %3798 = vrot.lane.b32.xlu0 %v3173, 104
        %v3799 = vpop.permute.xlu0 %3798
        %3800 = vrot.lane.b32.xlu0 %v3174, 104
        %v3801 = vpop.permute.xlu0 %3800
        %3802 = vrot.lane.b32.xlu0 %v3175, 104
        %v3803 = vpop.permute.xlu0 %3802
        %3804 = vrot.lane.b32.xlu0 %v3176, 104
        %v3805 = vpop.permute.xlu0 %3804
        %3806 = vrot.lane.b32.xlu0 %v3177, 104
        %v3807 = vpop.permute.xlu0 %3806
        %3808 = vrot.lane.b32.xlu0 %v3178, 104
        %v3809 = vpop.permute.xlu0 %3808
        %v3810 = vsel %vm765, %v3795, %v3797
        %v3811 = vsel %vm765, %v3797, %v3799
        %v3812 = vsel %vm765, %v3799, %v3801
        %v3813 = vsel %vm765, %v3803, %v3805
        %v3814 = vsel %vm765, %v3805, %v3807
        %v3815 = vsel %vm765, %v3807, %v3809
        %v3823 = vsel %vm3207, %v3790, 0
        %v3826 = vsel %vm3207, %v3791, 0
        %v3829 = vsel %vm3207, %v3792, 0
        %v3832 = vsel %vm3207, %v3793, 0
        %3834 = vmatprep.subr.bf16.mxu0 0
        %3835 = vmatpush1.bf16.msra.mxu0 0
        %3836 = vmatprep.subr.bf16.mxu0 0
        %3837 = vmatpush1.bf16.msra.mxu0 0
        %3838 = vmatprep.subr.bf16.mxu0 0
        %3839 = vmatpush1.bf16.msra.mxu0 0
        %3840 = vmatprep.subr.bf16.mxu0 0
        %3841 = vmatpush1.bf16.msra.mxu0 0
        %3842 = vmatprep.subr.bf16.mxu0 0
        %3843 = vmatpush1.bf16.msra.mxu0 0
        %3844 = vmatprep.subr.bf16.mxu0 0
        %3845 = vmatpush1.bf16.msra.mxu0 0
        %3846 = vmatprep.subr.bf16.mxu0 %v3814
        %3847 = vmatpush1.bf16.msra.mxu0 %v3813
        %3848 = vmatprep.subr.bf16.mxu0 %v3811
        %3849 = vmatpush1.bf16.msra.mxu0 %v3810
        %3850 = vmatprep.subr.bf16.mxu0 0
        %3851 = vmatpush2.bf16.msra.mxu0 0
        %3852 = vmatprep.subr.bf16.mxu0 0
        %3853 = vmatpush2.bf16.msra.mxu0 0
        %3854 = vmatprep.subr.bf16.mxu0 0
        %3855 = vmatpush2.bf16.msra.mxu0 0
        %3856 = vmatprep.subr.bf16.mxu0 0
        %3857 = vmatpush2.bf16.msra.mxu0 0
        %3858 = vmatprep.subr.bf16.mxu0 0
        %3859 = vmatpush2.bf16.msra.mxu0 0
        %3860 = vmatprep.subr.bf16.mxu0 0
        %3861 = vmatpush2.bf16.msra.mxu0 0
        %3862 = vmatprep.subr.bf16.mxu0 0
        %3863 = vmatpush2.bf16.msra.mxu0 0
        %3864 = vmatprep.subr.bf16.mxu0 0
        %3865 = vmatpush2.bf16.msra.mxu0 0
        %3866 = vmatprep.mubr.bf16.mxu0 0
        %3867 = vmatmul.mubr.bf16.gmra.mxu0 %v3823
        %v3868 = vpop.f32.mrf.mxu0
        %v3869 = vadd.f32 0.0, %v3868
        %v3870 = vpop.f32.mrf.mxu0
        %v3871 = vadd.f32 0.0, %v3870
        %v3872 = vpop.f32.mrf.mxu0
        %v3873 = vadd.f32 0.0, %v3872
        %v3874 = vpop.f32.mrf.mxu0
        %v3875 = vadd.f32 0.0, %v3874
        %3876 = vmatprep.mubr.bf16.mxu0 0
        %3877 = vmatmul.mubr.bf16.gmra.mxu0 %v3826
        %v3878 = vpop.f32.mrf.mxu0
        %v3879 = vadd.f32 0.0, %v3878
        %v3880 = vpop.f32.mrf.mxu0
        %v3881 = vadd.f32 0.0, %v3880
        %v3882 = vpop.f32.mrf.mxu0
        %v3883 = vadd.f32 0.0, %v3882
        %v3884 = vpop.f32.mrf.mxu0
        %v3885 = vadd.f32 0.0, %v3884
        %3886 = vmatprep.mubr.bf16.mxu0 0
        %3887 = vmatmul.mubr.bf16.gmra.mxu0 %v3829
        %v3888 = vpop.f32.mrf.mxu0
        %v3889 = vadd.f32 0.0, %v3888
        %v3890 = vpop.f32.mrf.mxu0
        %v3891 = vadd.f32 0.0, %v3890
        %v3892 = vpop.f32.mrf.mxu0
        %v3893 = vadd.f32 0.0, %v3892
        %v3894 = vpop.f32.mrf.mxu0
        %v3895 = vadd.f32 0.0, %v3894
        %3896 = vmatprep.mubr.bf16.mxu0 0
        %3897 = vmatmul.mubr.bf16.gmra.mxu0 %v3832
        %v3898 = vpop.f32.mrf.mxu0
        %v3899 = vadd.f32 0.0, %v3898
        %v3900 = vpop.f32.mrf.mxu0
        %v3901 = vadd.f32 0.0, %v3900
        %v3902 = vpop.f32.mrf.mxu0
        %v3903 = vadd.f32 0.0, %v3902
        %v3904 = vpop.f32.mrf.mxu0
        %v3905 = vadd.f32 0.0, %v3904
        %3906 = vdwg.mxu0
        %3907 = vmatprep.subr.bf16.mxu0 0
        %3908 = vmatpush1.bf16.msra.mxu0 0
        %3909 = vmatprep.subr.bf16.mxu0 0
        %3910 = vmatpush1.bf16.msra.mxu0 0
        %3911 = vmatprep.subr.bf16.mxu0 0
        %3912 = vmatpush1.bf16.msra.mxu0 0
        %3913 = vmatprep.subr.bf16.mxu0 0
        %3914 = vmatpush1.bf16.msra.mxu0 0
        %3915 = vmatprep.subr.bf16.mxu0 0
        %3916 = vmatpush1.bf16.msra.mxu0 0
        %3917 = vmatprep.subr.bf16.mxu0 0
        %3918 = vmatpush1.bf16.msra.mxu0 0
        %3919 = vmatprep.subr.bf16.mxu0 0
        %3920 = vmatpush1.bf16.msra.mxu0 %v3815
        %3921 = vmatprep.subr.bf16.mxu0 0
        %3922 = vmatpush1.bf16.msra.mxu0 %v3812
        %3923 = vmatprep.subr.bf16.mxu0 0
        %3924 = vmatpush2.bf16.msra.mxu0 0
        %3925 = vmatprep.subr.bf16.mxu0 0
        %3926 = vmatpush2.bf16.msra.mxu0 0
        %3927 = vmatprep.subr.bf16.mxu0 0
        %3928 = vmatpush2.bf16.msra.mxu0 0
        %3929 = vmatprep.subr.bf16.mxu0 0
        %3930 = vmatpush2.bf16.msra.mxu0 0
        %3931 = vmatprep.subr.bf16.mxu0 0
        %3932 = vmatpush2.bf16.msra.mxu0 0
        %3933 = vmatprep.subr.bf16.mxu0 0
        %3934 = vmatpush2.bf16.msra.mxu0 0
        %3935 = vmatprep.subr.bf16.mxu0 0
        %3936 = vmatpush2.bf16.msra.mxu0 0
        %3937 = vmatprep.subr.bf16.mxu0 0
        %3938 = vmatpush2.bf16.msra.mxu0 0
        %3939 = vmatprep.mubr.bf16.mxu0 0
        %3940 = vmatmul.mubr.bf16.gmra.mxu0 %v3823
        %v3941 = vpop.f32.mrf.mxu0
        %v3942 = vadd.f32 0.0, %v3941
        %v3943 = vpop.f32.mrf.mxu0
        %v3944 = vpop.f32.mrf.mxu0
        %v3945 = vadd.f32 0.0, %v3944
        %v3946 = vpop.f32.mrf.mxu0
        %3947 = vmatprep.mubr.bf16.mxu0 0
        %3948 = vmatmul.mubr.bf16.gmra.mxu0 %v3826
        %v3949 = vpop.f32.mrf.mxu0
        %v3950 = vadd.f32 0.0, %v3949
        %v3951 = vpop.f32.mrf.mxu0
        %v3952 = vpop.f32.mrf.mxu0
        %v3953 = vadd.f32 0.0, %v3952
        %v3954 = vpop.f32.mrf.mxu0
        %3955 = vmatprep.mubr.bf16.mxu0 0
        %3956 = vmatmul.mubr.bf16.gmra.mxu0 %v3829
        %v3957 = vpop.f32.mrf.mxu0
        %v3958 = vadd.f32 0.0, %v3957
        %v3959 = vpop.f32.mrf.mxu0
        %v3960 = vpop.f32.mrf.mxu0
        %v3961 = vadd.f32 0.0, %v3960
        %v3962 = vpop.f32.mrf.mxu0
        %3963 = vmatprep.mubr.bf16.mxu0 0
        %3964 = vmatmul.mubr.bf16.gmra.mxu0 %v3832
        %v3965 = vpop.f32.mrf.mxu0
        %v3966 = vadd.f32 0.0, %v3965
        %v3967 = vpop.f32.mrf.mxu0
        %v3968 = vpop.f32.mrf.mxu0
        %v3969 = vadd.f32 0.0, %v3968
        %v3970 = vpop.f32.mrf.mxu0
        %3971 = vdwg.mxu0
        %v3972 = vadd.f32 %v3741, %v3869
        %v3973 = vadd.f32 %v3742, %v3871
        %v3974 = vadd.f32 %v3743, %v3942
        %v3975 = vadd.f32 %v3744, %v3873
        %v3976 = vadd.f32 %v3745, %v3875
        %v3977 = vadd.f32 %v3746, %v3945
        %v3978 = vadd.f32 %v3747, %v3879
        %v3979 = vadd.f32 %v3748, %v3881
        %v3980 = vadd.f32 %v3749, %v3950
        %v3981 = vadd.f32 %v3750, %v3883
        %v3982 = vadd.f32 %v3751, %v3885
        %v3983 = vadd.f32 %v3752, %v3953
        %v3984 = vadd.f32 %v3753, %v3889
        %v3985 = vadd.f32 %v3754, %v3891
        %v3986 = vadd.f32 %v3755, %v3958
        %v3987 = vadd.f32 %v3756, %v3893
        %v3988 = vadd.f32 %v3757, %v3895
        %v3989 = vadd.f32 %v3758, %v3961
        %v3990 = vadd.f32 %v3759, %v3899
        %v3991 = vadd.f32 %v3760, %v3901
        %v3992 = vadd.f32 %v3761, %v3966
        %v3993 = vadd.f32 %v3762, %v3903
        %v3994 = vadd.f32 %v3763, %v3905
        %v3995 = vadd.f32 %v3764, %v3969
        %s3996 = scalar_lea.vmem %s3, 128
        %v3997 = vld [vmem:[%s3996] sm:$0xf]
        %v3998 = vld [vmem:[%s3996 + $0x4] sm:$0xf]
        %v3999 = vld [vmem:[%s3996 + $0x8] sm:$0xf]
        %v4000 = vld [vmem:[%s3996 + $0xc] sm:$0xf]
        %v4001 = vld [vmem:[%s3996 + $0x10] sm:$0xf]
        %v4002 = vld [vmem:[%s3996 + $0x14] sm:$0xf]
        %v4003 = vld [vmem:[%s3996 + $0x18] sm:$0xf]
        %v4004 = vld [vmem:[%s3996 + $0x1c] sm:$0xf]
        %v4013 = vunpack.c.l.b16 %v3997
        %v4014 = vunpack.c.l.b16 %v3998
        %v4015 = vunpack.c.l.b16 %v3999
        %v4016 = vunpack.c.l.b16 %v4000
        %v4017 = vunpack.c.l.b16 %v4001
        %v4018 = vunpack.c.l.b16 %v4002
        %v4019 = vunpack.c.l.b16 %v4003
        %v4020 = vunpack.c.l.b16 %v4004
        %v4021 = vpack.c.b16 %v4014, %v4013
        %v4022 = vpack.c.b16 %v4016, %v4015
        %v4023 = vpack.c.b16 %v4018, %v4017
        %v4024 = vpack.c.b16 %v4020, %v4019
        %4025 = vrot.lane.b32.xlu0 %v3171, 103
        %v4026 = vpop.permute.xlu0 %4025
        %4027 = vrot.lane.b32.xlu0 %v3172, 103
        %v4028 = vpop.permute.xlu0 %4027
        %4029 = vrot.lane.b32.xlu0 %v3173, 103
        %v4030 = vpop.permute.xlu0 %4029
        %4031 = vrot.lane.b32.xlu0 %v3174, 103
        %v4032 = vpop.permute.xlu0 %4031
        %4033 = vrot.lane.b32.xlu0 %v3175, 103
        %v4034 = vpop.permute.xlu0 %4033
        %4035 = vrot.lane.b32.xlu0 %v3176, 103
        %v4036 = vpop.permute.xlu0 %4035
        %4037 = vrot.lane.b32.xlu0 %v3177, 103
        %v4038 = vpop.permute.xlu0 %4037
        %4039 = vrot.lane.b32.xlu0 %v3178, 103
        %v4040 = vpop.permute.xlu0 %4039
        %v4041 = vsel %vm887, %v4026, %v4028
        %v4042 = vsel %vm887, %v4028, %v4030
        %v4043 = vsel %vm887, %v4030, %v4032
        %v4044 = vsel %vm887, %v4034, %v4036
        %v4045 = vsel %vm887, %v4036, %v4038
        %v4046 = vsel %vm887, %v4038, %v4040
        %v4054 = vsel %vm3207, %v4021, 0
        %v4057 = vsel %vm3207, %v4022, 0
        %v4060 = vsel %vm3207, %v4023, 0
        %v4063 = vsel %vm3207, %v4024, 0
        %4065 = vmatprep.subr.bf16.mxu0 0
        %4066 = vmatpush1.bf16.msra.mxu0 0
        %4067 = vmatprep.subr.bf16.mxu0 0
        %4068 = vmatpush1.bf16.msra.mxu0 0
        %4069 = vmatprep.subr.bf16.mxu0 0
        %4070 = vmatpush1.bf16.msra.mxu0 0
        %4071 = vmatprep.subr.bf16.mxu0 0
        %4072 = vmatpush1.bf16.msra.mxu0 0
        %4073 = vmatprep.subr.bf16.mxu0 0
        %4074 = vmatpush1.bf16.msra.mxu0 0
        %4075 = vmatprep.subr.bf16.mxu0 0
        %4076 = vmatpush1.bf16.msra.mxu0 0
        %4077 = vmatprep.subr.bf16.mxu0 %v4045
        %4078 = vmatpush1.bf16.msra.mxu0 %v4044
        %4079 = vmatprep.subr.bf16.mxu0 %v4042
        %4080 = vmatpush1.bf16.msra.mxu0 %v4041
        %4081 = vmatprep.subr.bf16.mxu0 0
        %4082 = vmatpush2.bf16.msra.mxu0 0
        %4083 = vmatprep.subr.bf16.mxu0 0
        %4084 = vmatpush2.bf16.msra.mxu0 0
        %4085 = vmatprep.subr.bf16.mxu0 0
        %4086 = vmatpush2.bf16.msra.mxu0 0
        %4087 = vmatprep.subr.bf16.mxu0 0
        %4088 = vmatpush2.bf16.msra.mxu0 0
        %4089 = vmatprep.subr.bf16.mxu0 0
        %4090 = vmatpush2.bf16.msra.mxu0 0
        %4091 = vmatprep.subr.bf16.mxu0 0
        %4092 = vmatpush2.bf16.msra.mxu0 0
        %4093 = vmatprep.subr.bf16.mxu0 0
        %4094 = vmatpush2.bf16.msra.mxu0 0
        %4095 = vmatprep.subr.bf16.mxu0 0
        %4096 = vmatpush2.bf16.msra.mxu0 0
        %4097 = vmatprep.mubr.bf16.mxu0 0
        %4098 = vmatmul.mubr.bf16.gmra.mxu0 %v4054
        %v4099 = vpop.f32.mrf.mxu0
        %v4100 = vadd.f32 0.0, %v4099
        %v4101 = vpop.f32.mrf.mxu0
        %v4102 = vadd.f32 0.0, %v4101
        %v4103 = vpop.f32.mrf.mxu0
        %v4104 = vadd.f32 0.0, %v4103
        %v4105 = vpop.f32.mrf.mxu0
        %v4106 = vadd.f32 0.0, %v4105
        %4107 = vmatprep.mubr.bf16.mxu0 0
        %4108 = vmatmul.mubr.bf16.gmra.mxu0 %v4057
        %v4109 = vpop.f32.mrf.mxu0
        %v4110 = vadd.f32 0.0, %v4109
        %v4111 = vpop.f32.mrf.mxu0
        %v4112 = vadd.f32 0.0, %v4111
        %v4113 = vpop.f32.mrf.mxu0
        %v4114 = vadd.f32 0.0, %v4113
        %v4115 = vpop.f32.mrf.mxu0
        %v4116 = vadd.f32 0.0, %v4115
        %4117 = vmatprep.mubr.bf16.mxu0 0
        %4118 = vmatmul.mubr.bf16.gmra.mxu0 %v4060
        %v4119 = vpop.f32.mrf.mxu0
        %v4120 = vadd.f32 0.0, %v4119
        %v4121 = vpop.f32.mrf.mxu0
        %v4122 = vadd.f32 0.0, %v4121
        %v4123 = vpop.f32.mrf.mxu0
        %v4124 = vadd.f32 0.0, %v4123
        %v4125 = vpop.f32.mrf.mxu0
        %v4126 = vadd.f32 0.0, %v4125
        %4127 = vmatprep.mubr.bf16.mxu0 0
        %4128 = vmatmul.mubr.bf16.gmra.mxu0 %v4063
        %v4129 = vpop.f32.mrf.mxu0
        %v4130 = vadd.f32 0.0, %v4129
        %v4131 = vpop.f32.mrf.mxu0
        %v4132 = vadd.f32 0.0, %v4131
        %v4133 = vpop.f32.mrf.mxu0
        %v4134 = vadd.f32 0.0, %v4133
        %v4135 = vpop.f32.mrf.mxu0
        %v4136 = vadd.f32 0.0, %v4135
        %4137 = vdwg.mxu0
        %4138 = vmatprep.subr.bf16.mxu0 0
        %4139 = vmatpush1.bf16.msra.mxu0 0
        %4140 = vmatprep.subr.bf16.mxu0 0
        %4141 = vmatpush1.bf16.msra.mxu0 0
        %4142 = vmatprep.subr.bf16.mxu0 0
        %4143 = vmatpush1.bf16.msra.mxu0 0
        %4144 = vmatprep.subr.bf16.mxu0 0
        %4145 = vmatpush1.bf16.msra.mxu0 0
        %4146 = vmatprep.subr.bf16.mxu0 0
        %4147 = vmatpush1.bf16.msra.mxu0 0
        %4148 = vmatprep.subr.bf16.mxu0 0
        %4149 = vmatpush1.bf16.msra.mxu0 0
        %4150 = vmatprep.subr.bf16.mxu0 0
        %4151 = vmatpush1.bf16.msra.mxu0 %v4046
        %4152 = vmatprep.subr.bf16.mxu0 0
        %4153 = vmatpush1.bf16.msra.mxu0 %v4043
        %4154 = vmatprep.subr.bf16.mxu0 0
        %4155 = vmatpush2.bf16.msra.mxu0 0
        %4156 = vmatprep.subr.bf16.mxu0 0
        %4157 = vmatpush2.bf16.msra.mxu0 0
        %4158 = vmatprep.subr.bf16.mxu0 0
        %4159 = vmatpush2.bf16.msra.mxu0 0
        %4160 = vmatprep.subr.bf16.mxu0 0
        %4161 = vmatpush2.bf16.msra.mxu0 0
        %4162 = vmatprep.subr.bf16.mxu0 0
        %4163 = vmatpush2.bf16.msra.mxu0 0
        %4164 = vmatprep.subr.bf16.mxu0 0
        %4165 = vmatpush2.bf16.msra.mxu0 0
        %4166 = vmatprep.subr.bf16.mxu0 0
        %4167 = vmatpush2.bf16.msra.mxu0 0
        %4168 = vmatprep.subr.bf16.mxu0 0
        %4169 = vmatpush2.bf16.msra.mxu0 0
        %4170 = vmatprep.mubr.bf16.mxu0 0
        %4171 = vmatmul.mubr.bf16.gmra.mxu0 %v4054
        %v4172 = vpop.f32.mrf.mxu0
        %v4173 = vadd.f32 0.0, %v4172
        %v4174 = vpop.f32.mrf.mxu0
        %v4175 = vpop.f32.mrf.mxu0
        %v4176 = vadd.f32 0.0, %v4175
        %v4177 = vpop.f32.mrf.mxu0
        %4178 = vmatprep.mubr.bf16.mxu0 0
        %4179 = vmatmul.mubr.bf16.gmra.mxu0 %v4057
        %v4180 = vpop.f32.mrf.mxu0
        %v4181 = vadd.f32 0.0, %v4180
        %v4182 = vpop.f32.mrf.mxu0
        %v4183 = vpop.f32.mrf.mxu0
        %v4184 = vadd.f32 0.0, %v4183
        %v4185 = vpop.f32.mrf.mxu0
        %4186 = vmatprep.mubr.bf16.mxu0 0
        %4187 = vmatmul.mubr.bf16.gmra.mxu0 %v4060
        %v4188 = vpop.f32.mrf.mxu0
        %v4189 = vadd.f32 0.0, %v4188
        %v4190 = vpop.f32.mrf.mxu0
        %v4191 = vpop.f32.mrf.mxu0
        %v4192 = vadd.f32 0.0, %v4191
        %v4193 = vpop.f32.mrf.mxu0
        %4194 = vmatprep.mubr.bf16.mxu0 0
        %4195 = vmatmul.mubr.bf16.gmra.mxu0 %v4063
        %v4196 = vpop.f32.mrf.mxu0
        %v4197 = vadd.f32 0.0, %v4196
        %v4198 = vpop.f32.mrf.mxu0
        %v4199 = vpop.f32.mrf.mxu0
        %v4200 = vadd.f32 0.0, %v4199
        %v4201 = vpop.f32.mrf.mxu0
        %4202 = vdwg.mxu0
        %v4203 = vadd.f32 %v3972, %v4100
        %v4204 = vadd.f32 %v3973, %v4102
        %v4205 = vadd.f32 %v3974, %v4173
        %v4206 = vadd.f32 %v3975, %v4104
        %v4207 = vadd.f32 %v3976, %v4106
        %v4208 = vadd.f32 %v3977, %v4176
        %v4209 = vadd.f32 %v3978, %v4110
        %v4210 = vadd.f32 %v3979, %v4112
        %v4211 = vadd.f32 %v3980, %v4181
        %v4212 = vadd.f32 %v3981, %v4114
        %v4213 = vadd.f32 %v3982, %v4116
        %v4214 = vadd.f32 %v3983, %v4184
        %v4215 = vadd.f32 %v3984, %v4120
        %v4216 = vadd.f32 %v3985, %v4122
        %v4217 = vadd.f32 %v3986, %v4189
        %v4218 = vadd.f32 %v3987, %v4124
        %v4219 = vadd.f32 %v3988, %v4126
        %v4220 = vadd.f32 %v3989, %v4192
        %v4221 = vadd.f32 %v3990, %v4130
        %v4222 = vadd.f32 %v3991, %v4132
        %v4223 = vadd.f32 %v3992, %v4197
        %v4224 = vadd.f32 %v3993, %v4134
        %v4225 = vadd.f32 %v3994, %v4136
        %v4226 = vadd.f32 %v3995, %v4200
        %s4227 = scalar_lea.vmem %s3, 160
        %v4228 = vld [vmem:[%s4227] sm:$0xf]
        %v4229 = vld [vmem:[%s4227 + $0x4] sm:$0xf]
        %v4230 = vld [vmem:[%s4227 + $0x8] sm:$0xf]
        %v4231 = vld [vmem:[%s4227 + $0xc] sm:$0xf]
        %v4232 = vld [vmem:[%s4227 + $0x10] sm:$0xf]
        %v4233 = vld [vmem:[%s4227 + $0x14] sm:$0xf]
        %v4234 = vld [vmem:[%s4227 + $0x18] sm:$0xf]
        %v4235 = vld [vmem:[%s4227 + $0x1c] sm:$0xf]
        %v4244 = vunpack.c.l.b16 %v4228
        %v4245 = vunpack.c.l.b16 %v4229
        %v4246 = vunpack.c.l.b16 %v4230
        %v4247 = vunpack.c.l.b16 %v4231
        %v4248 = vunpack.c.l.b16 %v4232
        %v4249 = vunpack.c.l.b16 %v4233
        %v4250 = vunpack.c.l.b16 %v4234
        %v4251 = vunpack.c.l.b16 %v4235
        %v4252 = vpack.c.b16 %v4245, %v4244
        %v4253 = vpack.c.b16 %v4247, %v4246
        %v4254 = vpack.c.b16 %v4249, %v4248
        %v4255 = vpack.c.b16 %v4251, %v4250
        %4256 = vrot.lane.b32.xlu0 %v3171, 102
        %v4257 = vpop.permute.xlu0 %4256
        %4258 = vrot.lane.b32.xlu0 %v3172, 102
        %v4259 = vpop.permute.xlu0 %4258
        %4260 = vrot.lane.b32.xlu0 %v3173, 102
        %v4261 = vpop.permute.xlu0 %4260
        %4262 = vrot.lane.b32.xlu0 %v3174, 102
        %v4263 = vpop.permute.xlu0 %4262
        %4264 = vrot.lane.b32.xlu0 %v3175, 102
        %v4265 = vpop.permute.xlu0 %4264
        %4266 = vrot.lane.b32.xlu0 %v3176, 102
        %v4267 = vpop.permute.xlu0 %4266
        %4268 = vrot.lane.b32.xlu0 %v3177, 102
        %v4269 = vpop.permute.xlu0 %4268
        %4270 = vrot.lane.b32.xlu0 %v3178, 102
        %v4271 = vpop.permute.xlu0 %4270
        %v4272 = vsel %vm1009, %v4257, %v4259
        %v4273 = vsel %vm1009, %v4259, %v4261
        %v4274 = vsel %vm1009, %v4261, %v4263
        %v4275 = vsel %vm1009, %v4265, %v4267
        %v4276 = vsel %vm1009, %v4267, %v4269
        %v4277 = vsel %vm1009, %v4269, %v4271
        %v4285 = vsel %vm3207, %v4252, 0
        %v4288 = vsel %vm3207, %v4253, 0
        %v4291 = vsel %vm3207, %v4254, 0
        %v4294 = vsel %vm3207, %v4255, 0
        %4296 = vmatprep.subr.bf16.mxu0 0
        %4297 = vmatpush1.bf16.msra.mxu0 0
        %4298 = vmatprep.subr.bf16.mxu0 0
        %4299 = vmatpush1.bf16.msra.mxu0 0
        %4300 = vmatprep.subr.bf16.mxu0 0
        %4301 = vmatpush1.bf16.msra.mxu0 0
        %4302 = vmatprep.subr.bf16.mxu0 0
        %4303 = vmatpush1.bf16.msra.mxu0 0
        %4304 = vmatprep.subr.bf16.mxu0 0
        %4305 = vmatpush1.bf16.msra.mxu0 0
        %4306 = vmatprep.subr.bf16.mxu0 0
        %4307 = vmatpush1.bf16.msra.mxu0 0
        %4308 = vmatprep.subr.bf16.mxu0 %v4276
        %4309 = vmatpush1.bf16.msra.mxu0 %v4275
        %4310 = vmatprep.subr.bf16.mxu0 %v4273
        %4311 = vmatpush1.bf16.msra.mxu0 %v4272
        %4312 = vmatprep.subr.bf16.mxu0 0
        %4313 = vmatpush2.bf16.msra.mxu0 0
        %4314 = vmatprep.subr.bf16.mxu0 0
        %4315 = vmatpush2.bf16.msra.mxu0 0
        %4316 = vmatprep.subr.bf16.mxu0 0
        %4317 = vmatpush2.bf16.msra.mxu0 0
        %4318 = vmatprep.subr.bf16.mxu0 0
        %4319 = vmatpush2.bf16.msra.mxu0 0
        %4320 = vmatprep.subr.bf16.mxu0 0
        %4321 = vmatpush2.bf16.msra.mxu0 0
        %4322 = vmatprep.subr.bf16.mxu0 0
        %4323 = vmatpush2.bf16.msra.mxu0 0
        %4324 = vmatprep.subr.bf16.mxu0 0
        %4325 = vmatpush2.bf16.msra.mxu0 0
        %4326 = vmatprep.subr.bf16.mxu0 0
        %4327 = vmatpush2.bf16.msra.mxu0 0
        %4328 = vmatprep.mubr.bf16.mxu0 0
        %4329 = vmatmul.mubr.bf16.gmra.mxu0 %v4285
        %v4330 = vpop.f32.mrf.mxu0
        %v4331 = vadd.f32 0.0, %v4330
        %v4332 = vpop.f32.mrf.mxu0
        %v4333 = vadd.f32 0.0, %v4332
        %v4334 = vpop.f32.mrf.mxu0
        %v4335 = vadd.f32 0.0, %v4334
        %v4336 = vpop.f32.mrf.mxu0
        %v4337 = vadd.f32 0.0, %v4336
        %4338 = vmatprep.mubr.bf16.mxu0 0
        %4339 = vmatmul.mubr.bf16.gmra.mxu0 %v4288
        %v4340 = vpop.f32.mrf.mxu0
        %v4341 = vadd.f32 0.0, %v4340
        %v4342 = vpop.f32.mrf.mxu0
        %v4343 = vadd.f32 0.0, %v4342
        %v4344 = vpop.f32.mrf.mxu0
        %v4345 = vadd.f32 0.0, %v4344
        %v4346 = vpop.f32.mrf.mxu0
        %v4347 = vadd.f32 0.0, %v4346
        %4348 = vmatprep.mubr.bf16.mxu0 0
        %4349 = vmatmul.mubr.bf16.gmra.mxu0 %v4291
        %v4350 = vpop.f32.mrf.mxu0
        %v4351 = vadd.f32 0.0, %v4350
        %v4352 = vpop.f32.mrf.mxu0
        %v4353 = vadd.f32 0.0, %v4352
        %v4354 = vpop.f32.mrf.mxu0
        %v4355 = vadd.f32 0.0, %v4354
        %v4356 = vpop.f32.mrf.mxu0
        %v4357 = vadd.f32 0.0, %v4356
        %4358 = vmatprep.mubr.bf16.mxu0 0
        %4359 = vmatmul.mubr.bf16.gmra.mxu0 %v4294
        %v4360 = vpop.f32.mrf.mxu0
        %v4361 = vadd.f32 0.0, %v4360
        %v4362 = vpop.f32.mrf.mxu0
        %v4363 = vadd.f32 0.0, %v4362
        %v4364 = vpop.f32.mrf.mxu0
        %v4365 = vadd.f32 0.0, %v4364
        %v4366 = vpop.f32.mrf.mxu0
        %v4367 = vadd.f32 0.0, %v4366
        %4368 = vdwg.mxu0
        %4369 = vmatprep.subr.bf16.mxu0 0
        %4370 = vmatpush1.bf16.msra.mxu0 0
        %4371 = vmatprep.subr.bf16.mxu0 0
        %4372 = vmatpush1.bf16.msra.mxu0 0
        %4373 = vmatprep.subr.bf16.mxu0 0
        %4374 = vmatpush1.bf16.msra.mxu0 0
        %4375 = vmatprep.subr.bf16.mxu0 0
        %4376 = vmatpush1.bf16.msra.mxu0 0
        %4377 = vmatprep.subr.bf16.mxu0 0
        %4378 = vmatpush1.bf16.msra.mxu0 0
        %4379 = vmatprep.subr.bf16.mxu0 0
        %4380 = vmatpush1.bf16.msra.mxu0 0
        %4381 = vmatprep.subr.bf16.mxu0 0
        %4382 = vmatpush1.bf16.msra.mxu0 %v4277
        %4383 = vmatprep.subr.bf16.mxu0 0
        %4384 = vmatpush1.bf16.msra.mxu0 %v4274
        %4385 = vmatprep.subr.bf16.mxu0 0
        %4386 = vmatpush2.bf16.msra.mxu0 0
        %4387 = vmatprep.subr.bf16.mxu0 0
        %4388 = vmatpush2.bf16.msra.mxu0 0
        %4389 = vmatprep.subr.bf16.mxu0 0
        %4390 = vmatpush2.bf16.msra.mxu0 0
        %4391 = vmatprep.subr.bf16.mxu0 0
        %4392 = vmatpush2.bf16.msra.mxu0 0
        %4393 = vmatprep.subr.bf16.mxu0 0
        %4394 = vmatpush2.bf16.msra.mxu0 0
        %4395 = vmatprep.subr.bf16.mxu0 0
        %4396 = vmatpush2.bf16.msra.mxu0 0
        %4397 = vmatprep.subr.bf16.mxu0 0
        %4398 = vmatpush2.bf16.msra.mxu0 0
        %4399 = vmatprep.subr.bf16.mxu0 0
        %4400 = vmatpush2.bf16.msra.mxu0 0
        %4401 = vmatprep.mubr.bf16.mxu0 0
        %4402 = vmatmul.mubr.bf16.gmra.mxu0 %v4285
        %v4403 = vpop.f32.mrf.mxu0
        %v4404 = vadd.f32 0.0, %v4403
        %v4405 = vpop.f32.mrf.mxu0
        %v4406 = vpop.f32.mrf.mxu0
        %v4407 = vadd.f32 0.0, %v4406
        %v4408 = vpop.f32.mrf.mxu0
        %4409 = vmatprep.mubr.bf16.mxu0 0
        %4410 = vmatmul.mubr.bf16.gmra.mxu0 %v4288
        %v4411 = vpop.f32.mrf.mxu0
        %v4412 = vadd.f32 0.0, %v4411
        %v4413 = vpop.f32.mrf.mxu0
        %v4414 = vpop.f32.mrf.mxu0
        %v4415 = vadd.f32 0.0, %v4414
        %v4416 = vpop.f32.mrf.mxu0
        %4417 = vmatprep.mubr.bf16.mxu0 0
        %4418 = vmatmul.mubr.bf16.gmra.mxu0 %v4291
        %v4419 = vpop.f32.mrf.mxu0
        %v4420 = vadd.f32 0.0, %v4419
        %v4421 = vpop.f32.mrf.mxu0
        %v4422 = vpop.f32.mrf.mxu0
        %v4423 = vadd.f32 0.0, %v4422
        %v4424 = vpop.f32.mrf.mxu0
        %4425 = vmatprep.mubr.bf16.mxu0 0
        %4426 = vmatmul.mubr.bf16.gmra.mxu0 %v4294
        %v4427 = vpop.f32.mrf.mxu0
        %v4428 = vadd.f32 0.0, %v4427
        %v4429 = vpop.f32.mrf.mxu0
        %v4430 = vpop.f32.mrf.mxu0
        %v4431 = vadd.f32 0.0, %v4430
        %v4432 = vpop.f32.mrf.mxu0
        %4433 = vdwg.mxu0
        %v4434 = vadd.f32 %v4203, %v4331
        %v4435 = vadd.f32 %v4204, %v4333
        %v4436 = vadd.f32 %v4205, %v4404
        %v4437 = vadd.f32 %v4206, %v4335
        %v4438 = vadd.f32 %v4207, %v4337
        %v4439 = vadd.f32 %v4208, %v4407
        %v4440 = vadd.f32 %v4209, %v4341
        %v4441 = vadd.f32 %v4210, %v4343
        %v4442 = vadd.f32 %v4211, %v4412
        %v4443 = vadd.f32 %v4212, %v4345
        %v4444 = vadd.f32 %v4213, %v4347
        %v4445 = vadd.f32 %v4214, %v4415
        %v4446 = vadd.f32 %v4215, %v4351
        %v4447 = vadd.f32 %v4216, %v4353
        %v4448 = vadd.f32 %v4217, %v4420
        %v4449 = vadd.f32 %v4218, %v4355
        %v4450 = vadd.f32 %v4219, %v4357
        %v4451 = vadd.f32 %v4220, %v4423
        %v4452 = vadd.f32 %v4221, %v4361
        %v4453 = vadd.f32 %v4222, %v4363
        %v4454 = vadd.f32 %v4223, %v4428
        %v4455 = vadd.f32 %v4224, %v4365
        %v4456 = vadd.f32 %v4225, %v4367
        %v4457 = vadd.f32 %v4226, %v4431
        %s4458 = scalar_lea.vmem %s3, 192
        %v4459 = vld [vmem:[%s4458] sm:$0xf]
        %v4460 = vld [vmem:[%s4458 + $0x4] sm:$0xf]
        %v4461 = vld [vmem:[%s4458 + $0x8] sm:$0xf]
        %v4462 = vld [vmem:[%s4458 + $0xc] sm:$0xf]
        %v4463 = vld [vmem:[%s4458 + $0x10] sm:$0xf]
        %v4464 = vld [vmem:[%s4458 + $0x14] sm:$0xf]
        %v4465 = vld [vmem:[%s4458 + $0x18] sm:$0xf]
        %v4466 = vld [vmem:[%s4458 + $0x1c] sm:$0xf]
        %v4475 = vunpack.c.l.b16 %v4459
        %v4476 = vunpack.c.l.b16 %v4460
        %v4477 = vunpack.c.l.b16 %v4461
        %v4478 = vunpack.c.l.b16 %v4462
        %v4479 = vunpack.c.l.b16 %v4463
        %v4480 = vunpack.c.l.b16 %v4464
        %v4481 = vunpack.c.l.b16 %v4465
        %v4482 = vunpack.c.l.b16 %v4466
        %v4483 = vpack.c.b16 %v4476, %v4475
        %v4484 = vpack.c.b16 %v4478, %v4477
        %v4485 = vpack.c.b16 %v4480, %v4479
        %v4486 = vpack.c.b16 %v4482, %v4481
        %4487 = vrot.lane.b32.xlu0 %v3171, 80
        %v4488 = vpop.permute.xlu0 %4487
        %4489 = vrot.lane.b32.xlu0 %v3172, 80
        %v4490 = vpop.permute.xlu0 %4489
        %4491 = vrot.lane.b32.xlu0 %v3173, 80
        %v4492 = vpop.permute.xlu0 %4491
        %4493 = vrot.lane.b32.xlu0 %v3174, 80
        %v4494 = vpop.permute.xlu0 %4493
        %4495 = vrot.lane.b32.xlu0 %v3175, 80
        %v4496 = vpop.permute.xlu0 %4495
        %4497 = vrot.lane.b32.xlu0 %v3176, 80
        %v4498 = vpop.permute.xlu0 %4497
        %4499 = vrot.lane.b32.xlu0 %v3177, 80
        %v4500 = vpop.permute.xlu0 %4499
        %4501 = vrot.lane.b32.xlu0 %v3178, 80
        %v4502 = vpop.permute.xlu0 %4501
        %v4503 = vsel %vm1131, %v4488, %v4490
        %v4504 = vsel %vm1131, %v4490, %v4492
        %v4505 = vsel %vm1131, %v4492, %v4494
        %v4506 = vsel %vm1131, %v4496, %v4498
        %v4507 = vsel %vm1131, %v4498, %v4500
        %v4508 = vsel %vm1131, %v4500, %v4502
        %v4516 = vsel %vm3207, %v4483, 0
        %v4519 = vsel %vm3207, %v4484, 0
        %v4522 = vsel %vm3207, %v4485, 0
        %v4525 = vsel %vm3207, %v4486, 0
        %4527 = vmatprep.subr.bf16.mxu0 0
        %4528 = vmatpush1.bf16.msra.mxu0 0
        %4529 = vmatprep.subr.bf16.mxu0 0
        %4530 = vmatpush1.bf16.msra.mxu0 0
        %4531 = vmatprep.subr.bf16.mxu0 0
        %4532 = vmatpush1.bf16.msra.mxu0 0
        %4533 = vmatprep.subr.bf16.mxu0 0
        %4534 = vmatpush1.bf16.msra.mxu0 0
        %4535 = vmatprep.subr.bf16.mxu0 0
        %4536 = vmatpush1.bf16.msra.mxu0 0
        %4537 = vmatprep.subr.bf16.mxu0 0
        %4538 = vmatpush1.bf16.msra.mxu0 0
        %4539 = vmatprep.subr.bf16.mxu0 %v4507
        %4540 = vmatpush1.bf16.msra.mxu0 %v4506
        %4541 = vmatprep.subr.bf16.mxu0 %v4504
        %4542 = vmatpush1.bf16.msra.mxu0 %v4503
        %4543 = vmatprep.subr.bf16.mxu0 0
        %4544 = vmatpush2.bf16.msra.mxu0 0
        %4545 = vmatprep.subr.bf16.mxu0 0
        %4546 = vmatpush2.bf16.msra.mxu0 0
        %4547 = vmatprep.subr.bf16.mxu0 0
        %4548 = vmatpush2.bf16.msra.mxu0 0
        %4549 = vmatprep.subr.bf16.mxu0 0
        %4550 = vmatpush2.bf16.msra.mxu0 0
        %4551 = vmatprep.subr.bf16.mxu0 0
        %4552 = vmatpush2.bf16.msra.mxu0 0
        %4553 = vmatprep.subr.bf16.mxu0 0
        %4554 = vmatpush2.bf16.msra.mxu0 0
        %4555 = vmatprep.subr.bf16.mxu0 0
        %4556 = vmatpush2.bf16.msra.mxu0 0
        %4557 = vmatprep.subr.bf16.mxu0 0
        %4558 = vmatpush2.bf16.msra.mxu0 0
        %4559 = vmatprep.mubr.bf16.mxu0 0
        %4560 = vmatmul.mubr.bf16.gmra.mxu0 %v4516
        %v4561 = vpop.f32.mrf.mxu0
        %v4562 = vadd.f32 0.0, %v4561
        %v4563 = vpop.f32.mrf.mxu0
        %v4564 = vadd.f32 0.0, %v4563
        %v4565 = vpop.f32.mrf.mxu0
        %v4566 = vadd.f32 0.0, %v4565
        %v4567 = vpop.f32.mrf.mxu0
        %v4568 = vadd.f32 0.0, %v4567
        %4569 = vmatprep.mubr.bf16.mxu0 0
        %4570 = vmatmul.mubr.bf16.gmra.mxu0 %v4519
        %v4571 = vpop.f32.mrf.mxu0
        %v4572 = vadd.f32 0.0, %v4571
        %v4573 = vpop.f32.mrf.mxu0
        %v4574 = vadd.f32 0.0, %v4573
        %v4575 = vpop.f32.mrf.mxu0
        %v4576 = vadd.f32 0.0, %v4575
        %v4577 = vpop.f32.mrf.mxu0
        %v4578 = vadd.f32 0.0, %v4577
        %4579 = vmatprep.mubr.bf16.mxu0 0
        %4580 = vmatmul.mubr.bf16.gmra.mxu0 %v4522
        %v4581 = vpop.f32.mrf.mxu0
        %v4582 = vadd.f32 0.0, %v4581
        %v4583 = vpop.f32.mrf.mxu0
        %v4584 = vadd.f32 0.0, %v4583
        %v4585 = vpop.f32.mrf.mxu0
        %v4586 = vadd.f32 0.0, %v4585
        %v4587 = vpop.f32.mrf.mxu0
        %v4588 = vadd.f32 0.0, %v4587
        %4589 = vmatprep.mubr.bf16.mxu0 0
        %4590 = vmatmul.mubr.bf16.gmra.mxu0 %v4525
        %v4591 = vpop.f32.mrf.mxu0
        %v4592 = vadd.f32 0.0, %v4591
        %v4593 = vpop.f32.mrf.mxu0
        %v4594 = vadd.f32 0.0, %v4593
        %v4595 = vpop.f32.mrf.mxu0
        %v4596 = vadd.f32 0.0, %v4595
        %v4597 = vpop.f32.mrf.mxu0
        %v4598 = vadd.f32 0.0, %v4597
        %4599 = vdwg.mxu0
        %4600 = vmatprep.subr.bf16.mxu0 0
        %4601 = vmatpush1.bf16.msra.mxu0 0
        %4602 = vmatprep.subr.bf16.mxu0 0
        %4603 = vmatpush1.bf16.msra.mxu0 0
        %4604 = vmatprep.subr.bf16.mxu0 0
        %4605 = vmatpush1.bf16.msra.mxu0 0
        %4606 = vmatprep.subr.bf16.mxu0 0
        %4607 = vmatpush1.bf16.msra.mxu0 0
        %4608 = vmatprep.subr.bf16.mxu0 0
        %4609 = vmatpush1.bf16.msra.mxu0 0
        %4610 = vmatprep.subr.bf16.mxu0 0
        %4611 = vmatpush1.bf16.msra.mxu0 0
        %4612 = vmatprep.subr.bf16.mxu0 0
        %4613 = vmatpush1.bf16.msra.mxu0 %v4508
        %4614 = vmatprep.subr.bf16.mxu0 0
        %4615 = vmatpush1.bf16.msra.mxu0 %v4505
        %4616 = vmatprep.subr.bf16.mxu0 0
        %4617 = vmatpush2.bf16.msra.mxu0 0
        %4618 = vmatprep.subr.bf16.mxu0 0
        %4619 = vmatpush2.bf16.msra.mxu0 0
        %4620 = vmatprep.subr.bf16.mxu0 0
        %4621 = vmatpush2.bf16.msra.mxu0 0
        %4622 = vmatprep.subr.bf16.mxu0 0
        %4623 = vmatpush2.bf16.msra.mxu0 0
        %4624 = vmatprep.subr.bf16.mxu0 0
        %4625 = vmatpush2.bf16.msra.mxu0 0
        %4626 = vmatprep.subr.bf16.mxu0 0
        %4627 = vmatpush2.bf16.msra.mxu0 0
        %4628 = vmatprep.subr.bf16.mxu0 0
        %4629 = vmatpush2.bf16.msra.mxu0 0
        %4630 = vmatprep.subr.bf16.mxu0 0
        %4631 = vmatpush2.bf16.msra.mxu0 0
        %4632 = vmatprep.mubr.bf16.mxu0 0
        %4633 = vmatmul.mubr.bf16.gmra.mxu0 %v4516
        %v4634 = vpop.f32.mrf.mxu0
        %v4635 = vadd.f32 0.0, %v4634
        %v4636 = vpop.f32.mrf.mxu0
        %v4637 = vpop.f32.mrf.mxu0
        %v4638 = vadd.f32 0.0, %v4637
        %v4639 = vpop.f32.mrf.mxu0
        %4640 = vmatprep.mubr.bf16.mxu0 0
        %4641 = vmatmul.mubr.bf16.gmra.mxu0 %v4519
        %v4642 = vpop.f32.mrf.mxu0
        %v4643 = vadd.f32 0.0, %v4642
        %v4644 = vpop.f32.mrf.mxu0
        %v4645 = vpop.f32.mrf.mxu0
        %v4646 = vadd.f32 0.0, %v4645
        %v4647 = vpop.f32.mrf.mxu0
        %4648 = vmatprep.mubr.bf16.mxu0 0
        %4649 = vmatmul.mubr.bf16.gmra.mxu0 %v4522
        %v4650 = vpop.f32.mrf.mxu0
        %v4651 = vadd.f32 0.0, %v4650
        %v4652 = vpop.f32.mrf.mxu0
        %v4653 = vpop.f32.mrf.mxu0
        %v4654 = vadd.f32 0.0, %v4653
        %v4655 = vpop.f32.mrf.mxu0
        %4656 = vmatprep.mubr.bf16.mxu0 0
        %4657 = vmatmul.mubr.bf16.gmra.mxu0 %v4525
        %v4658 = vpop.f32.mrf.mxu0
        %v4659 = vadd.f32 0.0, %v4658
        %v4660 = vpop.f32.mrf.mxu0
        %v4661 = vpop.f32.mrf.mxu0
        %v4662 = vadd.f32 0.0, %v4661
        %v4663 = vpop.f32.mrf.mxu0
        %4664 = vdwg.mxu0
        %v4665 = vadd.f32 %v4434, %v4562
        %v4666 = vadd.f32 %v4435, %v4564
        %v4667 = vadd.f32 %v4436, %v4635
        %v4668 = vadd.f32 %v4437, %v4566
        %v4669 = vadd.f32 %v4438, %v4568
        %v4670 = vadd.f32 %v4439, %v4638
        %v4671 = vadd.f32 %v4440, %v4572
        %v4672 = vadd.f32 %v4441, %v4574
        %v4673 = vadd.f32 %v4442, %v4643
        %v4674 = vadd.f32 %v4443, %v4576
        %v4675 = vadd.f32 %v4444, %v4578
        %v4676 = vadd.f32 %v4445, %v4646
        %v4677 = vadd.f32 %v4446, %v4582
        %v4678 = vadd.f32 %v4447, %v4584
        %v4679 = vadd.f32 %v4448, %v4651
        %v4680 = vadd.f32 %v4449, %v4586
        %v4681 = vadd.f32 %v4450, %v4588
        %v4682 = vadd.f32 %v4451, %v4654
        %v4683 = vadd.f32 %v4452, %v4592
        %v4684 = vadd.f32 %v4453, %v4594
        %v4685 = vadd.f32 %v4454, %v4659
        %v4686 = vadd.f32 %v4455, %v4596
        %v4687 = vadd.f32 %v4456, %v4598
        %v4688 = vadd.f32 %v4457, %v4662
        %s4689 = scalar_lea.vmem %s3, 224
        %v4690 = vld [vmem:[%s4689] sm:$0xf]
        %v4691 = vld [vmem:[%s4689 + $0x4] sm:$0xf]
        %v4692 = vld [vmem:[%s4689 + $0x8] sm:$0xf]
        %v4693 = vld [vmem:[%s4689 + $0xc] sm:$0xf]
        %v4694 = vld [vmem:[%s4689 + $0x10] sm:$0xf]
        %v4695 = vld [vmem:[%s4689 + $0x14] sm:$0xf]
        %v4696 = vld [vmem:[%s4689 + $0x18] sm:$0xf]
        %v4697 = vld [vmem:[%s4689 + $0x1c] sm:$0xf]
        %v4706 = vunpack.c.l.b16 %v4690
        %v4707 = vunpack.c.l.b16 %v4691
        %v4708 = vunpack.c.l.b16 %v4692
        %v4709 = vunpack.c.l.b16 %v4693
        %v4710 = vunpack.c.l.b16 %v4694
        %v4711 = vunpack.c.l.b16 %v4695
        %v4712 = vunpack.c.l.b16 %v4696
        %v4713 = vunpack.c.l.b16 %v4697
        %v4714 = vpack.c.b16 %v4707, %v4706
        %v4715 = vpack.c.b16 %v4709, %v4708
        %v4716 = vpack.c.b16 %v4711, %v4710
        %v4717 = vpack.c.b16 %v4713, %v4712
        %4718 = vrot.lane.b32.xlu0 %v3171, 79
        %v4719 = vpop.permute.xlu0 %4718
        %4720 = vrot.lane.b32.xlu0 %v3172, 79
        %v4721 = vpop.permute.xlu0 %4720
        %4722 = vrot.lane.b32.xlu0 %v3173, 79
        %v4723 = vpop.permute.xlu0 %4722
        %4724 = vrot.lane.b32.xlu0 %v3174, 79
        %v4725 = vpop.permute.xlu0 %4724
        %4726 = vrot.lane.b32.xlu0 %v3175, 79
        %v4727 = vpop.permute.xlu0 %4726
        %4728 = vrot.lane.b32.xlu0 %v3176, 79
        %v4729 = vpop.permute.xlu0 %4728
        %4730 = vrot.lane.b32.xlu0 %v3177, 79
        %v4731 = vpop.permute.xlu0 %4730
        %4732 = vrot.lane.b32.xlu0 %v3178, 79
        %v4733 = vpop.permute.xlu0 %4732
        %v4734 = vsel %vm1253, %v4719, %v4721
        %v4735 = vsel %vm1253, %v4721, %v4723
        %v4736 = vsel %vm1253, %v4723, %v4725
        %v4737 = vsel %vm1253, %v4727, %v4729
        %v4738 = vsel %vm1253, %v4729, %v4731
        %v4739 = vsel %vm1253, %v4731, %v4733
        %v4747 = vsel %vm3207, %v4714, 0
        %v4750 = vsel %vm3207, %v4715, 0
        %v4753 = vsel %vm3207, %v4716, 0
        %v4756 = vsel %vm3207, %v4717, 0
        %4758 = vmatprep.subr.bf16.mxu0 0
        %4759 = vmatpush1.bf16.msra.mxu0 0
        %4760 = vmatprep.subr.bf16.mxu0 0
        %4761 = vmatpush1.bf16.msra.mxu0 0
        %4762 = vmatprep.subr.bf16.mxu0 0
        %4763 = vmatpush1.bf16.msra.mxu0 0
        %4764 = vmatprep.subr.bf16.mxu0 0
        %4765 = vmatpush1.bf16.msra.mxu0 0
        %4766 = vmatprep.subr.bf16.mxu0 0
        %4767 = vmatpush1.bf16.msra.mxu0 0
        %4768 = vmatprep.subr.bf16.mxu0 0
        %4769 = vmatpush1.bf16.msra.mxu0 0
        %4770 = vmatprep.subr.bf16.mxu0 %v4738
        %4771 = vmatpush1.bf16.msra.mxu0 %v4737
        %4772 = vmatprep.subr.bf16.mxu0 %v4735
        %4773 = vmatpush1.bf16.msra.mxu0 %v4734
        %4774 = vmatprep.subr.bf16.mxu0 0
        %4775 = vmatpush2.bf16.msra.mxu0 0
        %4776 = vmatprep.subr.bf16.mxu0 0
        %4777 = vmatpush2.bf16.msra.mxu0 0
        %4778 = vmatprep.subr.bf16.mxu0 0
        %4779 = vmatpush2.bf16.msra.mxu0 0
        %4780 = vmatprep.subr.bf16.mxu0 0
        %4781 = vmatpush2.bf16.msra.mxu0 0
        %4782 = vmatprep.subr.bf16.mxu0 0
        %4783 = vmatpush2.bf16.msra.mxu0 0
        %4784 = vmatprep.subr.bf16.mxu0 0
        %4785 = vmatpush2.bf16.msra.mxu0 0
        %4786 = vmatprep.subr.bf16.mxu0 0
        %4787 = vmatpush2.bf16.msra.mxu0 0
        %4788 = vmatprep.subr.bf16.mxu0 0
        %4789 = vmatpush2.bf16.msra.mxu0 0
        %4790 = vmatprep.mubr.bf16.mxu0 0
        %4791 = vmatmul.mubr.bf16.gmra.mxu0 %v4747
        %v4792 = vpop.f32.mrf.mxu0
        %v4793 = vadd.f32 0.0, %v4792
        %v4794 = vpop.f32.mrf.mxu0
        %v4795 = vadd.f32 0.0, %v4794
        %v4796 = vpop.f32.mrf.mxu0
        %v4797 = vadd.f32 0.0, %v4796
        %v4798 = vpop.f32.mrf.mxu0
        %v4799 = vadd.f32 0.0, %v4798
        %4800 = vmatprep.mubr.bf16.mxu0 0
        %4801 = vmatmul.mubr.bf16.gmra.mxu0 %v4750
        %v4802 = vpop.f32.mrf.mxu0
        %v4803 = vadd.f32 0.0, %v4802
        %v4804 = vpop.f32.mrf.mxu0
        %v4805 = vadd.f32 0.0, %v4804
        %v4806 = vpop.f32.mrf.mxu0
        %v4807 = vadd.f32 0.0, %v4806
        %v4808 = vpop.f32.mrf.mxu0
        %v4809 = vadd.f32 0.0, %v4808
        %4810 = vmatprep.mubr.bf16.mxu0 0
        %4811 = vmatmul.mubr.bf16.gmra.mxu0 %v4753
        %v4812 = vpop.f32.mrf.mxu0
        %v4813 = vadd.f32 0.0, %v4812
        %v4814 = vpop.f32.mrf.mxu0
        %v4815 = vadd.f32 0.0, %v4814
        %v4816 = vpop.f32.mrf.mxu0
        %v4817 = vadd.f32 0.0, %v4816
        %v4818 = vpop.f32.mrf.mxu0
        %v4819 = vadd.f32 0.0, %v4818
        %4820 = vmatprep.mubr.bf16.mxu0 0
        %4821 = vmatmul.mubr.bf16.gmra.mxu0 %v4756
        %v4822 = vpop.f32.mrf.mxu0
        %v4823 = vadd.f32 0.0, %v4822
        %v4824 = vpop.f32.mrf.mxu0
        %v4825 = vadd.f32 0.0, %v4824
        %v4826 = vpop.f32.mrf.mxu0
        %v4827 = vadd.f32 0.0, %v4826
        %v4828 = vpop.f32.mrf.mxu0
        %v4829 = vadd.f32 0.0, %v4828
        %4830 = vdwg.mxu0
        %4831 = vmatprep.subr.bf16.mxu0 0
        %4832 = vmatpush1.bf16.msra.mxu0 0
        %4833 = vmatprep.subr.bf16.mxu0 0
        %4834 = vmatpush1.bf16.msra.mxu0 0
        %4835 = vmatprep.subr.bf16.mxu0 0
        %4836 = vmatpush1.bf16.msra.mxu0 0
        %4837 = vmatprep.subr.bf16.mxu0 0
        %4838 = vmatpush1.bf16.msra.mxu0 0
        %4839 = vmatprep.subr.bf16.mxu0 0
        %4840 = vmatpush1.bf16.msra.mxu0 0
        %4841 = vmatprep.subr.bf16.mxu0 0
        %4842 = vmatpush1.bf16.msra.mxu0 0
        %4843 = vmatprep.subr.bf16.mxu0 0
        %4844 = vmatpush1.bf16.msra.mxu0 %v4739
        %4845 = vmatprep.subr.bf16.mxu0 0
        %4846 = vmatpush1.bf16.msra.mxu0 %v4736
        %4847 = vmatprep.subr.bf16.mxu0 0
        %4848 = vmatpush2.bf16.msra.mxu0 0
        %4849 = vmatprep.subr.bf16.mxu0 0
        %4850 = vmatpush2.bf16.msra.mxu0 0
        %4851 = vmatprep.subr.bf16.mxu0 0
        %4852 = vmatpush2.bf16.msra.mxu0 0
        %4853 = vmatprep.subr.bf16.mxu0 0
        %4854 = vmatpush2.bf16.msra.mxu0 0
        %4855 = vmatprep.subr.bf16.mxu0 0
        %4856 = vmatpush2.bf16.msra.mxu0 0
        %4857 = vmatprep.subr.bf16.mxu0 0
        %4858 = vmatpush2.bf16.msra.mxu0 0
        %4859 = vmatprep.subr.bf16.mxu0 0
        %4860 = vmatpush2.bf16.msra.mxu0 0
        %4861 = vmatprep.subr.bf16.mxu0 0
        %4862 = vmatpush2.bf16.msra.mxu0 0
        %4863 = vmatprep.mubr.bf16.mxu0 0
        %4864 = vmatmul.mubr.bf16.gmra.mxu0 %v4747
        %v4865 = vpop.f32.mrf.mxu0
        %v4866 = vadd.f32 0.0, %v4865
        %v4867 = vpop.f32.mrf.mxu0
        %v4868 = vpop.f32.mrf.mxu0
        %v4869 = vadd.f32 0.0, %v4868
        %v4870 = vpop.f32.mrf.mxu0
        %4871 = vmatprep.mubr.bf16.mxu0 0
        %4872 = vmatmul.mubr.bf16.gmra.mxu0 %v4750
        %v4873 = vpop.f32.mrf.mxu0
        %v4874 = vadd.f32 0.0, %v4873
        %v4875 = vpop.f32.mrf.mxu0
        %v4876 = vpop.f32.mrf.mxu0
        %v4877 = vadd.f32 0.0, %v4876
        %v4878 = vpop.f32.mrf.mxu0
        %4879 = vmatprep.mubr.bf16.mxu0 0
        %4880 = vmatmul.mubr.bf16.gmra.mxu0 %v4753
        %v4881 = vpop.f32.mrf.mxu0
        %v4882 = vadd.f32 0.0, %v4881
        %v4883 = vpop.f32.mrf.mxu0
        %v4884 = vpop.f32.mrf.mxu0
        %v4885 = vadd.f32 0.0, %v4884
        %v4886 = vpop.f32.mrf.mxu0
        %4887 = vmatprep.mubr.bf16.mxu0 0
        %4888 = vmatmul.mubr.bf16.gmra.mxu0 %v4756
        %v4889 = vpop.f32.mrf.mxu0
        %v4890 = vadd.f32 0.0, %v4889
        %v4891 = vpop.f32.mrf.mxu0
        %v4892 = vpop.f32.mrf.mxu0
        %v4893 = vadd.f32 0.0, %v4892
        %v4894 = vpop.f32.mrf.mxu0
        %4895 = vdwg.mxu0
        %v4896 = vadd.f32 %v4665, %v4793
        %v4897 = vadd.f32 %v4666, %v4795
        %v4898 = vadd.f32 %v4667, %v4866
        %v4899 = vadd.f32 %v4668, %v4797
        %v4900 = vadd.f32 %v4669, %v4799
        %v4901 = vadd.f32 %v4670, %v4869
        %v4902 = vadd.f32 %v4671, %v4803
        %v4903 = vadd.f32 %v4672, %v4805
        %v4904 = vadd.f32 %v4673, %v4874
        %v4905 = vadd.f32 %v4674, %v4807
        %v4906 = vadd.f32 %v4675, %v4809
        %v4907 = vadd.f32 %v4676, %v4877
        %v4908 = vadd.f32 %v4677, %v4813
        %v4909 = vadd.f32 %v4678, %v4815
        %v4910 = vadd.f32 %v4679, %v4882
        %v4911 = vadd.f32 %v4680, %v4817
        %v4912 = vadd.f32 %v4681, %v4819
        %v4913 = vadd.f32 %v4682, %v4885
        %v4914 = vadd.f32 %v4683, %v4823
        %v4915 = vadd.f32 %v4684, %v4825
        %v4916 = vadd.f32 %v4685, %v4890
        %v4917 = vadd.f32 %v4686, %v4827
        %v4918 = vadd.f32 %v4687, %v4829
        %v4919 = vadd.f32 %v4688, %v4893
        %s4920 = scalar_lea.vmem %s3, 256
        %v4921 = vld [vmem:[%s4920] sm:$0xf]
        %v4922 = vld [vmem:[%s4920 + $0x4] sm:$0xf]
        %v4923 = vld [vmem:[%s4920 + $0x8] sm:$0xf]
        %v4924 = vld [vmem:[%s4920 + $0xc] sm:$0xf]
        %v4925 = vld [vmem:[%s4920 + $0x10] sm:$0xf]
        %v4926 = vld [vmem:[%s4920 + $0x14] sm:$0xf]
        %v4927 = vld [vmem:[%s4920 + $0x18] sm:$0xf]
        %v4928 = vld [vmem:[%s4920 + $0x1c] sm:$0xf]
        %v4937 = vunpack.c.l.b16 %v4921
        %v4938 = vunpack.c.l.b16 %v4922
        %v4939 = vunpack.c.l.b16 %v4923
        %v4940 = vunpack.c.l.b16 %v4924
        %v4941 = vunpack.c.l.b16 %v4925
        %v4942 = vunpack.c.l.b16 %v4926
        %v4943 = vunpack.c.l.b16 %v4927
        %v4944 = vunpack.c.l.b16 %v4928
        %v4945 = vpack.c.b16 %v4938, %v4937
        %v4946 = vpack.c.b16 %v4940, %v4939
        %v4947 = vpack.c.b16 %v4942, %v4941
        %v4948 = vpack.c.b16 %v4944, %v4943
        %4949 = vrot.lane.b32.xlu0 %v3171, 78
        %v4950 = vpop.permute.xlu0 %4949
        %4951 = vrot.lane.b32.xlu0 %v3172, 78
        %v4952 = vpop.permute.xlu0 %4951
        %4953 = vrot.lane.b32.xlu0 %v3173, 78
        %v4954 = vpop.permute.xlu0 %4953
        %4955 = vrot.lane.b32.xlu0 %v3174, 78
        %v4956 = vpop.permute.xlu0 %4955
        %4957 = vrot.lane.b32.xlu0 %v3175, 78
        %v4958 = vpop.permute.xlu0 %4957
        %4959 = vrot.lane.b32.xlu0 %v3176, 78
        %v4960 = vpop.permute.xlu0 %4959
        %4961 = vrot.lane.b32.xlu0 %v3177, 78
        %v4962 = vpop.permute.xlu0 %4961
        %4963 = vrot.lane.b32.xlu0 %v3178, 78
        %v4964 = vpop.permute.xlu0 %4963
        %v4965 = vsel %vm1375, %v4950, %v4952
        %v4966 = vsel %vm1375, %v4952, %v4954
        %v4967 = vsel %vm1375, %v4954, %v4956
        %v4968 = vsel %vm1375, %v4958, %v4960
        %v4969 = vsel %vm1375, %v4960, %v4962
        %v4970 = vsel %vm1375, %v4962, %v4964
        %v4978 = vsel %vm3207, %v4945, 0
        %v4981 = vsel %vm3207, %v4946, 0
        %v4984 = vsel %vm3207, %v4947, 0
        %v4987 = vsel %vm3207, %v4948, 0
        %4989 = vmatprep.subr.bf16.mxu0 0
        %4990 = vmatpush1.bf16.msra.mxu0 0
        %4991 = vmatprep.subr.bf16.mxu0 0
        %4992 = vmatpush1.bf16.msra.mxu0 0
        %4993 = vmatprep.subr.bf16.mxu0 0
        %4994 = vmatpush1.bf16.msra.mxu0 0
        %4995 = vmatprep.subr.bf16.mxu0 0
        %4996 = vmatpush1.bf16.msra.mxu0 0
        %4997 = vmatprep.subr.bf16.mxu0 0
        %4998 = vmatpush1.bf16.msra.mxu0 0
        %4999 = vmatprep.subr.bf16.mxu0 0
        %5000 = vmatpush1.bf16.msra.mxu0 0
        %5001 = vmatprep.subr.bf16.mxu0 %v4969
        %5002 = vmatpush1.bf16.msra.mxu0 %v4968
        %5003 = vmatprep.subr.bf16.mxu0 %v4966
        %5004 = vmatpush1.bf16.msra.mxu0 %v4965
        %5005 = vmatprep.subr.bf16.mxu0 0
        %5006 = vmatpush2.bf16.msra.mxu0 0
        %5007 = vmatprep.subr.bf16.mxu0 0
        %5008 = vmatpush2.bf16.msra.mxu0 0
        %5009 = vmatprep.subr.bf16.mxu0 0
        %5010 = vmatpush2.bf16.msra.mxu0 0
        %5011 = vmatprep.subr.bf16.mxu0 0
        %5012 = vmatpush2.bf16.msra.mxu0 0
        %5013 = vmatprep.subr.bf16.mxu0 0
        %5014 = vmatpush2.bf16.msra.mxu0 0
        %5015 = vmatprep.subr.bf16.mxu0 0
        %5016 = vmatpush2.bf16.msra.mxu0 0
        %5017 = vmatprep.subr.bf16.mxu0 0
        %5018 = vmatpush2.bf16.msra.mxu0 0
        %5019 = vmatprep.subr.bf16.mxu0 0
        %5020 = vmatpush2.bf16.msra.mxu0 0
        %5021 = vmatprep.mubr.bf16.mxu0 0
        %5022 = vmatmul.mubr.bf16.gmra.mxu0 %v4978
        %v5023 = vpop.f32.mrf.mxu0
        %v5024 = vadd.f32 0.0, %v5023
        %v5025 = vpop.f32.mrf.mxu0
        %v5026 = vadd.f32 0.0, %v5025
        %v5027 = vpop.f32.mrf.mxu0
        %v5028 = vadd.f32 0.0, %v5027
        %v5029 = vpop.f32.mrf.mxu0
        %v5030 = vadd.f32 0.0, %v5029
        %5031 = vmatprep.mubr.bf16.mxu0 0
        %5032 = vmatmul.mubr.bf16.gmra.mxu0 %v4981
        %v5033 = vpop.f32.mrf.mxu0
        %v5034 = vadd.f32 0.0, %v5033
        %v5035 = vpop.f32.mrf.mxu0
        %v5036 = vadd.f32 0.0, %v5035
        %v5037 = vpop.f32.mrf.mxu0
        %v5038 = vadd.f32 0.0, %v5037
        %v5039 = vpop.f32.mrf.mxu0
        %v5040 = vadd.f32 0.0, %v5039
        %5041 = vmatprep.mubr.bf16.mxu0 0
        %5042 = vmatmul.mubr.bf16.gmra.mxu0 %v4984
        %v5043 = vpop.f32.mrf.mxu0
        %v5044 = vadd.f32 0.0, %v5043
        %v5045 = vpop.f32.mrf.mxu0
        %v5046 = vadd.f32 0.0, %v5045
        %v5047 = vpop.f32.mrf.mxu0
        %v5048 = vadd.f32 0.0, %v5047
        %v5049 = vpop.f32.mrf.mxu0
        %v5050 = vadd.f32 0.0, %v5049
        %5051 = vmatprep.mubr.bf16.mxu0 0
        %5052 = vmatmul.mubr.bf16.gmra.mxu0 %v4987
        %v5053 = vpop.f32.mrf.mxu0
        %v5054 = vadd.f32 0.0, %v5053
        %v5055 = vpop.f32.mrf.mxu0
        %v5056 = vadd.f32 0.0, %v5055
        %v5057 = vpop.f32.mrf.mxu0
        %v5058 = vadd.f32 0.0, %v5057
        %v5059 = vpop.f32.mrf.mxu0
        %v5060 = vadd.f32 0.0, %v5059
        %5061 = vdwg.mxu0
        %5062 = vmatprep.subr.bf16.mxu0 0
        %5063 = vmatpush1.bf16.msra.mxu0 0
        %5064 = vmatprep.subr.bf16.mxu0 0
        %5065 = vmatpush1.bf16.msra.mxu0 0
        %5066 = vmatprep.subr.bf16.mxu0 0
        %5067 = vmatpush1.bf16.msra.mxu0 0
        %5068 = vmatprep.subr.bf16.mxu0 0
        %5069 = vmatpush1.bf16.msra.mxu0 0
        %5070 = vmatprep.subr.bf16.mxu0 0
        %5071 = vmatpush1.bf16.msra.mxu0 0
        %5072 = vmatprep.subr.bf16.mxu0 0
        %5073 = vmatpush1.bf16.msra.mxu0 0
        %5074 = vmatprep.subr.bf16.mxu0 0
        %5075 = vmatpush1.bf16.msra.mxu0 %v4970
        %5076 = vmatprep.subr.bf16.mxu0 0
        %5077 = vmatpush1.bf16.msra.mxu0 %v4967
        %5078 = vmatprep.subr.bf16.mxu0 0
        %5079 = vmatpush2.bf16.msra.mxu0 0
        %5080 = vmatprep.subr.bf16.mxu0 0
        %5081 = vmatpush2.bf16.msra.mxu0 0
        %5082 = vmatprep.subr.bf16.mxu0 0
        %5083 = vmatpush2.bf16.msra.mxu0 0
        %5084 = vmatprep.subr.bf16.mxu0 0
        %5085 = vmatpush2.bf16.msra.mxu0 0
        %5086 = vmatprep.subr.bf16.mxu0 0
        %5087 = vmatpush2.bf16.msra.mxu0 0
        %5088 = vmatprep.subr.bf16.mxu0 0
        %5089 = vmatpush2.bf16.msra.mxu0 0
        %5090 = vmatprep.subr.bf16.mxu0 0
        %5091 = vmatpush2.bf16.msra.mxu0 0
        %5092 = vmatprep.subr.bf16.mxu0 0
        %5093 = vmatpush2.bf16.msra.mxu0 0
        %5094 = vmatprep.mubr.bf16.mxu0 0
        %5095 = vmatmul.mubr.bf16.gmra.mxu0 %v4978
        %v5096 = vpop.f32.mrf.mxu0
        %v5097 = vadd.f32 0.0, %v5096
        %v5098 = vpop.f32.mrf.mxu0
        %v5099 = vpop.f32.mrf.mxu0
        %v5100 = vadd.f32 0.0, %v5099
        %v5101 = vpop.f32.mrf.mxu0
        %5102 = vmatprep.mubr.bf16.mxu0 0
        %5103 = vmatmul.mubr.bf16.gmra.mxu0 %v4981
        %v5104 = vpop.f32.mrf.mxu0
        %v5105 = vadd.f32 0.0, %v5104
        %v5106 = vpop.f32.mrf.mxu0
        %v5107 = vpop.f32.mrf.mxu0
        %v5108 = vadd.f32 0.0, %v5107
        %v5109 = vpop.f32.mrf.mxu0
        %5110 = vmatprep.mubr.bf16.mxu0 0
        %5111 = vmatmul.mubr.bf16.gmra.mxu0 %v4984
        %v5112 = vpop.f32.mrf.mxu0
        %v5113 = vadd.f32 0.0, %v5112
        %v5114 = vpop.f32.mrf.mxu0
        %v5115 = vpop.f32.mrf.mxu0
        %v5116 = vadd.f32 0.0, %v5115
        %v5117 = vpop.f32.mrf.mxu0
        %5118 = vmatprep.mubr.bf16.mxu0 0
        %5119 = vmatmul.mubr.bf16.gmra.mxu0 %v4987
        %v5120 = vpop.f32.mrf.mxu0
        %v5121 = vadd.f32 0.0, %v5120
        %v5122 = vpop.f32.mrf.mxu0
        %v5123 = vpop.f32.mrf.mxu0
        %v5124 = vadd.f32 0.0, %v5123
        %v5125 = vpop.f32.mrf.mxu0
        %5126 = vdwg.mxu0
        %v5127 = vadd.f32 %v4896, %v5024
        %v5128 = vadd.f32 %v4897, %v5026
        %v5129 = vadd.f32 %v4898, %v5097
        %v5130 = vadd.f32 %v4899, %v5028
        %v5131 = vadd.f32 %v4900, %v5030
        %v5132 = vadd.f32 %v4901, %v5100
        %v5133 = vadd.f32 %v4902, %v5034
        %v5134 = vadd.f32 %v4903, %v5036
        %v5135 = vadd.f32 %v4904, %v5105
        %v5136 = vadd.f32 %v4905, %v5038
        %v5137 = vadd.f32 %v4906, %v5040
        %v5138 = vadd.f32 %v4907, %v5108
        %v5139 = vadd.f32 %v4908, %v5044
        %v5140 = vadd.f32 %v4909, %v5046
        %v5141 = vadd.f32 %v4910, %v5113
        %v5142 = vadd.f32 %v4911, %v5048
        %v5143 = vadd.f32 %v4912, %v5050
        %v5144 = vadd.f32 %v4913, %v5116
        %v5145 = vadd.f32 %v4914, %v5054
        %v5146 = vadd.f32 %v4915, %v5056
        %v5147 = vadd.f32 %v4916, %v5121
        %v5148 = vadd.f32 %v4917, %v5058
        %v5149 = vadd.f32 %v4918, %v5060
        %v5150 = vadd.f32 %v4919, %v5124
        %s5151 = scalar_lea.vmem %s7, 128
        %v5152 = vld [vmem:[%s5151] sm:$0xff]
        %v5153 = vld [vmem:[%s5151 + $0x8] sm:$0xff]
        %v5154 = vld [vmem:[%s5151 + $0x10] sm:$0xff]
        %v5155 = vld [vmem:[%s5151 + $0x18] sm:$0xff]
        %v5156 = vld [vmem:[%s5151 + $0x20] sm:$0xff]
        %v5157 = vld [vmem:[%s5151 + $0x28] sm:$0xff]
        %v5158 = vld [vmem:[%s5151 + $0x30] sm:$0xff]
        %v5159 = vld [vmem:[%s5151 + $0x38] sm:$0xff]
        %5161 = vset.pattern.permute.xlu0 0
        %5162 = vperm.xlu0 %5161, %v5152
        %v5163 = vpop.permute.xlu0 %5162
        %5166 = vset.pattern.permute.xlu0 0
        %5167 = vperm.xlu0 %5166, %v5153
        %v5168 = vpop.permute.xlu0 %5167
        %5171 = vset.pattern.permute.xlu0 0
        %5172 = vperm.xlu0 %5171, %v5154
        %v5173 = vpop.permute.xlu0 %5172
        %5176 = vset.pattern.permute.xlu0 0
        %5177 = vperm.xlu0 %5176, %v5155
        %v5178 = vpop.permute.xlu0 %5177
        %5181 = vset.pattern.permute.xlu0 0
        %5182 = vperm.xlu0 %5181, %v5156
        %v5183 = vpop.permute.xlu0 %5182
        %5186 = vset.pattern.permute.xlu0 0
        %5187 = vperm.xlu0 %5186, %v5157
        %v5188 = vpop.permute.xlu0 %5187
        %5191 = vset.pattern.permute.xlu0 0
        %5192 = vperm.xlu0 %5191, %v5158
        %v5193 = vpop.permute.xlu0 %5192
        %5196 = vset.pattern.permute.xlu0 0
        %5197 = vperm.xlu0 %5196, %v5159
        %v5198 = vpop.permute.xlu0 %5197
        %v5200 = vmul.f32 %v5127, %v5163
        %v5201 = vmul.f32 %v5128, %v5163
        %v5202 = vmul.f32 %v5129, %v5163
        %v5203 = vmul.f32 %v5130, %v5168
        %v5204 = vmul.f32 %v5131, %v5168
        %v5205 = vmul.f32 %v5132, %v5168
        %v5206 = vmul.f32 %v5133, %v5173
        %v5207 = vmul.f32 %v5134, %v5173
        %v5208 = vmul.f32 %v5135, %v5173
        %v5209 = vmul.f32 %v5136, %v5178
        %v5210 = vmul.f32 %v5137, %v5178
        %v5211 = vmul.f32 %v5138, %v5178
        %v5212 = vmul.f32 %v5139, %v5183
        %v5213 = vmul.f32 %v5140, %v5183
        %v5214 = vmul.f32 %v5141, %v5183
        %v5215 = vmul.f32 %v5142, %v5188
        %v5216 = vmul.f32 %v5143, %v5188
        %v5217 = vmul.f32 %v5144, %v5188
        %v5218 = vmul.f32 %v5145, %v5193
        %v5219 = vmul.f32 %v5146, %v5193
        %v5220 = vmul.f32 %v5147, %v5193
        %v5221 = vmul.f32 %v5148, %v5198
        %v5222 = vmul.f32 %v5149, %v5198
        %v5223 = vmul.f32 %v5150, %v5198
        %s5224 = scalar_lea.vmem %s8, 128
        %v5225 = vld [vmem:[%s5224] sm:$0xff]
        %v5226 = vld [vmem:[%s5224 + $0x8] sm:$0xff]
        %v5227 = vld [vmem:[%s5224 + $0x10] sm:$0xff]
        %v5228 = vld [vmem:[%s5224 + $0x18] sm:$0xff]
        %v5229 = vld [vmem:[%s5224 + $0x20] sm:$0xff]
        %v5230 = vld [vmem:[%s5224 + $0x28] sm:$0xff]
        %v5231 = vld [vmem:[%s5224 + $0x30] sm:$0xff]
        %v5232 = vld [vmem:[%s5224 + $0x38] sm:$0xff]
        %5234 = vset.pattern.permute.xlu0 0
        %5235 = vperm.xlu0 %5234, %v5225
        %v5236 = vpop.permute.xlu0 %5235
        %5239 = vset.pattern.permute.xlu0 0
        %5240 = vperm.xlu0 %5239, %v5226
        %v5241 = vpop.permute.xlu0 %5240
        %5244 = vset.pattern.permute.xlu0 0
        %5245 = vperm.xlu0 %5244, %v5227
        %v5246 = vpop.permute.xlu0 %5245
        %5249 = vset.pattern.permute.xlu0 0
        %5250 = vperm.xlu0 %5249, %v5228
        %v5251 = vpop.permute.xlu0 %5250
        %5254 = vset.pattern.permute.xlu0 0
        %5255 = vperm.xlu0 %5254, %v5229
        %v5256 = vpop.permute.xlu0 %5255
        %5259 = vset.pattern.permute.xlu0 0
        %5260 = vperm.xlu0 %5259, %v5230
        %v5261 = vpop.permute.xlu0 %5260
        %5264 = vset.pattern.permute.xlu0 0
        %5265 = vperm.xlu0 %5264, %v5231
        %v5266 = vpop.permute.xlu0 %5265
        %5269 = vset.pattern.permute.xlu0 0
        %5270 = vperm.xlu0 %5269, %v5232
        %v5271 = vpop.permute.xlu0 %5270
        %v5273 = vadd.f32 %v5200, %v5236
        %v5274 = vadd.f32 %v5201, %v5236
        %v5275 = vadd.f32 %v5202, %v5236
        %v5276 = vadd.f32 %v5203, %v5241
        %v5277 = vadd.f32 %v5204, %v5241
        %v5278 = vadd.f32 %v5205, %v5241
        %v5279 = vadd.f32 %v5206, %v5246
        %v5280 = vadd.f32 %v5207, %v5246
        %v5281 = vadd.f32 %v5208, %v5246
        %v5282 = vadd.f32 %v5209, %v5251
        %v5283 = vadd.f32 %v5210, %v5251
        %v5284 = vadd.f32 %v5211, %v5251
        %v5285 = vadd.f32 %v5212, %v5256
        %v5286 = vadd.f32 %v5213, %v5256
        %v5287 = vadd.f32 %v5214, %v5256
        %v5288 = vadd.f32 %v5215, %v5261
        %v5289 = vadd.f32 %v5216, %v5261
        %v5290 = vadd.f32 %v5217, %v5261
        %v5291 = vadd.f32 %v5218, %v5266
        %v5292 = vadd.f32 %v5219, %v5266
        %v5293 = vadd.f32 %v5220, %v5266
        %v5294 = vadd.f32 %v5221, %v5271
        %v5295 = vadd.f32 %v5222, %v5271
        %v5296 = vadd.f32 %v5223, %v5271
        %v5297 = vmax.f32 %v5273, 0.0
        %v5298 = vmax.f32 %v5274, 0.0
        %v5299 = vmax.f32 %v5275, 0.0
        %v5300 = vmax.f32 %v5276, 0.0
        %v5301 = vmax.f32 %v5277, 0.0
        %v5302 = vmax.f32 %v5278, 0.0
        %v5303 = vmax.f32 %v5279, 0.0
        %v5304 = vmax.f32 %v5280, 0.0
        %v5305 = vmax.f32 %v5281, 0.0
        %v5306 = vmax.f32 %v5282, 0.0
        %v5307 = vmax.f32 %v5283, 0.0
        %v5308 = vmax.f32 %v5284, 0.0
        %v5309 = vmax.f32 %v5285, 0.0
        %v5310 = vmax.f32 %v5286, 0.0
        %v5311 = vmax.f32 %v5287, 0.0
        %v5312 = vmax.f32 %v5288, 0.0
        %v5313 = vmax.f32 %v5289, 0.0
        %v5314 = vmax.f32 %v5290, 0.0
        %v5315 = vmax.f32 %v5291, 0.0
        %v5316 = vmax.f32 %v5292, 0.0
        %v5317 = vmax.f32 %v5293, 0.0
        %v5318 = vmax.f32 %v5294, 0.0
        %v5319 = vmax.f32 %v5295, 0.0
        %v5320 = vmax.f32 %v5296, 0.0
        %v5321 = vmul.f32 %v5297, %v1527
        %v5322 = vmul.f32 %v5298, %v1531
        %v5323 = vmul.f32 %v5299, %v1535
        %v5324 = vmul.f32 %v5300, %v1527
        %v5325 = vmul.f32 %v5301, %v1531
        %v5326 = vmul.f32 %v5302, %v1535
        %v5327 = vmul.f32 %v5303, %v1527
        %v5328 = vmul.f32 %v5304, %v1531
        %v5329 = vmul.f32 %v5305, %v1535
        %v5330 = vmul.f32 %v5306, %v1527
        %v5331 = vmul.f32 %v5307, %v1531
        %v5332 = vmul.f32 %v5308, %v1535
        %v5333 = vmul.f32 %v5309, %v1527
        %v5334 = vmul.f32 %v5310, %v1531
        %v5335 = vmul.f32 %v5311, %v1535
        %v5336 = vmul.f32 %v5312, %v1527
        %v5337 = vmul.f32 %v5313, %v1531
        %v5338 = vmul.f32 %v5314, %v1535
        %v5339 = vmul.f32 %v5315, %v1527
        %v5340 = vmul.f32 %v5316, %v1531
        %v5341 = vmul.f32 %v5317, %v1535
        %v5342 = vmul.f32 %v5318, %v1527
        %v5343 = vmul.f32 %v5319, %v1531
        %v5344 = vmul.f32 %v5320, %v1535
        %v5345 = vpack.c.bf16 %v5324, %v5321
        %v5346 = vpack.c.bf16 %v5325, %v5322
        %v5347 = vpack.c.bf16 %v5326, %v5323
        %v5348 = vpack.c.bf16 %v5330, %v5327
        %v5349 = vpack.c.bf16 %v5331, %v5328
        %v5350 = vpack.c.bf16 %v5332, %v5329
        %v5351 = vpack.c.bf16 %v5336, %v5333
        %v5352 = vpack.c.bf16 %v5337, %v5334
        %v5353 = vpack.c.bf16 %v5338, %v5335
        %v5354 = vpack.c.bf16 %v5342, %v5339
        %v5355 = vpack.c.bf16 %v5343, %v5340
        %v5356 = vpack.c.bf16 %v5344, %v5341
        %v5369 = vunpack.c.l.b16 %v5345
        %v5370 = vunpack.c.l.b16 %v5346
        %v5371 = vunpack.c.l.b16 %v5347
        %v5372 = vunpack.c.h.b16 %v5345
        %v5373 = vunpack.c.h.b16 %v5346
        %v5374 = vunpack.c.h.b16 %v5347
        %v5375 = vunpack.c.l.b16 %v5348
        %v5376 = vunpack.c.l.b16 %v5349
        %v5377 = vunpack.c.l.b16 %v5350
        %v5378 = vunpack.c.h.b16 %v5348
        %v5379 = vunpack.c.h.b16 %v5349
        %v5380 = vunpack.c.h.b16 %v5350
        %v5381 = vunpack.c.l.b16 %v5351
        %v5382 = vunpack.c.l.b16 %v5352
        %v5383 = vunpack.c.l.b16 %v5353
        %v5384 = vunpack.c.h.b16 %v5351
        %v5385 = vunpack.c.h.b16 %v5352
        %v5386 = vunpack.c.h.b16 %v5353
        %v5387 = vunpack.c.l.b16 %v5354
        %v5388 = vunpack.c.l.b16 %v5355
        %v5389 = vunpack.c.l.b16 %v5356
        %v5390 = vunpack.c.h.b16 %v5354
        %v5391 = vunpack.c.h.b16 %v5355
        %v5392 = vunpack.c.h.b16 %v5356
        %v5393 = vpack.c.b16 %v5370, %v5369
        %v5394 = vpack.c.b16 %v5371, %v5371
        %v5395 = vpack.c.b16 %v5373, %v5372
        %v5396 = vpack.c.b16 %v5374, %v5374
        %v5397 = vpack.c.b16 %v5376, %v5375
        %v5398 = vpack.c.b16 %v5377, %v5377
        %v5399 = vpack.c.b16 %v5379, %v5378
        %v5400 = vpack.c.b16 %v5380, %v5380
        %v5401 = vpack.c.b16 %v5382, %v5381
        %v5402 = vpack.c.b16 %v5383, %v5383
        %v5403 = vpack.c.b16 %v5385, %v5384
        %v5404 = vpack.c.b16 %v5386, %v5386
        %v5405 = vpack.c.b16 %v5388, %v5387
        %v5406 = vpack.c.b16 %v5389, %v5389
        %v5407 = vpack.c.b16 %v5391, %v5390
        %v5408 = vpack.c.b16 %v5392, %v5392
        %5409 = vrot.lane.b32.xlu0 %v5393, 25
        %v5410 = vpop.permute.xlu0 %5409
        %5411 = vrot.lane.b32.xlu0 %v5394, 25
        %v5412 = vpop.permute.xlu0 %5411
        %5413 = vrot.lane.b32.xlu0 %v5395, 25
        %v5414 = vpop.permute.xlu0 %5413
        %5415 = vrot.lane.b32.xlu0 %v5396, 25
        %v5416 = vpop.permute.xlu0 %5415
        %5417 = vrot.lane.b32.xlu0 %v5397, 25
        %v5418 = vpop.permute.xlu0 %5417
        %5419 = vrot.lane.b32.xlu0 %v5398, 25
        %v5420 = vpop.permute.xlu0 %5419
        %5421 = vrot.lane.b32.xlu0 %v5399, 25
        %v5422 = vpop.permute.xlu0 %5421
        %5423 = vrot.lane.b32.xlu0 %v5400, 25
        %v5424 = vpop.permute.xlu0 %5423
        %5425 = vrot.lane.b32.xlu0 %v5401, 25
        %v5426 = vpop.permute.xlu0 %5425
        %5427 = vrot.lane.b32.xlu0 %v5402, 25
        %v5428 = vpop.permute.xlu0 %5427
        %5429 = vrot.lane.b32.xlu0 %v5403, 25
        %v5430 = vpop.permute.xlu0 %5429
        %5431 = vrot.lane.b32.xlu0 %v5404, 25
        %v5432 = vpop.permute.xlu0 %5431
        %5433 = vrot.lane.b32.xlu0 %v5405, 25
        %v5434 = vpop.permute.xlu0 %5433
        %5435 = vrot.lane.b32.xlu0 %v5406, 25
        %v5436 = vpop.permute.xlu0 %5435
        %5437 = vrot.lane.b32.xlu0 %v5407, 25
        %v5438 = vpop.permute.xlu0 %5437
        %5439 = vrot.lane.b32.xlu0 %v5408, 25
        %v5440 = vpop.permute.xlu0 %5439
        %v5441 = vrot.slane %v5410, 4
        %v5442 = vrot.slane %v5412, 4
        %v5443 = vrot.slane %v5414, 4
        %v5444 = vrot.slane %v5416, 4
        %v5445 = vrot.slane %v5418, 4
        %v5446 = vrot.slane %v5420, 4
        %v5447 = vrot.slane %v5422, 4
        %v5448 = vrot.slane %v5424, 4
        %v5449 = vrot.slane %v5426, 4
        %v5450 = vrot.slane %v5428, 4
        %v5451 = vrot.slane %v5430, 4
        %v5452 = vrot.slane %v5432, 4
        %v5453 = vrot.slane %v5434, 4
        %v5454 = vrot.slane %v5436, 4
        %v5455 = vrot.slane %v5438, 4
        %v5456 = vrot.slane %v5440, 4
        %v5457 = vsel %vm1573, %v5441, %v5410
        %v5458 = vsel %vm1575, %v5441, %v5442
        %v5459 = vsel %vm1573, %v5458, %v5412
        %v5460 = vsel %vm1573, %v5443, %v5414
        %v5461 = vsel %vm1575, %v5443, %v5444
        %v5462 = vsel %vm1573, %v5461, %v5416
        %v5463 = vsel %vm1573, %v5445, %v5418
        %v5464 = vsel %vm1575, %v5445, %v5446
        %v5465 = vsel %vm1573, %v5464, %v5420
        %v5466 = vsel %vm1573, %v5447, %v5422
        %v5467 = vsel %vm1575, %v5447, %v5448
        %v5468 = vsel %vm1573, %v5467, %v5424
        %v5469 = vsel %vm1573, %v5449, %v5426
        %v5470 = vsel %vm1575, %v5449, %v5450
        %v5471 = vsel %vm1573, %v5470, %v5428
        %v5472 = vsel %vm1573, %v5451, %v5430
        %v5473 = vsel %vm1575, %v5451, %v5452
        %v5474 = vsel %vm1573, %v5473, %v5432
        %v5475 = vsel %vm1573, %v5453, %v5434
        %v5476 = vsel %vm1575, %v5453, %v5454
        %v5477 = vsel %vm1573, %v5476, %v5436
        %v5478 = vsel %vm1573, %v5455, %v5438
        %v5479 = vsel %vm1575, %v5455, %v5456
        %v5480 = vsel %vm1573, %v5479, %v5440
        %5497 = vst.msk [vmem:[#allocation2] sm:$0xff] %vm1587, %v5457
        %5498 = vst.msk [vmem:[#allocation2 + $0x8] sm:$0xff] %vm1590, %v5459
        %5499 = vst.msk [vmem:[#allocation2 + $0x10] sm:$0xff] %vm1587, %v5460
        %5500 = vst.msk [vmem:[#allocation2 + $0x18] sm:$0xff] %vm1590, %v5462
        %5501 = vst.msk [vmem:[#allocation2 + $0x20] sm:$0xff] %vm1587, %v5463
        %5502 = vst.msk [vmem:[#allocation2 + $0x28] sm:$0xff] %vm1590, %v5465
        %5503 = vst.msk [vmem:[#allocation2 + $0x30] sm:$0xff] %vm1587, %v5466
        %5504 = vst.msk [vmem:[#allocation2 + $0x38] sm:$0xff] %vm1590, %v5468
        %5505 = vst.msk [vmem:[#allocation2 + $0x40] sm:$0xff] %vm1587, %v5469
        %5506 = vst.msk [vmem:[#allocation2 + $0x48] sm:$0xff] %vm1590, %v5471
        %5507 = vst.msk [vmem:[#allocation2 + $0x50] sm:$0xff] %vm1587, %v5472
        %5508 = vst.msk [vmem:[#allocation2 + $0x58] sm:$0xff] %vm1590, %v5474
        %5509 = vst.msk [vmem:[#allocation2 + $0x60] sm:$0xff] %vm1587, %v5475
        %5510 = vst.msk [vmem:[#allocation2 + $0x68] sm:$0xff] %vm1590, %v5477
        %5511 = vst.msk [vmem:[#allocation2 + $0x70] sm:$0xff] %vm1587, %v5478
        %5512 = vst.msk [vmem:[#allocation2 + $0x78] sm:$0xff] %vm1590, %v5480
        %v5513 = vld [vmem:[#allocation2] sm:$0xff]
        %v5514 = vld [vmem:[#allocation2 + $0x8] sm:$0xff]
        %v5515 = vld [vmem:[#allocation2 + $0x10] sm:$0xff]
        %v5516 = vld [vmem:[#allocation2 + $0x18] sm:$0xff]
        %v5517 = vld [vmem:[#allocation2 + $0x20] sm:$0xff]
        %v5518 = vld [vmem:[#allocation2 + $0x28] sm:$0xff]
        %v5519 = vld [vmem:[#allocation2 + $0x30] sm:$0xff]
        %v5520 = vld [vmem:[#allocation2 + $0x38] sm:$0xff]
        %v5521 = vld [vmem:[#allocation2 + $0x40] sm:$0xff]
        %v5522 = vld [vmem:[#allocation2 + $0x48] sm:$0xff]
        %v5523 = vld [vmem:[#allocation2 + $0x50] sm:$0xff]
        %v5524 = vld [vmem:[#allocation2 + $0x58] sm:$0xff]
        %v5525 = vld [vmem:[#allocation2 + $0x60] sm:$0xff]
        %v5526 = vld [vmem:[#allocation2 + $0x68] sm:$0xff]
        %v5527 = vld [vmem:[#allocation2 + $0x70] sm:$0xff]
        %v5528 = vld [vmem:[#allocation2 + $0x78] sm:$0xff]
        %v5529 = vld [vmem:[%s4] sm:$0xf]
        %v5530 = vld [vmem:[%s4 + $0x4] sm:$0xf]
        %v5531 = vld [vmem:[%s4 + $0x8] sm:$0xf]
        %v5532 = vld [vmem:[%s4 + $0xc] sm:$0xf]
        %s5533 = scalar_lea.vmem %s4, 16
        %v5534 = vld [vmem:[%s5533] sm:$0xf]
        %v5535 = vld [vmem:[%s5533 + $0x4] sm:$0xf]
        %v5536 = vld [vmem:[%s5533 + $0x8] sm:$0xf]
        %v5537 = vld [vmem:[%s5533 + $0xc] sm:$0xf]
        %v5542 = vunpack.c.l.b16 %v5534
        %v5543 = vunpack.c.l.b16 %v5535
        %v5544 = vunpack.c.l.b16 %v5536
        %v5545 = vunpack.c.l.b16 %v5537
        %v5546 = vpack.c.b16 %v5543, %v5542
        %v5547 = vpack.c.b16 %v5545, %v5544
        %v5564 = vunpack.c.l.b16 %v5513
        %v5565 = vunpack.c.h.b16 %v5513
        %v5566 = vunpack.c.l.b16 %v5514
        %v5567 = vunpack.c.h.b16 %v5514
        %v5568 = vunpack.c.l.b16 %v5515
        %v5569 = vunpack.c.h.b16 %v5515
        %v5570 = vunpack.c.l.b16 %v5516
        %v5571 = vunpack.c.h.b16 %v5516
        %v5572 = vunpack.c.l.b16 %v5517
        %v5573 = vunpack.c.h.b16 %v5517
        %v5574 = vunpack.c.l.b16 %v5518
        %v5575 = vunpack.c.h.b16 %v5518
        %v5576 = vunpack.c.l.b16 %v5519
        %v5577 = vunpack.c.h.b16 %v5519
        %v5578 = vunpack.c.l.b16 %v5520
        %v5579 = vunpack.c.h.b16 %v5520
        %v5580 = vunpack.c.l.b16 %v5521
        %v5581 = vunpack.c.h.b16 %v5521
        %v5582 = vunpack.c.l.b16 %v5522
        %v5583 = vunpack.c.h.b16 %v5522
        %v5584 = vunpack.c.l.b16 %v5523
        %v5585 = vunpack.c.h.b16 %v5523
        %v5586 = vunpack.c.l.b16 %v5524
        %v5587 = vunpack.c.h.b16 %v5524
        %v5588 = vunpack.c.l.b16 %v5525
        %v5589 = vunpack.c.h.b16 %v5525
        %v5590 = vunpack.c.l.b16 %v5526
        %v5591 = vunpack.c.h.b16 %v5526
        %v5592 = vunpack.c.l.b16 %v5527
        %v5593 = vunpack.c.h.b16 %v5527
        %v5594 = vunpack.c.l.b16 %v5528
        %v5595 = vunpack.c.h.b16 %v5528
        %v5596 = vpack.c.b16 %v5568, %v5564
        %v5597 = vpack.c.b16 %v5569, %v5565
        %v5598 = vpack.c.b16 %v5570, %v5566
        %v5599 = vpack.c.b16 %v5571, %v5567
        %v5600 = vpack.c.b16 %v5576, %v5572
        %v5601 = vpack.c.b16 %v5577, %v5573
        %v5602 = vpack.c.b16 %v5578, %v5574
        %v5603 = vpack.c.b16 %v5579, %v5575
        %v5604 = vpack.c.b16 %v5584, %v5580
        %v5605 = vpack.c.b16 %v5585, %v5581
        %v5606 = vpack.c.b16 %v5586, %v5582
        %v5607 = vpack.c.b16 %v5587, %v5583
        %v5608 = vpack.c.b16 %v5592, %v5588
        %v5609 = vpack.c.b16 %v5593, %v5589
        %v5610 = vpack.c.b16 %v5594, %v5590
        %v5611 = vpack.c.b16 %v5595, %v5591
        %5612 = vrot.lane.b32.xlu0 %v5596, 127
        %v5613 = vpop.permute.xlu0 %5612
        %5614 = vrot.lane.b32.xlu0 %v5597, 127
        %v5615 = vpop.permute.xlu0 %5614
        %5616 = vrot.lane.b32.xlu0 %v5598, 127
        %v5617 = vpop.permute.xlu0 %5616
        %5618 = vrot.lane.b32.xlu0 %v5599, 127
        %v5619 = vpop.permute.xlu0 %5618
        %5620 = vrot.lane.b32.xlu0 %v5600, 127
        %v5621 = vpop.permute.xlu0 %5620
        %5622 = vrot.lane.b32.xlu0 %v5601, 127
        %v5623 = vpop.permute.xlu0 %5622
        %5624 = vrot.lane.b32.xlu0 %v5602, 127
        %v5625 = vpop.permute.xlu0 %5624
        %5626 = vrot.lane.b32.xlu0 %v5603, 127
        %v5627 = vpop.permute.xlu0 %5626
        %5628 = vrot.lane.b32.xlu0 %v5604, 127
        %v5629 = vpop.permute.xlu0 %5628
        %5630 = vrot.lane.b32.xlu0 %v5605, 127
        %v5631 = vpop.permute.xlu0 %5630
        %5632 = vrot.lane.b32.xlu0 %v5606, 127
        %v5633 = vpop.permute.xlu0 %5632
        %5634 = vrot.lane.b32.xlu0 %v5607, 127
        %v5635 = vpop.permute.xlu0 %5634
        %5636 = vrot.lane.b32.xlu0 %v5608, 127
        %v5637 = vpop.permute.xlu0 %5636
        %5638 = vrot.lane.b32.xlu0 %v5609, 127
        %v5639 = vpop.permute.xlu0 %5638
        %5640 = vrot.lane.b32.xlu0 %v5610, 127
        %v5641 = vpop.permute.xlu0 %5640
        %5642 = vrot.lane.b32.xlu0 %v5611, 127
        %v5643 = vpop.permute.xlu0 %5642
        %v5644 = vsel %vm424, %v5613, %v5615
        %v5645 = vsel %vm424, %v5615, %v5617
        %v5646 = vsel %vm424, %v5617, %v5619
        %v5647 = vsel %vm424, %v5621, %v5623
        %v5648 = vsel %vm424, %v5623, %v5625
        %v5649 = vsel %vm424, %v5625, %v5627
        %v5650 = vsel %vm424, %v5629, %v5631
        %v5651 = vsel %vm424, %v5631, %v5633
        %v5652 = vsel %vm424, %v5633, %v5635
        %v5653 = vsel %vm424, %v5637, %v5639
        %v5654 = vsel %vm424, %v5639, %v5641
        %v5655 = vsel %vm424, %v5641, %v5643
        %vm5668 = vcmask 523264
        %v5670 = vsel %vm5668, %v5546, 0
        %v5673 = vsel %vm5668, %v5547, 0
        %5675 = vmatprep.subr.bf16.mxu0 0
        %5676 = vmatpush1.bf16.msra.mxu0 0
        %5677 = vmatprep.subr.bf16.mxu0 0
        %5678 = vmatpush1.bf16.msra.mxu0 0
        %5679 = vmatprep.subr.bf16.mxu0 0
        %5680 = vmatpush1.bf16.msra.mxu0 0
        %5681 = vmatprep.subr.bf16.mxu0 0
        %5682 = vmatpush1.bf16.msra.mxu0 0
        %5683 = vmatprep.subr.bf16.mxu0 %v5654
        %5684 = vmatpush1.bf16.msra.mxu0 %v5653
        %5685 = vmatprep.subr.bf16.mxu0 %v5651
        %5686 = vmatpush1.bf16.msra.mxu0 %v5650
        %5687 = vmatprep.subr.bf16.mxu0 %v5648
        %5688 = vmatpush1.bf16.msra.mxu0 %v5647
        %5689 = vmatprep.subr.bf16.mxu0 %v5645
        %5690 = vmatpush1.bf16.msra.mxu0 %v5644
        %5691 = vmatprep.subr.bf16.mxu0 0
        %5692 = vmatpush2.bf16.msra.mxu0 0
        %5693 = vmatprep.subr.bf16.mxu0 0
        %5694 = vmatpush2.bf16.msra.mxu0 0
        %5695 = vmatprep.subr.bf16.mxu0 0
        %5696 = vmatpush2.bf16.msra.mxu0 0
        %5697 = vmatprep.subr.bf16.mxu0 0
        %5698 = vmatpush2.bf16.msra.mxu0 0
        %5699 = vmatprep.subr.bf16.mxu0 0
        %5700 = vmatpush2.bf16.msra.mxu0 0
        %5701 = vmatprep.subr.bf16.mxu0 0
        %5702 = vmatpush2.bf16.msra.mxu0 0
        %5703 = vmatprep.subr.bf16.mxu0 0
        %5704 = vmatpush2.bf16.msra.mxu0 0
        %5705 = vmatprep.subr.bf16.mxu0 0
        %5706 = vmatpush2.bf16.msra.mxu0 0
        %5707 = vmatprep.mubr.bf16.mxu0 0
        %5708 = vmatmul.mubr.bf16.gmra.mxu0 %v5670
        %v5709 = vpop.f32.mrf.mxu0
        %v5710 = vadd.f32 0.0, %v5709
        %v5711 = vpop.f32.mrf.mxu0
        %v5712 = vadd.f32 0.0, %v5711
        %v5713 = vpop.f32.mrf.mxu0
        %v5714 = vadd.f32 0.0, %v5713
        %v5715 = vpop.f32.mrf.mxu0
        %v5716 = vadd.f32 0.0, %v5715
        %5717 = vmatprep.mubr.bf16.mxu0 0
        %5718 = vmatmul.mubr.bf16.gmra.mxu0 %v5673
        %v5719 = vpop.f32.mrf.mxu0
        %v5720 = vadd.f32 0.0, %v5719
        %v5721 = vpop.f32.mrf.mxu0
        %v5722 = vadd.f32 0.0, %v5721
        %v5723 = vpop.f32.mrf.mxu0
        %v5724 = vadd.f32 0.0, %v5723
        %v5725 = vpop.f32.mrf.mxu0
        %v5726 = vadd.f32 0.0, %v5725
        %5727 = vdwg.mxu0
        %5728 = vmatprep.subr.bf16.mxu0 0
        %5729 = vmatpush1.bf16.msra.mxu0 0
        %5730 = vmatprep.subr.bf16.mxu0 0
        %5731 = vmatpush1.bf16.msra.mxu0 0
        %5732 = vmatprep.subr.bf16.mxu0 0
        %5733 = vmatpush1.bf16.msra.mxu0 0
        %5734 = vmatprep.subr.bf16.mxu0 0
        %5735 = vmatpush1.bf16.msra.mxu0 0
        %5736 = vmatprep.subr.bf16.mxu0 0
        %5737 = vmatpush1.bf16.msra.mxu0 %v5655
        %5738 = vmatprep.subr.bf16.mxu0 0
        %5739 = vmatpush1.bf16.msra.mxu0 %v5652
        %5740 = vmatprep.subr.bf16.mxu0 0
        %5741 = vmatpush1.bf16.msra.mxu0 %v5649
        %5742 = vmatprep.subr.bf16.mxu0 0
        %5743 = vmatpush1.bf16.msra.mxu0 %v5646
        %5744 = vmatprep.subr.bf16.mxu0 0
        %5745 = vmatpush2.bf16.msra.mxu0 0
        %5746 = vmatprep.subr.bf16.mxu0 0
        %5747 = vmatpush2.bf16.msra.mxu0 0
        %5748 = vmatprep.subr.bf16.mxu0 0
        %5749 = vmatpush2.bf16.msra.mxu0 0
        %5750 = vmatprep.subr.bf16.mxu0 0
        %5751 = vmatpush2.bf16.msra.mxu0 0
        %5752 = vmatprep.subr.bf16.mxu0 0
        %5753 = vmatpush2.bf16.msra.mxu0 0
        %5754 = vmatprep.subr.bf16.mxu0 0
        %5755 = vmatpush2.bf16.msra.mxu0 0
        %5756 = vmatprep.subr.bf16.mxu0 0
        %5757 = vmatpush2.bf16.msra.mxu0 0
        %5758 = vmatprep.subr.bf16.mxu0 0
        %5759 = vmatpush2.bf16.msra.mxu0 0
        %5760 = vmatprep.mubr.bf16.mxu0 0
        %5761 = vmatmul.mubr.bf16.gmra.mxu0 %v5670
        %v5762 = vpop.f32.mrf.mxu0
        %v5763 = vadd.f32 0.0, %v5762
        %v5764 = vpop.f32.mrf.mxu0
        %v5765 = vpop.f32.mrf.mxu0
        %v5766 = vadd.f32 0.0, %v5765
        %v5767 = vpop.f32.mrf.mxu0
        %5768 = vmatprep.mubr.bf16.mxu0 0
        %5769 = vmatmul.mubr.bf16.gmra.mxu0 %v5673
        %v5770 = vpop.f32.mrf.mxu0
        %v5771 = vadd.f32 0.0, %v5770
        %v5772 = vpop.f32.mrf.mxu0
        %v5773 = vpop.f32.mrf.mxu0
        %v5774 = vadd.f32 0.0, %v5773
        %v5775 = vpop.f32.mrf.mxu0
        %5776 = vdwg.mxu0
        %v5781 = vunpack.c.l.b16 %v5529
        %v5782 = vunpack.c.l.b16 %v5530
        %v5783 = vunpack.c.l.b16 %v5531
        %v5784 = vunpack.c.l.b16 %v5532
        %v5785 = vpack.c.b16 %v5782, %v5781
        %v5786 = vpack.c.b16 %v5784, %v5783
        %v5800 = vsel %vm5668, %v5785, 0
        %v5803 = vsel %vm5668, %v5786, 0
        %5805 = vmatprep.subr.bf16.mxu0 0
        %5806 = vmatpush1.bf16.msra.mxu0 0
        %5807 = vmatprep.subr.bf16.mxu0 0
        %5808 = vmatpush1.bf16.msra.mxu0 0
        %5809 = vmatprep.subr.bf16.mxu0 0
        %5810 = vmatpush1.bf16.msra.mxu0 0
        %5811 = vmatprep.subr.bf16.mxu0 0
        %5812 = vmatpush1.bf16.msra.mxu0 0
        %5813 = vmatprep.subr.bf16.mxu0 %v5609
        %5814 = vmatpush1.bf16.msra.mxu0 %v5608
        %5815 = vmatprep.subr.bf16.mxu0 %v5605
        %5816 = vmatpush1.bf16.msra.mxu0 %v5604
        %5817 = vmatprep.subr.bf16.mxu0 %v5601
        %5818 = vmatpush1.bf16.msra.mxu0 %v5600
        %5819 = vmatprep.subr.bf16.mxu0 %v5597
        %5820 = vmatpush1.bf16.msra.mxu0 %v5596
        %5821 = vmatprep.subr.bf16.mxu0 0
        %5822 = vmatpush2.bf16.msra.mxu0 0
        %5823 = vmatprep.subr.bf16.mxu0 0
        %5824 = vmatpush2.bf16.msra.mxu0 0
        %5825 = vmatprep.subr.bf16.mxu0 0
        %5826 = vmatpush2.bf16.msra.mxu0 0
        %5827 = vmatprep.subr.bf16.mxu0 0
        %5828 = vmatpush2.bf16.msra.mxu0 0
        %5829 = vmatprep.subr.bf16.mxu0 0
        %5830 = vmatpush2.bf16.msra.mxu0 0
        %5831 = vmatprep.subr.bf16.mxu0 0
        %5832 = vmatpush2.bf16.msra.mxu0 0
        %5833 = vmatprep.subr.bf16.mxu0 0
        %5834 = vmatpush2.bf16.msra.mxu0 0
        %5835 = vmatprep.subr.bf16.mxu0 0
        %5836 = vmatpush2.bf16.msra.mxu0 0
        %5837 = vmatprep.mubr.bf16.mxu0 0
        %5838 = vmatmul.mubr.bf16.gmra.mxu0 %v5800
        %v5839 = vpop.f32.mrf.mxu0
        %v5840 = vadd.f32 %v5710, %v5839
        %v5841 = vpop.f32.mrf.mxu0
        %v5842 = vadd.f32 %v5712, %v5841
        %v5843 = vpop.f32.mrf.mxu0
        %v5844 = vadd.f32 %v5714, %v5843
        %v5845 = vpop.f32.mrf.mxu0
        %v5846 = vadd.f32 %v5716, %v5845
        %5847 = vmatprep.mubr.bf16.mxu0 0
        %5848 = vmatmul.mubr.bf16.gmra.mxu0 %v5803
        %v5849 = vpop.f32.mrf.mxu0
        %v5850 = vadd.f32 %v5720, %v5849
        %v5851 = vpop.f32.mrf.mxu0
        %v5852 = vadd.f32 %v5722, %v5851
        %v5853 = vpop.f32.mrf.mxu0
        %v5854 = vadd.f32 %v5724, %v5853
        %v5855 = vpop.f32.mrf.mxu0
        %v5856 = vadd.f32 %v5726, %v5855
        %5857 = vdwg.mxu0
        %5858 = vmatprep.subr.bf16.mxu0 0
        %5859 = vmatpush1.bf16.msra.mxu0 0
        %5860 = vmatprep.subr.bf16.mxu0 0
        %5861 = vmatpush1.bf16.msra.mxu0 0
        %5862 = vmatprep.subr.bf16.mxu0 0
        %5863 = vmatpush1.bf16.msra.mxu0 0
        %5864 = vmatprep.subr.bf16.mxu0 0
        %5865 = vmatpush1.bf16.msra.mxu0 0
        %5866 = vmatprep.subr.bf16.mxu0 0
        %5867 = vmatpush1.bf16.msra.mxu0 %v5610
        %5868 = vmatprep.subr.bf16.mxu0 0
        %5869 = vmatpush1.bf16.msra.mxu0 %v5606
        %5870 = vmatprep.subr.bf16.mxu0 0
        %5871 = vmatpush1.bf16.msra.mxu0 %v5602
        %5872 = vmatprep.subr.bf16.mxu0 0
        %5873 = vmatpush1.bf16.msra.mxu0 %v5598
        %5874 = vmatprep.subr.bf16.mxu0 0
        %5875 = vmatpush2.bf16.msra.mxu0 0
        %5876 = vmatprep.subr.bf16.mxu0 0
        %5877 = vmatpush2.bf16.msra.mxu0 0
        %5878 = vmatprep.subr.bf16.mxu0 0
        %5879 = vmatpush2.bf16.msra.mxu0 0
        %5880 = vmatprep.subr.bf16.mxu0 0
        %5881 = vmatpush2.bf16.msra.mxu0 0
        %5882 = vmatprep.subr.bf16.mxu0 0
        %5883 = vmatpush2.bf16.msra.mxu0 0
        %5884 = vmatprep.subr.bf16.mxu0 0
        %5885 = vmatpush2.bf16.msra.mxu0 0
        %5886 = vmatprep.subr.bf16.mxu0 0
        %5887 = vmatpush2.bf16.msra.mxu0 0
        %5888 = vmatprep.subr.bf16.mxu0 0
        %5889 = vmatpush2.bf16.msra.mxu0 0
        %5890 = vmatprep.mubr.bf16.mxu0 0
        %5891 = vmatmul.mubr.bf16.gmra.mxu0 %v5800
        %v5892 = vpop.f32.mrf.mxu0
        %v5893 = vadd.f32 %v5763, %v5892
        %v5894 = vpop.f32.mrf.mxu0
        %v5895 = vpop.f32.mrf.mxu0
        %v5896 = vadd.f32 %v5766, %v5895
        %v5897 = vpop.f32.mrf.mxu0
        %5898 = vmatprep.mubr.bf16.mxu0 0
        %5899 = vmatmul.mubr.bf16.gmra.mxu0 %v5803
        %v5900 = vpop.f32.mrf.mxu0
        %v5901 = vadd.f32 %v5771, %v5900
        %v5902 = vpop.f32.mrf.mxu0
        %v5903 = vpop.f32.mrf.mxu0
        %v5904 = vadd.f32 %v5774, %v5903
        %v5905 = vpop.f32.mrf.mxu0
        %5906 = vdwg.mxu0
        %s5907 = scalar_lea.vmem %s4, 32
        %v5908 = vld [vmem:[%s5907] sm:$0xf]
        %v5909 = vld [vmem:[%s5907 + $0x4] sm:$0xf]
        %v5910 = vld [vmem:[%s5907 + $0x8] sm:$0xf]
        %v5911 = vld [vmem:[%s5907 + $0xc] sm:$0xf]
        %v5916 = vunpack.c.l.b16 %v5908
        %v5917 = vunpack.c.l.b16 %v5909
        %v5918 = vunpack.c.l.b16 %v5910
        %v5919 = vunpack.c.l.b16 %v5911
        %v5920 = vpack.c.b16 %v5917, %v5916
        %v5921 = vpack.c.b16 %v5919, %v5918
        %5922 = vrot.lane.b32.xlu0 %v5596, 126
        %v5923 = vpop.permute.xlu0 %5922
        %5924 = vrot.lane.b32.xlu0 %v5597, 126
        %v5925 = vpop.permute.xlu0 %5924
        %5926 = vrot.lane.b32.xlu0 %v5598, 126
        %v5927 = vpop.permute.xlu0 %5926
        %5928 = vrot.lane.b32.xlu0 %v5599, 126
        %v5929 = vpop.permute.xlu0 %5928
        %5930 = vrot.lane.b32.xlu0 %v5600, 126
        %v5931 = vpop.permute.xlu0 %5930
        %5932 = vrot.lane.b32.xlu0 %v5601, 126
        %v5933 = vpop.permute.xlu0 %5932
        %5934 = vrot.lane.b32.xlu0 %v5602, 126
        %v5935 = vpop.permute.xlu0 %5934
        %5936 = vrot.lane.b32.xlu0 %v5603, 126
        %v5937 = vpop.permute.xlu0 %5936
        %5938 = vrot.lane.b32.xlu0 %v5604, 126
        %v5939 = vpop.permute.xlu0 %5938
        %5940 = vrot.lane.b32.xlu0 %v5605, 126
        %v5941 = vpop.permute.xlu0 %5940
        %5942 = vrot.lane.b32.xlu0 %v5606, 126
        %v5943 = vpop.permute.xlu0 %5942
        %5944 = vrot.lane.b32.xlu0 %v5607, 126
        %v5945 = vpop.permute.xlu0 %5944
        %5946 = vrot.lane.b32.xlu0 %v5608, 126
        %v5947 = vpop.permute.xlu0 %5946
        %5948 = vrot.lane.b32.xlu0 %v5609, 126
        %v5949 = vpop.permute.xlu0 %5948
        %5950 = vrot.lane.b32.xlu0 %v5610, 126
        %v5951 = vpop.permute.xlu0 %5950
        %5952 = vrot.lane.b32.xlu0 %v5611, 126
        %v5953 = vpop.permute.xlu0 %5952
        %v5954 = vsel %vm643, %v5923, %v5925
        %v5955 = vsel %vm643, %v5925, %v5927
        %v5956 = vsel %vm643, %v5927, %v5929
        %v5957 = vsel %vm643, %v5931, %v5933
        %v5958 = vsel %vm643, %v5933, %v5935
        %v5959 = vsel %vm643, %v5935, %v5937
        %v5960 = vsel %vm643, %v5939, %v5941
        %v5961 = vsel %vm643, %v5941, %v5943
        %v5962 = vsel %vm643, %v5943, %v5945
        %v5963 = vsel %vm643, %v5947, %v5949
        %v5964 = vsel %vm643, %v5949, %v5951
        %v5965 = vsel %vm643, %v5951, %v5953
        %v5979 = vsel %vm5668, %v5920, 0
        %v5982 = vsel %vm5668, %v5921, 0
        %5984 = vmatprep.subr.bf16.mxu0 0
        %5985 = vmatpush1.bf16.msra.mxu0 0
        %5986 = vmatprep.subr.bf16.mxu0 0
        %5987 = vmatpush1.bf16.msra.mxu0 0
        %5988 = vmatprep.subr.bf16.mxu0 0
        %5989 = vmatpush1.bf16.msra.mxu0 0
        %5990 = vmatprep.subr.bf16.mxu0 0
        %5991 = vmatpush1.bf16.msra.mxu0 0
        %5992 = vmatprep.subr.bf16.mxu0 %v5964
        %5993 = vmatpush1.bf16.msra.mxu0 %v5963
        %5994 = vmatprep.subr.bf16.mxu0 %v5961
        %5995 = vmatpush1.bf16.msra.mxu0 %v5960
        %5996 = vmatprep.subr.bf16.mxu0 %v5958
        %5997 = vmatpush1.bf16.msra.mxu0 %v5957
        %5998 = vmatprep.subr.bf16.mxu0 %v5955
        %5999 = vmatpush1.bf16.msra.mxu0 %v5954
        %6000 = vmatprep.subr.bf16.mxu0 0
        %6001 = vmatpush2.bf16.msra.mxu0 0
        %6002 = vmatprep.subr.bf16.mxu0 0
        %6003 = vmatpush2.bf16.msra.mxu0 0
        %6004 = vmatprep.subr.bf16.mxu0 0
        %6005 = vmatpush2.bf16.msra.mxu0 0
        %6006 = vmatprep.subr.bf16.mxu0 0
        %6007 = vmatpush2.bf16.msra.mxu0 0
        %6008 = vmatprep.subr.bf16.mxu0 0
        %6009 = vmatpush2.bf16.msra.mxu0 0
        %6010 = vmatprep.subr.bf16.mxu0 0
        %6011 = vmatpush2.bf16.msra.mxu0 0
        %6012 = vmatprep.subr.bf16.mxu0 0
        %6013 = vmatpush2.bf16.msra.mxu0 0
        %6014 = vmatprep.subr.bf16.mxu0 0
        %6015 = vmatpush2.bf16.msra.mxu0 0
        %6016 = vmatprep.mubr.bf16.mxu0 0
        %6017 = vmatmul.mubr.bf16.gmra.mxu0 %v5979
        %v6018 = vpop.f32.mrf.mxu0
        %v6019 = vadd.f32 0.0, %v6018
        %v6020 = vpop.f32.mrf.mxu0
        %v6021 = vadd.f32 0.0, %v6020
        %v6022 = vpop.f32.mrf.mxu0
        %v6023 = vadd.f32 0.0, %v6022
        %v6024 = vpop.f32.mrf.mxu0
        %v6025 = vadd.f32 0.0, %v6024
        %6026 = vmatprep.mubr.bf16.mxu0 0
        %6027 = vmatmul.mubr.bf16.gmra.mxu0 %v5982
        %v6028 = vpop.f32.mrf.mxu0
        %v6029 = vadd.f32 0.0, %v6028
        %v6030 = vpop.f32.mrf.mxu0
        %v6031 = vadd.f32 0.0, %v6030
        %v6032 = vpop.f32.mrf.mxu0
        %v6033 = vadd.f32 0.0, %v6032
        %v6034 = vpop.f32.mrf.mxu0
        %v6035 = vadd.f32 0.0, %v6034
        %6036 = vdwg.mxu0
        %6037 = vmatprep.subr.bf16.mxu0 0
        %6038 = vmatpush1.bf16.msra.mxu0 0
        %6039 = vmatprep.subr.bf16.mxu0 0
        %6040 = vmatpush1.bf16.msra.mxu0 0
        %6041 = vmatprep.subr.bf16.mxu0 0
        %6042 = vmatpush1.bf16.msra.mxu0 0
        %6043 = vmatprep.subr.bf16.mxu0 0
        %6044 = vmatpush1.bf16.msra.mxu0 0
        %6045 = vmatprep.subr.bf16.mxu0 0
        %6046 = vmatpush1.bf16.msra.mxu0 %v5965
        %6047 = vmatprep.subr.bf16.mxu0 0
        %6048 = vmatpush1.bf16.msra.mxu0 %v5962
        %6049 = vmatprep.subr.bf16.mxu0 0
        %6050 = vmatpush1.bf16.msra.mxu0 %v5959
        %6051 = vmatprep.subr.bf16.mxu0 0
        %6052 = vmatpush1.bf16.msra.mxu0 %v5956
        %6053 = vmatprep.subr.bf16.mxu0 0
        %6054 = vmatpush2.bf16.msra.mxu0 0
        %6055 = vmatprep.subr.bf16.mxu0 0
        %6056 = vmatpush2.bf16.msra.mxu0 0
        %6057 = vmatprep.subr.bf16.mxu0 0
        %6058 = vmatpush2.bf16.msra.mxu0 0
        %6059 = vmatprep.subr.bf16.mxu0 0
        %6060 = vmatpush2.bf16.msra.mxu0 0
        %6061 = vmatprep.subr.bf16.mxu0 0
        %6062 = vmatpush2.bf16.msra.mxu0 0
        %6063 = vmatprep.subr.bf16.mxu0 0
        %6064 = vmatpush2.bf16.msra.mxu0 0
        %6065 = vmatprep.subr.bf16.mxu0 0
        %6066 = vmatpush2.bf16.msra.mxu0 0
        %6067 = vmatprep.subr.bf16.mxu0 0
        %6068 = vmatpush2.bf16.msra.mxu0 0
        %6069 = vmatprep.mubr.bf16.mxu0 0
        %6070 = vmatmul.mubr.bf16.gmra.mxu0 %v5979
        %v6071 = vpop.f32.mrf.mxu0
        %v6072 = vadd.f32 0.0, %v6071
        %v6073 = vpop.f32.mrf.mxu0
        %v6074 = vpop.f32.mrf.mxu0
        %v6075 = vadd.f32 0.0, %v6074
        %v6076 = vpop.f32.mrf.mxu0
        %6077 = vmatprep.mubr.bf16.mxu0 0
        %6078 = vmatmul.mubr.bf16.gmra.mxu0 %v5982
        %v6079 = vpop.f32.mrf.mxu0
        %v6080 = vadd.f32 0.0, %v6079
        %v6081 = vpop.f32.mrf.mxu0
        %v6082 = vpop.f32.mrf.mxu0
        %v6083 = vadd.f32 0.0, %v6082
        %v6084 = vpop.f32.mrf.mxu0
        %6085 = vdwg.mxu0
        %v6086 = vadd.f32 %v5840, %v6019
        %v6087 = vadd.f32 %v5842, %v6021
        %v6088 = vadd.f32 %v5893, %v6072
        %v6089 = vadd.f32 %v5844, %v6023
        %v6090 = vadd.f32 %v5846, %v6025
        %v6091 = vadd.f32 %v5896, %v6075
        %v6092 = vadd.f32 %v5850, %v6029
        %v6093 = vadd.f32 %v5852, %v6031
        %v6094 = vadd.f32 %v5901, %v6080
        %v6095 = vadd.f32 %v5854, %v6033
        %v6096 = vadd.f32 %v5856, %v6035
        %v6097 = vadd.f32 %v5904, %v6083
        %s6098 = scalar_lea.vmem %s4, 48
        %v6099 = vld [vmem:[%s6098] sm:$0xf]
        %v6100 = vld [vmem:[%s6098 + $0x4] sm:$0xf]
        %v6101 = vld [vmem:[%s6098 + $0x8] sm:$0xf]
        %v6102 = vld [vmem:[%s6098 + $0xc] sm:$0xf]
        %v6107 = vunpack.c.l.b16 %v6099
        %v6108 = vunpack.c.l.b16 %v6100
        %v6109 = vunpack.c.l.b16 %v6101
        %v6110 = vunpack.c.l.b16 %v6102
        %v6111 = vpack.c.b16 %v6108, %v6107
        %v6112 = vpack.c.b16 %v6110, %v6109
        %6113 = vrot.lane.b32.xlu0 %v5596, 104
        %v6114 = vpop.permute.xlu0 %6113
        %6115 = vrot.lane.b32.xlu0 %v5597, 104
        %v6116 = vpop.permute.xlu0 %6115
        %6117 = vrot.lane.b32.xlu0 %v5598, 104
        %v6118 = vpop.permute.xlu0 %6117
        %6119 = vrot.lane.b32.xlu0 %v5599, 104
        %v6120 = vpop.permute.xlu0 %6119
        %6121 = vrot.lane.b32.xlu0 %v5600, 104
        %v6122 = vpop.permute.xlu0 %6121
        %6123 = vrot.lane.b32.xlu0 %v5601, 104
        %v6124 = vpop.permute.xlu0 %6123
        %6125 = vrot.lane.b32.xlu0 %v5602, 104
        %v6126 = vpop.permute.xlu0 %6125
        %6127 = vrot.lane.b32.xlu0 %v5603, 104
        %v6128 = vpop.permute.xlu0 %6127
        %6129 = vrot.lane.b32.xlu0 %v5604, 104
        %v6130 = vpop.permute.xlu0 %6129
        %6131 = vrot.lane.b32.xlu0 %v5605, 104
        %v6132 = vpop.permute.xlu0 %6131
        %6133 = vrot.lane.b32.xlu0 %v5606, 104
        %v6134 = vpop.permute.xlu0 %6133
        %6135 = vrot.lane.b32.xlu0 %v5607, 104
        %v6136 = vpop.permute.xlu0 %6135
        %6137 = vrot.lane.b32.xlu0 %v5608, 104
        %v6138 = vpop.permute.xlu0 %6137
        %6139 = vrot.lane.b32.xlu0 %v5609, 104
        %v6140 = vpop.permute.xlu0 %6139
        %6141 = vrot.lane.b32.xlu0 %v5610, 104
        %v6142 = vpop.permute.xlu0 %6141
        %6143 = vrot.lane.b32.xlu0 %v5611, 104
        %v6144 = vpop.permute.xlu0 %6143
        %v6145 = vsel %vm765, %v6114, %v6116
        %v6146 = vsel %vm765, %v6116, %v6118
        %v6147 = vsel %vm765, %v6118, %v6120
        %v6148 = vsel %vm765, %v6122, %v6124
        %v6149 = vsel %vm765, %v6124, %v6126
        %v6150 = vsel %vm765, %v6126, %v6128
        %v6151 = vsel %vm765, %v6130, %v6132
        %v6152 = vsel %vm765, %v6132, %v6134
        %v6153 = vsel %vm765, %v6134, %v6136
        %v6154 = vsel %vm765, %v6138, %v6140
        %v6155 = vsel %vm765, %v6140, %v6142
        %v6156 = vsel %vm765, %v6142, %v6144
        %v6170 = vsel %vm5668, %v6111, 0
        %v6173 = vsel %vm5668, %v6112, 0
        %6175 = vmatprep.subr.bf16.mxu0 0
        %6176 = vmatpush1.bf16.msra.mxu0 0
        %6177 = vmatprep.subr.bf16.mxu0 0
        %6178 = vmatpush1.bf16.msra.mxu0 0
        %6179 = vmatprep.subr.bf16.mxu0 0
        %6180 = vmatpush1.bf16.msra.mxu0 0
        %6181 = vmatprep.subr.bf16.mxu0 0
        %6182 = vmatpush1.bf16.msra.mxu0 0
        %6183 = vmatprep.subr.bf16.mxu0 %v6155
        %6184 = vmatpush1.bf16.msra.mxu0 %v6154
        %6185 = vmatprep.subr.bf16.mxu0 %v6152
        %6186 = vmatpush1.bf16.msra.mxu0 %v6151
        %6187 = vmatprep.subr.bf16.mxu0 %v6149
        %6188 = vmatpush1.bf16.msra.mxu0 %v6148
        %6189 = vmatprep.subr.bf16.mxu0 %v6146
        %6190 = vmatpush1.bf16.msra.mxu0 %v6145
        %6191 = vmatprep.subr.bf16.mxu0 0
        %6192 = vmatpush2.bf16.msra.mxu0 0
        %6193 = vmatprep.subr.bf16.mxu0 0
        %6194 = vmatpush2.bf16.msra.mxu0 0
        %6195 = vmatprep.subr.bf16.mxu0 0
        %6196 = vmatpush2.bf16.msra.mxu0 0
        %6197 = vmatprep.subr.bf16.mxu0 0
        %6198 = vmatpush2.bf16.msra.mxu0 0
        %6199 = vmatprep.subr.bf16.mxu0 0
        %6200 = vmatpush2.bf16.msra.mxu0 0
        %6201 = vmatprep.subr.bf16.mxu0 0
        %6202 = vmatpush2.bf16.msra.mxu0 0
        %6203 = vmatprep.subr.bf16.mxu0 0
        %6204 = vmatpush2.bf16.msra.mxu0 0
        %6205 = vmatprep.subr.bf16.mxu0 0
        %6206 = vmatpush2.bf16.msra.mxu0 0
        %6207 = vmatprep.mubr.bf16.mxu0 0
        %6208 = vmatmul.mubr.bf16.gmra.mxu0 %v6170
        %v6209 = vpop.f32.mrf.mxu0
        %v6210 = vadd.f32 0.0, %v6209
        %v6211 = vpop.f32.mrf.mxu0
        %v6212 = vadd.f32 0.0, %v6211
        %v6213 = vpop.f32.mrf.mxu0
        %v6214 = vadd.f32 0.0, %v6213
        %v6215 = vpop.f32.mrf.mxu0
        %v6216 = vadd.f32 0.0, %v6215
        %6217 = vmatprep.mubr.bf16.mxu0 0
        %6218 = vmatmul.mubr.bf16.gmra.mxu0 %v6173
        %v6219 = vpop.f32.mrf.mxu0
        %v6220 = vadd.f32 0.0, %v6219
        %v6221 = vpop.f32.mrf.mxu0
        %v6222 = vadd.f32 0.0, %v6221
        %v6223 = vpop.f32.mrf.mxu0
        %v6224 = vadd.f32 0.0, %v6223
        %v6225 = vpop.f32.mrf.mxu0
        %v6226 = vadd.f32 0.0, %v6225
        %6227 = vdwg.mxu0
        %6228 = vmatprep.subr.bf16.mxu0 0
        %6229 = vmatpush1.bf16.msra.mxu0 0
        %6230 = vmatprep.subr.bf16.mxu0 0
        %6231 = vmatpush1.bf16.msra.mxu0 0
        %6232 = vmatprep.subr.bf16.mxu0 0
        %6233 = vmatpush1.bf16.msra.mxu0 0
        %6234 = vmatprep.subr.bf16.mxu0 0
        %6235 = vmatpush1.bf16.msra.mxu0 0
        %6236 = vmatprep.subr.bf16.mxu0 0
        %6237 = vmatpush1.bf16.msra.mxu0 %v6156
        %6238 = vmatprep.subr.bf16.mxu0 0
        %6239 = vmatpush1.bf16.msra.mxu0 %v6153
        %6240 = vmatprep.subr.bf16.mxu0 0
        %6241 = vmatpush1.bf16.msra.mxu0 %v6150
        %6242 = vmatprep.subr.bf16.mxu0 0
        %6243 = vmatpush1.bf16.msra.mxu0 %v6147
        %6244 = vmatprep.subr.bf16.mxu0 0
        %6245 = vmatpush2.bf16.msra.mxu0 0
        %6246 = vmatprep.subr.bf16.mxu0 0
        %6247 = vmatpush2.bf16.msra.mxu0 0
        %6248 = vmatprep.subr.bf16.mxu0 0
        %6249 = vmatpush2.bf16.msra.mxu0 0
        %6250 = vmatprep.subr.bf16.mxu0 0
        %6251 = vmatpush2.bf16.msra.mxu0 0
        %6252 = vmatprep.subr.bf16.mxu0 0
        %6253 = vmatpush2.bf16.msra.mxu0 0
        %6254 = vmatprep.subr.bf16.mxu0 0
        %6255 = vmatpush2.bf16.msra.mxu0 0
        %6256 = vmatprep.subr.bf16.mxu0 0
        %6257 = vmatpush2.bf16.msra.mxu0 0
        %6258 = vmatprep.subr.bf16.mxu0 0
        %6259 = vmatpush2.bf16.msra.mxu0 0
        %6260 = vmatprep.mubr.bf16.mxu0 0
        %6261 = vmatmul.mubr.bf16.gmra.mxu0 %v6170
        %v6262 = vpop.f32.mrf.mxu0
        %v6263 = vadd.f32 0.0, %v6262
        %v6264 = vpop.f32.mrf.mxu0
        %v6265 = vpop.f32.mrf.mxu0
        %v6266 = vadd.f32 0.0, %v6265
        %v6267 = vpop.f32.mrf.mxu0
        %6268 = vmatprep.mubr.bf16.mxu0 0
        %6269 = vmatmul.mubr.bf16.gmra.mxu0 %v6173
        %v6270 = vpop.f32.mrf.mxu0
        %v6271 = vadd.f32 0.0, %v6270
        %v6272 = vpop.f32.mrf.mxu0
        %v6273 = vpop.f32.mrf.mxu0
        %v6274 = vadd.f32 0.0, %v6273
        %v6275 = vpop.f32.mrf.mxu0
        %6276 = vdwg.mxu0
        %v6277 = vadd.f32 %v6086, %v6210
        %v6278 = vadd.f32 %v6087, %v6212
        %v6279 = vadd.f32 %v6088, %v6263
        %v6280 = vadd.f32 %v6089, %v6214
        %v6281 = vadd.f32 %v6090, %v6216
        %v6282 = vadd.f32 %v6091, %v6266
        %v6283 = vadd.f32 %v6092, %v6220
        %v6284 = vadd.f32 %v6093, %v6222
        %v6285 = vadd.f32 %v6094, %v6271
        %v6286 = vadd.f32 %v6095, %v6224
        %v6287 = vadd.f32 %v6096, %v6226
        %v6288 = vadd.f32 %v6097, %v6274
        %s6289 = scalar_lea.vmem %s4, 64
        %v6290 = vld [vmem:[%s6289] sm:$0xf]
        %v6291 = vld [vmem:[%s6289 + $0x4] sm:$0xf]
        %v6292 = vld [vmem:[%s6289 + $0x8] sm:$0xf]
        %v6293 = vld [vmem:[%s6289 + $0xc] sm:$0xf]
        %v6298 = vunpack.c.l.b16 %v6290
        %v6299 = vunpack.c.l.b16 %v6291
        %v6300 = vunpack.c.l.b16 %v6292
        %v6301 = vunpack.c.l.b16 %v6293
        %v6302 = vpack.c.b16 %v6299, %v6298
        %v6303 = vpack.c.b16 %v6301, %v6300
        %6304 = vrot.lane.b32.xlu0 %v5596, 103
        %v6305 = vpop.permute.xlu0 %6304
        %6306 = vrot.lane.b32.xlu0 %v5597, 103
        %v6307 = vpop.permute.xlu0 %6306
        %6308 = vrot.lane.b32.xlu0 %v5598, 103
        %v6309 = vpop.permute.xlu0 %6308
        %6310 = vrot.lane.b32.xlu0 %v5599, 103
        %v6311 = vpop.permute.xlu0 %6310
        %6312 = vrot.lane.b32.xlu0 %v5600, 103
        %v6313 = vpop.permute.xlu0 %6312
        %6314 = vrot.lane.b32.xlu0 %v5601, 103
        %v6315 = vpop.permute.xlu0 %6314
        %6316 = vrot.lane.b32.xlu0 %v5602, 103
        %v6317 = vpop.permute.xlu0 %6316
        %6318 = vrot.lane.b32.xlu0 %v5603, 103
        %v6319 = vpop.permute.xlu0 %6318
        %6320 = vrot.lane.b32.xlu0 %v5604, 103
        %v6321 = vpop.permute.xlu0 %6320
        %6322 = vrot.lane.b32.xlu0 %v5605, 103
        %v6323 = vpop.permute.xlu0 %6322
        %6324 = vrot.lane.b32.xlu0 %v5606, 103
        %v6325 = vpop.permute.xlu0 %6324
        %6326 = vrot.lane.b32.xlu0 %v5607, 103
        %v6327 = vpop.permute.xlu0 %6326
        %6328 = vrot.lane.b32.xlu0 %v5608, 103
        %v6329 = vpop.permute.xlu0 %6328
        %6330 = vrot.lane.b32.xlu0 %v5609, 103
        %v6331 = vpop.permute.xlu0 %6330
        %6332 = vrot.lane.b32.xlu0 %v5610, 103
        %v6333 = vpop.permute.xlu0 %6332
        %6334 = vrot.lane.b32.xlu0 %v5611, 103
        %v6335 = vpop.permute.xlu0 %6334
        %v6336 = vsel %vm887, %v6305, %v6307
        %v6337 = vsel %vm887, %v6307, %v6309
        %v6338 = vsel %vm887, %v6309, %v6311
        %v6339 = vsel %vm887, %v6313, %v6315
        %v6340 = vsel %vm887, %v6315, %v6317
        %v6341 = vsel %vm887, %v6317, %v6319
        %v6342 = vsel %vm887, %v6321, %v6323
        %v6343 = vsel %vm887, %v6323, %v6325
        %v6344 = vsel %vm887, %v6325, %v6327
        %v6345 = vsel %vm887, %v6329, %v6331
        %v6346 = vsel %vm887, %v6331, %v6333
        %v6347 = vsel %vm887, %v6333, %v6335
        %v6361 = vsel %vm5668, %v6302, 0
        %v6364 = vsel %vm5668, %v6303, 0
        %6366 = vmatprep.subr.bf16.mxu0 0
        %6367 = vmatpush1.bf16.msra.mxu0 0
        %6368 = vmatprep.subr.bf16.mxu0 0
        %6369 = vmatpush1.bf16.msra.mxu0 0
        %6370 = vmatprep.subr.bf16.mxu0 0
        %6371 = vmatpush1.bf16.msra.mxu0 0
        %6372 = vmatprep.subr.bf16.mxu0 0
        %6373 = vmatpush1.bf16.msra.mxu0 0
        %6374 = vmatprep.subr.bf16.mxu0 %v6346
        %6375 = vmatpush1.bf16.msra.mxu0 %v6345
        %6376 = vmatprep.subr.bf16.mxu0 %v6343
        %6377 = vmatpush1.bf16.msra.mxu0 %v6342
        %6378 = vmatprep.subr.bf16.mxu0 %v6340
        %6379 = vmatpush1.bf16.msra.mxu0 %v6339
        %6380 = vmatprep.subr.bf16.mxu0 %v6337
        %6381 = vmatpush1.bf16.msra.mxu0 %v6336
        %6382 = vmatprep.subr.bf16.mxu0 0
        %6383 = vmatpush2.bf16.msra.mxu0 0
        %6384 = vmatprep.subr.bf16.mxu0 0
        %6385 = vmatpush2.bf16.msra.mxu0 0
        %6386 = vmatprep.subr.bf16.mxu0 0
        %6387 = vmatpush2.bf16.msra.mxu0 0
        %6388 = vmatprep.subr.bf16.mxu0 0
        %6389 = vmatpush2.bf16.msra.mxu0 0
        %6390 = vmatprep.subr.bf16.mxu0 0
        %6391 = vmatpush2.bf16.msra.mxu0 0
        %6392 = vmatprep.subr.bf16.mxu0 0
        %6393 = vmatpush2.bf16.msra.mxu0 0
        %6394 = vmatprep.subr.bf16.mxu0 0
        %6395 = vmatpush2.bf16.msra.mxu0 0
        %6396 = vmatprep.subr.bf16.mxu0 0
        %6397 = vmatpush2.bf16.msra.mxu0 0
        %6398 = vmatprep.mubr.bf16.mxu0 0
        %6399 = vmatmul.mubr.bf16.gmra.mxu0 %v6361
        %v6400 = vpop.f32.mrf.mxu0
        %v6401 = vadd.f32 0.0, %v6400
        %v6402 = vpop.f32.mrf.mxu0
        %v6403 = vadd.f32 0.0, %v6402
        %v6404 = vpop.f32.mrf.mxu0
        %v6405 = vadd.f32 0.0, %v6404
        %v6406 = vpop.f32.mrf.mxu0
        %v6407 = vadd.f32 0.0, %v6406
        %6408 = vmatprep.mubr.bf16.mxu0 0
        %6409 = vmatmul.mubr.bf16.gmra.mxu0 %v6364
        %v6410 = vpop.f32.mrf.mxu0
        %v6411 = vadd.f32 0.0, %v6410
        %v6412 = vpop.f32.mrf.mxu0
        %v6413 = vadd.f32 0.0, %v6412
        %v6414 = vpop.f32.mrf.mxu0
        %v6415 = vadd.f32 0.0, %v6414
        %v6416 = vpop.f32.mrf.mxu0
        %v6417 = vadd.f32 0.0, %v6416
        %6418 = vdwg.mxu0
        %6419 = vmatprep.subr.bf16.mxu0 0
        %6420 = vmatpush1.bf16.msra.mxu0 0
        %6421 = vmatprep.subr.bf16.mxu0 0
        %6422 = vmatpush1.bf16.msra.mxu0 0
        %6423 = vmatprep.subr.bf16.mxu0 0
        %6424 = vmatpush1.bf16.msra.mxu0 0
        %6425 = vmatprep.subr.bf16.mxu0 0
        %6426 = vmatpush1.bf16.msra.mxu0 0
        %6427 = vmatprep.subr.bf16.mxu0 0
        %6428 = vmatpush1.bf16.msra.mxu0 %v6347
        %6429 = vmatprep.subr.bf16.mxu0 0
        %6430 = vmatpush1.bf16.msra.mxu0 %v6344
        %6431 = vmatprep.subr.bf16.mxu0 0
        %6432 = vmatpush1.bf16.msra.mxu0 %v6341
        %6433 = vmatprep.subr.bf16.mxu0 0
        %6434 = vmatpush1.bf16.msra.mxu0 %v6338
        %6435 = vmatprep.subr.bf16.mxu0 0
        %6436 = vmatpush2.bf16.msra.mxu0 0
        %6437 = vmatprep.subr.bf16.mxu0 0
        %6438 = vmatpush2.bf16.msra.mxu0 0
        %6439 = vmatprep.subr.bf16.mxu0 0
        %6440 = vmatpush2.bf16.msra.mxu0 0
        %6441 = vmatprep.subr.bf16.mxu0 0
        %6442 = vmatpush2.bf16.msra.mxu0 0
        %6443 = vmatprep.subr.bf16.mxu0 0
        %6444 = vmatpush2.bf16.msra.mxu0 0
        %6445 = vmatprep.subr.bf16.mxu0 0
        %6446 = vmatpush2.bf16.msra.mxu0 0
        %6447 = vmatprep.subr.bf16.mxu0 0
        %6448 = vmatpush2.bf16.msra.mxu0 0
        %6449 = vmatprep.subr.bf16.mxu0 0
        %6450 = vmatpush2.bf16.msra.mxu0 0
        %6451 = vmatprep.mubr.bf16.mxu0 0
        %6452 = vmatmul.mubr.bf16.gmra.mxu0 %v6361
        %v6453 = vpop.f32.mrf.mxu0
        %v6454 = vadd.f32 0.0, %v6453
        %v6455 = vpop.f32.mrf.mxu0
        %v6456 = vpop.f32.mrf.mxu0
        %v6457 = vadd.f32 0.0, %v6456
        %v6458 = vpop.f32.mrf.mxu0
        %6459 = vmatprep.mubr.bf16.mxu0 0
        %6460 = vmatmul.mubr.bf16.gmra.mxu0 %v6364
        %v6461 = vpop.f32.mrf.mxu0
        %v6462 = vadd.f32 0.0, %v6461
        %v6463 = vpop.f32.mrf.mxu0
        %v6464 = vpop.f32.mrf.mxu0
        %v6465 = vadd.f32 0.0, %v6464
        %v6466 = vpop.f32.mrf.mxu0
        %6467 = vdwg.mxu0
        %v6468 = vadd.f32 %v6277, %v6401
        %v6469 = vadd.f32 %v6278, %v6403
        %v6470 = vadd.f32 %v6279, %v6454
        %v6471 = vadd.f32 %v6280, %v6405
        %v6472 = vadd.f32 %v6281, %v6407
        %v6473 = vadd.f32 %v6282, %v6457
        %v6474 = vadd.f32 %v6283, %v6411
        %v6475 = vadd.f32 %v6284, %v6413
        %v6476 = vadd.f32 %v6285, %v6462
        %v6477 = vadd.f32 %v6286, %v6415
        %v6478 = vadd.f32 %v6287, %v6417
        %v6479 = vadd.f32 %v6288, %v6465
        %s6480 = scalar_lea.vmem %s4, 80
        %v6481 = vld [vmem:[%s6480] sm:$0xf]
        %v6482 = vld [vmem:[%s6480 + $0x4] sm:$0xf]
        %v6483 = vld [vmem:[%s6480 + $0x8] sm:$0xf]
        %v6484 = vld [vmem:[%s6480 + $0xc] sm:$0xf]
        %v6489 = vunpack.c.l.b16 %v6481
        %v6490 = vunpack.c.l.b16 %v6482
        %v6491 = vunpack.c.l.b16 %v6483
        %v6492 = vunpack.c.l.b16 %v6484
        %v6493 = vpack.c.b16 %v6490, %v6489
        %v6494 = vpack.c.b16 %v6492, %v6491
        %6495 = vrot.lane.b32.xlu0 %v5596, 102
        %v6496 = vpop.permute.xlu0 %6495
        %6497 = vrot.lane.b32.xlu0 %v5597, 102
        %v6498 = vpop.permute.xlu0 %6497
        %6499 = vrot.lane.b32.xlu0 %v5598, 102
        %v6500 = vpop.permute.xlu0 %6499
        %6501 = vrot.lane.b32.xlu0 %v5599, 102
        %v6502 = vpop.permute.xlu0 %6501
        %6503 = vrot.lane.b32.xlu0 %v5600, 102
        %v6504 = vpop.permute.xlu0 %6503
        %6505 = vrot.lane.b32.xlu0 %v5601, 102
        %v6506 = vpop.permute.xlu0 %6505
        %6507 = vrot.lane.b32.xlu0 %v5602, 102
        %v6508 = vpop.permute.xlu0 %6507
        %6509 = vrot.lane.b32.xlu0 %v5603, 102
        %v6510 = vpop.permute.xlu0 %6509
        %6511 = vrot.lane.b32.xlu0 %v5604, 102
        %v6512 = vpop.permute.xlu0 %6511
        %6513 = vrot.lane.b32.xlu0 %v5605, 102
        %v6514 = vpop.permute.xlu0 %6513
        %6515 = vrot.lane.b32.xlu0 %v5606, 102
        %v6516 = vpop.permute.xlu0 %6515
        %6517 = vrot.lane.b32.xlu0 %v5607, 102
        %v6518 = vpop.permute.xlu0 %6517
        %6519 = vrot.lane.b32.xlu0 %v5608, 102
        %v6520 = vpop.permute.xlu0 %6519
        %6521 = vrot.lane.b32.xlu0 %v5609, 102
        %v6522 = vpop.permute.xlu0 %6521
        %6523 = vrot.lane.b32.xlu0 %v5610, 102
        %v6524 = vpop.permute.xlu0 %6523
        %6525 = vrot.lane.b32.xlu0 %v5611, 102
        %v6526 = vpop.permute.xlu0 %6525
        %v6527 = vsel %vm1009, %v6496, %v6498
        %v6528 = vsel %vm1009, %v6498, %v6500
        %v6529 = vsel %vm1009, %v6500, %v6502
        %v6530 = vsel %vm1009, %v6504, %v6506
        %v6531 = vsel %vm1009, %v6506, %v6508
        %v6532 = vsel %vm1009, %v6508, %v6510
        %v6533 = vsel %vm1009, %v6512, %v6514
        %v6534 = vsel %vm1009, %v6514, %v6516
        %v6535 = vsel %vm1009, %v6516, %v6518
        %v6536 = vsel %vm1009, %v6520, %v6522
        %v6537 = vsel %vm1009, %v6522, %v6524
        %v6538 = vsel %vm1009, %v6524, %v6526
        %v6552 = vsel %vm5668, %v6493, 0
        %v6555 = vsel %vm5668, %v6494, 0
        %6557 = vmatprep.subr.bf16.mxu0 0
        %6558 = vmatpush1.bf16.msra.mxu0 0
        %6559 = vmatprep.subr.bf16.mxu0 0
        %6560 = vmatpush1.bf16.msra.mxu0 0
        %6561 = vmatprep.subr.bf16.mxu0 0
        %6562 = vmatpush1.bf16.msra.mxu0 0
        %6563 = vmatprep.subr.bf16.mxu0 0
        %6564 = vmatpush1.bf16.msra.mxu0 0
        %6565 = vmatprep.subr.bf16.mxu0 %v6537
        %6566 = vmatpush1.bf16.msra.mxu0 %v6536
        %6567 = vmatprep.subr.bf16.mxu0 %v6534
        %6568 = vmatpush1.bf16.msra.mxu0 %v6533
        %6569 = vmatprep.subr.bf16.mxu0 %v6531
        %6570 = vmatpush1.bf16.msra.mxu0 %v6530
        %6571 = vmatprep.subr.bf16.mxu0 %v6528
        %6572 = vmatpush1.bf16.msra.mxu0 %v6527
        %6573 = vmatprep.subr.bf16.mxu0 0
        %6574 = vmatpush2.bf16.msra.mxu0 0
        %6575 = vmatprep.subr.bf16.mxu0 0
        %6576 = vmatpush2.bf16.msra.mxu0 0
        %6577 = vmatprep.subr.bf16.mxu0 0
        %6578 = vmatpush2.bf16.msra.mxu0 0
        %6579 = vmatprep.subr.bf16.mxu0 0
        %6580 = vmatpush2.bf16.msra.mxu0 0
        %6581 = vmatprep.subr.bf16.mxu0 0
        %6582 = vmatpush2.bf16.msra.mxu0 0
        %6583 = vmatprep.subr.bf16.mxu0 0
        %6584 = vmatpush2.bf16.msra.mxu0 0
        %6585 = vmatprep.subr.bf16.mxu0 0
        %6586 = vmatpush2.bf16.msra.mxu0 0
        %6587 = vmatprep.subr.bf16.mxu0 0
        %6588 = vmatpush2.bf16.msra.mxu0 0
        %6589 = vmatprep.mubr.bf16.mxu0 0
        %6590 = vmatmul.mubr.bf16.gmra.mxu0 %v6552
        %v6591 = vpop.f32.mrf.mxu0
        %v6592 = vadd.f32 0.0, %v6591
        %v6593 = vpop.f32.mrf.mxu0
        %v6594 = vadd.f32 0.0, %v6593
        %v6595 = vpop.f32.mrf.mxu0
        %v6596 = vadd.f32 0.0, %v6595
        %v6597 = vpop.f32.mrf.mxu0
        %v6598 = vadd.f32 0.0, %v6597
        %6599 = vmatprep.mubr.bf16.mxu0 0
        %6600 = vmatmul.mubr.bf16.gmra.mxu0 %v6555
        %v6601 = vpop.f32.mrf.mxu0
        %v6602 = vadd.f32 0.0, %v6601
        %v6603 = vpop.f32.mrf.mxu0
        %v6604 = vadd.f32 0.0, %v6603
        %v6605 = vpop.f32.mrf.mxu0
        %v6606 = vadd.f32 0.0, %v6605
        %v6607 = vpop.f32.mrf.mxu0
        %v6608 = vadd.f32 0.0, %v6607
        %6609 = vdwg.mxu0
        %6610 = vmatprep.subr.bf16.mxu0 0
        %6611 = vmatpush1.bf16.msra.mxu0 0
        %6612 = vmatprep.subr.bf16.mxu0 0
        %6613 = vmatpush1.bf16.msra.mxu0 0
        %6614 = vmatprep.subr.bf16.mxu0 0
        %6615 = vmatpush1.bf16.msra.mxu0 0
        %6616 = vmatprep.subr.bf16.mxu0 0
        %6617 = vmatpush1.bf16.msra.mxu0 0
        %6618 = vmatprep.subr.bf16.mxu0 0
        %6619 = vmatpush1.bf16.msra.mxu0 %v6538
        %6620 = vmatprep.subr.bf16.mxu0 0
        %6621 = vmatpush1.bf16.msra.mxu0 %v6535
        %6622 = vmatprep.subr.bf16.mxu0 0
        %6623 = vmatpush1.bf16.msra.mxu0 %v6532
        %6624 = vmatprep.subr.bf16.mxu0 0
        %6625 = vmatpush1.bf16.msra.mxu0 %v6529
        %6626 = vmatprep.subr.bf16.mxu0 0
        %6627 = vmatpush2.bf16.msra.mxu0 0
        %6628 = vmatprep.subr.bf16.mxu0 0
        %6629 = vmatpush2.bf16.msra.mxu0 0
        %6630 = vmatprep.subr.bf16.mxu0 0
        %6631 = vmatpush2.bf16.msra.mxu0 0
        %6632 = vmatprep.subr.bf16.mxu0 0
        %6633 = vmatpush2.bf16.msra.mxu0 0
        %6634 = vmatprep.subr.bf16.mxu0 0
        %6635 = vmatpush2.bf16.msra.mxu0 0
        %6636 = vmatprep.subr.bf16.mxu0 0
        %6637 = vmatpush2.bf16.msra.mxu0 0
        %6638 = vmatprep.subr.bf16.mxu0 0
        %6639 = vmatpush2.bf16.msra.mxu0 0
        %6640 = vmatprep.subr.bf16.mxu0 0
        %6641 = vmatpush2.bf16.msra.mxu0 0
        %6642 = vmatprep.mubr.bf16.mxu0 0
        %6643 = vmatmul.mubr.bf16.gmra.mxu0 %v6552
        %v6644 = vpop.f32.mrf.mxu0
        %v6645 = vadd.f32 0.0, %v6644
        %v6646 = vpop.f32.mrf.mxu0
        %v6647 = vpop.f32.mrf.mxu0
        %v6648 = vadd.f32 0.0, %v6647
        %v6649 = vpop.f32.mrf.mxu0
        %6650 = vmatprep.mubr.bf16.mxu0 0
        %6651 = vmatmul.mubr.bf16.gmra.mxu0 %v6555
        %v6652 = vpop.f32.mrf.mxu0
        %v6653 = vadd.f32 0.0, %v6652
        %v6654 = vpop.f32.mrf.mxu0
        %v6655 = vpop.f32.mrf.mxu0
        %v6656 = vadd.f32 0.0, %v6655
        %v6657 = vpop.f32.mrf.mxu0
        %6658 = vdwg.mxu0
        %v6659 = vadd.f32 %v6468, %v6592
        %v6660 = vadd.f32 %v6469, %v6594
        %v6661 = vadd.f32 %v6470, %v6645
        %v6662 = vadd.f32 %v6471, %v6596
        %v6663 = vadd.f32 %v6472, %v6598
        %v6664 = vadd.f32 %v6473, %v6648
        %v6665 = vadd.f32 %v6474, %v6602
        %v6666 = vadd.f32 %v6475, %v6604
        %v6667 = vadd.f32 %v6476, %v6653
        %v6668 = vadd.f32 %v6477, %v6606
        %v6669 = vadd.f32 %v6478, %v6608
        %v6670 = vadd.f32 %v6479, %v6656
        %s6671 = scalar_lea.vmem %s4, 96
        %v6672 = vld [vmem:[%s6671] sm:$0xf]
        %v6673 = vld [vmem:[%s6671 + $0x4] sm:$0xf]
        %v6674 = vld [vmem:[%s6671 + $0x8] sm:$0xf]
        %v6675 = vld [vmem:[%s6671 + $0xc] sm:$0xf]
        %v6680 = vunpack.c.l.b16 %v6672
        %v6681 = vunpack.c.l.b16 %v6673
        %v6682 = vunpack.c.l.b16 %v6674
        %v6683 = vunpack.c.l.b16 %v6675
        %v6684 = vpack.c.b16 %v6681, %v6680
        %v6685 = vpack.c.b16 %v6683, %v6682
        %6686 = vrot.lane.b32.xlu0 %v5596, 80
        %v6687 = vpop.permute.xlu0 %6686
        %6688 = vrot.lane.b32.xlu0 %v5597, 80
        %v6689 = vpop.permute.xlu0 %6688
        %6690 = vrot.lane.b32.xlu0 %v5598, 80
        %v6691 = vpop.permute.xlu0 %6690
        %6692 = vrot.lane.b32.xlu0 %v5599, 80
        %v6693 = vpop.permute.xlu0 %6692
        %6694 = vrot.lane.b32.xlu0 %v5600, 80
        %v6695 = vpop.permute.xlu0 %6694
        %6696 = vrot.lane.b32.xlu0 %v5601, 80
        %v6697 = vpop.permute.xlu0 %6696
        %6698 = vrot.lane.b32.xlu0 %v5602, 80
        %v6699 = vpop.permute.xlu0 %6698
        %6700 = vrot.lane.b32.xlu0 %v5603, 80
        %v6701 = vpop.permute.xlu0 %6700
        %6702 = vrot.lane.b32.xlu0 %v5604, 80
        %v6703 = vpop.permute.xlu0 %6702
        %6704 = vrot.lane.b32.xlu0 %v5605, 80
        %v6705 = vpop.permute.xlu0 %6704
        %6706 = vrot.lane.b32.xlu0 %v5606, 80
        %v6707 = vpop.permute.xlu0 %6706
        %6708 = vrot.lane.b32.xlu0 %v5607, 80
        %v6709 = vpop.permute.xlu0 %6708
        %6710 = vrot.lane.b32.xlu0 %v5608, 80
        %v6711 = vpop.permute.xlu0 %6710
        %6712 = vrot.lane.b32.xlu0 %v5609, 80
        %v6713 = vpop.permute.xlu0 %6712
        %6714 = vrot.lane.b32.xlu0 %v5610, 80
        %v6715 = vpop.permute.xlu0 %6714
        %6716 = vrot.lane.b32.xlu0 %v5611, 80
        %v6717 = vpop.permute.xlu0 %6716
        %v6718 = vsel %vm1131, %v6687, %v6689
        %v6719 = vsel %vm1131, %v6689, %v6691
        %v6720 = vsel %vm1131, %v6691, %v6693
        %v6721 = vsel %vm1131, %v6695, %v6697
        %v6722 = vsel %vm1131, %v6697, %v6699
        %v6723 = vsel %vm1131, %v6699, %v6701
        %v6724 = vsel %vm1131, %v6703, %v6705
        %v6725 = vsel %vm1131, %v6705, %v6707
        %v6726 = vsel %vm1131, %v6707, %v6709
        %v6727 = vsel %vm1131, %v6711, %v6713
        %v6728 = vsel %vm1131, %v6713, %v6715
        %v6729 = vsel %vm1131, %v6715, %v6717
        %v6743 = vsel %vm5668, %v6684, 0
        %v6746 = vsel %vm5668, %v6685, 0
        %6748 = vmatprep.subr.bf16.mxu0 0
        %6749 = vmatpush1.bf16.msra.mxu0 0
        %6750 = vmatprep.subr.bf16.mxu0 0
        %6751 = vmatpush1.bf16.msra.mxu0 0
        %6752 = vmatprep.subr.bf16.mxu0 0
        %6753 = vmatpush1.bf16.msra.mxu0 0
        %6754 = vmatprep.subr.bf16.mxu0 0
        %6755 = vmatpush1.bf16.msra.mxu0 0
        %6756 = vmatprep.subr.bf16.mxu0 %v6728
        %6757 = vmatpush1.bf16.msra.mxu0 %v6727
        %6758 = vmatprep.subr.bf16.mxu0 %v6725
        %6759 = vmatpush1.bf16.msra.mxu0 %v6724
        %6760 = vmatprep.subr.bf16.mxu0 %v6722
        %6761 = vmatpush1.bf16.msra.mxu0 %v6721
        %6762 = vmatprep.subr.bf16.mxu0 %v6719
        %6763 = vmatpush1.bf16.msra.mxu0 %v6718
        %6764 = vmatprep.subr.bf16.mxu0 0
        %6765 = vmatpush2.bf16.msra.mxu0 0
        %6766 = vmatprep.subr.bf16.mxu0 0
        %6767 = vmatpush2.bf16.msra.mxu0 0
        %6768 = vmatprep.subr.bf16.mxu0 0
        %6769 = vmatpush2.bf16.msra.mxu0 0
        %6770 = vmatprep.subr.bf16.mxu0 0
        %6771 = vmatpush2.bf16.msra.mxu0 0
        %6772 = vmatprep.subr.bf16.mxu0 0
        %6773 = vmatpush2.bf16.msra.mxu0 0
        %6774 = vmatprep.subr.bf16.mxu0 0
        %6775 = vmatpush2.bf16.msra.mxu0 0
        %6776 = vmatprep.subr.bf16.mxu0 0
        %6777 = vmatpush2.bf16.msra.mxu0 0
        %6778 = vmatprep.subr.bf16.mxu0 0
        %6779 = vmatpush2.bf16.msra.mxu0 0
        %6780 = vmatprep.mubr.bf16.mxu0 0
        %6781 = vmatmul.mubr.bf16.gmra.mxu0 %v6743
        %v6782 = vpop.f32.mrf.mxu0
        %v6783 = vadd.f32 0.0, %v6782
        %v6784 = vpop.f32.mrf.mxu0
        %v6785 = vadd.f32 0.0, %v6784
        %v6786 = vpop.f32.mrf.mxu0
        %v6787 = vadd.f32 0.0, %v6786
        %v6788 = vpop.f32.mrf.mxu0
        %v6789 = vadd.f32 0.0, %v6788
        %6790 = vmatprep.mubr.bf16.mxu0 0
        %6791 = vmatmul.mubr.bf16.gmra.mxu0 %v6746
        %v6792 = vpop.f32.mrf.mxu0
        %v6793 = vadd.f32 0.0, %v6792
        %v6794 = vpop.f32.mrf.mxu0
        %v6795 = vadd.f32 0.0, %v6794
        %v6796 = vpop.f32.mrf.mxu0
        %v6797 = vadd.f32 0.0, %v6796
        %v6798 = vpop.f32.mrf.mxu0
        %v6799 = vadd.f32 0.0, %v6798
        %6800 = vdwg.mxu0
        %6801 = vmatprep.subr.bf16.mxu0 0
        %6802 = vmatpush1.bf16.msra.mxu0 0
        %6803 = vmatprep.subr.bf16.mxu0 0
        %6804 = vmatpush1.bf16.msra.mxu0 0
        %6805 = vmatprep.subr.bf16.mxu0 0
        %6806 = vmatpush1.bf16.msra.mxu0 0
        %6807 = vmatprep.subr.bf16.mxu0 0
        %6808 = vmatpush1.bf16.msra.mxu0 0
        %6809 = vmatprep.subr.bf16.mxu0 0
        %6810 = vmatpush1.bf16.msra.mxu0 %v6729
        %6811 = vmatprep.subr.bf16.mxu0 0
        %6812 = vmatpush1.bf16.msra.mxu0 %v6726
        %6813 = vmatprep.subr.bf16.mxu0 0
        %6814 = vmatpush1.bf16.msra.mxu0 %v6723
        %6815 = vmatprep.subr.bf16.mxu0 0
        %6816 = vmatpush1.bf16.msra.mxu0 %v6720
        %6817 = vmatprep.subr.bf16.mxu0 0
        %6818 = vmatpush2.bf16.msra.mxu0 0
        %6819 = vmatprep.subr.bf16.mxu0 0
        %6820 = vmatpush2.bf16.msra.mxu0 0
        %6821 = vmatprep.subr.bf16.mxu0 0
        %6822 = vmatpush2.bf16.msra.mxu0 0
        %6823 = vmatprep.subr.bf16.mxu0 0
        %6824 = vmatpush2.bf16.msra.mxu0 0
        %6825 = vmatprep.subr.bf16.mxu0 0
        %6826 = vmatpush2.bf16.msra.mxu0 0
        %6827 = vmatprep.subr.bf16.mxu0 0
        %6828 = vmatpush2.bf16.msra.mxu0 0
        %6829 = vmatprep.subr.bf16.mxu0 0
        %6830 = vmatpush2.bf16.msra.mxu0 0
        %6831 = vmatprep.subr.bf16.mxu0 0
        %6832 = vmatpush2.bf16.msra.mxu0 0
        %6833 = vmatprep.mubr.bf16.mxu0 0
        %6834 = vmatmul.mubr.bf16.gmra.mxu0 %v6743
        %v6835 = vpop.f32.mrf.mxu0
        %v6836 = vadd.f32 0.0, %v6835
        %v6837 = vpop.f32.mrf.mxu0
        %v6838 = vpop.f32.mrf.mxu0
        %v6839 = vadd.f32 0.0, %v6838
        %v6840 = vpop.f32.mrf.mxu0
        %6841 = vmatprep.mubr.bf16.mxu0 0
        %6842 = vmatmul.mubr.bf16.gmra.mxu0 %v6746
        %v6843 = vpop.f32.mrf.mxu0
        %v6844 = vadd.f32 0.0, %v6843
        %v6845 = vpop.f32.mrf.mxu0
        %v6846 = vpop.f32.mrf.mxu0
        %v6847 = vadd.f32 0.0, %v6846
        %v6848 = vpop.f32.mrf.mxu0
        %6849 = vdwg.mxu0
        %v6850 = vadd.f32 %v6659, %v6783
        %v6851 = vadd.f32 %v6660, %v6785
        %v6852 = vadd.f32 %v6661, %v6836
        %v6853 = vadd.f32 %v6662, %v6787
        %v6854 = vadd.f32 %v6663, %v6789
        %v6855 = vadd.f32 %v6664, %v6839
        %v6856 = vadd.f32 %v6665, %v6793
        %v6857 = vadd.f32 %v6666, %v6795
        %v6858 = vadd.f32 %v6667, %v6844
        %v6859 = vadd.f32 %v6668, %v6797
        %v6860 = vadd.f32 %v6669, %v6799
        %v6861 = vadd.f32 %v6670, %v6847
        %s6862 = scalar_lea.vmem %s4, 112
        %v6863 = vld [vmem:[%s6862] sm:$0xf]
        %v6864 = vld [vmem:[%s6862 + $0x4] sm:$0xf]
        %v6865 = vld [vmem:[%s6862 + $0x8] sm:$0xf]
        %v6866 = vld [vmem:[%s6862 + $0xc] sm:$0xf]
        %v6871 = vunpack.c.l.b16 %v6863
        %v6872 = vunpack.c.l.b16 %v6864
        %v6873 = vunpack.c.l.b16 %v6865
        %v6874 = vunpack.c.l.b16 %v6866
        %v6875 = vpack.c.b16 %v6872, %v6871
        %v6876 = vpack.c.b16 %v6874, %v6873
        %6877 = vrot.lane.b32.xlu0 %v5596, 79
        %v6878 = vpop.permute.xlu0 %6877
        %6879 = vrot.lane.b32.xlu0 %v5597, 79
        %v6880 = vpop.permute.xlu0 %6879
        %6881 = vrot.lane.b32.xlu0 %v5598, 79
        %v6882 = vpop.permute.xlu0 %6881
        %6883 = vrot.lane.b32.xlu0 %v5599, 79
        %v6884 = vpop.permute.xlu0 %6883
        %6885 = vrot.lane.b32.xlu0 %v5600, 79
        %v6886 = vpop.permute.xlu0 %6885
        %6887 = vrot.lane.b32.xlu0 %v5601, 79
        %v6888 = vpop.permute.xlu0 %6887
        %6889 = vrot.lane.b32.xlu0 %v5602, 79
        %v6890 = vpop.permute.xlu0 %6889
        %6891 = vrot.lane.b32.xlu0 %v5603, 79
        %v6892 = vpop.permute.xlu0 %6891
        %6893 = vrot.lane.b32.xlu0 %v5604, 79
        %v6894 = vpop.permute.xlu0 %6893
        %6895 = vrot.lane.b32.xlu0 %v5605, 79
        %v6896 = vpop.permute.xlu0 %6895
        %6897 = vrot.lane.b32.xlu0 %v5606, 79
        %v6898 = vpop.permute.xlu0 %6897
        %6899 = vrot.lane.b32.xlu0 %v5607, 79
        %v6900 = vpop.permute.xlu0 %6899
        %6901 = vrot.lane.b32.xlu0 %v5608, 79
        %v6902 = vpop.permute.xlu0 %6901
        %6903 = vrot.lane.b32.xlu0 %v5609, 79
        %v6904 = vpop.permute.xlu0 %6903
        %6905 = vrot.lane.b32.xlu0 %v5610, 79
        %v6906 = vpop.permute.xlu0 %6905
        %6907 = vrot.lane.b32.xlu0 %v5611, 79
        %v6908 = vpop.permute.xlu0 %6907
        %v6909 = vsel %vm1253, %v6878, %v6880
        %v6910 = vsel %vm1253, %v6880, %v6882
        %v6911 = vsel %vm1253, %v6882, %v6884
        %v6912 = vsel %vm1253, %v6886, %v6888
        %v6913 = vsel %vm1253, %v6888, %v6890
        %v6914 = vsel %vm1253, %v6890, %v6892
        %v6915 = vsel %vm1253, %v6894, %v6896
        %v6916 = vsel %vm1253, %v6896, %v6898
        %v6917 = vsel %vm1253, %v6898, %v6900
        %v6918 = vsel %vm1253, %v6902, %v6904
        %v6919 = vsel %vm1253, %v6904, %v6906
        %v6920 = vsel %vm1253, %v6906, %v6908
        %v6934 = vsel %vm5668, %v6875, 0
        %v6937 = vsel %vm5668, %v6876, 0
        %6939 = vmatprep.subr.bf16.mxu0 0
        %6940 = vmatpush1.bf16.msra.mxu0 0
        %6941 = vmatprep.subr.bf16.mxu0 0
        %6942 = vmatpush1.bf16.msra.mxu0 0
        %6943 = vmatprep.subr.bf16.mxu0 0
        %6944 = vmatpush1.bf16.msra.mxu0 0
        %6945 = vmatprep.subr.bf16.mxu0 0
        %6946 = vmatpush1.bf16.msra.mxu0 0
        %6947 = vmatprep.subr.bf16.mxu0 %v6919
        %6948 = vmatpush1.bf16.msra.mxu0 %v6918
        %6949 = vmatprep.subr.bf16.mxu0 %v6916
        %6950 = vmatpush1.bf16.msra.mxu0 %v6915
        %6951 = vmatprep.subr.bf16.mxu0 %v6913
        %6952 = vmatpush1.bf16.msra.mxu0 %v6912
        %6953 = vmatprep.subr.bf16.mxu0 %v6910
        %6954 = vmatpush1.bf16.msra.mxu0 %v6909
        %6955 = vmatprep.subr.bf16.mxu0 0
        %6956 = vmatpush2.bf16.msra.mxu0 0
        %6957 = vmatprep.subr.bf16.mxu0 0
        %6958 = vmatpush2.bf16.msra.mxu0 0
        %6959 = vmatprep.subr.bf16.mxu0 0
        %6960 = vmatpush2.bf16.msra.mxu0 0
        %6961 = vmatprep.subr.bf16.mxu0 0
        %6962 = vmatpush2.bf16.msra.mxu0 0
        %6963 = vmatprep.subr.bf16.mxu0 0
        %6964 = vmatpush2.bf16.msra.mxu0 0
        %6965 = vmatprep.subr.bf16.mxu0 0
        %6966 = vmatpush2.bf16.msra.mxu0 0
        %6967 = vmatprep.subr.bf16.mxu0 0
        %6968 = vmatpush2.bf16.msra.mxu0 0
        %6969 = vmatprep.subr.bf16.mxu0 0
        %6970 = vmatpush2.bf16.msra.mxu0 0
        %6971 = vmatprep.mubr.bf16.mxu0 0
        %6972 = vmatmul.mubr.bf16.gmra.mxu0 %v6934
        %v6973 = vpop.f32.mrf.mxu0
        %v6974 = vadd.f32 0.0, %v6973
        %v6975 = vpop.f32.mrf.mxu0
        %v6976 = vadd.f32 0.0, %v6975
        %v6977 = vpop.f32.mrf.mxu0
        %v6978 = vadd.f32 0.0, %v6977
        %v6979 = vpop.f32.mrf.mxu0
        %v6980 = vadd.f32 0.0, %v6979
        %6981 = vmatprep.mubr.bf16.mxu0 0
        %6982 = vmatmul.mubr.bf16.gmra.mxu0 %v6937
        %v6983 = vpop.f32.mrf.mxu0
        %v6984 = vadd.f32 0.0, %v6983
        %v6985 = vpop.f32.mrf.mxu0
        %v6986 = vadd.f32 0.0, %v6985
        %v6987 = vpop.f32.mrf.mxu0
        %v6988 = vadd.f32 0.0, %v6987
        %v6989 = vpop.f32.mrf.mxu0
        %v6990 = vadd.f32 0.0, %v6989
        %6991 = vdwg.mxu0
        %6992 = vmatprep.subr.bf16.mxu0 0
        %6993 = vmatpush1.bf16.msra.mxu0 0
        %6994 = vmatprep.subr.bf16.mxu0 0
        %6995 = vmatpush1.bf16.msra.mxu0 0
        %6996 = vmatprep.subr.bf16.mxu0 0
        %6997 = vmatpush1.bf16.msra.mxu0 0
        %6998 = vmatprep.subr.bf16.mxu0 0
        %6999 = vmatpush1.bf16.msra.mxu0 0
        %7000 = vmatprep.subr.bf16.mxu0 0
        %7001 = vmatpush1.bf16.msra.mxu0 %v6920
        %7002 = vmatprep.subr.bf16.mxu0 0
        %7003 = vmatpush1.bf16.msra.mxu0 %v6917
        %7004 = vmatprep.subr.bf16.mxu0 0
        %7005 = vmatpush1.bf16.msra.mxu0 %v6914
        %7006 = vmatprep.subr.bf16.mxu0 0
        %7007 = vmatpush1.bf16.msra.mxu0 %v6911
        %7008 = vmatprep.subr.bf16.mxu0 0
        %7009 = vmatpush2.bf16.msra.mxu0 0
        %7010 = vmatprep.subr.bf16.mxu0 0
        %7011 = vmatpush2.bf16.msra.mxu0 0
        %7012 = vmatprep.subr.bf16.mxu0 0
        %7013 = vmatpush2.bf16.msra.mxu0 0
        %7014 = vmatprep.subr.bf16.mxu0 0
        %7015 = vmatpush2.bf16.msra.mxu0 0
        %7016 = vmatprep.subr.bf16.mxu0 0
        %7017 = vmatpush2.bf16.msra.mxu0 0
        %7018 = vmatprep.subr.bf16.mxu0 0
        %7019 = vmatpush2.bf16.msra.mxu0 0
        %7020 = vmatprep.subr.bf16.mxu0 0
        %7021 = vmatpush2.bf16.msra.mxu0 0
        %7022 = vmatprep.subr.bf16.mxu0 0
        %7023 = vmatpush2.bf16.msra.mxu0 0
        %7024 = vmatprep.mubr.bf16.mxu0 0
        %7025 = vmatmul.mubr.bf16.gmra.mxu0 %v6934
        %v7026 = vpop.f32.mrf.mxu0
        %v7027 = vadd.f32 0.0, %v7026
        %v7028 = vpop.f32.mrf.mxu0
        %v7029 = vpop.f32.mrf.mxu0
        %v7030 = vadd.f32 0.0, %v7029
        %v7031 = vpop.f32.mrf.mxu0
        %7032 = vmatprep.mubr.bf16.mxu0 0
        %7033 = vmatmul.mubr.bf16.gmra.mxu0 %v6937
        %v7034 = vpop.f32.mrf.mxu0
        %v7035 = vadd.f32 0.0, %v7034
        %v7036 = vpop.f32.mrf.mxu0
        %v7037 = vpop.f32.mrf.mxu0
        %v7038 = vadd.f32 0.0, %v7037
        %v7039 = vpop.f32.mrf.mxu0
        %7040 = vdwg.mxu0
        %v7041 = vadd.f32 %v6850, %v6974
        %v7042 = vadd.f32 %v6851, %v6976
        %v7043 = vadd.f32 %v6852, %v7027
        %v7044 = vadd.f32 %v6853, %v6978
        %v7045 = vadd.f32 %v6854, %v6980
        %v7046 = vadd.f32 %v6855, %v7030
        %v7047 = vadd.f32 %v6856, %v6984
        %v7048 = vadd.f32 %v6857, %v6986
        %v7049 = vadd.f32 %v6858, %v7035
        %v7050 = vadd.f32 %v6859, %v6988
        %v7051 = vadd.f32 %v6860, %v6990
        %v7052 = vadd.f32 %v6861, %v7038
        %s7053 = scalar_lea.vmem %s4, 128
        %v7054 = vld [vmem:[%s7053] sm:$0xf]
        %v7055 = vld [vmem:[%s7053 + $0x4] sm:$0xf]
        %v7056 = vld [vmem:[%s7053 + $0x8] sm:$0xf]
        %v7057 = vld [vmem:[%s7053 + $0xc] sm:$0xf]
        %v7062 = vunpack.c.l.b16 %v7054
        %v7063 = vunpack.c.l.b16 %v7055
        %v7064 = vunpack.c.l.b16 %v7056
        %v7065 = vunpack.c.l.b16 %v7057
        %v7066 = vpack.c.b16 %v7063, %v7062
        %v7067 = vpack.c.b16 %v7065, %v7064
        %7068 = vrot.lane.b32.xlu0 %v5596, 78
        %v7069 = vpop.permute.xlu0 %7068
        %7070 = vrot.lane.b32.xlu0 %v5597, 78
        %v7071 = vpop.permute.xlu0 %7070
        %7072 = vrot.lane.b32.xlu0 %v5598, 78
        %v7073 = vpop.permute.xlu0 %7072
        %7074 = vrot.lane.b32.xlu0 %v5599, 78
        %v7075 = vpop.permute.xlu0 %7074
        %7076 = vrot.lane.b32.xlu0 %v5600, 78
        %v7077 = vpop.permute.xlu0 %7076
        %7078 = vrot.lane.b32.xlu0 %v5601, 78
        %v7079 = vpop.permute.xlu0 %7078
        %7080 = vrot.lane.b32.xlu0 %v5602, 78
        %v7081 = vpop.permute.xlu0 %7080
        %7082 = vrot.lane.b32.xlu0 %v5603, 78
        %v7083 = vpop.permute.xlu0 %7082
        %7084 = vrot.lane.b32.xlu0 %v5604, 78
        %v7085 = vpop.permute.xlu0 %7084
        %7086 = vrot.lane.b32.xlu0 %v5605, 78
        %v7087 = vpop.permute.xlu0 %7086
        %7088 = vrot.lane.b32.xlu0 %v5606, 78
        %v7089 = vpop.permute.xlu0 %7088
        %7090 = vrot.lane.b32.xlu0 %v5607, 78
        %v7091 = vpop.permute.xlu0 %7090
        %7092 = vrot.lane.b32.xlu0 %v5608, 78
        %v7093 = vpop.permute.xlu0 %7092
        %7094 = vrot.lane.b32.xlu0 %v5609, 78
        %v7095 = vpop.permute.xlu0 %7094
        %7096 = vrot.lane.b32.xlu0 %v5610, 78
        %v7097 = vpop.permute.xlu0 %7096
        %7098 = vrot.lane.b32.xlu0 %v5611, 78
        %v7099 = vpop.permute.xlu0 %7098
        %v7100 = vsel %vm1375, %v7069, %v7071
        %v7101 = vsel %vm1375, %v7071, %v7073
        %v7102 = vsel %vm1375, %v7073, %v7075
        %v7103 = vsel %vm1375, %v7077, %v7079
        %v7104 = vsel %vm1375, %v7079, %v7081
        %v7105 = vsel %vm1375, %v7081, %v7083
        %v7106 = vsel %vm1375, %v7085, %v7087
        %v7107 = vsel %vm1375, %v7087, %v7089
        %v7108 = vsel %vm1375, %v7089, %v7091
        %v7109 = vsel %vm1375, %v7093, %v7095
        %v7110 = vsel %vm1375, %v7095, %v7097
        %v7111 = vsel %vm1375, %v7097, %v7099
        %v7125 = vsel %vm5668, %v7066, 0
        %v7128 = vsel %vm5668, %v7067, 0
        %7130 = vmatprep.subr.bf16.mxu0 0
        %7131 = vmatpush1.bf16.msra.mxu0 0
        %7132 = vmatprep.subr.bf16.mxu0 0
        %7133 = vmatpush1.bf16.msra.mxu0 0
        %7134 = vmatprep.subr.bf16.mxu0 0
        %7135 = vmatpush1.bf16.msra.mxu0 0
        %7136 = vmatprep.subr.bf16.mxu0 0
        %7137 = vmatpush1.bf16.msra.mxu0 0
        %7138 = vmatprep.subr.bf16.mxu0 %v7110
        %7139 = vmatpush1.bf16.msra.mxu0 %v7109
        %7140 = vmatprep.subr.bf16.mxu0 %v7107
        %7141 = vmatpush1.bf16.msra.mxu0 %v7106
        %7142 = vmatprep.subr.bf16.mxu0 %v7104
        %7143 = vmatpush1.bf16.msra.mxu0 %v7103
        %7144 = vmatprep.subr.bf16.mxu0 %v7101
        %7145 = vmatpush1.bf16.msra.mxu0 %v7100
        %7146 = vmatprep.subr.bf16.mxu0 0
        %7147 = vmatpush2.bf16.msra.mxu0 0
        %7148 = vmatprep.subr.bf16.mxu0 0
        %7149 = vmatpush2.bf16.msra.mxu0 0
        %7150 = vmatprep.subr.bf16.mxu0 0
        %7151 = vmatpush2.bf16.msra.mxu0 0
        %7152 = vmatprep.subr.bf16.mxu0 0
        %7153 = vmatpush2.bf16.msra.mxu0 0
        %7154 = vmatprep.subr.bf16.mxu0 0
        %7155 = vmatpush2.bf16.msra.mxu0 0
        %7156 = vmatprep.subr.bf16.mxu0 0
        %7157 = vmatpush2.bf16.msra.mxu0 0
        %7158 = vmatprep.subr.bf16.mxu0 0
        %7159 = vmatpush2.bf16.msra.mxu0 0
        %7160 = vmatprep.subr.bf16.mxu0 0
        %7161 = vmatpush2.bf16.msra.mxu0 0
        %7162 = vmatprep.mubr.bf16.mxu0 0
        %7163 = vmatmul.mubr.bf16.gmra.mxu0 %v7125
        %v7164 = vpop.f32.mrf.mxu0
        %v7165 = vadd.f32 0.0, %v7164
        %v7166 = vpop.f32.mrf.mxu0
        %v7167 = vadd.f32 0.0, %v7166
        %v7168 = vpop.f32.mrf.mxu0
        %v7169 = vadd.f32 0.0, %v7168
        %v7170 = vpop.f32.mrf.mxu0
        %v7171 = vadd.f32 0.0, %v7170
        %7172 = vmatprep.mubr.bf16.mxu0 0
        %7173 = vmatmul.mubr.bf16.gmra.mxu0 %v7128
        %v7174 = vpop.f32.mrf.mxu0
        %v7175 = vadd.f32 0.0, %v7174
        %v7176 = vpop.f32.mrf.mxu0
        %v7177 = vadd.f32 0.0, %v7176
        %v7178 = vpop.f32.mrf.mxu0
        %v7179 = vadd.f32 0.0, %v7178
        %v7180 = vpop.f32.mrf.mxu0
        %v7181 = vadd.f32 0.0, %v7180
        %7182 = vdwg.mxu0
        %7183 = vmatprep.subr.bf16.mxu0 0
        %7184 = vmatpush1.bf16.msra.mxu0 0
        %7185 = vmatprep.subr.bf16.mxu0 0
        %7186 = vmatpush1.bf16.msra.mxu0 0
        %7187 = vmatprep.subr.bf16.mxu0 0
        %7188 = vmatpush1.bf16.msra.mxu0 0
        %7189 = vmatprep.subr.bf16.mxu0 0
        %7190 = vmatpush1.bf16.msra.mxu0 0
        %7191 = vmatprep.subr.bf16.mxu0 0
        %7192 = vmatpush1.bf16.msra.mxu0 %v7111
        %7193 = vmatprep.subr.bf16.mxu0 0
        %7194 = vmatpush1.bf16.msra.mxu0 %v7108
        %7195 = vmatprep.subr.bf16.mxu0 0
        %7196 = vmatpush1.bf16.msra.mxu0 %v7105
        %7197 = vmatprep.subr.bf16.mxu0 0
        %7198 = vmatpush1.bf16.msra.mxu0 %v7102
        %7199 = vmatprep.subr.bf16.mxu0 0
        %7200 = vmatpush2.bf16.msra.mxu0 0
        %7201 = vmatprep.subr.bf16.mxu0 0
        %7202 = vmatpush2.bf16.msra.mxu0 0
        %7203 = vmatprep.subr.bf16.mxu0 0
        %7204 = vmatpush2.bf16.msra.mxu0 0
        %7205 = vmatprep.subr.bf16.mxu0 0
        %7206 = vmatpush2.bf16.msra.mxu0 0
        %7207 = vmatprep.subr.bf16.mxu0 0
        %7208 = vmatpush2.bf16.msra.mxu0 0
        %7209 = vmatprep.subr.bf16.mxu0 0
        %7210 = vmatpush2.bf16.msra.mxu0 0
        %7211 = vmatprep.subr.bf16.mxu0 0
        %7212 = vmatpush2.bf16.msra.mxu0 0
        %7213 = vmatprep.subr.bf16.mxu0 0
        %7214 = vmatpush2.bf16.msra.mxu0 0
        %7215 = vmatprep.mubr.bf16.mxu0 0
        %7216 = vmatmul.mubr.bf16.gmra.mxu0 %v7125
        %v7217 = vpop.f32.mrf.mxu0
        %v7218 = vadd.f32 0.0, %v7217
        %v7219 = vpop.f32.mrf.mxu0
        %v7220 = vpop.f32.mrf.mxu0
        %v7221 = vadd.f32 0.0, %v7220
        %v7222 = vpop.f32.mrf.mxu0
        %7223 = vmatprep.mubr.bf16.mxu0 0
        %7224 = vmatmul.mubr.bf16.gmra.mxu0 %v7128
        %v7225 = vpop.f32.mrf.mxu0
        %v7226 = vadd.f32 0.0, %v7225
        %v7227 = vpop.f32.mrf.mxu0
        %v7228 = vpop.f32.mrf.mxu0
        %v7229 = vadd.f32 0.0, %v7228
        %v7230 = vpop.f32.mrf.mxu0
        %7231 = vdwg.mxu0
        %v7232 = vadd.f32 %v7041, %v7165
        %v7233 = vadd.f32 %v7042, %v7167
        %v7234 = vadd.f32 %v7043, %v7218
        %v7235 = vadd.f32 %v7044, %v7169
        %v7236 = vadd.f32 %v7045, %v7171
        %v7237 = vadd.f32 %v7046, %v7221
        %v7238 = vadd.f32 %v7047, %v7175
        %v7239 = vadd.f32 %v7048, %v7177
        %v7240 = vadd.f32 %v7049, %v7226
        %v7241 = vadd.f32 %v7050, %v7179
        %v7242 = vadd.f32 %v7051, %v7181
        %v7243 = vadd.f32 %v7052, %v7229
        %s7244 = scalar_lea.vmem %s7, 192
        %v7245 = vld [vmem:[%s7244] sm:$0xff]
        %v7246 = vld [vmem:[%s7244 + $0x8] sm:$0xff]
        %v7247 = vld [vmem:[%s7244 + $0x10] sm:$0xff]
        %v7248 = vld [vmem:[%s7244 + $0x18] sm:$0xff]
        %7250 = vset.pattern.permute.xlu0 0
        %7251 = vperm.xlu0 %7250, %v7245
        %v7252 = vpop.permute.xlu0 %7251
        %7255 = vset.pattern.permute.xlu0 0
        %7256 = vperm.xlu0 %7255, %v7246
        %v7257 = vpop.permute.xlu0 %7256
        %7260 = vset.pattern.permute.xlu0 0
        %7261 = vperm.xlu0 %7260, %v7247
        %v7262 = vpop.permute.xlu0 %7261
        %7265 = vset.pattern.permute.xlu0 0
        %7266 = vperm.xlu0 %7265, %v7248
        %v7267 = vpop.permute.xlu0 %7266
        %v7269 = vmul.f32 %v7232, %v7252
        %v7270 = vmul.f32 %v7233, %v7252
        %v7271 = vmul.f32 %v7234, %v7252
        %v7272 = vmul.f32 %v7235, %v7257
        %v7273 = vmul.f32 %v7236, %v7257
        %v7274 = vmul.f32 %v7237, %v7257
        %v7275 = vmul.f32 %v7238, %v7262
        %v7276 = vmul.f32 %v7239, %v7262
        %v7277 = vmul.f32 %v7240, %v7262
        %v7278 = vmul.f32 %v7241, %v7267
        %v7279 = vmul.f32 %v7242, %v7267
        %v7280 = vmul.f32 %v7243, %v7267
        %s7281 = scalar_lea.vmem %s8, 192
        %v7282 = vld [vmem:[%s7281] sm:$0xff]
        %v7283 = vld [vmem:[%s7281 + $0x8] sm:$0xff]
        %v7284 = vld [vmem:[%s7281 + $0x10] sm:$0xff]
        %v7285 = vld [vmem:[%s7281 + $0x18] sm:$0xff]
        %7287 = vset.pattern.permute.xlu0 0
        %7288 = vperm.xlu0 %7287, %v7282
        %v7289 = vpop.permute.xlu0 %7288
        %7292 = vset.pattern.permute.xlu0 0
        %7293 = vperm.xlu0 %7292, %v7283
        %v7294 = vpop.permute.xlu0 %7293
        %7297 = vset.pattern.permute.xlu0 0
        %7298 = vperm.xlu0 %7297, %v7284
        %v7299 = vpop.permute.xlu0 %7298
        %7302 = vset.pattern.permute.xlu0 0
        %7303 = vperm.xlu0 %7302, %v7285
        %v7304 = vpop.permute.xlu0 %7303
        %v7306 = vadd.f32 %v7269, %v7289
        %v7307 = vadd.f32 %v7270, %v7289
        %v7308 = vadd.f32 %v7271, %v7289
        %v7309 = vadd.f32 %v7272, %v7294
        %v7310 = vadd.f32 %v7273, %v7294
        %v7311 = vadd.f32 %v7274, %v7294
        %v7312 = vadd.f32 %v7275, %v7299
        %v7313 = vadd.f32 %v7276, %v7299
        %v7314 = vadd.f32 %v7277, %v7299
        %v7315 = vadd.f32 %v7278, %v7304
        %v7316 = vadd.f32 %v7279, %v7304
        %v7317 = vadd.f32 %v7280, %v7304
        %v7318 = vmax.f32 %v7306, 0.0
        %v7319 = vmax.f32 %v7307, 0.0
        %v7320 = vmax.f32 %v7308, 0.0
        %v7321 = vmax.f32 %v7309, 0.0
        %v7322 = vmax.f32 %v7310, 0.0
        %v7323 = vmax.f32 %v7311, 0.0
        %v7324 = vmax.f32 %v7312, 0.0
        %v7325 = vmax.f32 %v7313, 0.0
        %v7326 = vmax.f32 %v7314, 0.0
        %v7327 = vmax.f32 %v7315, 0.0
        %v7328 = vmax.f32 %v7316, 0.0
        %v7329 = vmax.f32 %v7317, 0.0
        %v7330 = vmul.f32 %v7318, %v1527
        %v7331 = vmul.f32 %v7319, %v1531
        %v7332 = vmul.f32 %v7320, %v1535
        %v7333 = vmul.f32 %v7321, %v1527
        %v7334 = vmul.f32 %v7322, %v1531
        %v7335 = vmul.f32 %v7323, %v1535
        %v7336 = vmul.f32 %v7324, %v1527
        %v7337 = vmul.f32 %v7325, %v1531
        %v7338 = vmul.f32 %v7326, %v1535
        %v7339 = vmul.f32 %v7327, %v1527
        %v7340 = vmul.f32 %v7328, %v1531
        %v7341 = vmul.f32 %v7329, %v1535
        %v7342 = vpack.c.bf16 %v7333, %v7330
        %v7343 = vpack.c.bf16 %v7334, %v7331
        %v7344 = vpack.c.bf16 %v7335, %v7332
        %v7345 = vpack.c.bf16 %v7339, %v7336
        %v7346 = vpack.c.bf16 %v7340, %v7337
        %v7347 = vpack.c.bf16 %v7341, %v7338
        %v7354 = vunpack.c.l.b16 %v7342
        %v7355 = vunpack.c.l.b16 %v7343
        %v7356 = vunpack.c.l.b16 %v7344
        %v7357 = vunpack.c.h.b16 %v7342
        %v7358 = vunpack.c.h.b16 %v7343
        %v7359 = vunpack.c.h.b16 %v7344
        %v7360 = vunpack.c.l.b16 %v7345
        %v7361 = vunpack.c.l.b16 %v7346
        %v7362 = vunpack.c.l.b16 %v7347
        %v7363 = vunpack.c.h.b16 %v7345
        %v7364 = vunpack.c.h.b16 %v7346
        %v7365 = vunpack.c.h.b16 %v7347
        %v7366 = vpack.c.b16 %v7355, %v7354
        %v7367 = vpack.c.b16 %v7356, %v7356
        %v7368 = vpack.c.b16 %v7358, %v7357
        %v7369 = vpack.c.b16 %v7359, %v7359
        %v7370 = vpack.c.b16 %v7361, %v7360
        %v7371 = vpack.c.b16 %v7362, %v7362
        %v7372 = vpack.c.b16 %v7364, %v7363
        %v7373 = vpack.c.b16 %v7365, %v7365
        %7374 = vrot.lane.b32.xlu0 %v7366, 25
        %v7375 = vpop.permute.xlu0 %7374
        %7376 = vrot.lane.b32.xlu0 %v7367, 25
        %v7377 = vpop.permute.xlu0 %7376
        %7378 = vrot.lane.b32.xlu0 %v7368, 25
        %v7379 = vpop.permute.xlu0 %7378
        %7380 = vrot.lane.b32.xlu0 %v7369, 25
        %v7381 = vpop.permute.xlu0 %7380
        %7382 = vrot.lane.b32.xlu0 %v7370, 25
        %v7383 = vpop.permute.xlu0 %7382
        %7384 = vrot.lane.b32.xlu0 %v7371, 25
        %v7385 = vpop.permute.xlu0 %7384
        %7386 = vrot.lane.b32.xlu0 %v7372, 25
        %v7387 = vpop.permute.xlu0 %7386
        %7388 = vrot.lane.b32.xlu0 %v7373, 25
        %v7389 = vpop.permute.xlu0 %7388
        %v7390 = vrot.slane %v7375, 4
        %v7391 = vrot.slane %v7377, 4
        %v7392 = vrot.slane %v7379, 4
        %v7393 = vrot.slane %v7381, 4
        %v7394 = vrot.slane %v7383, 4
        %v7395 = vrot.slane %v7385, 4
        %v7396 = vrot.slane %v7387, 4
        %v7397 = vrot.slane %v7389, 4
        %v7398 = vsel %vm1573, %v7390, %v7375
        %v7399 = vsel %vm1575, %v7390, %v7391
        %v7400 = vsel %vm1573, %v7399, %v7377
        %v7401 = vsel %vm1573, %v7392, %v7379
        %v7402 = vsel %vm1575, %v7392, %v7393
        %v7403 = vsel %vm1573, %v7402, %v7381
        %v7404 = vsel %vm1573, %v7394, %v7383
        %v7405 = vsel %vm1575, %v7394, %v7395
        %v7406 = vsel %vm1573, %v7405, %v7385
        %v7407 = vsel %vm1573, %v7396, %v7387
        %v7408 = vsel %vm1575, %v7396, %v7397
        %v7409 = vsel %vm1573, %v7408, %v7389
        %7418 = vst.msk [vmem:[#allocation3] sm:$0xff] %vm1587, %v7398
        %7419 = vst.msk [vmem:[#allocation3 + $0x8] sm:$0xff] %vm1590, %v7400
        %7420 = vst.msk [vmem:[#allocation3 + $0x10] sm:$0xff] %vm1587, %v7401
        %7421 = vst.msk [vmem:[#allocation3 + $0x18] sm:$0xff] %vm1590, %v7403
        %7422 = vst.msk [vmem:[#allocation3 + $0x20] sm:$0xff] %vm1587, %v7404
        %7423 = vst.msk [vmem:[#allocation3 + $0x28] sm:$0xff] %vm1590, %v7406
        %7424 = vst.msk [vmem:[#allocation3 + $0x30] sm:$0xff] %vm1587, %v7407
        %7425 = vst.msk [vmem:[#allocation3 + $0x38] sm:$0xff] %vm1590, %v7409
        %v7426 = vld [vmem:[#allocation3] sm:$0xff]
        %v7427 = vld [vmem:[#allocation3 + $0x8] sm:$0xff]
        %v7428 = vld [vmem:[#allocation3 + $0x10] sm:$0xff]
        %v7429 = vld [vmem:[#allocation3 + $0x18] sm:$0xff]
        %v7430 = vld [vmem:[#allocation3 + $0x20] sm:$0xff]
        %v7431 = vld [vmem:[#allocation3 + $0x28] sm:$0xff]
        %v7432 = vld [vmem:[#allocation3 + $0x30] sm:$0xff]
        %v7433 = vld [vmem:[#allocation3 + $0x38] sm:$0xff]
        %v7434 = vld [vmem:[%s5] sm:$0xf]
        %v7435 = vld [vmem:[%s5 + $0x4] sm:$0xf]
        %s7436 = scalar_lea.vmem %s5, 8
        %v7437 = vld [vmem:[%s7436] sm:$0xf]
        %v7438 = vld [vmem:[%s7436 + $0x4] sm:$0xf]
        %v7441 = vunpack.c.l.b16 %v7437
        %v7442 = vunpack.c.l.b16 %v7438
        %v7443 = vpack.c.b16 %v7442, %v7441
        %v7452 = vunpack.c.l.b16 %v7426
        %v7453 = vunpack.c.h.b16 %v7426
        %v7454 = vunpack.c.l.b16 %v7427
        %v7455 = vunpack.c.h.b16 %v7427
        %v7456 = vunpack.c.l.b16 %v7428
        %v7457 = vunpack.c.h.b16 %v7428
        %v7458 = vunpack.c.l.b16 %v7429
        %v7459 = vunpack.c.h.b16 %v7429
        %v7460 = vunpack.c.l.b16 %v7430
        %v7461 = vunpack.c.h.b16 %v7430
        %v7462 = vunpack.c.l.b16 %v7431
        %v7463 = vunpack.c.h.b16 %v7431
        %v7464 = vunpack.c.l.b16 %v7432
        %v7465 = vunpack.c.h.b16 %v7432
        %v7466 = vunpack.c.l.b16 %v7433
        %v7467 = vunpack.c.h.b16 %v7433
        %v7468 = vpack.c.b16 %v7456, %v7452
        %v7469 = vpack.c.b16 %v7457, %v7453
        %v7470 = vpack.c.b16 %v7458, %v7454
        %v7471 = vpack.c.b16 %v7459, %v7455
        %v7472 = vpack.c.b16 %v7464, %v7460
        %v7473 = vpack.c.b16 %v7465, %v7461
        %v7474 = vpack.c.b16 %v7466, %v7462
        %v7475 = vpack.c.b16 %v7467, %v7463
        %7476 = vrot.lane.b32.xlu0 %v7468, 127
        %v7477 = vpop.permute.xlu0 %7476
        %7478 = vrot.lane.b32.xlu0 %v7469, 127
        %v7479 = vpop.permute.xlu0 %7478
        %7480 = vrot.lane.b32.xlu0 %v7470, 127
        %v7481 = vpop.permute.xlu0 %7480
        %7482 = vrot.lane.b32.xlu0 %v7471, 127
        %v7483 = vpop.permute.xlu0 %7482
        %7484 = vrot.lane.b32.xlu0 %v7472, 127
        %v7485 = vpop.permute.xlu0 %7484
        %7486 = vrot.lane.b32.xlu0 %v7473, 127
        %v7487 = vpop.permute.xlu0 %7486
        %7488 = vrot.lane.b32.xlu0 %v7474, 127
        %v7489 = vpop.permute.xlu0 %7488
        %7490 = vrot.lane.b32.xlu0 %v7475, 127
        %v7491 = vpop.permute.xlu0 %7490
        %v7492 = vsel %vm424, %v7477, %v7479
        %v7493 = vsel %vm424, %v7479, %v7481
        %v7494 = vsel %vm424, %v7481, %v7483
        %v7495 = vsel %vm424, %v7485, %v7487
        %v7496 = vsel %vm424, %v7487, %v7489
        %v7497 = vsel %vm424, %v7489, %v7491
        %v7505 = vsel %vm3207, %v7443, 0
        %7507 = vmatprep.subr.bf16.mxu0 0
        %7508 = vmatpush1.bf16.msra.mxu0 0
        %7509 = vmatprep.subr.bf16.mxu0 0
        %7510 = vmatpush1.bf16.msra.mxu0 0
        %7511 = vmatprep.subr.bf16.mxu0 0
        %7512 = vmatpush1.bf16.msra.mxu0 0
        %7513 = vmatprep.subr.bf16.mxu0 0
        %7514 = vmatpush1.bf16.msra.mxu0 0
        %7515 = vmatprep.subr.bf16.mxu0 0
        %7516 = vmatpush1.bf16.msra.mxu0 0
        %7517 = vmatprep.subr.bf16.mxu0 0
        %7518 = vmatpush1.bf16.msra.mxu0 0
        %7519 = vmatprep.subr.bf16.mxu0 %v7496
        %7520 = vmatpush1.bf16.msra.mxu0 %v7495
        %7521 = vmatprep.subr.bf16.mxu0 %v7493
        %7522 = vmatpush1.bf16.msra.mxu0 %v7492
        %7523 = vmatprep.subr.bf16.mxu0 0
        %7524 = vmatpush2.bf16.msra.mxu0 0
        %7525 = vmatprep.subr.bf16.mxu0 0
        %7526 = vmatpush2.bf16.msra.mxu0 0
        %7527 = vmatprep.subr.bf16.mxu0 0
        %7528 = vmatpush2.bf16.msra.mxu0 0
        %7529 = vmatprep.subr.bf16.mxu0 0
        %7530 = vmatpush2.bf16.msra.mxu0 0
        %7531 = vmatprep.subr.bf16.mxu0 0
        %7532 = vmatpush2.bf16.msra.mxu0 0
        %7533 = vmatprep.subr.bf16.mxu0 0
        %7534 = vmatpush2.bf16.msra.mxu0 0
        %7535 = vmatprep.subr.bf16.mxu0 0
        %7536 = vmatpush2.bf16.msra.mxu0 0
        %7537 = vmatprep.subr.bf16.mxu0 0
        %7538 = vmatpush2.bf16.msra.mxu0 0
        %7539 = vmatprep.mubr.bf16.mxu0 0
        %7540 = vmatmul.mubr.bf16.gmra.mxu0 %v7505
        %v7541 = vpop.f32.mrf.mxu0
        %v7542 = vadd.f32 0.0, %v7541
        %v7543 = vpop.f32.mrf.mxu0
        %v7544 = vadd.f32 0.0, %v7543
        %v7545 = vpop.f32.mrf.mxu0
        %v7546 = vadd.f32 0.0, %v7545
        %v7547 = vpop.f32.mrf.mxu0
        %v7548 = vadd.f32 0.0, %v7547
        %7549 = vdwg.mxu0
        %7550 = vmatprep.subr.bf16.mxu0 0
        %7551 = vmatpush1.bf16.msra.mxu0 0
        %7552 = vmatprep.subr.bf16.mxu0 0
        %7553 = vmatpush1.bf16.msra.mxu0 0
        %7554 = vmatprep.subr.bf16.mxu0 0
        %7555 = vmatpush1.bf16.msra.mxu0 0
        %7556 = vmatprep.subr.bf16.mxu0 0
        %7557 = vmatpush1.bf16.msra.mxu0 0
        %7558 = vmatprep.subr.bf16.mxu0 0
        %7559 = vmatpush1.bf16.msra.mxu0 0
        %7560 = vmatprep.subr.bf16.mxu0 0
        %7561 = vmatpush1.bf16.msra.mxu0 0
        %7562 = vmatprep.subr.bf16.mxu0 0
        %7563 = vmatpush1.bf16.msra.mxu0 %v7497
        %7564 = vmatprep.subr.bf16.mxu0 0
        %7565 = vmatpush1.bf16.msra.mxu0 %v7494
        %7566 = vmatprep.subr.bf16.mxu0 0
        %7567 = vmatpush2.bf16.msra.mxu0 0
        %7568 = vmatprep.subr.bf16.mxu0 0
        %7569 = vmatpush2.bf16.msra.mxu0 0
        %7570 = vmatprep.subr.bf16.mxu0 0
        %7571 = vmatpush2.bf16.msra.mxu0 0
        %7572 = vmatprep.subr.bf16.mxu0 0
        %7573 = vmatpush2.bf16.msra.mxu0 0
        %7574 = vmatprep.subr.bf16.mxu0 0
        %7575 = vmatpush2.bf16.msra.mxu0 0
        %7576 = vmatprep.subr.bf16.mxu0 0
        %7577 = vmatpush2.bf16.msra.mxu0 0
        %7578 = vmatprep.subr.bf16.mxu0 0
        %7579 = vmatpush2.bf16.msra.mxu0 0
        %7580 = vmatprep.subr.bf16.mxu0 0
        %7581 = vmatpush2.bf16.msra.mxu0 0
        %7582 = vmatprep.mubr.bf16.mxu0 0
        %7583 = vmatmul.mubr.bf16.gmra.mxu0 %v7505
        %v7584 = vpop.f32.mrf.mxu0
        %v7585 = vadd.f32 0.0, %v7584
        %v7586 = vpop.f32.mrf.mxu0
        %v7587 = vpop.f32.mrf.mxu0
        %v7588 = vadd.f32 0.0, %v7587
        %v7589 = vpop.f32.mrf.mxu0
        %7590 = vdwg.mxu0
        %v7593 = vunpack.c.l.b16 %v7434
        %v7594 = vunpack.c.l.b16 %v7435
        %v7595 = vpack.c.b16 %v7594, %v7593
        %v7603 = vsel %vm3207, %v7595, 0
        %7605 = vmatprep.subr.bf16.mxu0 0
        %7606 = vmatpush1.bf16.msra.mxu0 0
        %7607 = vmatprep.subr.bf16.mxu0 0
        %7608 = vmatpush1.bf16.msra.mxu0 0
        %7609 = vmatprep.subr.bf16.mxu0 0
        %7610 = vmatpush1.bf16.msra.mxu0 0
        %7611 = vmatprep.subr.bf16.mxu0 0
        %7612 = vmatpush1.bf16.msra.mxu0 0
        %7613 = vmatprep.subr.bf16.mxu0 0
        %7614 = vmatpush1.bf16.msra.mxu0 0
        %7615 = vmatprep.subr.bf16.mxu0 0
        %7616 = vmatpush1.bf16.msra.mxu0 0
        %7617 = vmatprep.subr.bf16.mxu0 %v7473
        %7618 = vmatpush1.bf16.msra.mxu0 %v7472
        %7619 = vmatprep.subr.bf16.mxu0 %v7469
        %7620 = vmatpush1.bf16.msra.mxu0 %v7468
        %7621 = vmatprep.subr.bf16.mxu0 0
        %7622 = vmatpush2.bf16.msra.mxu0 0
        %7623 = vmatprep.subr.bf16.mxu0 0
        %7624 = vmatpush2.bf16.msra.mxu0 0
        %7625 = vmatprep.subr.bf16.mxu0 0
        %7626 = vmatpush2.bf16.msra.mxu0 0
        %7627 = vmatprep.subr.bf16.mxu0 0
        %7628 = vmatpush2.bf16.msra.mxu0 0
        %7629 = vmatprep.subr.bf16.mxu0 0
        %7630 = vmatpush2.bf16.msra.mxu0 0
        %7631 = vmatprep.subr.bf16.mxu0 0
        %7632 = vmatpush2.bf16.msra.mxu0 0
        %7633 = vmatprep.subr.bf16.mxu0 0
        %7634 = vmatpush2.bf16.msra.mxu0 0
        %7635 = vmatprep.subr.bf16.mxu0 0
        %7636 = vmatpush2.bf16.msra.mxu0 0
        %7637 = vmatprep.mubr.bf16.mxu0 0
        %7638 = vmatmul.mubr.bf16.gmra.mxu0 %v7603
        %v7639 = vpop.f32.mrf.mxu0
        %v7640 = vadd.f32 %v7542, %v7639
        %v7641 = vpop.f32.mrf.mxu0
        %v7642 = vadd.f32 %v7544, %v7641
        %v7643 = vpop.f32.mrf.mxu0
        %v7644 = vadd.f32 %v7546, %v7643
        %v7645 = vpop.f32.mrf.mxu0
        %v7646 = vadd.f32 %v7548, %v7645
        %7647 = vdwg.mxu0
        %7648 = vmatprep.subr.bf16.mxu0 0
        %7649 = vmatpush1.bf16.msra.mxu0 0
        %7650 = vmatprep.subr.bf16.mxu0 0
        %7651 = vmatpush1.bf16.msra.mxu0 0
        %7652 = vmatprep.subr.bf16.mxu0 0
        %7653 = vmatpush1.bf16.msra.mxu0 0
        %7654 = vmatprep.subr.bf16.mxu0 0
        %7655 = vmatpush1.bf16.msra.mxu0 0
        %7656 = vmatprep.subr.bf16.mxu0 0
        %7657 = vmatpush1.bf16.msra.mxu0 0
        %7658 = vmatprep.subr.bf16.mxu0 0
        %7659 = vmatpush1.bf16.msra.mxu0 0
        %7660 = vmatprep.subr.bf16.mxu0 0
        %7661 = vmatpush1.bf16.msra.mxu0 %v7474
        %7662 = vmatprep.subr.bf16.mxu0 0
        %7663 = vmatpush1.bf16.msra.mxu0 %v7470
        %7664 = vmatprep.subr.bf16.mxu0 0
        %7665 = vmatpush2.bf16.msra.mxu0 0
        %7666 = vmatprep.subr.bf16.mxu0 0
        %7667 = vmatpush2.bf16.msra.mxu0 0
        %7668 = vmatprep.subr.bf16.mxu0 0
        %7669 = vmatpush2.bf16.msra.mxu0 0
        %7670 = vmatprep.subr.bf16.mxu0 0
        %7671 = vmatpush2.bf16.msra.mxu0 0
        %7672 = vmatprep.subr.bf16.mxu0 0
        %7673 = vmatpush2.bf16.msra.mxu0 0
        %7674 = vmatprep.subr.bf16.mxu0 0
        %7675 = vmatpush2.bf16.msra.mxu0 0
        %7676 = vmatprep.subr.bf16.mxu0 0
        %7677 = vmatpush2.bf16.msra.mxu0 0
        %7678 = vmatprep.subr.bf16.mxu0 0
        %7679 = vmatpush2.bf16.msra.mxu0 0
        %7680 = vmatprep.mubr.bf16.mxu0 0
        %7681 = vmatmul.mubr.bf16.gmra.mxu0 %v7603
        %v7682 = vpop.f32.mrf.mxu0
        %v7683 = vadd.f32 %v7585, %v7682
        %v7684 = vpop.f32.mrf.mxu0
        %v7685 = vpop.f32.mrf.mxu0
        %v7686 = vadd.f32 %v7588, %v7685
        %v7687 = vpop.f32.mrf.mxu0
        %7688 = vdwg.mxu0
        %s7689 = scalar_lea.vmem %s5, 16
        %v7690 = vld [vmem:[%s7689] sm:$0xf]
        %v7691 = vld [vmem:[%s7689 + $0x4] sm:$0xf]
        %v7694 = vunpack.c.l.b16 %v7690
        %v7695 = vunpack.c.l.b16 %v7691
        %v7696 = vpack.c.b16 %v7695, %v7694
        %7697 = vrot.lane.b32.xlu0 %v7468, 126
        %v7698 = vpop.permute.xlu0 %7697
        %7699 = vrot.lane.b32.xlu0 %v7469, 126
        %v7700 = vpop.permute.xlu0 %7699
        %7701 = vrot.lane.b32.xlu0 %v7470, 126
        %v7702 = vpop.permute.xlu0 %7701
        %7703 = vrot.lane.b32.xlu0 %v7471, 126
        %v7704 = vpop.permute.xlu0 %7703
        %7705 = vrot.lane.b32.xlu0 %v7472, 126
        %v7706 = vpop.permute.xlu0 %7705
        %7707 = vrot.lane.b32.xlu0 %v7473, 126
        %v7708 = vpop.permute.xlu0 %7707
        %7709 = vrot.lane.b32.xlu0 %v7474, 126
        %v7710 = vpop.permute.xlu0 %7709
        %7711 = vrot.lane.b32.xlu0 %v7475, 126
        %v7712 = vpop.permute.xlu0 %7711
        %v7713 = vsel %vm643, %v7698, %v7700
        %v7714 = vsel %vm643, %v7700, %v7702
        %v7715 = vsel %vm643, %v7702, %v7704
        %v7716 = vsel %vm643, %v7706, %v7708
        %v7717 = vsel %vm643, %v7708, %v7710
        %v7718 = vsel %vm643, %v7710, %v7712
        %v7726 = vsel %vm3207, %v7696, 0
        %7728 = vmatprep.subr.bf16.mxu0 0
        %7729 = vmatpush1.bf16.msra.mxu0 0
        %7730 = vmatprep.subr.bf16.mxu0 0
        %7731 = vmatpush1.bf16.msra.mxu0 0
        %7732 = vmatprep.subr.bf16.mxu0 0
        %7733 = vmatpush1.bf16.msra.mxu0 0
        %7734 = vmatprep.subr.bf16.mxu0 0
        %7735 = vmatpush1.bf16.msra.mxu0 0
        %7736 = vmatprep.subr.bf16.mxu0 0
        %7737 = vmatpush1.bf16.msra.mxu0 0
        %7738 = vmatprep.subr.bf16.mxu0 0
        %7739 = vmatpush1.bf16.msra.mxu0 0
        %7740 = vmatprep.subr.bf16.mxu0 %v7717
        %7741 = vmatpush1.bf16.msra.mxu0 %v7716
        %7742 = vmatprep.subr.bf16.mxu0 %v7714
        %7743 = vmatpush1.bf16.msra.mxu0 %v7713
        %7744 = vmatprep.subr.bf16.mxu0 0
        %7745 = vmatpush2.bf16.msra.mxu0 0
        %7746 = vmatprep.subr.bf16.mxu0 0
        %7747 = vmatpush2.bf16.msra.mxu0 0
        %7748 = vmatprep.subr.bf16.mxu0 0
        %7749 = vmatpush2.bf16.msra.mxu0 0
        %7750 = vmatprep.subr.bf16.mxu0 0
        %7751 = vmatpush2.bf16.msra.mxu0 0
        %7752 = vmatprep.subr.bf16.mxu0 0
        %7753 = vmatpush2.bf16.msra.mxu0 0
        %7754 = vmatprep.subr.bf16.mxu0 0
        %7755 = vmatpush2.bf16.msra.mxu0 0
        %7756 = vmatprep.subr.bf16.mxu0 0
        %7757 = vmatpush2.bf16.msra.mxu0 0
        %7758 = vmatprep.subr.bf16.mxu0 0
        %7759 = vmatpush2.bf16.msra.mxu0 0
        %7760 = vmatprep.mubr.bf16.mxu0 0
        %7761 = vmatmul.mubr.bf16.gmra.mxu0 %v7726
        %v7762 = vpop.f32.mrf.mxu0
        %v7763 = vadd.f32 0.0, %v7762
        %v7764 = vpop.f32.mrf.mxu0
        %v7765 = vadd.f32 0.0, %v7764
        %v7766 = vpop.f32.mrf.mxu0
        %v7767 = vadd.f32 0.0, %v7766
        %v7768 = vpop.f32.mrf.mxu0
        %v7769 = vadd.f32 0.0, %v7768
        %7770 = vdwg.mxu0
        %7771 = vmatprep.subr.bf16.mxu0 0
        %7772 = vmatpush1.bf16.msra.mxu0 0
        %7773 = vmatprep.subr.bf16.mxu0 0
        %7774 = vmatpush1.bf16.msra.mxu0 0
        %7775 = vmatprep.subr.bf16.mxu0 0
        %7776 = vmatpush1.bf16.msra.mxu0 0
        %7777 = vmatprep.subr.bf16.mxu0 0
        %7778 = vmatpush1.bf16.msra.mxu0 0
        %7779 = vmatprep.subr.bf16.mxu0 0
        %7780 = vmatpush1.bf16.msra.mxu0 0
        %7781 = vmatprep.subr.bf16.mxu0 0
        %7782 = vmatpush1.bf16.msra.mxu0 0
        %7783 = vmatprep.subr.bf16.mxu0 0
        %7784 = vmatpush1.bf16.msra.mxu0 %v7718
        %7785 = vmatprep.subr.bf16.mxu0 0
        %7786 = vmatpush1.bf16.msra.mxu0 %v7715
        %7787 = vmatprep.subr.bf16.mxu0 0
        %7788 = vmatpush2.bf16.msra.mxu0 0
        %7789 = vmatprep.subr.bf16.mxu0 0
        %7790 = vmatpush2.bf16.msra.mxu0 0
        %7791 = vmatprep.subr.bf16.mxu0 0
        %7792 = vmatpush2.bf16.msra.mxu0 0
        %7793 = vmatprep.subr.bf16.mxu0 0
        %7794 = vmatpush2.bf16.msra.mxu0 0
        %7795 = vmatprep.subr.bf16.mxu0 0
        %7796 = vmatpush2.bf16.msra.mxu0 0
        %7797 = vmatprep.subr.bf16.mxu0 0
        %7798 = vmatpush2.bf16.msra.mxu0 0
        %7799 = vmatprep.subr.bf16.mxu0 0
        %7800 = vmatpush2.bf16.msra.mxu0 0
        %7801 = vmatprep.subr.bf16.mxu0 0
        %7802 = vmatpush2.bf16.msra.mxu0 0
        %7803 = vmatprep.mubr.bf16.mxu0 0
        %7804 = vmatmul.mubr.bf16.gmra.mxu0 %v7726
        %v7805 = vpop.f32.mrf.mxu0
        %v7806 = vadd.f32 0.0, %v7805
        %v7807 = vpop.f32.mrf.mxu0
        %v7808 = vpop.f32.mrf.mxu0
        %v7809 = vadd.f32 0.0, %v7808
        %v7810 = vpop.f32.mrf.mxu0
        %7811 = vdwg.mxu0
        %v7812 = vadd.f32 %v7640, %v7763
        %v7813 = vadd.f32 %v7642, %v7765
        %v7814 = vadd.f32 %v7683, %v7806
        %v7815 = vadd.f32 %v7644, %v7767
        %v7816 = vadd.f32 %v7646, %v7769
        %v7817 = vadd.f32 %v7686, %v7809
        %s7818 = scalar_lea.vmem %s5, 24
        %v7819 = vld [vmem:[%s7818] sm:$0xf]
        %v7820 = vld [vmem:[%s7818 + $0x4] sm:$0xf]
        %v7823 = vunpack.c.l.b16 %v7819
        %v7824 = vunpack.c.l.b16 %v7820
        %v7825 = vpack.c.b16 %v7824, %v7823
        %7826 = vrot.lane.b32.xlu0 %v7468, 104
        %v7827 = vpop.permute.xlu0 %7826
        %7828 = vrot.lane.b32.xlu0 %v7469, 104
        %v7829 = vpop.permute.xlu0 %7828
        %7830 = vrot.lane.b32.xlu0 %v7470, 104
        %v7831 = vpop.permute.xlu0 %7830
        %7832 = vrot.lane.b32.xlu0 %v7471, 104
        %v7833 = vpop.permute.xlu0 %7832
        %7834 = vrot.lane.b32.xlu0 %v7472, 104
        %v7835 = vpop.permute.xlu0 %7834
        %7836 = vrot.lane.b32.xlu0 %v7473, 104
        %v7837 = vpop.permute.xlu0 %7836
        %7838 = vrot.lane.b32.xlu0 %v7474, 104
        %v7839 = vpop.permute.xlu0 %7838
        %7840 = vrot.lane.b32.xlu0 %v7475, 104
        %v7841 = vpop.permute.xlu0 %7840
        %v7842 = vsel %vm765, %v7827, %v7829
        %v7843 = vsel %vm765, %v7829, %v7831
        %v7844 = vsel %vm765, %v7831, %v7833
        %v7845 = vsel %vm765, %v7835, %v7837
        %v7846 = vsel %vm765, %v7837, %v7839
        %v7847 = vsel %vm765, %v7839, %v7841
        %v7855 = vsel %vm3207, %v7825, 0
        %7857 = vmatprep.subr.bf16.mxu0 0
        %7858 = vmatpush1.bf16.msra.mxu0 0
        %7859 = vmatprep.subr.bf16.mxu0 0
        %7860 = vmatpush1.bf16.msra.mxu0 0
        %7861 = vmatprep.subr.bf16.mxu0 0
        %7862 = vmatpush1.bf16.msra.mxu0 0
        %7863 = vmatprep.subr.bf16.mxu0 0
        %7864 = vmatpush1.bf16.msra.mxu0 0
        %7865 = vmatprep.subr.bf16.mxu0 0
        %7866 = vmatpush1.bf16.msra.mxu0 0
        %7867 = vmatprep.subr.bf16.mxu0 0
        %7868 = vmatpush1.bf16.msra.mxu0 0
        %7869 = vmatprep.subr.bf16.mxu0 %v7846
        %7870 = vmatpush1.bf16.msra.mxu0 %v7845
        %7871 = vmatprep.subr.bf16.mxu0 %v7843
        %7872 = vmatpush1.bf16.msra.mxu0 %v7842
        %7873 = vmatprep.subr.bf16.mxu0 0
        %7874 = vmatpush2.bf16.msra.mxu0 0
        %7875 = vmatprep.subr.bf16.mxu0 0
        %7876 = vmatpush2.bf16.msra.mxu0 0
        %7877 = vmatprep.subr.bf16.mxu0 0
        %7878 = vmatpush2.bf16.msra.mxu0 0
        %7879 = vmatprep.subr.bf16.mxu0 0
        %7880 = vmatpush2.bf16.msra.mxu0 0
        %7881 = vmatprep.subr.bf16.mxu0 0
        %7882 = vmatpush2.bf16.msra.mxu0 0
        %7883 = vmatprep.subr.bf16.mxu0 0
        %7884 = vmatpush2.bf16.msra.mxu0 0
        %7885 = vmatprep.subr.bf16.mxu0 0
        %7886 = vmatpush2.bf16.msra.mxu0 0
        %7887 = vmatprep.subr.bf16.mxu0 0
        %7888 = vmatpush2.bf16.msra.mxu0 0
        %7889 = vmatprep.mubr.bf16.mxu0 0
        %7890 = vmatmul.mubr.bf16.gmra.mxu0 %v7855
        %v7891 = vpop.f32.mrf.mxu0
        %v7892 = vadd.f32 0.0, %v7891
        %v7893 = vpop.f32.mrf.mxu0
        %v7894 = vadd.f32 0.0, %v7893
        %v7895 = vpop.f32.mrf.mxu0
        %v7896 = vadd.f32 0.0, %v7895
        %v7897 = vpop.f32.mrf.mxu0
        %v7898 = vadd.f32 0.0, %v7897
        %7899 = vdwg.mxu0
        %7900 = vmatprep.subr.bf16.mxu0 0
        %7901 = vmatpush1.bf16.msra.mxu0 0
        %7902 = vmatprep.subr.bf16.mxu0 0
        %7903 = vmatpush1.bf16.msra.mxu0 0
        %7904 = vmatprep.subr.bf16.mxu0 0
        %7905 = vmatpush1.bf16.msra.mxu0 0
        %7906 = vmatprep.subr.bf16.mxu0 0
        %7907 = vmatpush1.bf16.msra.mxu0 0
        %7908 = vmatprep.subr.bf16.mxu0 0
        %7909 = vmatpush1.bf16.msra.mxu0 0
        %7910 = vmatprep.subr.bf16.mxu0 0
        %7911 = vmatpush1.bf16.msra.mxu0 0
        %7912 = vmatprep.subr.bf16.mxu0 0
        %7913 = vmatpush1.bf16.msra.mxu0 %v7847
        %7914 = vmatprep.subr.bf16.mxu0 0
        %7915 = vmatpush1.bf16.msra.mxu0 %v7844
        %7916 = vmatprep.subr.bf16.mxu0 0
        %7917 = vmatpush2.bf16.msra.mxu0 0
        %7918 = vmatprep.subr.bf16.mxu0 0
        %7919 = vmatpush2.bf16.msra.mxu0 0
        %7920 = vmatprep.subr.bf16.mxu0 0
        %7921 = vmatpush2.bf16.msra.mxu0 0
        %7922 = vmatprep.subr.bf16.mxu0 0
        %7923 = vmatpush2.bf16.msra.mxu0 0
        %7924 = vmatprep.subr.bf16.mxu0 0
        %7925 = vmatpush2.bf16.msra.mxu0 0
        %7926 = vmatprep.subr.bf16.mxu0 0
        %7927 = vmatpush2.bf16.msra.mxu0 0
        %7928 = vmatprep.subr.bf16.mxu0 0
        %7929 = vmatpush2.bf16.msra.mxu0 0
        %7930 = vmatprep.subr.bf16.mxu0 0
        %7931 = vmatpush2.bf16.msra.mxu0 0
        %7932 = vmatprep.mubr.bf16.mxu0 0
        %7933 = vmatmul.mubr.bf16.gmra.mxu0 %v7855
        %v7934 = vpop.f32.mrf.mxu0
        %v7935 = vadd.f32 0.0, %v7934
        %v7936 = vpop.f32.mrf.mxu0
        %v7937 = vpop.f32.mrf.mxu0
        %v7938 = vadd.f32 0.0, %v7937
        %v7939 = vpop.f32.mrf.mxu0
        %7940 = vdwg.mxu0
        %v7941 = vadd.f32 %v7812, %v7892
        %v7942 = vadd.f32 %v7813, %v7894
        %v7943 = vadd.f32 %v7814, %v7935
        %v7944 = vadd.f32 %v7815, %v7896
        %v7945 = vadd.f32 %v7816, %v7898
        %v7946 = vadd.f32 %v7817, %v7938
        %s7947 = scalar_lea.vmem %s5, 32
        %v7948 = vld [vmem:[%s7947] sm:$0xf]
        %v7949 = vld [vmem:[%s7947 + $0x4] sm:$0xf]
        %v7952 = vunpack.c.l.b16 %v7948
        %v7953 = vunpack.c.l.b16 %v7949
        %v7954 = vpack.c.b16 %v7953, %v7952
        %7955 = vrot.lane.b32.xlu0 %v7468, 103
        %v7956 = vpop.permute.xlu0 %7955
        %7957 = vrot.lane.b32.xlu0 %v7469, 103
        %v7958 = vpop.permute.xlu0 %7957
        %7959 = vrot.lane.b32.xlu0 %v7470, 103
        %v7960 = vpop.permute.xlu0 %7959
        %7961 = vrot.lane.b32.xlu0 %v7471, 103
        %v7962 = vpop.permute.xlu0 %7961
        %7963 = vrot.lane.b32.xlu0 %v7472, 103
        %v7964 = vpop.permute.xlu0 %7963
        %7965 = vrot.lane.b32.xlu0 %v7473, 103
        %v7966 = vpop.permute.xlu0 %7965
        %7967 = vrot.lane.b32.xlu0 %v7474, 103
        %v7968 = vpop.permute.xlu0 %7967
        %7969 = vrot.lane.b32.xlu0 %v7475, 103
        %v7970 = vpop.permute.xlu0 %7969
        %v7971 = vsel %vm887, %v7956, %v7958
        %v7972 = vsel %vm887, %v7958, %v7960
        %v7973 = vsel %vm887, %v7960, %v7962
        %v7974 = vsel %vm887, %v7964, %v7966
        %v7975 = vsel %vm887, %v7966, %v7968
        %v7976 = vsel %vm887, %v7968, %v7970
        %v7984 = vsel %vm3207, %v7954, 0
        %7986 = vmatprep.subr.bf16.mxu0 0
        %7987 = vmatpush1.bf16.msra.mxu0 0
        %7988 = vmatprep.subr.bf16.mxu0 0
        %7989 = vmatpush1.bf16.msra.mxu0 0
        %7990 = vmatprep.subr.bf16.mxu0 0
        %7991 = vmatpush1.bf16.msra.mxu0 0
        %7992 = vmatprep.subr.bf16.mxu0 0
        %7993 = vmatpush1.bf16.msra.mxu0 0
        %7994 = vmatprep.subr.bf16.mxu0 0
        %7995 = vmatpush1.bf16.msra.mxu0 0
        %7996 = vmatprep.subr.bf16.mxu0 0
        %7997 = vmatpush1.bf16.msra.mxu0 0
        %7998 = vmatprep.subr.bf16.mxu0 %v7975
        %7999 = vmatpush1.bf16.msra.mxu0 %v7974
        %8000 = vmatprep.subr.bf16.mxu0 %v7972
        %8001 = vmatpush1.bf16.msra.mxu0 %v7971
        %8002 = vmatprep.subr.bf16.mxu0 0
        %8003 = vmatpush2.bf16.msra.mxu0 0
        %8004 = vmatprep.subr.bf16.mxu0 0
        %8005 = vmatpush2.bf16.msra.mxu0 0
        %8006 = vmatprep.subr.bf16.mxu0 0
        %8007 = vmatpush2.bf16.msra.mxu0 0
        %8008 = vmatprep.subr.bf16.mxu0 0
        %8009 = vmatpush2.bf16.msra.mxu0 0
        %8010 = vmatprep.subr.bf16.mxu0 0
        %8011 = vmatpush2.bf16.msra.mxu0 0
        %8012 = vmatprep.subr.bf16.mxu0 0
        %8013 = vmatpush2.bf16.msra.mxu0 0
        %8014 = vmatprep.subr.bf16.mxu0 0
        %8015 = vmatpush2.bf16.msra.mxu0 0
        %8016 = vmatprep.subr.bf16.mxu0 0
        %8017 = vmatpush2.bf16.msra.mxu0 0
        %8018 = vmatprep.mubr.bf16.mxu0 0
        %8019 = vmatmul.mubr.bf16.gmra.mxu0 %v7984
        %v8020 = vpop.f32.mrf.mxu0
        %v8021 = vadd.f32 0.0, %v8020
        %v8022 = vpop.f32.mrf.mxu0
        %v8023 = vadd.f32 0.0, %v8022
        %v8024 = vpop.f32.mrf.mxu0
        %v8025 = vadd.f32 0.0, %v8024
        %v8026 = vpop.f32.mrf.mxu0
        %v8027 = vadd.f32 0.0, %v8026
        %8028 = vdwg.mxu0
        %8029 = vmatprep.subr.bf16.mxu0 0
        %8030 = vmatpush1.bf16.msra.mxu0 0
        %8031 = vmatprep.subr.bf16.mxu0 0
        %8032 = vmatpush1.bf16.msra.mxu0 0
        %8033 = vmatprep.subr.bf16.mxu0 0
        %8034 = vmatpush1.bf16.msra.mxu0 0
        %8035 = vmatprep.subr.bf16.mxu0 0
        %8036 = vmatpush1.bf16.msra.mxu0 0
        %8037 = vmatprep.subr.bf16.mxu0 0
        %8038 = vmatpush1.bf16.msra.mxu0 0
        %8039 = vmatprep.subr.bf16.mxu0 0
        %8040 = vmatpush1.bf16.msra.mxu0 0
        %8041 = vmatprep.subr.bf16.mxu0 0
        %8042 = vmatpush1.bf16.msra.mxu0 %v7976
        %8043 = vmatprep.subr.bf16.mxu0 0
        %8044 = vmatpush1.bf16.msra.mxu0 %v7973
        %8045 = vmatprep.subr.bf16.mxu0 0
        %8046 = vmatpush2.bf16.msra.mxu0 0
        %8047 = vmatprep.subr.bf16.mxu0 0
        %8048 = vmatpush2.bf16.msra.mxu0 0
        %8049 = vmatprep.subr.bf16.mxu0 0
        %8050 = vmatpush2.bf16.msra.mxu0 0
        %8051 = vmatprep.subr.bf16.mxu0 0
        %8052 = vmatpush2.bf16.msra.mxu0 0
        %8053 = vmatprep.subr.bf16.mxu0 0
        %8054 = vmatpush2.bf16.msra.mxu0 0
        %8055 = vmatprep.subr.bf16.mxu0 0
        %8056 = vmatpush2.bf16.msra.mxu0 0
        %8057 = vmatprep.subr.bf16.mxu0 0
        %8058 = vmatpush2.bf16.msra.mxu0 0
        %8059 = vmatprep.subr.bf16.mxu0 0
        %8060 = vmatpush2.bf16.msra.mxu0 0
        %8061 = vmatprep.mubr.bf16.mxu0 0
        %8062 = vmatmul.mubr.bf16.gmra.mxu0 %v7984
        %v8063 = vpop.f32.mrf.mxu0
        %v8064 = vadd.f32 0.0, %v8063
        %v8065 = vpop.f32.mrf.mxu0
        %v8066 = vpop.f32.mrf.mxu0
        %v8067 = vadd.f32 0.0, %v8066
        %v8068 = vpop.f32.mrf.mxu0
        %8069 = vdwg.mxu0
        %v8070 = vadd.f32 %v7941, %v8021
        %v8071 = vadd.f32 %v7942, %v8023
        %v8072 = vadd.f32 %v7943, %v8064
        %v8073 = vadd.f32 %v7944, %v8025
        %v8074 = vadd.f32 %v7945, %v8027
        %v8075 = vadd.f32 %v7946, %v8067
        %s8076 = scalar_lea.vmem %s5, 40
        %v8077 = vld [vmem:[%s8076] sm:$0xf]
        %v8078 = vld [vmem:[%s8076 + $0x4] sm:$0xf]
        %v8081 = vunpack.c.l.b16 %v8077
        %v8082 = vunpack.c.l.b16 %v8078
        %v8083 = vpack.c.b16 %v8082, %v8081
        %8084 = vrot.lane.b32.xlu0 %v7468, 102
        %v8085 = vpop.permute.xlu0 %8084
        %8086 = vrot.lane.b32.xlu0 %v7469, 102
        %v8087 = vpop.permute.xlu0 %8086
        %8088 = vrot.lane.b32.xlu0 %v7470, 102
        %v8089 = vpop.permute.xlu0 %8088
        %8090 = vrot.lane.b32.xlu0 %v7471, 102
        %v8091 = vpop.permute.xlu0 %8090
        %8092 = vrot.lane.b32.xlu0 %v7472, 102
        %v8093 = vpop.permute.xlu0 %8092
        %8094 = vrot.lane.b32.xlu0 %v7473, 102
        %v8095 = vpop.permute.xlu0 %8094
        %8096 = vrot.lane.b32.xlu0 %v7474, 102
        %v8097 = vpop.permute.xlu0 %8096
        %8098 = vrot.lane.b32.xlu0 %v7475, 102
        %v8099 = vpop.permute.xlu0 %8098
        %v8100 = vsel %vm1009, %v8085, %v8087
        %v8101 = vsel %vm1009, %v8087, %v8089
        %v8102 = vsel %vm1009, %v8089, %v8091
        %v8103 = vsel %vm1009, %v8093, %v8095
        %v8104 = vsel %vm1009, %v8095, %v8097
        %v8105 = vsel %vm1009, %v8097, %v8099
        %v8113 = vsel %vm3207, %v8083, 0
        %8115 = vmatprep.subr.bf16.mxu0 0
        %8116 = vmatpush1.bf16.msra.mxu0 0
        %8117 = vmatprep.subr.bf16.mxu0 0
        %8118 = vmatpush1.bf16.msra.mxu0 0
        %8119 = vmatprep.subr.bf16.mxu0 0
        %8120 = vmatpush1.bf16.msra.mxu0 0
        %8121 = vmatprep.subr.bf16.mxu0 0
        %8122 = vmatpush1.bf16.msra.mxu0 0
        %8123 = vmatprep.subr.bf16.mxu0 0
        %8124 = vmatpush1.bf16.msra.mxu0 0
        %8125 = vmatprep.subr.bf16.mxu0 0
        %8126 = vmatpush1.bf16.msra.mxu0 0
        %8127 = vmatprep.subr.bf16.mxu0 %v8104
        %8128 = vmatpush1.bf16.msra.mxu0 %v8103
        %8129 = vmatprep.subr.bf16.mxu0 %v8101
        %8130 = vmatpush1.bf16.msra.mxu0 %v8100
        %8131 = vmatprep.subr.bf16.mxu0 0
        %8132 = vmatpush2.bf16.msra.mxu0 0
        %8133 = vmatprep.subr.bf16.mxu0 0
        %8134 = vmatpush2.bf16.msra.mxu0 0
        %8135 = vmatprep.subr.bf16.mxu0 0
        %8136 = vmatpush2.bf16.msra.mxu0 0
        %8137 = vmatprep.subr.bf16.mxu0 0
        %8138 = vmatpush2.bf16.msra.mxu0 0
        %8139 = vmatprep.subr.bf16.mxu0 0
        %8140 = vmatpush2.bf16.msra.mxu0 0
        %8141 = vmatprep.subr.bf16.mxu0 0
        %8142 = vmatpush2.bf16.msra.mxu0 0
        %8143 = vmatprep.subr.bf16.mxu0 0
        %8144 = vmatpush2.bf16.msra.mxu0 0
        %8145 = vmatprep.subr.bf16.mxu0 0
        %8146 = vmatpush2.bf16.msra.mxu0 0
        %8147 = vmatprep.mubr.bf16.mxu0 0
        %8148 = vmatmul.mubr.bf16.gmra.mxu0 %v8113
        %v8149 = vpop.f32.mrf.mxu0
        %v8150 = vadd.f32 0.0, %v8149
        %v8151 = vpop.f32.mrf.mxu0
        %v8152 = vadd.f32 0.0, %v8151
        %v8153 = vpop.f32.mrf.mxu0
        %v8154 = vadd.f32 0.0, %v8153
        %v8155 = vpop.f32.mrf.mxu0
        %v8156 = vadd.f32 0.0, %v8155
        %8157 = vdwg.mxu0
        %8158 = vmatprep.subr.bf16.mxu0 0
        %8159 = vmatpush1.bf16.msra.mxu0 0
        %8160 = vmatprep.subr.bf16.mxu0 0
        %8161 = vmatpush1.bf16.msra.mxu0 0
        %8162 = vmatprep.subr.bf16.mxu0 0
        %8163 = vmatpush1.bf16.msra.mxu0 0
        %8164 = vmatprep.subr.bf16.mxu0 0
        %8165 = vmatpush1.bf16.msra.mxu0 0
        %8166 = vmatprep.subr.bf16.mxu0 0
        %8167 = vmatpush1.bf16.msra.mxu0 0
        %8168 = vmatprep.subr.bf16.mxu0 0
        %8169 = vmatpush1.bf16.msra.mxu0 0
        %8170 = vmatprep.subr.bf16.mxu0 0
        %8171 = vmatpush1.bf16.msra.mxu0 %v8105
        %8172 = vmatprep.subr.bf16.mxu0 0
        %8173 = vmatpush1.bf16.msra.mxu0 %v8102
        %8174 = vmatprep.subr.bf16.mxu0 0
        %8175 = vmatpush2.bf16.msra.mxu0 0
        %8176 = vmatprep.subr.bf16.mxu0 0
        %8177 = vmatpush2.bf16.msra.mxu0 0
        %8178 = vmatprep.subr.bf16.mxu0 0
        %8179 = vmatpush2.bf16.msra.mxu0 0
        %8180 = vmatprep.subr.bf16.mxu0 0
        %8181 = vmatpush2.bf16.msra.mxu0 0
        %8182 = vmatprep.subr.bf16.mxu0 0
        %8183 = vmatpush2.bf16.msra.mxu0 0
        %8184 = vmatprep.subr.bf16.mxu0 0
        %8185 = vmatpush2.bf16.msra.mxu0 0
        %8186 = vmatprep.subr.bf16.mxu0 0
        %8187 = vmatpush2.bf16.msra.mxu0 0
        %8188 = vmatprep.subr.bf16.mxu0 0
        %8189 = vmatpush2.bf16.msra.mxu0 0
        %8190 = vmatprep.mubr.bf16.mxu0 0
        %8191 = vmatmul.mubr.bf16.gmra.mxu0 %v8113
        %v8192 = vpop.f32.mrf.mxu0
        %v8193 = vadd.f32 0.0, %v8192
        %v8194 = vpop.f32.mrf.mxu0
        %v8195 = vpop.f32.mrf.mxu0
        %v8196 = vadd.f32 0.0, %v8195
        %v8197 = vpop.f32.mrf.mxu0
        %8198 = vdwg.mxu0
        %v8199 = vadd.f32 %v8070, %v8150
        %v8200 = vadd.f32 %v8071, %v8152
        %v8201 = vadd.f32 %v8072, %v8193
        %v8202 = vadd.f32 %v8073, %v8154
        %v8203 = vadd.f32 %v8074, %v8156
        %v8204 = vadd.f32 %v8075, %v8196
        %s8205 = scalar_lea.vmem %s5, 48
        %v8206 = vld [vmem:[%s8205] sm:$0xf]
        %v8207 = vld [vmem:[%s8205 + $0x4] sm:$0xf]
        %v8210 = vunpack.c.l.b16 %v8206
        %v8211 = vunpack.c.l.b16 %v8207
        %v8212 = vpack.c.b16 %v8211, %v8210
        %8213 = vrot.lane.b32.xlu0 %v7468, 80
        %v8214 = vpop.permute.xlu0 %8213
        %8215 = vrot.lane.b32.xlu0 %v7469, 80
        %v8216 = vpop.permute.xlu0 %8215
        %8217 = vrot.lane.b32.xlu0 %v7470, 80
        %v8218 = vpop.permute.xlu0 %8217
        %8219 = vrot.lane.b32.xlu0 %v7471, 80
        %v8220 = vpop.permute.xlu0 %8219
        %8221 = vrot.lane.b32.xlu0 %v7472, 80
        %v8222 = vpop.permute.xlu0 %8221
        %8223 = vrot.lane.b32.xlu0 %v7473, 80
        %v8224 = vpop.permute.xlu0 %8223
        %8225 = vrot.lane.b32.xlu0 %v7474, 80
        %v8226 = vpop.permute.xlu0 %8225
        %8227 = vrot.lane.b32.xlu0 %v7475, 80
        %v8228 = vpop.permute.xlu0 %8227
        %v8229 = vsel %vm1131, %v8214, %v8216
        %v8230 = vsel %vm1131, %v8216, %v8218
        %v8231 = vsel %vm1131, %v8218, %v8220
        %v8232 = vsel %vm1131, %v8222, %v8224
        %v8233 = vsel %vm1131, %v8224, %v8226
        %v8234 = vsel %vm1131, %v8226, %v8228
        %v8242 = vsel %vm3207, %v8212, 0
        %8244 = vmatprep.subr.bf16.mxu0 0
        %8245 = vmatpush1.bf16.msra.mxu0 0
        %8246 = vmatprep.subr.bf16.mxu0 0
        %8247 = vmatpush1.bf16.msra.mxu0 0
        %8248 = vmatprep.subr.bf16.mxu0 0
        %8249 = vmatpush1.bf16.msra.mxu0 0
        %8250 = vmatprep.subr.bf16.mxu0 0
        %8251 = vmatpush1.bf16.msra.mxu0 0
        %8252 = vmatprep.subr.bf16.mxu0 0
        %8253 = vmatpush1.bf16.msra.mxu0 0
        %8254 = vmatprep.subr.bf16.mxu0 0
        %8255 = vmatpush1.bf16.msra.mxu0 0
        %8256 = vmatprep.subr.bf16.mxu0 %v8233
        %8257 = vmatpush1.bf16.msra.mxu0 %v8232
        %8258 = vmatprep.subr.bf16.mxu0 %v8230
        %8259 = vmatpush1.bf16.msra.mxu0 %v8229
        %8260 = vmatprep.subr.bf16.mxu0 0
        %8261 = vmatpush2.bf16.msra.mxu0 0
        %8262 = vmatprep.subr.bf16.mxu0 0
        %8263 = vmatpush2.bf16.msra.mxu0 0
        %8264 = vmatprep.subr.bf16.mxu0 0
        %8265 = vmatpush2.bf16.msra.mxu0 0
        %8266 = vmatprep.subr.bf16.mxu0 0
        %8267 = vmatpush2.bf16.msra.mxu0 0
        %8268 = vmatprep.subr.bf16.mxu0 0
        %8269 = vmatpush2.bf16.msra.mxu0 0
        %8270 = vmatprep.subr.bf16.mxu0 0
        %8271 = vmatpush2.bf16.msra.mxu0 0
        %8272 = vmatprep.subr.bf16.mxu0 0
        %8273 = vmatpush2.bf16.msra.mxu0 0
        %8274 = vmatprep.subr.bf16.mxu0 0
        %8275 = vmatpush2.bf16.msra.mxu0 0
        %8276 = vmatprep.mubr.bf16.mxu0 0
        %8277 = vmatmul.mubr.bf16.gmra.mxu0 %v8242
        %v8278 = vpop.f32.mrf.mxu0
        %v8279 = vadd.f32 0.0, %v8278
        %v8280 = vpop.f32.mrf.mxu0
        %v8281 = vadd.f32 0.0, %v8280
        %v8282 = vpop.f32.mrf.mxu0
        %v8283 = vadd.f32 0.0, %v8282
        %v8284 = vpop.f32.mrf.mxu0
        %v8285 = vadd.f32 0.0, %v8284
        %8286 = vdwg.mxu0
        %8287 = vmatprep.subr.bf16.mxu0 0
        %8288 = vmatpush1.bf16.msra.mxu0 0
        %8289 = vmatprep.subr.bf16.mxu0 0
        %8290 = vmatpush1.bf16.msra.mxu0 0
        %8291 = vmatprep.subr.bf16.mxu0 0
        %8292 = vmatpush1.bf16.msra.mxu0 0
        %8293 = vmatprep.subr.bf16.mxu0 0
        %8294 = vmatpush1.bf16.msra.mxu0 0
        %8295 = vmatprep.subr.bf16.mxu0 0
        %8296 = vmatpush1.bf16.msra.mxu0 0
        %8297 = vmatprep.subr.bf16.mxu0 0
        %8298 = vmatpush1.bf16.msra.mxu0 0
        %8299 = vmatprep.subr.bf16.mxu0 0
        %8300 = vmatpush1.bf16.msra.mxu0 %v8234
        %8301 = vmatprep.subr.bf16.mxu0 0
        %8302 = vmatpush1.bf16.msra.mxu0 %v8231
        %8303 = vmatprep.subr.bf16.mxu0 0
        %8304 = vmatpush2.bf16.msra.mxu0 0
        %8305 = vmatprep.subr.bf16.mxu0 0
        %8306 = vmatpush2.bf16.msra.mxu0 0
        %8307 = vmatprep.subr.bf16.mxu0 0
        %8308 = vmatpush2.bf16.msra.mxu0 0
        %8309 = vmatprep.subr.bf16.mxu0 0
        %8310 = vmatpush2.bf16.msra.mxu0 0
        %8311 = vmatprep.subr.bf16.mxu0 0
        %8312 = vmatpush2.bf16.msra.mxu0 0
        %8313 = vmatprep.subr.bf16.mxu0 0
        %8314 = vmatpush2.bf16.msra.mxu0 0
        %8315 = vmatprep.subr.bf16.mxu0 0
        %8316 = vmatpush2.bf16.msra.mxu0 0
        %8317 = vmatprep.subr.bf16.mxu0 0
        %8318 = vmatpush2.bf16.msra.mxu0 0
        %8319 = vmatprep.mubr.bf16.mxu0 0
        %8320 = vmatmul.mubr.bf16.gmra.mxu0 %v8242
        %v8321 = vpop.f32.mrf.mxu0
        %v8322 = vadd.f32 0.0, %v8321
        %v8323 = vpop.f32.mrf.mxu0
        %v8324 = vpop.f32.mrf.mxu0
        %v8325 = vadd.f32 0.0, %v8324
        %v8326 = vpop.f32.mrf.mxu0
        %8327 = vdwg.mxu0
        %v8328 = vadd.f32 %v8199, %v8279
        %v8329 = vadd.f32 %v8200, %v8281
        %v8330 = vadd.f32 %v8201, %v8322
        %v8331 = vadd.f32 %v8202, %v8283
        %v8332 = vadd.f32 %v8203, %v8285
        %v8333 = vadd.f32 %v8204, %v8325
        %s8334 = scalar_lea.vmem %s5, 56
        %v8335 = vld [vmem:[%s8334] sm:$0xf]
        %v8336 = vld [vmem:[%s8334 + $0x4] sm:$0xf]
        %v8339 = vunpack.c.l.b16 %v8335
        %v8340 = vunpack.c.l.b16 %v8336
        %v8341 = vpack.c.b16 %v8340, %v8339
        %8342 = vrot.lane.b32.xlu0 %v7468, 79
        %v8343 = vpop.permute.xlu0 %8342
        %8344 = vrot.lane.b32.xlu0 %v7469, 79
        %v8345 = vpop.permute.xlu0 %8344
        %8346 = vrot.lane.b32.xlu0 %v7470, 79
        %v8347 = vpop.permute.xlu0 %8346
        %8348 = vrot.lane.b32.xlu0 %v7471, 79
        %v8349 = vpop.permute.xlu0 %8348
        %8350 = vrot.lane.b32.xlu0 %v7472, 79
        %v8351 = vpop.permute.xlu0 %8350
        %8352 = vrot.lane.b32.xlu0 %v7473, 79
        %v8353 = vpop.permute.xlu0 %8352
        %8354 = vrot.lane.b32.xlu0 %v7474, 79
        %v8355 = vpop.permute.xlu0 %8354
        %8356 = vrot.lane.b32.xlu0 %v7475, 79
        %v8357 = vpop.permute.xlu0 %8356
        %v8358 = vsel %vm1253, %v8343, %v8345
        %v8359 = vsel %vm1253, %v8345, %v8347
        %v8360 = vsel %vm1253, %v8347, %v8349
        %v8361 = vsel %vm1253, %v8351, %v8353
        %v8362 = vsel %vm1253, %v8353, %v8355
        %v8363 = vsel %vm1253, %v8355, %v8357
        %v8371 = vsel %vm3207, %v8341, 0
        %8373 = vmatprep.subr.bf16.mxu0 0
        %8374 = vmatpush1.bf16.msra.mxu0 0
        %8375 = vmatprep.subr.bf16.mxu0 0
        %8376 = vmatpush1.bf16.msra.mxu0 0
        %8377 = vmatprep.subr.bf16.mxu0 0
        %8378 = vmatpush1.bf16.msra.mxu0 0
        %8379 = vmatprep.subr.bf16.mxu0 0
        %8380 = vmatpush1.bf16.msra.mxu0 0
        %8381 = vmatprep.subr.bf16.mxu0 0
        %8382 = vmatpush1.bf16.msra.mxu0 0
        %8383 = vmatprep.subr.bf16.mxu0 0
        %8384 = vmatpush1.bf16.msra.mxu0 0
        %8385 = vmatprep.subr.bf16.mxu0 %v8362
        %8386 = vmatpush1.bf16.msra.mxu0 %v8361
        %8387 = vmatprep.subr.bf16.mxu0 %v8359
        %8388 = vmatpush1.bf16.msra.mxu0 %v8358
        %8389 = vmatprep.subr.bf16.mxu0 0
        %8390 = vmatpush2.bf16.msra.mxu0 0
        %8391 = vmatprep.subr.bf16.mxu0 0
        %8392 = vmatpush2.bf16.msra.mxu0 0
        %8393 = vmatprep.subr.bf16.mxu0 0
        %8394 = vmatpush2.bf16.msra.mxu0 0
        %8395 = vmatprep.subr.bf16.mxu0 0
        %8396 = vmatpush2.bf16.msra.mxu0 0
        %8397 = vmatprep.subr.bf16.mxu0 0
        %8398 = vmatpush2.bf16.msra.mxu0 0
        %8399 = vmatprep.subr.bf16.mxu0 0
        %8400 = vmatpush2.bf16.msra.mxu0 0
        %8401 = vmatprep.subr.bf16.mxu0 0
        %8402 = vmatpush2.bf16.msra.mxu0 0
        %8403 = vmatprep.subr.bf16.mxu0 0
        %8404 = vmatpush2.bf16.msra.mxu0 0
        %8405 = vmatprep.mubr.bf16.mxu0 0
        %8406 = vmatmul.mubr.bf16.gmra.mxu0 %v8371
        %v8407 = vpop.f32.mrf.mxu0
        %v8408 = vadd.f32 0.0, %v8407
        %v8409 = vpop.f32.mrf.mxu0
        %v8410 = vadd.f32 0.0, %v8409
        %v8411 = vpop.f32.mrf.mxu0
        %v8412 = vadd.f32 0.0, %v8411
        %v8413 = vpop.f32.mrf.mxu0
        %v8414 = vadd.f32 0.0, %v8413
        %8415 = vdwg.mxu0
        %8416 = vmatprep.subr.bf16.mxu0 0
        %8417 = vmatpush1.bf16.msra.mxu0 0
        %8418 = vmatprep.subr.bf16.mxu0 0
        %8419 = vmatpush1.bf16.msra.mxu0 0
        %8420 = vmatprep.subr.bf16.mxu0 0
        %8421 = vmatpush1.bf16.msra.mxu0 0
        %8422 = vmatprep.subr.bf16.mxu0 0
        %8423 = vmatpush1.bf16.msra.mxu0 0
        %8424 = vmatprep.subr.bf16.mxu0 0
        %8425 = vmatpush1.bf16.msra.mxu0 0
        %8426 = vmatprep.subr.bf16.mxu0 0
        %8427 = vmatpush1.bf16.msra.mxu0 0
        %8428 = vmatprep.subr.bf16.mxu0 0
        %8429 = vmatpush1.bf16.msra.mxu0 %v8363
        %8430 = vmatprep.subr.bf16.mxu0 0
        %8431 = vmatpush1.bf16.msra.mxu0 %v8360
        %8432 = vmatprep.subr.bf16.mxu0 0
        %8433 = vmatpush2.bf16.msra.mxu0 0
        %8434 = vmatprep.subr.bf16.mxu0 0
        %8435 = vmatpush2.bf16.msra.mxu0 0
        %8436 = vmatprep.subr.bf16.mxu0 0
        %8437 = vmatpush2.bf16.msra.mxu0 0
        %8438 = vmatprep.subr.bf16.mxu0 0
        %8439 = vmatpush2.bf16.msra.mxu0 0
        %8440 = vmatprep.subr.bf16.mxu0 0
        %8441 = vmatpush2.bf16.msra.mxu0 0
        %8442 = vmatprep.subr.bf16.mxu0 0
        %8443 = vmatpush2.bf16.msra.mxu0 0
        %8444 = vmatprep.subr.bf16.mxu0 0
        %8445 = vmatpush2.bf16.msra.mxu0 0
        %8446 = vmatprep.subr.bf16.mxu0 0
        %8447 = vmatpush2.bf16.msra.mxu0 0
        %8448 = vmatprep.mubr.bf16.mxu0 0
        %8449 = vmatmul.mubr.bf16.gmra.mxu0 %v8371
        %v8450 = vpop.f32.mrf.mxu0
        %v8451 = vadd.f32 0.0, %v8450
        %v8452 = vpop.f32.mrf.mxu0
        %v8453 = vpop.f32.mrf.mxu0
        %v8454 = vadd.f32 0.0, %v8453
        %v8455 = vpop.f32.mrf.mxu0
        %8456 = vdwg.mxu0
        %v8457 = vadd.f32 %v8328, %v8408
        %v8458 = vadd.f32 %v8329, %v8410
        %v8459 = vadd.f32 %v8330, %v8451
        %v8460 = vadd.f32 %v8331, %v8412
        %v8461 = vadd.f32 %v8332, %v8414
        %v8462 = vadd.f32 %v8333, %v8454
        %s8463 = scalar_lea.vmem %s5, 64
        %v8464 = vld [vmem:[%s8463] sm:$0xf]
        %v8465 = vld [vmem:[%s8463 + $0x4] sm:$0xf]
        %v8468 = vunpack.c.l.b16 %v8464
        %v8469 = vunpack.c.l.b16 %v8465
        %v8470 = vpack.c.b16 %v8469, %v8468
        %8471 = vrot.lane.b32.xlu0 %v7468, 78
        %v8472 = vpop.permute.xlu0 %8471
        %8473 = vrot.lane.b32.xlu0 %v7469, 78
        %v8474 = vpop.permute.xlu0 %8473
        %8475 = vrot.lane.b32.xlu0 %v7470, 78
        %v8476 = vpop.permute.xlu0 %8475
        %8477 = vrot.lane.b32.xlu0 %v7471, 78
        %v8478 = vpop.permute.xlu0 %8477
        %8479 = vrot.lane.b32.xlu0 %v7472, 78
        %v8480 = vpop.permute.xlu0 %8479
        %8481 = vrot.lane.b32.xlu0 %v7473, 78
        %v8482 = vpop.permute.xlu0 %8481
        %8483 = vrot.lane.b32.xlu0 %v7474, 78
        %v8484 = vpop.permute.xlu0 %8483
        %8485 = vrot.lane.b32.xlu0 %v7475, 78
        %v8486 = vpop.permute.xlu0 %8485
        %v8487 = vsel %vm1375, %v8472, %v8474
        %v8488 = vsel %vm1375, %v8474, %v8476
        %v8489 = vsel %vm1375, %v8476, %v8478
        %v8490 = vsel %vm1375, %v8480, %v8482
        %v8491 = vsel %vm1375, %v8482, %v8484
        %v8492 = vsel %vm1375, %v8484, %v8486
        %v8500 = vsel %vm3207, %v8470, 0
        %8502 = vmatprep.subr.bf16.mxu0 0
        %8503 = vmatpush1.bf16.msra.mxu0 0
        %8504 = vmatprep.subr.bf16.mxu0 0
        %8505 = vmatpush1.bf16.msra.mxu0 0
        %8506 = vmatprep.subr.bf16.mxu0 0
        %8507 = vmatpush1.bf16.msra.mxu0 0
        %8508 = vmatprep.subr.bf16.mxu0 0
        %8509 = vmatpush1.bf16.msra.mxu0 0
        %8510 = vmatprep.subr.bf16.mxu0 0
        %8511 = vmatpush1.bf16.msra.mxu0 0
        %8512 = vmatprep.subr.bf16.mxu0 0
        %8513 = vmatpush1.bf16.msra.mxu0 0
        %8514 = vmatprep.subr.bf16.mxu0 %v8491
        %8515 = vmatpush1.bf16.msra.mxu0 %v8490
        %8516 = vmatprep.subr.bf16.mxu0 %v8488
        %8517 = vmatpush1.bf16.msra.mxu0 %v8487
        %8518 = vmatprep.subr.bf16.mxu0 0
        %8519 = vmatpush2.bf16.msra.mxu0 0
        %8520 = vmatprep.subr.bf16.mxu0 0
        %8521 = vmatpush2.bf16.msra.mxu0 0
        %8522 = vmatprep.subr.bf16.mxu0 0
        %8523 = vmatpush2.bf16.msra.mxu0 0
        %8524 = vmatprep.subr.bf16.mxu0 0
        %8525 = vmatpush2.bf16.msra.mxu0 0
        %8526 = vmatprep.subr.bf16.mxu0 0
        %8527 = vmatpush2.bf16.msra.mxu0 0
        %8528 = vmatprep.subr.bf16.mxu0 0
        %8529 = vmatpush2.bf16.msra.mxu0 0
        %8530 = vmatprep.subr.bf16.mxu0 0
        %8531 = vmatpush2.bf16.msra.mxu0 0
        %8532 = vmatprep.subr.bf16.mxu0 0
        %8533 = vmatpush2.bf16.msra.mxu0 0
        %8534 = vmatprep.mubr.bf16.mxu0 0
        %8535 = vmatmul.mubr.bf16.gmra.mxu0 %v8500
        %v8536 = vpop.f32.mrf.mxu0
        %v8537 = vadd.f32 0.0, %v8536
        %v8538 = vpop.f32.mrf.mxu0
        %v8539 = vadd.f32 0.0, %v8538
        %v8540 = vpop.f32.mrf.mxu0
        %v8541 = vadd.f32 0.0, %v8540
        %v8542 = vpop.f32.mrf.mxu0
        %v8543 = vadd.f32 0.0, %v8542
        %8544 = vdwg.mxu0
        %8545 = vmatprep.subr.bf16.mxu0 0
        %8546 = vmatpush1.bf16.msra.mxu0 0
        %8547 = vmatprep.subr.bf16.mxu0 0
        %8548 = vmatpush1.bf16.msra.mxu0 0
        %8549 = vmatprep.subr.bf16.mxu0 0
        %8550 = vmatpush1.bf16.msra.mxu0 0
        %8551 = vmatprep.subr.bf16.mxu0 0
        %8552 = vmatpush1.bf16.msra.mxu0 0
        %8553 = vmatprep.subr.bf16.mxu0 0
        %8554 = vmatpush1.bf16.msra.mxu0 0
        %8555 = vmatprep.subr.bf16.mxu0 0
        %8556 = vmatpush1.bf16.msra.mxu0 0
        %8557 = vmatprep.subr.bf16.mxu0 0
        %8558 = vmatpush1.bf16.msra.mxu0 %v8492
        %8559 = vmatprep.subr.bf16.mxu0 0
        %8560 = vmatpush1.bf16.msra.mxu0 %v8489
        %8561 = vmatprep.subr.bf16.mxu0 0
        %8562 = vmatpush2.bf16.msra.mxu0 0
        %8563 = vmatprep.subr.bf16.mxu0 0
        %8564 = vmatpush2.bf16.msra.mxu0 0
        %8565 = vmatprep.subr.bf16.mxu0 0
        %8566 = vmatpush2.bf16.msra.mxu0 0
        %8567 = vmatprep.subr.bf16.mxu0 0
        %8568 = vmatpush2.bf16.msra.mxu0 0
        %8569 = vmatprep.subr.bf16.mxu0 0
        %8570 = vmatpush2.bf16.msra.mxu0 0
        %8571 = vmatprep.subr.bf16.mxu0 0
        %8572 = vmatpush2.bf16.msra.mxu0 0
        %8573 = vmatprep.subr.bf16.mxu0 0
        %8574 = vmatpush2.bf16.msra.mxu0 0
        %8575 = vmatprep.subr.bf16.mxu0 0
        %8576 = vmatpush2.bf16.msra.mxu0 0
        %8577 = vmatprep.mubr.bf16.mxu0 0
        %8578 = vmatmul.mubr.bf16.gmra.mxu0 %v8500
        %v8579 = vpop.f32.mrf.mxu0
        %v8580 = vadd.f32 0.0, %v8579
        %v8581 = vpop.f32.mrf.mxu0
        %v8582 = vpop.f32.mrf.mxu0
        %v8583 = vadd.f32 0.0, %v8582
        %v8584 = vpop.f32.mrf.mxu0
        %8585 = vdwg.mxu0
        %v8586 = vadd.f32 %v8457, %v8537
        %v8587 = vadd.f32 %v8458, %v8539
        %v8588 = vadd.f32 %v8459, %v8580
        %v8589 = vadd.f32 %v8460, %v8541
        %v8590 = vadd.f32 %v8461, %v8543
        %v8591 = vadd.f32 %v8462, %v8583
        %s8592 = scalar_lea.vmem %s7, 256
        %v8593 = vld [vmem:[%s8592] sm:$0xff]
        %v8594 = vld [vmem:[%s8592 + $0x8] sm:$0xff]
        %8596 = vset.pattern.permute.xlu0 0
        %8597 = vperm.xlu0 %8596, %v8593
        %v8598 = vpop.permute.xlu0 %8597
        %8601 = vset.pattern.permute.xlu0 0
        %8602 = vperm.xlu0 %8601, %v8594
        %v8603 = vpop.permute.xlu0 %8602
        %v8605 = vmul.f32 %v8586, %v8598
        %v8606 = vmul.f32 %v8587, %v8598
        %v8607 = vmul.f32 %v8588, %v8598
        %v8608 = vmul.f32 %v8589, %v8603
        %v8609 = vmul.f32 %v8590, %v8603
        %v8610 = vmul.f32 %v8591, %v8603
        %s8611 = scalar_lea.vmem %s8, 256
        %v8612 = vld [vmem:[%s8611] sm:$0xff]
        %v8613 = vld [vmem:[%s8611 + $0x8] sm:$0xff]
        %8615 = vset.pattern.permute.xlu0 0
        %8616 = vperm.xlu0 %8615, %v8612
        %v8617 = vpop.permute.xlu0 %8616
        %8620 = vset.pattern.permute.xlu0 0
        %8621 = vperm.xlu0 %8620, %v8613
        %v8622 = vpop.permute.xlu0 %8621
        %v8624 = vadd.f32 %v8605, %v8617
        %v8625 = vadd.f32 %v8606, %v8617
        %v8626 = vadd.f32 %v8607, %v8617
        %v8627 = vadd.f32 %v8608, %v8622
        %v8628 = vadd.f32 %v8609, %v8622
        %v8629 = vadd.f32 %v8610, %v8622
        %v8630 = vmax.f32 %v8624, 0.0
        %v8631 = vmax.f32 %v8625, 0.0
        %v8632 = vmax.f32 %v8626, 0.0
        %v8633 = vmax.f32 %v8627, 0.0
        %v8634 = vmax.f32 %v8628, 0.0
        %v8635 = vmax.f32 %v8629, 0.0
        %v8636 = vmul.f32 %v8630, %v1527
        %v8637 = vmul.f32 %v8631, %v1531
        %v8638 = vmul.f32 %v8632, %v1535
        %v8639 = vmul.f32 %v8633, %v1527
        %v8640 = vmul.f32 %v8634, %v1531
        %v8641 = vmul.f32 %v8635, %v1535
        %v8642 = vpack.c.bf16 %v8639, %v8636
        %v8643 = vpack.c.bf16 %v8640, %v8637
        %v8644 = vpack.c.bf16 %v8641, %v8638
        %v8648 = vunpack.c.l.b16 %v8642
        %v8649 = vunpack.c.l.b16 %v8643
        %v8650 = vunpack.c.l.b16 %v8644
        %v8651 = vunpack.c.h.b16 %v8642
        %v8652 = vunpack.c.h.b16 %v8643
        %v8653 = vunpack.c.h.b16 %v8644
        %v8654 = vpack.c.b16 %v8649, %v8648
        %v8655 = vpack.c.b16 %v8650, %v8650
        %v8656 = vpack.c.b16 %v8652, %v8651
        %v8657 = vpack.c.b16 %v8653, %v8653
        %8658 = vrot.lane.b32.xlu0 %v8654, 25
        %v8659 = vpop.permute.xlu0 %8658
        %8660 = vrot.lane.b32.xlu0 %v8655, 25
        %v8661 = vpop.permute.xlu0 %8660
        %8662 = vrot.lane.b32.xlu0 %v8656, 25
        %v8663 = vpop.permute.xlu0 %8662
        %8664 = vrot.lane.b32.xlu0 %v8657, 25
        %v8665 = vpop.permute.xlu0 %8664
        %v8666 = vrot.slane %v8659, 4
        %v8667 = vrot.slane %v8661, 4
        %v8668 = vrot.slane %v8663, 4
        %v8669 = vrot.slane %v8665, 4
        %v8670 = vsel %vm1573, %v8666, %v8659
        %v8671 = vsel %vm1575, %v8666, %v8667
        %v8672 = vsel %vm1573, %v8671, %v8661
        %v8673 = vsel %vm1573, %v8668, %v8663
        %v8674 = vsel %vm1575, %v8668, %v8669
        %v8675 = vsel %vm1573, %v8674, %v8665
        %8680 = vst.msk [vmem:[#allocation2] sm:$0xff] %vm1587, %v8670
        %8681 = vst.msk [vmem:[#allocation2 + $0x8] sm:$0xff] %vm1590, %v8672
        %8682 = vst.msk [vmem:[#allocation2 + $0x10] sm:$0xff] %vm1587, %v8673
        %8683 = vst.msk [vmem:[#allocation2 + $0x18] sm:$0xff] %vm1590, %v8675
        %v8684 = vld [vmem:[#allocation2] sm:$0xff]
        %v8685 = vld [vmem:[#allocation2 + $0x8] sm:$0xff]
        %v8686 = vld [vmem:[#allocation2 + $0x10] sm:$0xff]
        %v8687 = vld [vmem:[#allocation2 + $0x18] sm:$0xff]
        %v8688 = vld [vmem:[%s6] sm:$0xf]
        %s8689 = scalar_lea.vmem %s6, 4
        %v8690 = vld [vmem:[%s8689] sm:$0xf]
        %v8695 = vunpack.c.l.b16 %v8684
        %v8696 = vunpack.c.h.b16 %v8684
        %v8697 = vunpack.c.l.b16 %v8685
        %v8698 = vunpack.c.h.b16 %v8685
        %v8699 = vunpack.c.l.b16 %v8686
        %v8700 = vunpack.c.h.b16 %v8686
        %v8701 = vunpack.c.l.b16 %v8687
        %v8702 = vunpack.c.h.b16 %v8687
        %v8703 = vpack.c.b16 %v8699, %v8695
        %v8704 = vpack.c.b16 %v8700, %v8696
        %v8705 = vpack.c.b16 %v8701, %v8697
        %v8706 = vpack.c.b16 %v8702, %v8698
        %8707 = vrot.lane.b32.xlu0 %v8703, 127
        %v8708 = vpop.permute.xlu0 %8707
        %8709 = vrot.lane.b32.xlu0 %v8704, 127
        %v8710 = vpop.permute.xlu0 %8709
        %8711 = vrot.lane.b32.xlu0 %v8705, 127
        %v8712 = vpop.permute.xlu0 %8711
        %8713 = vrot.lane.b32.xlu0 %v8706, 127
        %v8714 = vpop.permute.xlu0 %8713
        %v8715 = vsel %vm424, %v8708, %v8710
        %v8716 = vsel %vm424, %v8710, %v8712
        %v8717 = vsel %vm424, %v8712, %v8714
        %v8722 = vsel %vm1647, %v8690, 0
        %8724 = vmatprep.subr.bf16.mxu0 0
        %8725 = vmatpush1.bf16.msra.mxu0 0
        %8726 = vmatprep.subr.bf16.mxu0 0
        %8727 = vmatpush1.bf16.msra.mxu0 0
        %8728 = vmatprep.subr.bf16.mxu0 0
        %8729 = vmatpush1.bf16.msra.mxu0 0
        %8730 = vmatprep.subr.bf16.mxu0 0
        %8731 = vmatpush1.bf16.msra.mxu0 0
        %8732 = vmatprep.subr.bf16.mxu0 0
        %8733 = vmatpush1.bf16.msra.mxu0 0
        %8734 = vmatprep.subr.bf16.mxu0 0
        %8735 = vmatpush1.bf16.msra.mxu0 0
        %8736 = vmatprep.subr.bf16.mxu0 0
        %8737 = vmatpush1.bf16.msra.mxu0 0
        %8738 = vmatprep.subr.bf16.mxu0 %v8716
        %8739 = vmatpush1.bf16.msra.mxu0 %v8715
        %8740 = vmatprep.subr.bf16.mxu0 0
        %8741 = vmatpush2.bf16.msra.mxu0 0
        %8742 = vmatprep.subr.bf16.mxu0 0
        %8743 = vmatpush2.bf16.msra.mxu0 0
        %8744 = vmatprep.subr.bf16.mxu0 0
        %8745 = vmatpush2.bf16.msra.mxu0 0
        %8746 = vmatprep.subr.bf16.mxu0 0
        %8747 = vmatpush2.bf16.msra.mxu0 0
        %8748 = vmatprep.subr.bf16.mxu0 0
        %8749 = vmatpush2.bf16.msra.mxu0 0
        %8750 = vmatprep.subr.bf16.mxu0 0
        %8751 = vmatpush2.bf16.msra.mxu0 0
        %8752 = vmatprep.subr.bf16.mxu0 0
        %8753 = vmatpush2.bf16.msra.mxu0 0
        %8754 = vmatprep.subr.bf16.mxu0 0
        %8755 = vmatpush2.bf16.msra.mxu0 0
        %8756 = vmatprep.mubr.bf16.mxu0 0
        %8757 = vmatmul.mubr.bf16.gmra.mxu0 %v8722
        %v8758 = vpop.f32.mrf.mxu0
        %v8759 = vadd.f32 0.0, %v8758
        %v8760 = vpop.f32.mrf.mxu0
        %v8761 = vadd.f32 0.0, %v8760
        %v8762 = vpop.f32.mrf.mxu0
        %v8763 = vpop.f32.mrf.mxu0
        %8764 = vdwg.mxu0
        %8765 = vmatprep.subr.bf16.mxu0 0
        %8766 = vmatpush1.bf16.msra.mxu0 0
        %8767 = vmatprep.subr.bf16.mxu0 0
        %8768 = vmatpush1.bf16.msra.mxu0 0
        %8769 = vmatprep.subr.bf16.mxu0 0
        %8770 = vmatpush1.bf16.msra.mxu0 0
        %8771 = vmatprep.subr.bf16.mxu0 0
        %8772 = vmatpush1.bf16.msra.mxu0 0
        %8773 = vmatprep.subr.bf16.mxu0 0
        %8774 = vmatpush1.bf16.msra.mxu0 0
        %8775 = vmatprep.subr.bf16.mxu0 0
        %8776 = vmatpush1.bf16.msra.mxu0 0
        %8777 = vmatprep.subr.bf16.mxu0 0
        %8778 = vmatpush1.bf16.msra.mxu0 0
        %8779 = vmatprep.subr.bf16.mxu0 0
        %8780 = vmatpush1.bf16.msra.mxu0 %v8717
        %8781 = vmatprep.subr.bf16.mxu0 0
        %8782 = vmatpush2.bf16.msra.mxu0 0
        %8783 = vmatprep.subr.bf16.mxu0 0
        %8784 = vmatpush2.bf16.msra.mxu0 0
        %8785 = vmatprep.subr.bf16.mxu0 0
        %8786 = vmatpush2.bf16.msra.mxu0 0
        %8787 = vmatprep.subr.bf16.mxu0 0
        %8788 = vmatpush2.bf16.msra.mxu0 0
        %8789 = vmatprep.subr.bf16.mxu0 0
        %8790 = vmatpush2.bf16.msra.mxu0 0
        %8791 = vmatprep.subr.bf16.mxu0 0
        %8792 = vmatpush2.bf16.msra.mxu0 0
        %8793 = vmatprep.subr.bf16.mxu0 0
        %8794 = vmatpush2.bf16.msra.mxu0 0
        %8795 = vmatprep.subr.bf16.mxu0 0
        %8796 = vmatpush2.bf16.msra.mxu0 0
        %8797 = vmatprep.mubr.bf16.mxu0 0
        %8798 = vmatmul.mubr.bf16.gmra.mxu0 %v8722
        %v8799 = vpop.f32.mrf.mxu0
        %v8800 = vadd.f32 0.0, %v8799
        %v8801 = vpop.f32.mrf.mxu0
        %v8802 = vpop.f32.mrf.mxu0
        %v8803 = vpop.f32.mrf.mxu0
        %8804 = vdwg.mxu0
        %v8809 = vsel %vm1647, %v8688, 0
        %8811 = vmatprep.subr.bf16.mxu0 0
        %8812 = vmatpush1.bf16.msra.mxu0 0
        %8813 = vmatprep.subr.bf16.mxu0 0
        %8814 = vmatpush1.bf16.msra.mxu0 0
        %8815 = vmatprep.subr.bf16.mxu0 0
        %8816 = vmatpush1.bf16.msra.mxu0 0
        %8817 = vmatprep.subr.bf16.mxu0 0
        %8818 = vmatpush1.bf16.msra.mxu0 0
        %8819 = vmatprep.subr.bf16.mxu0 0
        %8820 = vmatpush1.bf16.msra.mxu0 0
        %8821 = vmatprep.subr.bf16.mxu0 0
        %8822 = vmatpush1.bf16.msra.mxu0 0
        %8823 = vmatprep.subr.bf16.mxu0 0
        %8824 = vmatpush1.bf16.msra.mxu0 0
        %8825 = vmatprep.subr.bf16.mxu0 %v8704
        %8826 = vmatpush1.bf16.msra.mxu0 %v8703
        %8827 = vmatprep.subr.bf16.mxu0 0
        %8828 = vmatpush2.bf16.msra.mxu0 0
        %8829 = vmatprep.subr.bf16.mxu0 0
        %8830 = vmatpush2.bf16.msra.mxu0 0
        %8831 = vmatprep.subr.bf16.mxu0 0
        %8832 = vmatpush2.bf16.msra.mxu0 0
        %8833 = vmatprep.subr.bf16.mxu0 0
        %8834 = vmatpush2.bf16.msra.mxu0 0
        %8835 = vmatprep.subr.bf16.mxu0 0
        %8836 = vmatpush2.bf16.msra.mxu0 0
        %8837 = vmatprep.subr.bf16.mxu0 0
        %8838 = vmatpush2.bf16.msra.mxu0 0
        %8839 = vmatprep.subr.bf16.mxu0 0
        %8840 = vmatpush2.bf16.msra.mxu0 0
        %8841 = vmatprep.subr.bf16.mxu0 0
        %8842 = vmatpush2.bf16.msra.mxu0 0
        %8843 = vmatprep.mubr.bf16.mxu0 0
        %8844 = vmatmul.mubr.bf16.gmra.mxu0 %v8809
        %v8845 = vpop.f32.mrf.mxu0
        %v8846 = vadd.f32 %v8759, %v8845
        %v8847 = vpop.f32.mrf.mxu0
        %v8848 = vadd.f32 %v8761, %v8847
        %v8849 = vpop.f32.mrf.mxu0
        %v8850 = vpop.f32.mrf.mxu0
        %8851 = vdwg.mxu0
        %8852 = vmatprep.subr.bf16.mxu0 0
        %8853 = vmatpush1.bf16.msra.mxu0 0
        %8854 = vmatprep.subr.bf16.mxu0 0
        %8855 = vmatpush1.bf16.msra.mxu0 0
        %8856 = vmatprep.subr.bf16.mxu0 0
        %8857 = vmatpush1.bf16.msra.mxu0 0
        %8858 = vmatprep.subr.bf16.mxu0 0
        %8859 = vmatpush1.bf16.msra.mxu0 0
        %8860 = vmatprep.subr.bf16.mxu0 0
        %8861 = vmatpush1.bf16.msra.mxu0 0
        %8862 = vmatprep.subr.bf16.mxu0 0
        %8863 = vmatpush1.bf16.msra.mxu0 0
        %8864 = vmatprep.subr.bf16.mxu0 0
        %8865 = vmatpush1.bf16.msra.mxu0 0
        %8866 = vmatprep.subr.bf16.mxu0 0
        %8867 = vmatpush1.bf16.msra.mxu0 %v8705
        %8868 = vmatprep.subr.bf16.mxu0 0
        %8869 = vmatpush2.bf16.msra.mxu0 0
        %8870 = vmatprep.subr.bf16.mxu0 0
        %8871 = vmatpush2.bf16.msra.mxu0 0
        %8872 = vmatprep.subr.bf16.mxu0 0
        %8873 = vmatpush2.bf16.msra.mxu0 0
        %8874 = vmatprep.subr.bf16.mxu0 0
        %8875 = vmatpush2.bf16.msra.mxu0 0
        %8876 = vmatprep.subr.bf16.mxu0 0
        %8877 = vmatpush2.bf16.msra.mxu0 0
        %8878 = vmatprep.subr.bf16.mxu0 0
        %8879 = vmatpush2.bf16.msra.mxu0 0
        %8880 = vmatprep.subr.bf16.mxu0 0
        %8881 = vmatpush2.bf16.msra.mxu0 0
        %8882 = vmatprep.subr.bf16.mxu0 0
        %8883 = vmatpush2.bf16.msra.mxu0 0
        %8884 = vmatprep.mubr.bf16.mxu0 0
        %8885 = vmatmul.mubr.bf16.gmra.mxu0 %v8809
        %v8886 = vpop.f32.mrf.mxu0
        %v8887 = vadd.f32 %v8800, %v8886
        %v8888 = vpop.f32.mrf.mxu0
        %v8889 = vpop.f32.mrf.mxu0
        %v8890 = vpop.f32.mrf.mxu0
        %8891 = vdwg.mxu0
        %s8892 = scalar_lea.vmem %s6, 8
        %v8893 = vld [vmem:[%s8892] sm:$0xf]
        %8894 = vrot.lane.b32.xlu0 %v8703, 126
        %v8895 = vpop.permute.xlu0 %8894
        %8896 = vrot.lane.b32.xlu0 %v8704, 126
        %v8897 = vpop.permute.xlu0 %8896
        %8898 = vrot.lane.b32.xlu0 %v8705, 126
        %v8899 = vpop.permute.xlu0 %8898
        %8900 = vrot.lane.b32.xlu0 %v8706, 126
        %v8901 = vpop.permute.xlu0 %8900
        %v8902 = vsel %vm643, %v8895, %v8897
        %v8903 = vsel %vm643, %v8897, %v8899
        %v8904 = vsel %vm643, %v8899, %v8901
        %v8909 = vsel %vm1647, %v8893, 0
        %8911 = vmatprep.subr.bf16.mxu0 0
        %8912 = vmatpush1.bf16.msra.mxu0 0
        %8913 = vmatprep.subr.bf16.mxu0 0
        %8914 = vmatpush1.bf16.msra.mxu0 0
        %8915 = vmatprep.subr.bf16.mxu0 0
        %8916 = vmatpush1.bf16.msra.mxu0 0
        %8917 = vmatprep.subr.bf16.mxu0 0
        %8918 = vmatpush1.bf16.msra.mxu0 0
        %8919 = vmatprep.subr.bf16.mxu0 0
        %8920 = vmatpush1.bf16.msra.mxu0 0
        %8921 = vmatprep.subr.bf16.mxu0 0
        %8922 = vmatpush1.bf16.msra.mxu0 0
        %8923 = vmatprep.subr.bf16.mxu0 0
        %8924 = vmatpush1.bf16.msra.mxu0 0
        %8925 = vmatprep.subr.bf16.mxu0 %v8903
        %8926 = vmatpush1.bf16.msra.mxu0 %v8902
        %8927 = vmatprep.subr.bf16.mxu0 0
        %8928 = vmatpush2.bf16.msra.mxu0 0
        %8929 = vmatprep.subr.bf16.mxu0 0
        %8930 = vmatpush2.bf16.msra.mxu0 0
        %8931 = vmatprep.subr.bf16.mxu0 0
        %8932 = vmatpush2.bf16.msra.mxu0 0
        %8933 = vmatprep.subr.bf16.mxu0 0
        %8934 = vmatpush2.bf16.msra.mxu0 0
        %8935 = vmatprep.subr.bf16.mxu0 0
        %8936 = vmatpush2.bf16.msra.mxu0 0
        %8937 = vmatprep.subr.bf16.mxu0 0
        %8938 = vmatpush2.bf16.msra.mxu0 0
        %8939 = vmatprep.subr.bf16.mxu0 0
        %8940 = vmatpush2.bf16.msra.mxu0 0
        %8941 = vmatprep.subr.bf16.mxu0 0
        %8942 = vmatpush2.bf16.msra.mxu0 0
        %8943 = vmatprep.mubr.bf16.mxu0 0
        %8944 = vmatmul.mubr.bf16.gmra.mxu0 %v8909
        %v8945 = vpop.f32.mrf.mxu0
        %v8946 = vadd.f32 0.0, %v8945
        %v8947 = vpop.f32.mrf.mxu0
        %v8948 = vadd.f32 0.0, %v8947
        %v8949 = vpop.f32.mrf.mxu0
        %v8950 = vpop.f32.mrf.mxu0
        %8951 = vdwg.mxu0
        %8952 = vmatprep.subr.bf16.mxu0 0
        %8953 = vmatpush1.bf16.msra.mxu0 0
        %8954 = vmatprep.subr.bf16.mxu0 0
        %8955 = vmatpush1.bf16.msra.mxu0 0
        %8956 = vmatprep.subr.bf16.mxu0 0
        %8957 = vmatpush1.bf16.msra.mxu0 0
        %8958 = vmatprep.subr.bf16.mxu0 0
        %8959 = vmatpush1.bf16.msra.mxu0 0
        %8960 = vmatprep.subr.bf16.mxu0 0
        %8961 = vmatpush1.bf16.msra.mxu0 0
        %8962 = vmatprep.subr.bf16.mxu0 0
        %8963 = vmatpush1.bf16.msra.mxu0 0
        %8964 = vmatprep.subr.bf16.mxu0 0
        %8965 = vmatpush1.bf16.msra.mxu0 0
        %8966 = vmatprep.subr.bf16.mxu0 0
        %8967 = vmatpush1.bf16.msra.mxu0 %v8904
        %8968 = vmatprep.subr.bf16.mxu0 0
        %8969 = vmatpush2.bf16.msra.mxu0 0
        %8970 = vmatprep.subr.bf16.mxu0 0
        %8971 = vmatpush2.bf16.msra.mxu0 0
        %8972 = vmatprep.subr.bf16.mxu0 0
        %8973 = vmatpush2.bf16.msra.mxu0 0
        %8974 = vmatprep.subr.bf16.mxu0 0
        %8975 = vmatpush2.bf16.msra.mxu0 0
        %8976 = vmatprep.subr.bf16.mxu0 0
        %8977 = vmatpush2.bf16.msra.mxu0 0
        %8978 = vmatprep.subr.bf16.mxu0 0
        %8979 = vmatpush2.bf16.msra.mxu0 0
        %8980 = vmatprep.subr.bf16.mxu0 0
        %8981 = vmatpush2.bf16.msra.mxu0 0
        %8982 = vmatprep.subr.bf16.mxu0 0
        %8983 = vmatpush2.bf16.msra.mxu0 0
        %8984 = vmatprep.mubr.bf16.mxu0 0
        %8985 = vmatmul.mubr.bf16.gmra.mxu0 %v8909
        %v8986 = vpop.f32.mrf.mxu0
        %v8987 = vadd.f32 0.0, %v8986
        %v8988 = vpop.f32.mrf.mxu0
        %v8989 = vpop.f32.mrf.mxu0
        %v8990 = vpop.f32.mrf.mxu0
        %8991 = vdwg.mxu0
        %v8992 = vadd.f32 %v8846, %v8946
        %v8993 = vadd.f32 %v8848, %v8948
        %v8994 = vadd.f32 %v8887, %v8987
        %s8995 = scalar_lea.vmem %s6, 12
        %v8996 = vld [vmem:[%s8995] sm:$0xf]
        %8997 = vrot.lane.b32.xlu0 %v8703, 104
        %v8998 = vpop.permute.xlu0 %8997
        %8999 = vrot.lane.b32.xlu0 %v8704, 104
        %v9000 = vpop.permute.xlu0 %8999
        %9001 = vrot.lane.b32.xlu0 %v8705, 104
        %v9002 = vpop.permute.xlu0 %9001
        %9003 = vrot.lane.b32.xlu0 %v8706, 104
        %v9004 = vpop.permute.xlu0 %9003
        %v9005 = vsel %vm765, %v8998, %v9000
        %v9006 = vsel %vm765, %v9000, %v9002
        %v9007 = vsel %vm765, %v9002, %v9004
        %v9012 = vsel %vm1647, %v8996, 0
        %9014 = vmatprep.subr.bf16.mxu0 0
        %9015 = vmatpush1.bf16.msra.mxu0 0
        %9016 = vmatprep.subr.bf16.mxu0 0
        %9017 = vmatpush1.bf16.msra.mxu0 0
        %9018 = vmatprep.subr.bf16.mxu0 0
        %9019 = vmatpush1.bf16.msra.mxu0 0
        %9020 = vmatprep.subr.bf16.mxu0 0
        %9021 = vmatpush1.bf16.msra.mxu0 0
        %9022 = vmatprep.subr.bf16.mxu0 0
        %9023 = vmatpush1.bf16.msra.mxu0 0
        %9024 = vmatprep.subr.bf16.mxu0 0
        %9025 = vmatpush1.bf16.msra.mxu0 0
        %9026 = vmatprep.subr.bf16.mxu0 0
        %9027 = vmatpush1.bf16.msra.mxu0 0
        %9028 = vmatprep.subr.bf16.mxu0 %v9006
        %9029 = vmatpush1.bf16.msra.mxu0 %v9005
        %9030 = vmatprep.subr.bf16.mxu0 0
        %9031 = vmatpush2.bf16.msra.mxu0 0
        %9032 = vmatprep.subr.bf16.mxu0 0
        %9033 = vmatpush2.bf16.msra.mxu0 0
        %9034 = vmatprep.subr.bf16.mxu0 0
        %9035 = vmatpush2.bf16.msra.mxu0 0
        %9036 = vmatprep.subr.bf16.mxu0 0
        %9037 = vmatpush2.bf16.msra.mxu0 0
        %9038 = vmatprep.subr.bf16.mxu0 0
        %9039 = vmatpush2.bf16.msra.mxu0 0
        %9040 = vmatprep.subr.bf16.mxu0 0
        %9041 = vmatpush2.bf16.msra.mxu0 0
        %9042 = vmatprep.subr.bf16.mxu0 0
        %9043 = vmatpush2.bf16.msra.mxu0 0
        %9044 = vmatprep.subr.bf16.mxu0 0
        %9045 = vmatpush2.bf16.msra.mxu0 0
        %9046 = vmatprep.mubr.bf16.mxu0 0
        %9047 = vmatmul.mubr.bf16.gmra.mxu0 %v9012
        %v9048 = vpop.f32.mrf.mxu0
        %v9049 = vadd.f32 0.0, %v9048
        %v9050 = vpop.f32.mrf.mxu0
        %v9051 = vadd.f32 0.0, %v9050
        %v9052 = vpop.f32.mrf.mxu0
        %v9053 = vpop.f32.mrf.mxu0
        %9054 = vdwg.mxu0
        %9055 = vmatprep.subr.bf16.mxu0 0
        %9056 = vmatpush1.bf16.msra.mxu0 0
        %9057 = vmatprep.subr.bf16.mxu0 0
        %9058 = vmatpush1.bf16.msra.mxu0 0
        %9059 = vmatprep.subr.bf16.mxu0 0
        %9060 = vmatpush1.bf16.msra.mxu0 0
        %9061 = vmatprep.subr.bf16.mxu0 0
        %9062 = vmatpush1.bf16.msra.mxu0 0
        %9063 = vmatprep.subr.bf16.mxu0 0
        %9064 = vmatpush1.bf16.msra.mxu0 0
        %9065 = vmatprep.subr.bf16.mxu0 0
        %9066 = vmatpush1.bf16.msra.mxu0 0
        %9067 = vmatprep.subr.bf16.mxu0 0
        %9068 = vmatpush1.bf16.msra.mxu0 0
        %9069 = vmatprep.subr.bf16.mxu0 0
        %9070 = vmatpush1.bf16.msra.mxu0 %v9007
        %9071 = vmatprep.subr.bf16.mxu0 0
        %9072 = vmatpush2.bf16.msra.mxu0 0
        %9073 = vmatprep.subr.bf16.mxu0 0
        %9074 = vmatpush2.bf16.msra.mxu0 0
        %9075 = vmatprep.subr.bf16.mxu0 0
        %9076 = vmatpush2.bf16.msra.mxu0 0
        %9077 = vmatprep.subr.bf16.mxu0 0
        %9078 = vmatpush2.bf16.msra.mxu0 0
        %9079 = vmatprep.subr.bf16.mxu0 0
        %9080 = vmatpush2.bf16.msra.mxu0 0
        %9081 = vmatprep.subr.bf16.mxu0 0
        %9082 = vmatpush2.bf16.msra.mxu0 0
        %9083 = vmatprep.subr.bf16.mxu0 0
        %9084 = vmatpush2.bf16.msra.mxu0 0
        %9085 = vmatprep.subr.bf16.mxu0 0
        %9086 = vmatpush2.bf16.msra.mxu0 0
        %9087 = vmatprep.mubr.bf16.mxu0 0
        %9088 = vmatmul.mubr.bf16.gmra.mxu0 %v9012
        %v9089 = vpop.f32.mrf.mxu0
        %v9090 = vadd.f32 0.0, %v9089
        %v9091 = vpop.f32.mrf.mxu0
        %v9092 = vpop.f32.mrf.mxu0
        %v9093 = vpop.f32.mrf.mxu0
        %9094 = vdwg.mxu0
        %v9095 = vadd.f32 %v8992, %v9049
        %v9096 = vadd.f32 %v8993, %v9051
        %v9097 = vadd.f32 %v8994, %v9090
        %s9098 = scalar_lea.vmem %s6, 16
        %v9099 = vld [vmem:[%s9098] sm:$0xf]
        %9100 = vrot.lane.b32.xlu0 %v8703, 103
        %v9101 = vpop.permute.xlu0 %9100
        %9102 = vrot.lane.b32.xlu0 %v8704, 103
        %v9103 = vpop.permute.xlu0 %9102
        %9104 = vrot.lane.b32.xlu0 %v8705, 103
        %v9105 = vpop.permute.xlu0 %9104
        %9106 = vrot.lane.b32.xlu0 %v8706, 103
        %v9107 = vpop.permute.xlu0 %9106
        %v9108 = vsel %vm887, %v9101, %v9103
        %v9109 = vsel %vm887, %v9103, %v9105
        %v9110 = vsel %vm887, %v9105, %v9107
        %v9115 = vsel %vm1647, %v9099, 0
        %9117 = vmatprep.subr.bf16.mxu0 0
        %9118 = vmatpush1.bf16.msra.mxu0 0
        %9119 = vmatprep.subr.bf16.mxu0 0
        %9120 = vmatpush1.bf16.msra.mxu0 0
        %9121 = vmatprep.subr.bf16.mxu0 0
        %9122 = vmatpush1.bf16.msra.mxu0 0
        %9123 = vmatprep.subr.bf16.mxu0 0
        %9124 = vmatpush1.bf16.msra.mxu0 0
        %9125 = vmatprep.subr.bf16.mxu0 0
        %9126 = vmatpush1.bf16.msra.mxu0 0
        %9127 = vmatprep.subr.bf16.mxu0 0
        %9128 = vmatpush1.bf16.msra.mxu0 0
        %9129 = vmatprep.subr.bf16.mxu0 0
        %9130 = vmatpush1.bf16.msra.mxu0 0
        %9131 = vmatprep.subr.bf16.mxu0 %v9109
        %9132 = vmatpush1.bf16.msra.mxu0 %v9108
        %9133 = vmatprep.subr.bf16.mxu0 0
        %9134 = vmatpush2.bf16.msra.mxu0 0
        %9135 = vmatprep.subr.bf16.mxu0 0
        %9136 = vmatpush2.bf16.msra.mxu0 0
        %9137 = vmatprep.subr.bf16.mxu0 0
        %9138 = vmatpush2.bf16.msra.mxu0 0
        %9139 = vmatprep.subr.bf16.mxu0 0
        %9140 = vmatpush2.bf16.msra.mxu0 0
        %9141 = vmatprep.subr.bf16.mxu0 0
        %9142 = vmatpush2.bf16.msra.mxu0 0
        %9143 = vmatprep.subr.bf16.mxu0 0
        %9144 = vmatpush2.bf16.msra.mxu0 0
        %9145 = vmatprep.subr.bf16.mxu0 0
        %9146 = vmatpush2.bf16.msra.mxu0 0
        %9147 = vmatprep.subr.bf16.mxu0 0
        %9148 = vmatpush2.bf16.msra.mxu0 0
        %9149 = vmatprep.mubr.bf16.mxu0 0
        %9150 = vmatmul.mubr.bf16.gmra.mxu0 %v9115
        %v9151 = vpop.f32.mrf.mxu0
        %v9152 = vadd.f32 0.0, %v9151
        %v9153 = vpop.f32.mrf.mxu0
        %v9154 = vadd.f32 0.0, %v9153
        %v9155 = vpop.f32.mrf.mxu0
        %v9156 = vpop.f32.mrf.mxu0
        %9157 = vdwg.mxu0
        %9158 = vmatprep.subr.bf16.mxu0 0
        %9159 = vmatpush1.bf16.msra.mxu0 0
        %9160 = vmatprep.subr.bf16.mxu0 0
        %9161 = vmatpush1.bf16.msra.mxu0 0
        %9162 = vmatprep.subr.bf16.mxu0 0
        %9163 = vmatpush1.bf16.msra.mxu0 0
        %9164 = vmatprep.subr.bf16.mxu0 0
        %9165 = vmatpush1.bf16.msra.mxu0 0
        %9166 = vmatprep.subr.bf16.mxu0 0
        %9167 = vmatpush1.bf16.msra.mxu0 0
        %9168 = vmatprep.subr.bf16.mxu0 0
        %9169 = vmatpush1.bf16.msra.mxu0 0
        %9170 = vmatprep.subr.bf16.mxu0 0
        %9171 = vmatpush1.bf16.msra.mxu0 0
        %9172 = vmatprep.subr.bf16.mxu0 0
        %9173 = vmatpush1.bf16.msra.mxu0 %v9110
        %9174 = vmatprep.subr.bf16.mxu0 0
        %9175 = vmatpush2.bf16.msra.mxu0 0
        %9176 = vmatprep.subr.bf16.mxu0 0
        %9177 = vmatpush2.bf16.msra.mxu0 0
        %9178 = vmatprep.subr.bf16.mxu0 0
        %9179 = vmatpush2.bf16.msra.mxu0 0
        %9180 = vmatprep.subr.bf16.mxu0 0
        %9181 = vmatpush2.bf16.msra.mxu0 0
        %9182 = vmatprep.subr.bf16.mxu0 0
        %9183 = vmatpush2.bf16.msra.mxu0 0
        %9184 = vmatprep.subr.bf16.mxu0 0
        %9185 = vmatpush2.bf16.msra.mxu0 0
        %9186 = vmatprep.subr.bf16.mxu0 0
        %9187 = vmatpush2.bf16.msra.mxu0 0
        %9188 = vmatprep.subr.bf16.mxu0 0
        %9189 = vmatpush2.bf16.msra.mxu0 0
        %9190 = vmatprep.mubr.bf16.mxu0 0
        %9191 = vmatmul.mubr.bf16.gmra.mxu0 %v9115
        %v9192 = vpop.f32.mrf.mxu0
        %v9193 = vadd.f32 0.0, %v9192
        %v9194 = vpop.f32.mrf.mxu0
        %v9195 = vpop.f32.mrf.mxu0
        %v9196 = vpop.f32.mrf.mxu0
        %9197 = vdwg.mxu0
        %v9198 = vadd.f32 %v9095, %v9152
        %v9199 = vadd.f32 %v9096, %v9154
        %v9200 = vadd.f32 %v9097, %v9193
        %s9201 = scalar_lea.vmem %s6, 20
        %v9202 = vld [vmem:[%s9201] sm:$0xf]
        %9203 = vrot.lane.b32.xlu0 %v8703, 102
        %v9204 = vpop.permute.xlu0 %9203
        %9205 = vrot.lane.b32.xlu0 %v8704, 102
        %v9206 = vpop.permute.xlu0 %9205
        %9207 = vrot.lane.b32.xlu0 %v8705, 102
        %v9208 = vpop.permute.xlu0 %9207
        %9209 = vrot.lane.b32.xlu0 %v8706, 102
        %v9210 = vpop.permute.xlu0 %9209
        %v9211 = vsel %vm1009, %v9204, %v9206
        %v9212 = vsel %vm1009, %v9206, %v9208
        %v9213 = vsel %vm1009, %v9208, %v9210
        %v9218 = vsel %vm1647, %v9202, 0
        %9220 = vmatprep.subr.bf16.mxu0 0
        %9221 = vmatpush1.bf16.msra.mxu0 0
        %9222 = vmatprep.subr.bf16.mxu0 0
        %9223 = vmatpush1.bf16.msra.mxu0 0
        %9224 = vmatprep.subr.bf16.mxu0 0
        %9225 = vmatpush1.bf16.msra.mxu0 0
        %9226 = vmatprep.subr.bf16.mxu0 0
        %9227 = vmatpush1.bf16.msra.mxu0 0
        %9228 = vmatprep.subr.bf16.mxu0 0
        %9229 = vmatpush1.bf16.msra.mxu0 0
        %9230 = vmatprep.subr.bf16.mxu0 0
        %9231 = vmatpush1.bf16.msra.mxu0 0
        %9232 = vmatprep.subr.bf16.mxu0 0
        %9233 = vmatpush1.bf16.msra.mxu0 0
        %9234 = vmatprep.subr.bf16.mxu0 %v9212
        %9235 = vmatpush1.bf16.msra.mxu0 %v9211
        %9236 = vmatprep.subr.bf16.mxu0 0
        %9237 = vmatpush2.bf16.msra.mxu0 0
        %9238 = vmatprep.subr.bf16.mxu0 0
        %9239 = vmatpush2.bf16.msra.mxu0 0
        %9240 = vmatprep.subr.bf16.mxu0 0
        %9241 = vmatpush2.bf16.msra.mxu0 0
        %9242 = vmatprep.subr.bf16.mxu0 0
        %9243 = vmatpush2.bf16.msra.mxu0 0
        %9244 = vmatprep.subr.bf16.mxu0 0
        %9245 = vmatpush2.bf16.msra.mxu0 0
        %9246 = vmatprep.subr.bf16.mxu0 0
        %9247 = vmatpush2.bf16.msra.mxu0 0
        %9248 = vmatprep.subr.bf16.mxu0 0
        %9249 = vmatpush2.bf16.msra.mxu0 0
        %9250 = vmatprep.subr.bf16.mxu0 0
        %9251 = vmatpush2.bf16.msra.mxu0 0
        %9252 = vmatprep.mubr.bf16.mxu0 0
        %9253 = vmatmul.mubr.bf16.gmra.mxu0 %v9218
        %v9254 = vpop.f32.mrf.mxu0
        %v9255 = vadd.f32 0.0, %v9254
        %v9256 = vpop.f32.mrf.mxu0
        %v9257 = vadd.f32 0.0, %v9256
        %v9258 = vpop.f32.mrf.mxu0
        %v9259 = vpop.f32.mrf.mxu0
        %9260 = vdwg.mxu0
        %9261 = vmatprep.subr.bf16.mxu0 0
        %9262 = vmatpush1.bf16.msra.mxu0 0
        %9263 = vmatprep.subr.bf16.mxu0 0
        %9264 = vmatpush1.bf16.msra.mxu0 0
        %9265 = vmatprep.subr.bf16.mxu0 0
        %9266 = vmatpush1.bf16.msra.mxu0 0
        %9267 = vmatprep.subr.bf16.mxu0 0
        %9268 = vmatpush1.bf16.msra.mxu0 0
        %9269 = vmatprep.subr.bf16.mxu0 0
        %9270 = vmatpush1.bf16.msra.mxu0 0
        %9271 = vmatprep.subr.bf16.mxu0 0
        %9272 = vmatpush1.bf16.msra.mxu0 0
        %9273 = vmatprep.subr.bf16.mxu0 0
        %9274 = vmatpush1.bf16.msra.mxu0 0
        %9275 = vmatprep.subr.bf16.mxu0 0
        %9276 = vmatpush1.bf16.msra.mxu0 %v9213
        %9277 = vmatprep.subr.bf16.mxu0 0
        %9278 = vmatpush2.bf16.msra.mxu0 0
        %9279 = vmatprep.subr.bf16.mxu0 0
        %9280 = vmatpush2.bf16.msra.mxu0 0
        %9281 = vmatprep.subr.bf16.mxu0 0
        %9282 = vmatpush2.bf16.msra.mxu0 0
        %9283 = vmatprep.subr.bf16.mxu0 0
        %9284 = vmatpush2.bf16.msra.mxu0 0
        %9285 = vmatprep.subr.bf16.mxu0 0
        %9286 = vmatpush2.bf16.msra.mxu0 0
        %9287 = vmatprep.subr.bf16.mxu0 0
        %9288 = vmatpush2.bf16.msra.mxu0 0
        %9289 = vmatprep.subr.bf16.mxu0 0
        %9290 = vmatpush2.bf16.msra.mxu0 0
        %9291 = vmatprep.subr.bf16.mxu0 0
        %9292 = vmatpush2.bf16.msra.mxu0 0
        %9293 = vmatprep.mubr.bf16.mxu0 0
        %9294 = vmatmul.mubr.bf16.gmra.mxu0 %v9218
        %v9295 = vpop.f32.mrf.mxu0
        %v9296 = vadd.f32 0.0, %v9295
        %v9297 = vpop.f32.mrf.mxu0
        %v9298 = vpop.f32.mrf.mxu0
        %v9299 = vpop.f32.mrf.mxu0
        %9300 = vdwg.mxu0
        %v9301 = vadd.f32 %v9198, %v9255
        %v9302 = vadd.f32 %v9199, %v9257
        %v9303 = vadd.f32 %v9200, %v9296
        %s9304 = scalar_lea.vmem %s6, 24
        %v9305 = vld [vmem:[%s9304] sm:$0xf]
        %9306 = vrot.lane.b32.xlu0 %v8703, 80
        %v9307 = vpop.permute.xlu0 %9306
        %9308 = vrot.lane.b32.xlu0 %v8704, 80
        %v9309 = vpop.permute.xlu0 %9308
        %9310 = vrot.lane.b32.xlu0 %v8705, 80
        %v9311 = vpop.permute.xlu0 %9310
        %9312 = vrot.lane.b32.xlu0 %v8706, 80
        %v9313 = vpop.permute.xlu0 %9312
        %v9314 = vsel %vm1131, %v9307, %v9309
        %v9315 = vsel %vm1131, %v9309, %v9311
        %v9316 = vsel %vm1131, %v9311, %v9313
        %v9321 = vsel %vm1647, %v9305, 0
        %9323 = vmatprep.subr.bf16.mxu0 0
        %9324 = vmatpush1.bf16.msra.mxu0 0
        %9325 = vmatprep.subr.bf16.mxu0 0
        %9326 = vmatpush1.bf16.msra.mxu0 0
        %9327 = vmatprep.subr.bf16.mxu0 0
        %9328 = vmatpush1.bf16.msra.mxu0 0
        %9329 = vmatprep.subr.bf16.mxu0 0
        %9330 = vmatpush1.bf16.msra.mxu0 0
        %9331 = vmatprep.subr.bf16.mxu0 0
        %9332 = vmatpush1.bf16.msra.mxu0 0
        %9333 = vmatprep.subr.bf16.mxu0 0
        %9334 = vmatpush1.bf16.msra.mxu0 0
        %9335 = vmatprep.subr.bf16.mxu0 0
        %9336 = vmatpush1.bf16.msra.mxu0 0
        %9337 = vmatprep.subr.bf16.mxu0 %v9315
        %9338 = vmatpush1.bf16.msra.mxu0 %v9314
        %9339 = vmatprep.subr.bf16.mxu0 0
        %9340 = vmatpush2.bf16.msra.mxu0 0
        %9341 = vmatprep.subr.bf16.mxu0 0
        %9342 = vmatpush2.bf16.msra.mxu0 0
        %9343 = vmatprep.subr.bf16.mxu0 0
        %9344 = vmatpush2.bf16.msra.mxu0 0
        %9345 = vmatprep.subr.bf16.mxu0 0
        %9346 = vmatpush2.bf16.msra.mxu0 0
        %9347 = vmatprep.subr.bf16.mxu0 0
        %9348 = vmatpush2.bf16.msra.mxu0 0
        %9349 = vmatprep.subr.bf16.mxu0 0
        %9350 = vmatpush2.bf16.msra.mxu0 0
        %9351 = vmatprep.subr.bf16.mxu0 0
        %9352 = vmatpush2.bf16.msra.mxu0 0
        %9353 = vmatprep.subr.bf16.mxu0 0
        %9354 = vmatpush2.bf16.msra.mxu0 0
        %9355 = vmatprep.mubr.bf16.mxu0 0
        %9356 = vmatmul.mubr.bf16.gmra.mxu0 %v9321
        %v9357 = vpop.f32.mrf.mxu0
        %v9358 = vadd.f32 0.0, %v9357
        %v9359 = vpop.f32.mrf.mxu0
        %v9360 = vadd.f32 0.0, %v9359
        %v9361 = vpop.f32.mrf.mxu0
        %v9362 = vpop.f32.mrf.mxu0
        %9363 = vdwg.mxu0
        %9364 = vmatprep.subr.bf16.mxu0 0
        %9365 = vmatpush1.bf16.msra.mxu0 0
        %9366 = vmatprep.subr.bf16.mxu0 0
        %9367 = vmatpush1.bf16.msra.mxu0 0
        %9368 = vmatprep.subr.bf16.mxu0 0
        %9369 = vmatpush1.bf16.msra.mxu0 0
        %9370 = vmatprep.subr.bf16.mxu0 0
        %9371 = vmatpush1.bf16.msra.mxu0 0
        %9372 = vmatprep.subr.bf16.mxu0 0
        %9373 = vmatpush1.bf16.msra.mxu0 0
        %9374 = vmatprep.subr.bf16.mxu0 0
        %9375 = vmatpush1.bf16.msra.mxu0 0
        %9376 = vmatprep.subr.bf16.mxu0 0
        %9377 = vmatpush1.bf16.msra.mxu0 0
        %9378 = vmatprep.subr.bf16.mxu0 0
        %9379 = vmatpush1.bf16.msra.mxu0 %v9316
        %9380 = vmatprep.subr.bf16.mxu0 0
        %9381 = vmatpush2.bf16.msra.mxu0 0
        %9382 = vmatprep.subr.bf16.mxu0 0
        %9383 = vmatpush2.bf16.msra.mxu0 0
        %9384 = vmatprep.subr.bf16.mxu0 0
        %9385 = vmatpush2.bf16.msra.mxu0 0
        %9386 = vmatprep.subr.bf16.mxu0 0
        %9387 = vmatpush2.bf16.msra.mxu0 0
        %9388 = vmatprep.subr.bf16.mxu0 0
        %9389 = vmatpush2.bf16.msra.mxu0 0
        %9390 = vmatprep.subr.bf16.mxu0 0
        %9391 = vmatpush2.bf16.msra.mxu0 0
        %9392 = vmatprep.subr.bf16.mxu0 0
        %9393 = vmatpush2.bf16.msra.mxu0 0
        %9394 = vmatprep.subr.bf16.mxu0 0
        %9395 = vmatpush2.bf16.msra.mxu0 0
        %9396 = vmatprep.mubr.bf16.mxu0 0
        %9397 = vmatmul.mubr.bf16.gmra.mxu0 %v9321
        %v9398 = vpop.f32.mrf.mxu0
        %v9399 = vadd.f32 0.0, %v9398
        %v9400 = vpop.f32.mrf.mxu0
        %v9401 = vpop.f32.mrf.mxu0
        %v9402 = vpop.f32.mrf.mxu0
        %9403 = vdwg.mxu0
        %v9404 = vadd.f32 %v9301, %v9358
        %v9405 = vadd.f32 %v9302, %v9360
        %v9406 = vadd.f32 %v9303, %v9399
        %s9407 = scalar_lea.vmem %s6, 28
        %v9408 = vld [vmem:[%s9407] sm:$0xf]
        %9409 = vrot.lane.b32.xlu0 %v8703, 79
        %v9410 = vpop.permute.xlu0 %9409
        %9411 = vrot.lane.b32.xlu0 %v8704, 79
        %v9412 = vpop.permute.xlu0 %9411
        %9413 = vrot.lane.b32.xlu0 %v8705, 79
        %v9414 = vpop.permute.xlu0 %9413
        %9415 = vrot.lane.b32.xlu0 %v8706, 79
        %v9416 = vpop.permute.xlu0 %9415
        %v9417 = vsel %vm1253, %v9410, %v9412
        %v9418 = vsel %vm1253, %v9412, %v9414
        %v9419 = vsel %vm1253, %v9414, %v9416
        %v9424 = vsel %vm1647, %v9408, 0
        %9426 = vmatprep.subr.bf16.mxu0 0
        %9427 = vmatpush1.bf16.msra.mxu0 0
        %9428 = vmatprep.subr.bf16.mxu0 0
        %9429 = vmatpush1.bf16.msra.mxu0 0
        %9430 = vmatprep.subr.bf16.mxu0 0
        %9431 = vmatpush1.bf16.msra.mxu0 0
        %9432 = vmatprep.subr.bf16.mxu0 0
        %9433 = vmatpush1.bf16.msra.mxu0 0
        %9434 = vmatprep.subr.bf16.mxu0 0
        %9435 = vmatpush1.bf16.msra.mxu0 0
        %9436 = vmatprep.subr.bf16.mxu0 0
        %9437 = vmatpush1.bf16.msra.mxu0 0
        %9438 = vmatprep.subr.bf16.mxu0 0
        %9439 = vmatpush1.bf16.msra.mxu0 0
        %9440 = vmatprep.subr.bf16.mxu0 %v9418
        %9441 = vmatpush1.bf16.msra.mxu0 %v9417
        %9442 = vmatprep.subr.bf16.mxu0 0
        %9443 = vmatpush2.bf16.msra.mxu0 0
        %9444 = vmatprep.subr.bf16.mxu0 0
        %9445 = vmatpush2.bf16.msra.mxu0 0
        %9446 = vmatprep.subr.bf16.mxu0 0
        %9447 = vmatpush2.bf16.msra.mxu0 0
        %9448 = vmatprep.subr.bf16.mxu0 0
        %9449 = vmatpush2.bf16.msra.mxu0 0
        %9450 = vmatprep.subr.bf16.mxu0 0
        %9451 = vmatpush2.bf16.msra.mxu0 0
        %9452 = vmatprep.subr.bf16.mxu0 0
        %9453 = vmatpush2.bf16.msra.mxu0 0
        %9454 = vmatprep.subr.bf16.mxu0 0
        %9455 = vmatpush2.bf16.msra.mxu0 0
        %9456 = vmatprep.subr.bf16.mxu0 0
        %9457 = vmatpush2.bf16.msra.mxu0 0
        %9458 = vmatprep.mubr.bf16.mxu0 0
        %9459 = vmatmul.mubr.bf16.gmra.mxu0 %v9424
        %v9460 = vpop.f32.mrf.mxu0
        %v9461 = vadd.f32 0.0, %v9460
        %v9462 = vpop.f32.mrf.mxu0
        %v9463 = vadd.f32 0.0, %v9462
        %v9464 = vpop.f32.mrf.mxu0
        %v9465 = vpop.f32.mrf.mxu0
        %9466 = vdwg.mxu0
        %9467 = vmatprep.subr.bf16.mxu0 0
        %9468 = vmatpush1.bf16.msra.mxu0 0
        %9469 = vmatprep.subr.bf16.mxu0 0
        %9470 = vmatpush1.bf16.msra.mxu0 0
        %9471 = vmatprep.subr.bf16.mxu0 0
        %9472 = vmatpush1.bf16.msra.mxu0 0
        %9473 = vmatprep.subr.bf16.mxu0 0
        %9474 = vmatpush1.bf16.msra.mxu0 0
        %9475 = vmatprep.subr.bf16.mxu0 0
        %9476 = vmatpush1.bf16.msra.mxu0 0
        %9477 = vmatprep.subr.bf16.mxu0 0
        %9478 = vmatpush1.bf16.msra.mxu0 0
        %9479 = vmatprep.subr.bf16.mxu0 0
        %9480 = vmatpush1.bf16.msra.mxu0 0
        %9481 = vmatprep.subr.bf16.mxu0 0
        %9482 = vmatpush1.bf16.msra.mxu0 %v9419
        %9483 = vmatprep.subr.bf16.mxu0 0
        %9484 = vmatpush2.bf16.msra.mxu0 0
        %9485 = vmatprep.subr.bf16.mxu0 0
        %9486 = vmatpush2.bf16.msra.mxu0 0
        %9487 = vmatprep.subr.bf16.mxu0 0
        %9488 = vmatpush2.bf16.msra.mxu0 0
        %9489 = vmatprep.subr.bf16.mxu0 0
        %9490 = vmatpush2.bf16.msra.mxu0 0
        %9491 = vmatprep.subr.bf16.mxu0 0
        %9492 = vmatpush2.bf16.msra.mxu0 0
        %9493 = vmatprep.subr.bf16.mxu0 0
        %9494 = vmatpush2.bf16.msra.mxu0 0
        %9495 = vmatprep.subr.bf16.mxu0 0
        %9496 = vmatpush2.bf16.msra.mxu0 0
        %9497 = vmatprep.subr.bf16.mxu0 0
        %9498 = vmatpush2.bf16.msra.mxu0 0
        %9499 = vmatprep.mubr.bf16.mxu0 0
        %9500 = vmatmul.mubr.bf16.gmra.mxu0 %v9424
        %v9501 = vpop.f32.mrf.mxu0
        %v9502 = vadd.f32 0.0, %v9501
        %v9503 = vpop.f32.mrf.mxu0
        %v9504 = vpop.f32.mrf.mxu0
        %v9505 = vpop.f32.mrf.mxu0
        %9506 = vdwg.mxu0
        %v9507 = vadd.f32 %v9404, %v9461
        %v9508 = vadd.f32 %v9405, %v9463
        %v9509 = vadd.f32 %v9406, %v9502
        %s9510 = scalar_lea.vmem %s6, 32
        %v9511 = vld [vmem:[%s9510] sm:$0xf]
        %9512 = vrot.lane.b32.xlu0 %v8703, 78
        %v9513 = vpop.permute.xlu0 %9512
        %9514 = vrot.lane.b32.xlu0 %v8704, 78
        %v9515 = vpop.permute.xlu0 %9514
        %9516 = vrot.lane.b32.xlu0 %v8705, 78
        %v9517 = vpop.permute.xlu0 %9516
        %9518 = vrot.lane.b32.xlu0 %v8706, 78
        %v9519 = vpop.permute.xlu0 %9518
        %v9520 = vsel %vm1375, %v9513, %v9515
        %v9521 = vsel %vm1375, %v9515, %v9517
        %v9522 = vsel %vm1375, %v9517, %v9519
        %v9527 = vsel %vm1647, %v9511, 0
        %9529 = vmatprep.subr.bf16.mxu0 0
        %9530 = vmatpush1.bf16.msra.mxu0 0
        %9531 = vmatprep.subr.bf16.mxu0 0
        %9532 = vmatpush1.bf16.msra.mxu0 0
        %9533 = vmatprep.subr.bf16.mxu0 0
        %9534 = vmatpush1.bf16.msra.mxu0 0
        %9535 = vmatprep.subr.bf16.mxu0 0
        %9536 = vmatpush1.bf16.msra.mxu0 0
        %9537 = vmatprep.subr.bf16.mxu0 0
        %9538 = vmatpush1.bf16.msra.mxu0 0
        %9539 = vmatprep.subr.bf16.mxu0 0
        %9540 = vmatpush1.bf16.msra.mxu0 0
        %9541 = vmatprep.subr.bf16.mxu0 0
        %9542 = vmatpush1.bf16.msra.mxu0 0
        %9543 = vmatprep.subr.bf16.mxu0 %v9521
        %9544 = vmatpush1.bf16.msra.mxu0 %v9520
        %9545 = vmatprep.subr.bf16.mxu0 0
        %9546 = vmatpush2.bf16.msra.mxu0 0
        %9547 = vmatprep.subr.bf16.mxu0 0
        %9548 = vmatpush2.bf16.msra.mxu0 0
        %9549 = vmatprep.subr.bf16.mxu0 0
        %9550 = vmatpush2.bf16.msra.mxu0 0
        %9551 = vmatprep.subr.bf16.mxu0 0
        %9552 = vmatpush2.bf16.msra.mxu0 0
        %9553 = vmatprep.subr.bf16.mxu0 0
        %9554 = vmatpush2.bf16.msra.mxu0 0
        %9555 = vmatprep.subr.bf16.mxu0 0
        %9556 = vmatpush2.bf16.msra.mxu0 0
        %9557 = vmatprep.subr.bf16.mxu0 0
        %9558 = vmatpush2.bf16.msra.mxu0 0
        %9559 = vmatprep.subr.bf16.mxu0 0
        %9560 = vmatpush2.bf16.msra.mxu0 0
        %9561 = vmatprep.mubr.bf16.mxu0 0
        %9562 = vmatmul.mubr.bf16.gmra.mxu0 %v9527
        %v9563 = vpop.f32.mrf.mxu0
        %v9564 = vadd.f32 0.0, %v9563
        %v9565 = vpop.f32.mrf.mxu0
        %v9566 = vadd.f32 0.0, %v9565
        %v9567 = vpop.f32.mrf.mxu0
        %v9568 = vpop.f32.mrf.mxu0
        %9569 = vdwg.mxu0
        %9570 = vmatprep.subr.bf16.mxu0 0
        %9571 = vmatpush1.bf16.msra.mxu0 0
        %9572 = vmatprep.subr.bf16.mxu0 0
        %9573 = vmatpush1.bf16.msra.mxu0 0
        %9574 = vmatprep.subr.bf16.mxu0 0
        %9575 = vmatpush1.bf16.msra.mxu0 0
        %9576 = vmatprep.subr.bf16.mxu0 0
        %9577 = vmatpush1.bf16.msra.mxu0 0
        %9578 = vmatprep.subr.bf16.mxu0 0
        %9579 = vmatpush1.bf16.msra.mxu0 0
        %9580 = vmatprep.subr.bf16.mxu0 0
        %9581 = vmatpush1.bf16.msra.mxu0 0
        %9582 = vmatprep.subr.bf16.mxu0 0
        %9583 = vmatpush1.bf16.msra.mxu0 0
        %9584 = vmatprep.subr.bf16.mxu0 0
        %9585 = vmatpush1.bf16.msra.mxu0 %v9522
        %9586 = vmatprep.subr.bf16.mxu0 0
        %9587 = vmatpush2.bf16.msra.mxu0 0
        %9588 = vmatprep.subr.bf16.mxu0 0
        %9589 = vmatpush2.bf16.msra.mxu0 0
        %9590 = vmatprep.subr.bf16.mxu0 0
        %9591 = vmatpush2.bf16.msra.mxu0 0
        %9592 = vmatprep.subr.bf16.mxu0 0
        %9593 = vmatpush2.bf16.msra.mxu0 0
        %9594 = vmatprep.subr.bf16.mxu0 0
        %9595 = vmatpush2.bf16.msra.mxu0 0
        %9596 = vmatprep.subr.bf16.mxu0 0
        %9597 = vmatpush2.bf16.msra.mxu0 0
        %9598 = vmatprep.subr.bf16.mxu0 0
        %9599 = vmatpush2.bf16.msra.mxu0 0
        %9600 = vmatprep.subr.bf16.mxu0 0
        %9601 = vmatpush2.bf16.msra.mxu0 0
        %9602 = vmatprep.mubr.bf16.mxu0 0
        %9603 = vmatmul.mubr.bf16.gmra.mxu0 %v9527
        %v9604 = vpop.f32.mrf.mxu0
        %v9605 = vadd.f32 0.0, %v9604
        %v9606 = vpop.f32.mrf.mxu0
        %v9607 = vpop.f32.mrf.mxu0
        %v9608 = vpop.f32.mrf.mxu0
        %9609 = vdwg.mxu0
        %v9610 = vadd.f32 %v9507, %v9564
        %v9611 = vadd.f32 %v9508, %v9566
        %v9612 = vadd.f32 %v9509, %v9605
        %s9613 = scalar_lea.vmem %s7, 320
        %v9614 = vld [vmem:[%s9613] sm:$0xff]
        %9616 = vset.pattern.permute.xlu0 0
        %9617 = vperm.xlu0 %9616, %v9614
        %v9618 = vpop.permute.xlu0 %9617
        %v9620 = vmul.f32 %v9610, %v9618
        %v9621 = vmul.f32 %v9611, %v9618
        %v9622 = vmul.f32 %v9612, %v9618
        %s9623 = scalar_lea.vmem %s8, 320
        %v9624 = vld [vmem:[%s9623] sm:$0xff]
        %9626 = vset.pattern.permute.xlu0 0
        %9627 = vperm.xlu0 %9626, %v9624
        %v9628 = vpop.permute.xlu0 %9627
        %v9630 = vadd.f32 %v9620, %v9628
        %v9631 = vadd.f32 %v9621, %v9628
        %v9632 = vadd.f32 %v9622, %v9628
        %v9633 = vxor.u32 %v9630, 2147483648
        %v9634 = vxor.u32 %v9631, 2147483648
        %v9635 = vxor.u32 %v9632, 2147483648
        %v9636 = vmul.f32 %v9633, 1.442695
        %v9637 = vpow.pop %v9636
        %v9638 = vmul.f32 %v9634, 1.442695
        %v9639 = vpow.pop %v9638
        %v9640 = vmul.f32 %v9635, 1.442695
        %v9641 = vpow.pop %v9640
        %v9642 = vadd.f32 %v9637, 1.0
        %v9643 = vadd.f32 %v9639, 1.0
        %v9644 = vadd.f32 %v9641, 1.0
        %v9645 = vrcp.pop %v9642
        %v9646 = vmul.f32 1.0, %v9645
        %v9647 = vrcp.pop %v9643
        %v9648 = vmul.f32 1.0, %v9647
        %v9649 = vrcp.pop %v9644
        %v9650 = vmul.f32 1.0, %v9649
        %9651 = vst [vmem:[%s352] sm:$0xff] %v9646
        %9652 = vst [vmem:[%s352 + $0x8] sm:$0xff] %v9648
        %9653 = vst [vmem:[%s352 + $0x10] sm:$0xff] %v9650
        %s9654 = sand.u32 %s247, 1
        %s9655 = scalar_lea.sflag [#allocation5], %s9654
        %s9656 = sand.u32 %s247, 1
        %s9657 = smul.addr %s9656, 24
        %s9658 = scalar_lea.vmem [#allocation4], %s9657
        // Predicated region
        $region61: #{tpu_custom_call.1} parent=59 // pred_check
          %p9659 = pneg %p257
        $region62: #{tpu_custom_call.1} parent=59 // pred_check_branch
          %9661 = sbr.rel (%p9659) target = $region64
        $region63: #{tpu_custom_call.1} parent=59 // pred_region
          %s9663 = ssub.s32 384, 384
          %9664 = vsyncadd %s9655, %s9663
          %s9665 = smul.addr %s24, 3
          %s9666 = smul.addr %s9665, 128
          %s9667 = scalar_lea.hbm %s10, %s9666
          %s9669 = sshll.u32 %s9658, 4
          %s9670 = int_to_ptr.vmem [resolvable:$true] %s9669
          %9672 = dma.vmem_to_hbm [thread:$0]  %s9670, 384, %s9667, %s9655
        $region64: #{tpu_custom_call.1} parent=59 // pred_fallthru
          _
      $region60: #{tpu_custom_call.1} parent=5 // pred_fallthru
        _
      %p9673 = scmp.le.s32.totalorder 2, %s19
      // Predicated region
      $region65: #{tpu_custom_call.1} parent=5 // pred_check
        %p9674 = pneg %p9673
      $region66: #{tpu_custom_call.1} parent=5 // pred_check_branch
        %9676 = sbr.rel (%p9674) target = $region68
      $region67: #{tpu_custom_call.1} parent=5 // pred_region
        %s9677 = ssub.s32 %s19, 2
        // Predicated region
        $region69: #{tpu_custom_call.1} parent=67 // pred_check
          %p9678 = pneg %p263
        $region70: #{tpu_custom_call.1} parent=67 // pred_check_branch
          %9680 = sbr.rel (%p9678) target = $region72
        $region71: #{tpu_custom_call.1} parent=67 // pred_region
          %s9681 = sand.u32 %s248, 1
          %s9682 = scalar_lea.sflag [#allocation5], %s9681
          %s9683 = sand.u32 %s248, 1
          %s9684 = smul.addr %s9683, 24
          %s9685 = scalar_lea.vmem [#allocation4], %s9684
          %9686 = dma.done %s9682, 384
        $region72: #{tpu_custom_call.1} parent=67 // pred_fallthru
          _
      $region68: #{tpu_custom_call.1} parent=5 // pred_fallthru
        _
    $region6: #{tpu_custom_call.1} parent=1 // loop_footer
      %s23 = sadd.s32 1, %s19
    $region7: #{tpu_custom_call.1} parent=1 // loop_footer_branch
      %18 = sbr.rel target = $region3
    $region8: #{tpu_custom_call.1} parent=1 // loop_exit
      _
    %9687 = vsyncpa [#allocation5], 1
    %s9688 = scalar_lea.sflag [#allocation5], 1
    %9689 = vsyncpa %s9688, 1

</llo_original>
